<compile_context>
chip_gen: v6e
topology: v6e:2x2x1
jax: 0.10.0
libtpu: 0.0.40
codegen_flags: <defaults>
</compile_context>

<pallas_src>
import functools

import numpy as np
import jax
import jax.numpy as jnp
from jax.experimental import pallas as pl
from jax.experimental.pallas import tpu as pltpu

SCALEUP = 0.7


# ---------------------------------------------------------------------------
# Static configuration helpers
# ---------------------------------------------------------------------------
def _round_up(v, m):
    return (v + m - 1) // m * m


def _channel_sizes(input_size, num_filters):
    c1 = num_filters
    c2 = int(num_filters * (1 + SCALEUP))
    c3 = int(num_filters * (1 + SCALEUP * 2))
    c3b = int(num_filters * (1 + SCALEUP * 3))
    c4 = int(num_filters * (1 + SCALEUP * 4))
    c4b = c4 + input_size
    return c1, c2, c3, c3b, c4, c4b


def _make_config(input_size, num_filters, kernel_size, L, dilation):
    c1, c2, c3, c3b, c4, c4b = _channel_sizes(input_size, num_filters)
    pool_pad = dilation // 2
    max_pad = max((kernel_size - 1) // 2,                 # conv1 / convOut (dil=1)
                  dilation * (kernel_size - 1) // 2,      # dilated convs
                  pool_pad)
    assert max_pad < L, "reflect padding requires pad < sequence length"
    return dict(
        C_PAD=_round_up(max(c4b, input_size, 128), 128),  # lane-dense channel slab
        L=L,
        L_pad=_round_up(L, 8),                            # sublane-aligned rows
        P=max(_round_up(max_pad, 8), 8),                  # halo rows per side
        c4=c4,
        pool_k=dilation,
        pool_pad=pool_pad,
    )


# ---------------------------------------------------------------------------
# The single fused kernel: conv1 .. convOut entirely in VMEM.
# Activation layout: (rows = sequence + halo, lanes = channels, zero-padded).
# ---------------------------------------------------------------------------
def _cnn_fused_kernel(x_ref, inv_ref, rev_ref,
                      w1, b1, w1b, b1b, w2, b2, w3, b3, w3b, b3b, w4, b4,
                      w4bh, w4bx, b4b, wo, bo,
                      out_ref, buf_a, buf_b, xwx,
                      *, L, L_pad, P, Cin, K, dil, pool_k, pool_pad, final_act):
    C_PAD = buf_a.shape[1]
    inv = inv_ref[...]          # (L_pad, C_PAD) 1/pool_count, lane-broadcast on host
    rev = rev_ref[...]          # (P, P) antidiagonal row-reversal matrix

    # Robustness: zero both ping-pong buffers once per sequence so halo / tail
    # rows can never inject NaN/Inf whatever the (K, dilation, L) config is.
    buf_a[...] = jnp.zeros(buf_a.shape, jnp.float32)
    buf_b[...] = jnp.zeros(buf_b.shape, jnp.float32)

    # Stage the compact (L_pad, Cin) input into the 128-lane slab; lanes >= Cin
    # stay zero (no host-side 128-lane padding / inflated HBM traffic).
    buf_a[P:P + L_pad, 0:Cin] = x_ref[...]

    # conv4b's  x @ W_x  term, computed while the staged input is still live
    # (full-width contraction; avoids keeping x around until conv4b).
    xwx[...] = jnp.dot(buf_a[P:P + L_pad, :], w4bx[...],
                       preferred_element_type=jnp.float32)

    def reflect_fill(src):
        # Fill the full P-row halo on each side with the reflected sequence via
        # ONE antidiagonal matmul + ONE slab store per side (instead of ~2*p
        # single-row masked stores).  Rows reflected further out than this
        # conv's pad are never read, so one (P,P) matrix serves every conv.
        src[0:P, :] = jnp.dot(rev, src[P + 1:2 * P + 1, :],
                              preferred_element_type=jnp.float32)
        src[P + L:P + L + P, :] = jnp.dot(rev, src[P + L - 1 - P:P + L - 1, :],
                                          preferred_element_type=jnp.float32)

    def conv(src, dst, dst_off, w_ref, b_ref, k, d, act):
        """'same' conv, stride 1, reflect padding, dilation d: k shifted reads
        of the VMEM-resident activation feeding k accumulated MXU matmuls."""
        p = d * (k - 1) // 2
        if p > 0:
            reflect_fill(src)
        acc = jnp.dot(src[P - p:P - p + L_pad, :], w_ref[0],
                      preferred_element_type=jnp.float32)
        for j in range(1, k):
            off = P - p + j * d
            acc = acc + jnp.dot(src[off:off + L_pad, :], w_ref[j],
                                preferred_element_type=jnp.float32)
        y = acc + b_ref[...]
        if act == "relu":
            y = jnp.maximum(y, 0.0)
        elif act == "sigmoid":
            y = jax.nn.sigmoid(y)
        dst[dst_off:dst_off + L_pad, :] = y

    def pool_relu(src, dst):
        """AvgPool1d(kernel=pool_k, stride=1, pad=pool_pad,
        count_include_pad=False) followed by ReLU (zero rows in the halo)."""
        right_z = pool_k - 1 - pool_pad
        if pool_pad > 0:
            src[P - pool_pad:P, :] = jnp.zeros((pool_pad, C_PAD), jnp.float32)
        if right_z > 0:
            src[P + L:P + L + right_z, :] = jnp.zeros((right_z, C_PAD), jnp.float32)
        acc = src[P - pool_pad:P - pool_pad + L_pad, :]
        for j in range(1, pool_k):
            off = P - pool_pad + j
            acc = acc + src[off:off + L_pad, :]
        dst[P:P + L_pad, :] = jnp.maximum(acc * inv, 0.0)

    conv(buf_a, buf_b, P, w1, b1, K, 1, "relu")           # conv1 + relu
    conv(buf_b, buf_a, P, w1b, b1b, 1, 1, "none")         # conv1b
    pool_relu(buf_a, buf_b)                               # pool + relu
    conv(buf_b, buf_a, P, w2, b2, K, dil, "none")         # conv2
    pool_relu(buf_a, buf_b)
    conv(buf_b, buf_a, P, w3, b3, K, dil, "none")         # conv3
    pool_relu(buf_a, buf_b)
    conv(buf_b, buf_a, P, w3b, b3b, K, dil, "none")       # conv3b
    pool_relu(buf_a, buf_b)
    conv(buf_b, buf_a, P, w4, b4, K, dil, "relu")         # conv4 + relu

    # conv4b: 1x1 conv over cat(conv4_out, x) == split matmul (no concat)
    y = jnp.dot(buf_a[P:P + L_pad, :], w4bh[...], preferred_element_type=jnp.float32)
    buf_b[P:P + L_pad, :] = jnp.maximum(y + xwx[...] + b4b[...], 0.0)

    # convOut (+ sigmoid) written straight into the lane-dense output slab
    conv(buf_b, out_ref, 0, wo, bo, K, 1, final_act)


# ---------------------------------------------------------------------------
# One-time parameter re-layout (hoisted out of the traced forward).
# ---------------------------------------------------------------------------
def prepare_params(params, input_size, cfg):
    C_PAD, L, L_pad, P = cfg["C_PAD"], cfg["L"], cfg["L_pad"], cfg["P"]
    c4, pool_k, pool_pad = cfg["c4"], cfg["pool_k"], cfg["pool_pad"]

    def pack_w(w):                                        # (Cout,Cin,K) -> (K,128,128)
        cout, cin, k = w.shape
        wt = jnp.transpose(w, (2, 1, 0)).astype(jnp.float32)
        return jnp.zeros((k, C_PAD, C_PAD), jnp.float32).at[:, :cin, :cout].set(wt)

    def pack_b(b):                                        # (Cout,) -> (1,128)
        return jnp.zeros((1, C_PAD), jnp.float32).at[0, :b.shape[0]].set(
            b.astype(jnp.float32))

    def pack_mat(m):                                      # (Cin,Cout) -> (128,128)
        cin, cout = m.shape
        return jnp.zeros((C_PAD, C_PAD), jnp.float32).at[:cin, :cout].set(
            m.astype(jnp.float32))

    w4b = params["conv4b_w"][:, :, 0]                     # (c4b, c4 + input_size)
    ops = [
        pack_w(params["conv1_w"]),  pack_b(params["conv1_b"]),
        pack_w(params["conv1b_w"]), pack_b(params["conv1b_b"]),
        pack_w(params["conv2_w"]),  pack_b(params["conv2_b"]),
        pack_w(params["conv3_w"]),  pack_b(params["conv3_b"]),
        pack_w(params["conv3b_w"]), pack_b(params["conv3b_b"]),
        pack_w(params["conv4_w"]),  pack_b(params["conv4_b"]),
        pack_mat(jnp.transpose(w4b[:, :c4])),             # W_h : conv4_out channels
        pack_mat(jnp.transpose(w4b[:, c4:])),             # W_x : original x channels
        pack_b(params["conv4b_b"]),
        pack_w(params["convOut_w"]), pack_b(params["convOut_b"]),
    ]

    # 1/count for AvgPool1d(count_include_pad=False), lane-broadcast on host.
    t = np.arange(L_pad)
    cnt = (np.minimum(t - pool_pad + pool_k - 1, L - 1)
           - np.maximum(t - pool_pad, 0) + 1)
    inv_col = np.where(t < L, 1.0 / np.maximum(cnt, 1), 0.0).astype(np.float32)
    inv = jnp.asarray(np.broadcast_to(inv_col[:, None], (L_pad, C_PAD)).copy())

    # (P,P) antidiagonal matrix: row reversal used by the reflect halo fill.
    rev = jnp.asarray(np.eye(P, dtype=np.float32)[::-1].copy())
    return ops, inv, rev


# ---------------------------------------------------------------------------
# Forward builder: one pallas_call per batch (grid over batch), jitted wrapper.
# ---------------------------------------------------------------------------
def make_forward(params, input_size, num_filters, kernel_size, L,
                 dilation=5, output_type="sigmoid"):
    cfg = _make_config(input_size, num_filters, kernel_size, L, dilation)
    C_PAD, L_pad, P = cfg["C_PAD"], cfg["L_pad"], cfg["P"]
    n_rows = 2 * P + L_pad

    ops, inv, rev = prepare_params(params, input_size, cfg)

    kernel = functools.partial(
        _cnn_fused_kernel,
        L=L, L_pad=L_pad, P=P, Cin=input_size, K=kernel_size, dil=dilation,
        pool_k=cfg["pool_k"], pool_pad=cfg["pool_pad"],
        final_act="sigmoid" if output_type == "sigmoid" else "none")

    def _const_spec(shape):
        nd = len(shape)
        if nd == 2:
            idx = lambda b: (0, 0)
        else:
            idx = lambda b: (0, 0, 0)
        return pl.BlockSpec(tuple(shape), idx)

    def _build(B):
        # Weights / inv / rev use constant block indices -> DMA'd once and kept
        # VMEM-resident across the whole batch grid.
        in_specs = ([pl.BlockSpec((None, L_pad, input_size), lambda b: (b, 0, 0)),
                     _const_spec(inv.shape),
                     _const_spec(rev.shape)]
                    + [_const_spec(op.shape) for op in ops])
        out_specs = pl.BlockSpec((None, L_pad, C_PAD), lambda b: (b, 0, 0))

        weight_bytes = int(sum(int(np.prod(o.shape)) for o in ops)) * 4
        scratch_bytes = (2 * n_rows + L_pad) * C_PAD * 4
        io_bytes = (2 * (L_pad * input_size + L_pad * C_PAD) * 4
                    + int(np.prod(inv.shape)) * 4 + P * P * 4)
        vmem_limit = int(min(max(weight_bytes + scratch_bytes + io_bytes + (4 << 20),
                                 16 << 20), 64 << 20))

        return pl.pallas_call(
            kernel,
            out_shape=jax.ShapeDtypeStruct((B, L_pad, C_PAD), jnp.float32),
            grid=(B,),
            in_specs=in_specs,
            out_specs=out_specs,
            scratch_shapes=[pltpu.VMEM((n_rows, C_PAD), jnp.float32),
                            pltpu.VMEM((n_rows, C_PAD), jnp.float32),
                            pltpu.VMEM((L_pad, C_PAD), jnp.float32)],
            compiler_params=pltpu.CompilerParams(
                dimension_semantics=("parallel",),
                vmem_limit_bytes=vmem_limit),
        )

    @jax.jit
    def _forward_batched(xb, inv_a, rev_a, *weight_ops):
        # xb: (B, C, L)  ->  (B, 1, L)
        B = xb.shape[0]
        x_lc = jnp.transpose(xb, (0, 2, 1)).astype(jnp.float32)     # (B, L, Cin)
        x_pad = jnp.pad(x_lc, ((0, 0), (0, L_pad - L), (0, 0)))     # rows only
        slab = _build(B)(x_pad, inv_a, rev_a, *weight_ops)          # (B, L_pad, C_PAD)
        return jnp.transpose(slab[:, :L, 0:1], (0, 2, 1))           # (B, 1, L)

    def forward(x):
        # x: unbatched PyTorch (C, L) layout -> (1, L), as in CNN.forward
        return _forward_batched(x[None], inv, rev, *ops)[0]

    def forward_batch(xb):
        # xb: (B, C, L) -> (B, 1, L): B independent sequences, one pallas_call
        return _forward_batched(xb, inv, rev, *ops)

    return forward, forward_batch


# ---------------------------------------------------------------------------
# Deterministic parameter init (PyTorch Conv1d default: U(-1/sqrt(fan_in), ..)).
# ---------------------------------------------------------------------------
def init_params(key, input_size, num_filters, kernel_size):
    c1, c2, c3, c3b, c4, c4b = _channel_sizes(input_size, num_filters)

    def conv_init(kk, cout, cin, ksize):
        kw, kb = jax.random.split(kk)
        bound = 1.0 / float(cin * ksize) ** 0.5
        w = jax.random.uniform(kw, (cout, cin, ksize), jnp.float32, -bound, bound)
        b = jax.random.uniform(kb, (cout,), jnp.float32, -bound, bound)
        return w, b

    keys = jax.random.split(key, 8)
    p = {}
    p["conv1_w"], p["conv1_b"] = conv_init(keys[0], c1, input_size, kernel_size)
    p["conv1b_w"], p["conv1b_b"] = conv_init(keys[1], c1, c1, 1)
    p["conv2_w"], p["conv2_b"] = conv_init(keys[2], c2, c1, kernel_size)
    p["conv3_w"], p["conv3_b"] = conv_init(keys[3], c3, c2, kernel_size)
    p["conv3b_w"], p["conv3b_b"] = conv_init(keys[4], c3b, c3, kernel_size)
    p["conv4_w"], p["conv4_b"] = conv_init(keys[5], c4, c3b, kernel_size)
    p["conv4b_w"], p["conv4b_b"] = conv_init(keys[6], c4b, c4b, 1)
    p["convOut_w"], p["convOut_b"] = conv_init(keys[7], 1, c4b, kernel_size)
    return p
    # note: fit()/predict() training machinery is host-side code, not kernel work.


# ---------------------------------------------------------------------------
# Independent NumPy float64 reference (mirrors CNN.forward exactly).
# ---------------------------------------------------------------------------
def reference_forward_np(x, params, kernel_size, dilation=5):
    xf = np.asarray(x, np.float64)

    def conv1d(h, w, b, dil):
        w = np.asarray(w, np.float64)
        b = np.asarray(b, np.float64)
        cout, cin, k = w.shape
        n = h.shape[1]
        p = dil * (k - 1) // 2
        hp = np.pad(h, ((0, 0), (p, p)), mode="reflect") if p > 0 else h
        out = np.zeros((cout, n), np.float64)
        for j in range(k):
            out += w[:, :, j] @ hp[:, j * dil:j * dil + n]
        return out + b[:, None]

    def avgpool(h, k, pad):
        n = h.shape[1]
        hp = np.pad(h, ((0, 0), (pad, pad)), mode="constant")
        num = np.zeros_like(h)
        for j in range(k):
            num += hp[:, j:j + n]
        t = np.arange(n)
        cnt = np.minimum(t - pad + k - 1, n - 1) - np.maximum(t - pad, 0) + 1
        return num / cnt[None, :]

    relu = lambda a: np.maximum(a, 0.0)
    pk, pp = dilation, dilation // 2

    out = relu(conv1d(xf, params["conv1_w"], params["conv1_b"], 1))
    out = relu(avgpool(conv1d(out, params["conv1b_w"], params["conv1b_b"], 1), pk, pp))
    out = relu(avgpool(conv1d(out, params["conv2_w"], params["conv2_b"], dilation), pk, pp))
    out = relu(avgpool(conv1d(out, params["conv3_w"], params["conv3_b"], dilation), pk, pp))
    out = relu(avgpool(conv1d(out, params["conv3b_w"], params["conv3b_b"], dilation), pk, pp))
    out = relu(conv1d(out, params["conv4_w"], params["conv4_b"], dilation))
    out = np.concatenate([out, xf], axis=0)
    out = relu(conv1d(out, params["conv4b_w"], params["conv4b_b"], 1))
    out = conv1d(out, params["convOut_w"], params["convOut_b"], 1)
    return 1.0 / (1.0 + np.exp(-out))


if __name__ == "__main__":
    # Module defaults: kernel_size=7, dilation=5; small nf / L for the test.
    input_size, num_filters, kernel_size = 4, 8, 7
    L = 100                                # sequence length (fit() uses batch as sequence)

    key = jax.random.PRNGKey(0)
    kx, kx2, kp = jax.random.split(key, 3)
    x = jax.random.normal(kx, (input_size, L), jnp.float32)     # unbatched (C, L)
    x2 = jax.random.normal(kx2, (input_size, L), jnp.float32)
    params = init_params(kp, input_size, num_filters, kernel_size)

    forward, forward_batch = make_forward(params, input_size, num_filters,
                                          kernel_size, L)

    # single sequence (matches CNN.forward semantics)
    out = jax.block_until_ready(forward(x))
    assert out.shape == (1, L), out.shape
    assert bool(jnp.all(jnp.isfinite(out)))
    assert bool(jnp.all((out >= 0.0) & (out <= 1.0)))           # sigmoid range

    ref = reference_forward_np(x, params, kernel_size, dilation=5)
    err = float(np.max(np.abs(np.asarray(out, np.float64) - ref)))
    assert err < 1e-2, err

    # batched path: 2 sequences in one pallas_call (parallel batch grid)
    xb = jnp.stack([x, x2], axis=0)
    outb = jax.block_until_ready(forward_batch(xb))
    assert outb.shape == (2, 1, L), outb.shape
    ref2 = reference_forward_np(x2, params, kernel_size, dilation=5)
    errb = max(float(np.max(np.abs(np.asarray(outb[0], np.float64) - ref))),
               float(np.max(np.abs(np.asarray(outb[1], np.float64) - ref2))))
    assert errb < 1e-2, errb

    print("KERNEL_OK")
</pallas_src>

<mosaic_0001>
module attributes {stable_mosaic.version = 11 : i64} {
  func.func @_cnn_fused_kernel(%arg0: i32, %arg1: memref<1x104x4xf32, #tpu.memory_space<vmem>>, %arg2: memref<104x128xf32, #tpu.memory_space<vmem>>, %arg3: memref<16x16xf32, #tpu.memory_space<vmem>>, %arg4: memref<7x128x128xf32, #tpu.memory_space<vmem>>, %arg5: memref<1x128xf32, #tpu.memory_space<vmem>>, %arg6: memref<1x128x128xf32, #tpu.memory_space<vmem>>, %arg7: memref<1x128xf32, #tpu.memory_space<vmem>>, %arg8: memref<7x128x128xf32, #tpu.memory_space<vmem>>, %arg9: memref<1x128xf32, #tpu.memory_space<vmem>>, %arg10: memref<7x128x128xf32, #tpu.memory_space<vmem>>, %arg11: memref<1x128xf32, #tpu.memory_space<vmem>>, %arg12: memref<7x128x128xf32, #tpu.memory_space<vmem>>, %arg13: memref<1x128xf32, #tpu.memory_space<vmem>>, %arg14: memref<7x128x128xf32, #tpu.memory_space<vmem>>, %arg15: memref<1x128xf32, #tpu.memory_space<vmem>>, %arg16: memref<128x128xf32, #tpu.memory_space<vmem>>, %arg17: memref<128x128xf32, #tpu.memory_space<vmem>>, %arg18: memref<1x128xf32, #tpu.memory_space<vmem>>, %arg19: memref<7x128x128xf32, #tpu.memory_space<vmem>>, %arg20: memref<1x128xf32, #tpu.memory_space<vmem>>, %arg21: memref<1x104x128xf32, #tpu.memory_space<vmem>>, %arg22: memref<136x128xf32, #tpu.memory_space<vmem>>, %arg23: memref<136x128xf32, #tpu.memory_space<vmem>>, %arg24: memref<104x128xf32, #tpu.memory_space<vmem>>) attributes {dimension_semantics = [#tpu.dimension_semantics<parallel>], iteration_bounds = array<i64: 1>, scalar_prefetch = 0 : i64, scratch_operands = 3 : i64, tpu.core_type = #tpu.core_type<tc>, window_params = [{transform_indices = @transform_0, window_bounds = array<i64: 1, 104, 4>}, {pipeline_mode = #tpu.pipeline_mode<synchronous>, transform_indices = @transform_1, window_bounds = array<i64: 104, 128>}, {pipeline_mode = #tpu.pipeline_mode<synchronous>, transform_indices = @transform_2, window_bounds = array<i64: 16, 16>}, {pipeline_mode = #tpu.pipeline_mode<synchronous>, transform_indices = @transform_3, window_bounds = array<i64: 7, 128, 128>}, {pipeline_mode = #tpu.pipeline_mode<synchronous>, transform_indices = @transform_4, window_bounds = array<i64: 1, 128>}, {pipeline_mode = #tpu.pipeline_mode<synchronous>, transform_indices = @transform_5, window_bounds = array<i64: 1, 128, 128>}, {pipeline_mode = #tpu.pipeline_mode<synchronous>, transform_indices = @transform_6, window_bounds = array<i64: 1, 128>}, {pipeline_mode = #tpu.pipeline_mode<synchronous>, transform_indices = @transform_7, window_bounds = array<i64: 7, 128, 128>}, {pipeline_mode = #tpu.pipeline_mode<synchronous>, transform_indices = @transform_8, window_bounds = array<i64: 1, 128>}, {pipeline_mode = #tpu.pipeline_mode<synchronous>, transform_indices = @transform_9, window_bounds = array<i64: 7, 128, 128>}, {pipeline_mode = #tpu.pipeline_mode<synchronous>, transform_indices = @transform_10, window_bounds = array<i64: 1, 128>}, {pipeline_mode = #tpu.pipeline_mode<synchronous>, transform_indices = @transform_11, window_bounds = array<i64: 7, 128, 128>}, {pipeline_mode = #tpu.pipeline_mode<synchronous>, transform_indices = @transform_12, window_bounds = array<i64: 1, 128>}, {pipeline_mode = #tpu.pipeline_mode<synchronous>, transform_indices = @transform_13, window_bounds = array<i64: 7, 128, 128>}, {pipeline_mode = #tpu.pipeline_mode<synchronous>, transform_indices = @transform_14, window_bounds = array<i64: 1, 128>}, {pipeline_mode = #tpu.pipeline_mode<synchronous>, transform_indices = @transform_15, window_bounds = array<i64: 128, 128>}, {pipeline_mode = #tpu.pipeline_mode<synchronous>, transform_indices = @transform_16, window_bounds = array<i64: 128, 128>}, {pipeline_mode = #tpu.pipeline_mode<synchronous>, transform_indices = @transform_17, window_bounds = array<i64: 1, 128>}, {pipeline_mode = #tpu.pipeline_mode<synchronous>, transform_indices = @transform_18, window_bounds = array<i64: 7, 128, 128>}, {pipeline_mode = #tpu.pipeline_mode<synchronous>, transform_indices = @transform_19, window_bounds = array<i64: 1, 128>}, {transform_indices = @transform_20, window_bounds = array<i64: 1, 104, 128>}]} {
    %c0 = arith.constant 0 : index
    %c0_0 = arith.constant 0 : index
    %0 = vector.load %arg2[%c0, %c0_0] : memref<104x128xf32, #tpu.memory_space<vmem>>, vector<104x128xf32>
    %c0_1 = arith.constant 0 : index
    %c0_2 = arith.constant 0 : index
    %1 = vector.load %arg3[%c0_1, %c0_2] : memref<16x16xf32, #tpu.memory_space<vmem>>, vector<16x16xf32>
    %cst = arith.constant 0.000000e+00 : f32
    %2 = vector.broadcast %cst : f32 to vector<136x128xf32>
    %c0_3 = arith.constant 0 : index
    %c0_4 = arith.constant 0 : index
    %3 = vector.load %arg22[%c0_3, %c0_4] : memref<136x128xf32, #tpu.memory_space<vmem>>, vector<136x128xf32>
    tpu.vector_store %arg22[%c0_3, %c0_4], %2 {strides = array<i32>} : memref<136x128xf32, #tpu.memory_space<vmem>>, vector<136x128xf32>,
    %cst_5 = arith.constant 0.000000e+00 : f32
    %4 = vector.broadcast %cst_5 : f32 to vector<136x128xf32>
    %c0_6 = arith.constant 0 : index
    %c0_7 = arith.constant 0 : index
    %5 = vector.load %arg23[%c0_6, %c0_7] : memref<136x128xf32, #tpu.memory_space<vmem>>, vector<136x128xf32>
    tpu.vector_store %arg23[%c0_6, %c0_7], %4 {strides = array<i32>} : memref<136x128xf32, #tpu.memory_space<vmem>>, vector<136x128xf32>,
    %c0_8 = arith.constant 0 : index
    %c0_9 = arith.constant 0 : index
    %c0_10 = arith.constant 0 : index
    %6 = vector.load %arg1[%c0_8, %c0_9, %c0_10] : memref<1x104x4xf32, #tpu.memory_space<vmem>>, vector<1x104x4xf32>
    %7 = vector.shape_cast %6 : vector<1x104x4xf32> to vector<104x4xf32>
    %c16 = arith.constant 16 : index
    %c0_11 = arith.constant 0 : index
    %8 = vector.load %arg22[%c16, %c0_11] : memref<136x128xf32, #tpu.memory_space<vmem>>, vector<104x4xf32>
    tpu.vector_store %arg22[%c16, %c0_11], %7 {strides = array<i32>} : memref<136x128xf32, #tpu.memory_space<vmem>>, vector<104x4xf32>,
    %c16_12 = arith.constant 16 : index
    %c0_13 = arith.constant 0 : index
    %9 = vector.load %arg22[%c16_12, %c0_13] : memref<136x128xf32, #tpu.memory_space<vmem>>, vector<104x128xf32>
    %c0_14 = arith.constant 0 : index
    %c0_15 = arith.constant 0 : index
    %10 = vector.load %arg17[%c0_14, %c0_15] : memref<128x128xf32, #tpu.memory_space<vmem>>, vector<128x128xf32>
    %cst_16 = arith.constant dense<0.000000e+00> : vector<104x128xf32>
    %11 = tpu.matmul %9, %10, %cst_16 {dimension_numbers = #tpu.dot_dimension_numbers<[1], [0], [0], [1], [0, 0, 1, 1], [], []>} : vector<104x128xf32>, vector<128x128xf32>, vector<104x128xf32> -> vector<104x128xf32>
    %c0_17 = arith.constant 0 : index
    %c0_18 = arith.constant 0 : index
    %12 = vector.load %arg24[%c0_17, %c0_18] : memref<104x128xf32, #tpu.memory_space<vmem>>, vector<104x128xf32>
    tpu.vector_store %arg24[%c0_17, %c0_18], %11 {strides = array<i32>} : memref<104x128xf32, #tpu.memory_space<vmem>>, vector<104x128xf32>,
    %c17 = arith.constant 17 : index
    %c0_19 = arith.constant 0 : index
    %13 = vector.load %arg22[%c17, %c0_19] : memref<136x128xf32, #tpu.memory_space<vmem>>, vector<16x128xf32>
    %cst_20 = arith.constant dense<0.000000e+00> : vector<16x128xf32>
    %14 = tpu.matmul %1, %13, %cst_20 {dimension_numbers = #tpu.dot_dimension_numbers<[1], [0], [0], [1], [0, 0, 1, 1], [], []>} : vector<16x16xf32>, vector<16x128xf32>, vector<16x128xf32> -> vector<16x128xf32>
    %c0_21 = arith.constant 0 : index
    %c0_22 = arith.constant 0 : index
    %15 = vector.load %arg22[%c0_21, %c0_22] : memref<136x128xf32, #tpu.memory_space<vmem>>, vector<16x128xf32>
    tpu.vector_store %arg22[%c0_21, %c0_22], %14 {strides = array<i32>} : memref<136x128xf32, #tpu.memory_space<vmem>>, vector<16x128xf32>,
    %c99 = arith.constant 99 : index
    %c0_23 = arith.constant 0 : index
    %16 = vector.load %arg22[%c99, %c0_23] : memref<136x128xf32, #tpu.memory_space<vmem>>, vector<16x128xf32>
    %cst_24 = arith.constant dense<0.000000e+00> : vector<16x128xf32>
    %17 = tpu.matmul %1, %16, %cst_24 {dimension_numbers = #tpu.dot_dimension_numbers<[1], [0], [0], [1], [0, 0, 1, 1], [], []>} : vector<16x16xf32>, vector<16x128xf32>, vector<16x128xf32> -> vector<16x128xf32>
    %c116 = arith.constant 116 : index
    %c0_25 = arith.constant 0 : index
    %18 = vector.load %arg22[%c116, %c0_25] : memref<136x128xf32, #tpu.memory_space<vmem>>, vector<16x128xf32>
    tpu.vector_store %arg22[%c116, %c0_25], %17 {strides = array<i32>} : memref<136x128xf32, #tpu.memory_space<vmem>>, vector<16x128xf32>,
    %c13 = arith.constant 13 : index
    %c0_26 = arith.constant 0 : index
    %19 = vector.load %arg22[%c13, %c0_26] : memref<136x128xf32, #tpu.memory_space<vmem>>, vector<104x128xf32>
    %c0_27 = arith.constant 0 : index
    %c0_28 = arith.constant 0 : index
    %c0_29 = arith.constant 0 : index
    %20 = vector.load %arg4[%c0_27, %c0_28, %c0_29] : memref<7x128x128xf32, #tpu.memory_space<vmem>>, vector<1x128x128xf32>
    %21 = vector.shape_cast %20 : vector<1x128x128xf32> to vector<128x128xf32>
    %cst_30 = arith.constant dense<0.000000e+00> : vector<104x128xf32>
    %22 = tpu.matmul %19, %21, %cst_30 {dimension_numbers = #tpu.dot_dimension_numbers<[1], [0], [0], [1], [0, 0, 1, 1], [], []>} : vector<104x128xf32>, vector<128x128xf32>, vector<104x128xf32> -> vector<104x128xf32>
    %c14 = arith.constant 14 : index
    %c0_31 = arith.constant 0 : index
    %23 = vector.load %arg22[%c14, %c0_31] : memref<136x128xf32, #tpu.memory_space<vmem>>, vector<104x128xf32>
    %c1 = arith.constant 1 : index
    %c0_32 = arith.constant 0 : index
    %c0_33 = arith.constant 0 : index
    %24 = vector.load %arg4[%c1, %c0_32, %c0_33] : memref<7x128x128xf32, #tpu.memory_space<vmem>>, vector<1x128x128xf32>
    %25 = vector.shape_cast %24 : vector<1x128x128xf32> to vector<128x128xf32>
    %cst_34 = arith.constant dense<0.000000e+00> : vector<104x128xf32>
    %26 = tpu.matmul %23, %25, %cst_34 {dimension_numbers = #tpu.dot_dimension_numbers<[1], [0], [0], [1], [0, 0, 1, 1], [], []>} : vector<104x128xf32>, vector<128x128xf32>, vector<104x128xf32> -> vector<104x128xf32>
    %27 = arith.addf %22, %26 : vector<104x128xf32>
    %c15 = arith.constant 15 : index
    %c0_35 = arith.constant 0 : index
    %28 = vector.load %arg22[%c15, %c0_35] : memref<136x128xf32, #tpu.memory_space<vmem>>, vector<104x128xf32>
    %c2 = arith.constant 2 : index
    %c0_36 = arith.constant 0 : index
    %c0_37 = arith.constant 0 : index
    %29 = vector.load %arg4[%c2, %c0_36, %c0_37] : memref<7x128x128xf32, #tpu.memory_space<vmem>>, vector<1x128x128xf32>
    %30 = vector.shape_cast %29 : vector<1x128x128xf32> to vector<128x128xf32>
    %cst_38 = arith.constant dense<0.000000e+00> : vector<104x128xf32>
    %31 = tpu.matmul %28, %30, %cst_38 {dimension_numbers = #tpu.dot_dimension_numbers<[1], [0], [0], [1], [0, 0, 1, 1], [], []>} : vector<104x128xf32>, vector<128x128xf32>, vector<104x128xf32> -> vector<104x128xf32>
    %32 = arith.addf %27, %31 : vector<104x128xf32>
    %c16_39 = arith.constant 16 : index
    %c0_40 = arith.constant 0 : index
    %33 = vector.load %arg22[%c16_39, %c0_40] : memref<136x128xf32, #tpu.memory_space<vmem>>, vector<104x128xf32>
    %c3 = arith.constant 3 : index
    %c0_41 = arith.constant 0 : index
    %c0_42 = arith.constant 0 : index
    %34 = vector.load %arg4[%c3, %c0_41, %c0_42] : memref<7x128x128xf32, #tpu.memory_space<vmem>>, vector<1x128x128xf32>
    %35 = vector.shape_cast %34 : vector<1x128x128xf32> to vector<128x128xf32>
    %cst_43 = arith.constant dense<0.000000e+00> : vector<104x128xf32>
    %36 = tpu.matmul %33, %35, %cst_43 {dimension_numbers = #tpu.dot_dimension_numbers<[1], [0], [0], [1], [0, 0, 1, 1], [], []>} : vector<104x128xf32>, vector<128x128xf32>, vector<104x128xf32> -> vector<104x128xf32>
    %37 = arith.addf %32, %36 : vector<104x128xf32>
    %c17_44 = arith.constant 17 : index
    %c0_45 = arith.constant 0 : index
    %38 = vector.load %arg22[%c17_44, %c0_45] : memref<136x128xf32, #tpu.memory_space<vmem>>, vector<104x128xf32>
    %c4 = arith.constant 4 : index
    %c0_46 = arith.constant 0 : index
    %c0_47 = arith.constant 0 : index
    %39 = vector.load %arg4[%c4, %c0_46, %c0_47] : memref<7x128x128xf32, #tpu.memory_space<vmem>>, vector<1x128x128xf32>
    %40 = vector.shape_cast %39 : vector<1x128x128xf32> to vector<128x128xf32>
    %cst_48 = arith.constant dense<0.000000e+00> : vector<104x128xf32>
    %41 = tpu.matmul %38, %40, %cst_48 {dimension_numbers = #tpu.dot_dimension_numbers<[1], [0], [0], [1], [0, 0, 1, 1], [], []>} : vector<104x128xf32>, vector<128x128xf32>, vector<104x128xf32> -> vector<104x128xf32>
    %42 = arith.addf %37, %41 : vector<104x128xf32>
    %c18 = arith.constant 18 : index
    %c0_49 = arith.constant 0 : index
    %43 = vector.load %arg22[%c18, %c0_49] : memref<136x128xf32, #tpu.memory_space<vmem>>, vector<104x128xf32>
    %c5 = arith.constant 5 : index
    %c0_50 = arith.constant 0 : index
    %c0_51 = arith.constant 0 : index
    %44 = vector.load %arg4[%c5, %c0_50, %c0_51] : memref<7x128x128xf32, #tpu.memory_space<vmem>>, vector<1x128x128xf32>
    %45 = vector.shape_cast %44 : vector<1x128x128xf32> to vector<128x128xf32>
    %cst_52 = arith.constant dense<0.000000e+00> : vector<104x128xf32>
    %46 = tpu.matmul %43, %45, %cst_52 {dimension_numbers = #tpu.dot_dimension_numbers<[1], [0], [0], [1], [0, 0, 1, 1], [], []>} : vector<104x128xf32>, vector<128x128xf32>, vector<104x128xf32> -> vector<104x128xf32>
    %47 = arith.addf %42, %46 : vector<104x128xf32>
    %c19 = arith.constant 19 : index
    %c0_53 = arith.constant 0 : index
    %48 = vector.load %arg22[%c19, %c0_53] : memref<136x128xf32, #tpu.memory_space<vmem>>, vector<104x128xf32>
    %c6 = arith.constant 6 : index
    %c0_54 = arith.constant 0 : index
    %c0_55 = arith.constant 0 : index
    %49 = vector.load %arg4[%c6, %c0_54, %c0_55] : memref<7x128x128xf32, #tpu.memory_space<vmem>>, vector<1x128x128xf32>
    %50 = vector.shape_cast %49 : vector<1x128x128xf32> to vector<128x128xf32>
    %cst_56 = arith.constant dense<0.000000e+00> : vector<104x128xf32>
    %51 = tpu.matmul %48, %50, %cst_56 {dimension_numbers = #tpu.dot_dimension_numbers<[1], [0], [0], [1], [0, 0, 1, 1], [], []>} : vector<104x128xf32>, vector<128x128xf32>, vector<104x128xf32> -> vector<104x128xf32>
    %52 = arith.addf %47, %51 : vector<104x128xf32>
    %c0_57 = arith.constant 0 : index
    %c0_58 = arith.constant 0 : index
    %53 = vector.load %arg5[%c0_57, %c0_58] : memref<1x128xf32, #tpu.memory_space<vmem>>, vector<1x128xf32>
    %54 = vector.broadcast %53 : vector<1x128xf32> to vector<104x128xf32>
    %55 = arith.addf %52, %54 : vector<104x128xf32>
    %cst_59 = arith.constant 0.000000e+00 : f32
    %56 = vector.broadcast %cst_59 : f32 to vector<104x128xf32>
    %57 = arith.maximumf %55, %56 : vector<104x128xf32>
    %c16_60 = arith.constant 16 : index
    %c0_61 = arith.constant 0 : index
    %58 = vector.load %arg23[%c16_60, %c0_61] : memref<136x128xf32, #tpu.memory_space<vmem>>, vector<104x128xf32>
    tpu.vector_store %arg23[%c16_60, %c0_61], %57 {strides = array<i32>} : memref<136x128xf32, #tpu.memory_space<vmem>>, vector<104x128xf32>,
    %c16_62 = arith.constant 16 : index
    %c0_63 = arith.constant 0 : index
    %59 = vector.load %arg23[%c16_62, %c0_63] : memref<136x128xf32, #tpu.memory_space<vmem>>, vector<104x128xf32>
    %c0_64 = arith.constant 0 : index
    %c0_65 = arith.constant 0 : index
    %c0_66 = arith.constant 0 : index
    %60 = vector.load %arg6[%c0_64, %c0_65, %c0_66] : memref<1x128x128xf32, #tpu.memory_space<vmem>>, vector<1x128x128xf32>
    %61 = vector.shape_cast %60 : vector<1x128x128xf32> to vector<128x128xf32>
    %cst_67 = arith.constant dense<0.000000e+00> : vector<104x128xf32>
    %62 = tpu.matmul %59, %61, %cst_67 {dimension_numbers = #tpu.dot_dimension_numbers<[1], [0], [0], [1], [0, 0, 1, 1], [], []>} : vector<104x128xf32>, vector<128x128xf32>, vector<104x128xf32> -> vector<104x128xf32>
    %c0_68 = arith.constant 0 : index
    %c0_69 = arith.constant 0 : index
    %63 = vector.load %arg7[%c0_68, %c0_69] : memref<1x128xf32, #tpu.memory_space<vmem>>, vector<1x128xf32>
    %64 = vector.broadcast %63 : vector<1x128xf32> to vector<104x128xf32>
    %65 = arith.addf %62, %64 : vector<104x128xf32>
    %c16_70 = arith.constant 16 : index
    %c0_71 = arith.constant 0 : index
    %66 = vector.load %arg22[%c16_70, %c0_71] : memref<136x128xf32, #tpu.memory_space<vmem>>, vector<104x128xf32>
    tpu.vector_store %arg22[%c16_70, %c0_71], %65 {strides = array<i32>} : memref<136x128xf32, #tpu.memory_space<vmem>>, vector<104x128xf32>,
    %cst_72 = arith.constant 0.000000e+00 : f32
    %67 = vector.broadcast %cst_72 : f32 to vector<2x128xf32>
    %c14_73 = arith.constant 14 : index
    %c0_74 = arith.constant 0 : index
    %68 = vector.load %arg22[%c14_73, %c0_74] : memref<136x128xf32, #tpu.memory_space<vmem>>, vector<2x128xf32>
    tpu.vector_store %arg22[%c14_73, %c0_74], %67 {strides = array<i32>} : memref<136x128xf32, #tpu.memory_space<vmem>>, vector<2x128xf32>,
    %cst_75 = arith.constant 0.000000e+00 : f32
    %69 = vector.broadcast %cst_75 : f32 to vector<2x128xf32>
    %c116_76 = arith.constant 116 : index
    %c0_77 = arith.constant 0 : index
    %70 = vector.load %arg22[%c116_76, %c0_77] : memref<136x128xf32, #tpu.memory_space<vmem>>, vector<2x128xf32>
    tpu.vector_store %arg22[%c116_76, %c0_77], %69 {strides = array<i32>} : memref<136x128xf32, #tpu.memory_space<vmem>>, vector<2x128xf32>,
    %c14_78 = arith.constant 14 : index
    %c0_79 = arith.constant 0 : index
    %71 = vector.load %arg22[%c14_78, %c0_79] : memref<136x128xf32, #tpu.memory_space<vmem>>, vector<104x128xf32>
    %c15_80 = arith.constant 15 : index
    %c0_81 = arith.constant 0 : index
    %72 = vector.load %arg22[%c15_80, %c0_81] : memref<136x128xf32, #tpu.memory_space<vmem>>, vector<104x128xf32>
    %73 = arith.addf %71, %72 : vector<104x128xf32>
    %c16_82 = arith.constant 16 : index
    %c0_83 = arith.constant 0 : index
    %74 = vector.load %arg22[%c16_82, %c0_83] : memref<136x128xf32, #tpu.memory_space<vmem>>, vector<104x128xf32>
    %75 = arith.addf %73, %74 : vector<104x128xf32>
    %c17_84 = arith.constant 17 : index
    %c0_85 = arith.constant 0 : index
    %76 = vector.load %arg22[%c17_84, %c0_85] : memref<136x128xf32, #tpu.memory_space<vmem>>, vector<104x128xf32>
    %77 = arith.addf %75, %76 : vector<104x128xf32>
    %c18_86 = arith.constant 18 : index
    %c0_87 = arith.constant 0 : index
    %78 = vector.load %arg22[%c18_86, %c0_87] : memref<136x128xf32, #tpu.memory_space<vmem>>, vector<104x128xf32>
    %79 = arith.addf %77, %78 : vector<104x128xf32>
    %80 = arith.mulf %79, %0 : vector<104x128xf32>
    %cst_88 = arith.constant 0.000000e+00 : f32
    %81 = vector.broadcast %cst_88 : f32 to vector<104x128xf32>
    %82 = arith.maximumf %80, %81 : vector<104x128xf32>
    %c16_89 = arith.constant 16 : index
    %c0_90 = arith.constant 0 : index
    %83 = vector.load %arg23[%c16_89, %c0_90] : memref<136x128xf32, #tpu.memory_space<vmem>>, vector<104x128xf32>
    tpu.vector_store %arg23[%c16_89, %c0_90], %82 {strides = array<i32>} : memref<136x128xf32, #tpu.memory_space<vmem>>, vector<104x128xf32>,
    %c17_91 = arith.constant 17 : index
    %c0_92 = arith.constant 0 : index
    %84 = vector.load %arg23[%c17_91, %c0_92] : memref<136x128xf32, #tpu.memory_space<vmem>>, vector<16x128xf32>
    %cst_93 = arith.constant dense<0.000000e+00> : vector<16x128xf32>
    %85 = tpu.matmul %1, %84, %cst_93 {dimension_numbers = #tpu.dot_dimension_numbers<[1], [0], [0], [1], [0, 0, 1, 1], [], []>} : vector<16x16xf32>, vector<16x128xf32>, vector<16x128xf32> -> vector<16x128xf32>
    %c0_94 = arith.constant 0 : index
    %c0_95 = arith.constant 0 : index
    %86 = vector.load %arg23[%c0_94, %c0_95] : memref<136x128xf32, #tpu.memory_space<vmem>>, vector<16x128xf32>
    tpu.vector_store %arg23[%c0_94, %c0_95], %85 {strides = array<i32>} : memref<136x128xf32, #tpu.memory_space<vmem>>, vector<16x128xf32>,
    %c99_96 = arith.constant 99 : index
    %c0_97 = arith.constant 0 : index
    %87 = vector.load %arg23[%c99_96, %c0_97] : memref<136x128xf32, #tpu.memory_space<vmem>>, vector<16x128xf32>
    %cst_98 = arith.constant dense<0.000000e+00> : vector<16x128xf32>
    %88 = tpu.matmul %1, %87, %cst_98 {dimension_numbers = #tpu.dot_dimension_numbers<[1], [0], [0], [1], [0, 0, 1, 1], [], []>} : vector<16x16xf32>, vector<16x128xf32>, vector<16x128xf32> -> vector<16x128xf32>
    %c116_99 = arith.constant 116 : index
    %c0_100 = arith.constant 0 : index
    %89 = vector.load %arg23[%c116_99, %c0_100] : memref<136x128xf32, #tpu.memory_space<vmem>>, vector<16x128xf32>
    tpu.vector_store %arg23[%c116_99, %c0_100], %88 {strides = array<i32>} : memref<136x128xf32, #tpu.memory_space<vmem>>, vector<16x128xf32>,
    %c1_101 = arith.constant 1 : index
    %c0_102 = arith.constant 0 : index
    %90 = vector.load %arg23[%c1_101, %c0_102] : memref<136x128xf32, #tpu.memory_space<vmem>>, vector<104x128xf32>
    %c0_103 = arith.constant 0 : index
    %c0_104 = arith.constant 0 : index
    %c0_105 = arith.constant 0 : index
    %91 = vector.load %arg8[%c0_103, %c0_104, %c0_105] : memref<7x128x128xf32, #tpu.memory_space<vmem>>, vector<1x128x128xf32>
    %92 = vector.shape_cast %91 : vector<1x128x128xf32> to vector<128x128xf32>
    %cst_106 = arith.constant dense<0.000000e+00> : vector<104x128xf32>
    %93 = tpu.matmul %90, %92, %cst_106 {dimension_numbers = #tpu.dot_dimension_numbers<[1], [0], [0], [1], [0, 0, 1, 1], [], []>} : vector<104x128xf32>, vector<128x128xf32>, vector<104x128xf32> -> vector<104x128xf32>
    %c6_107 = arith.constant 6 : index
    %c0_108 = arith.constant 0 : index
    %94 = vector.load %arg23[%c6_107, %c0_108] : memref<136x128xf32, #tpu.memory_space<vmem>>, vector<104x128xf32>
    %c1_109 = arith.constant 1 : index
    %c0_110 = arith.constant 0 : index
    %c0_111 = arith.constant 0 : index
    %95 = vector.load %arg8[%c1_109, %c0_110, %c0_111] : memref<7x128x128xf32, #tpu.memory_space<vmem>>, vector<1x128x128xf32>
    %96 = vector.shape_cast %95 : vector<1x128x128xf32> to vector<128x128xf32>
    %cst_112 = arith.constant dense<0.000000e+00> : vector<104x128xf32>
    %97 = tpu.matmul %94, %96, %cst_112 {dimension_numbers = #tpu.dot_dimension_numbers<[1], [0], [0], [1], [0, 0, 1, 1], [], []>} : vector<104x128xf32>, vector<128x128xf32>, vector<104x128xf32> -> vector<104x128xf32>
    %98 = arith.addf %93, %97 : vector<104x128xf32>
    %c11 = arith.constant 11 : index
    %c0_113 = arith.constant 0 : index
    %99 = vector.load %arg23[%c11, %c0_113] : memref<136x128xf32, #tpu.memory_space<vmem>>, vector<104x128xf32>
    %c2_114 = arith.constant 2 : index
    %c0_115 = arith.constant 0 : index
    %c0_116 = arith.constant 0 : index
    %100 = vector.load %arg8[%c2_114, %c0_115, %c0_116] : memref<7x128x128xf32, #tpu.memory_space<vmem>>, vector<1x128x128xf32>
    %101 = vector.shape_cast %100 : vector<1x128x128xf32> to vector<128x128xf32>
    %cst_117 = arith.constant dense<0.000000e+00> : vector<104x128xf32>
    %102 = tpu.matmul %99, %101, %cst_117 {dimension_numbers = #tpu.dot_dimension_numbers<[1], [0], [0], [1], [0, 0, 1, 1], [], []>} : vector<104x128xf32>, vector<128x128xf32>, vector<104x128xf32> -> vector<104x128xf32>
    %103 = arith.addf %98, %102 : vector<104x128xf32>
    %c16_118 = arith.constant 16 : index
    %c0_119 = arith.constant 0 : index
    %104 = vector.load %arg23[%c16_118, %c0_119] : memref<136x128xf32, #tpu.memory_space<vmem>>, vector<104x128xf32>
    %c3_120 = arith.constant 3 : index
    %c0_121 = arith.constant 0 : index
    %c0_122 = arith.constant 0 : index
    %105 = vector.load %arg8[%c3_120, %c0_121, %c0_122] : memref<7x128x128xf32, #tpu.memory_space<vmem>>, vector<1x128x128xf32>
    %106 = vector.shape_cast %105 : vector<1x128x128xf32> to vector<128x128xf32>
    %cst_123 = arith.constant dense<0.000000e+00> : vector<104x128xf32>
    %107 = tpu.matmul %104, %106, %cst_123 {dimension_numbers = #tpu.dot_dimension_numbers<[1], [0], [0], [1], [0, 0, 1, 1], [], []>} : vector<104x128xf32>, vector<128x128xf32>, vector<104x128xf32> -> vector<104x128xf32>
    %108 = arith.addf %103, %107 : vector<104x128xf32>
    %c21 = arith.constant 21 : index
    %c0_124 = arith.constant 0 : index
    %109 = vector.load %arg23[%c21, %c0_124] : memref<136x128xf32, #tpu.memory_space<vmem>>, vector<104x128xf32>
    %c4_125 = arith.constant 4 : index
    %c0_126 = arith.constant 0 : index
    %c0_127 = arith.constant 0 : index
    %110 = vector.load %arg8[%c4_125, %c0_126, %c0_127] : memref<7x128x128xf32, #tpu.memory_space<vmem>>, vector<1x128x128xf32>
    %111 = vector.shape_cast %110 : vector<1x128x128xf32> to vector<128x128xf32>
    %cst_128 = arith.constant dense<0.000000e+00> : vector<104x128xf32>
    %112 = tpu.matmul %109, %111, %cst_128 {dimension_numbers = #tpu.dot_dimension_numbers<[1], [0], [0], [1], [0, 0, 1, 1], [], []>} : vector<104x128xf32>, vector<128x128xf32>, vector<104x128xf32> -> vector<104x128xf32>
    %113 = arith.addf %108, %112 : vector<104x128xf32>
    %c26 = arith.constant 26 : index
    %c0_129 = arith.constant 0 : index
    %114 = vector.load %arg23[%c26, %c0_129] : memref<136x128xf32, #tpu.memory_space<vmem>>, vector<104x128xf32>
    %c5_130 = arith.constant 5 : index
    %c0_131 = arith.constant 0 : index
    %c0_132 = arith.constant 0 : index
    %115 = vector.load %arg8[%c5_130, %c0_131, %c0_132] : memref<7x128x128xf32, #tpu.memory_space<vmem>>, vector<1x128x128xf32>
    %116 = vector.shape_cast %115 : vector<1x128x128xf32> to vector<128x128xf32>
    %cst_133 = arith.constant dense<0.000000e+00> : vector<104x128xf32>
    %117 = tpu.matmul %114, %116, %cst_133 {dimension_numbers = #tpu.dot_dimension_numbers<[1], [0], [0], [1], [0, 0, 1, 1], [], []>} : vector<104x128xf32>, vector<128x128xf32>, vector<104x128xf32> -> vector<104x128xf32>
    %118 = arith.addf %113, %117 : vector<104x128xf32>
    %c31 = arith.constant 31 : index
    %c0_134 = arith.constant 0 : index
    %119 = vector.load %arg23[%c31, %c0_134] : memref<136x128xf32, #tpu.memory_space<vmem>>, vector<104x128xf32>
    %c6_135 = arith.constant 6 : index
    %c0_136 = arith.constant 0 : index
    %c0_137 = arith.constant 0 : index
    %120 = vector.load %arg8[%c6_135, %c0_136, %c0_137] : memref<7x128x128xf32, #tpu.memory_space<vmem>>, vector<1x128x128xf32>
    %121 = vector.shape_cast %120 : vector<1x128x128xf32> to vector<128x128xf32>
    %cst_138 = arith.constant dense<0.000000e+00> : vector<104x128xf32>
    %122 = tpu.matmul %119, %121, %cst_138 {dimension_numbers = #tpu.dot_dimension_numbers<[1], [0], [0], [1], [0, 0, 1, 1], [], []>} : vector<104x128xf32>, vector<128x128xf32>, vector<104x128xf32> -> vector<104x128xf32>
    %123 = arith.addf %118, %122 : vector<104x128xf32>
    %c0_139 = arith.constant 0 : index
    %c0_140 = arith.constant 0 : index
    %124 = vector.load %arg9[%c0_139, %c0_140] : memref<1x128xf32, #tpu.memory_space<vmem>>, vector<1x128xf32>
    %125 = vector.broadcast %124 : vector<1x128xf32> to vector<104x128xf32>
    %126 = arith.addf %123, %125 : vector<104x128xf32>
    %c16_141 = arith.constant 16 : index
    %c0_142 = arith.constant 0 : index
    %127 = vector.load %arg22[%c16_141, %c0_142] : memref<136x128xf32, #tpu.memory_space<vmem>>, vector<104x128xf32>
    tpu.vector_store %arg22[%c16_141, %c0_142], %126 {strides = array<i32>} : memref<136x128xf32, #tpu.memory_space<vmem>>, vector<104x128xf32>,
    %cst_143 = arith.constant 0.000000e+00 : f32
    %128 = vector.broadcast %cst_143 : f32 to vector<2x128xf32>
    %c14_144 = arith.constant 14 : index
    %c0_145 = arith.constant 0 : index
    %129 = vector.load %arg22[%c14_144, %c0_145] : memref<136x128xf32, #tpu.memory_space<vmem>>, vector<2x128xf32>
    tpu.vector_store %arg22[%c14_144, %c0_145], %128 {strides = array<i32>} : memref<136x128xf32, #tpu.memory_space<vmem>>, vector<2x128xf32>,
    %cst_146 = arith.constant 0.000000e+00 : f32
    %130 = vector.broadcast %cst_146 : f32 to vector<2x128xf32>
    %c116_147 = arith.constant 116 : index
    %c0_148 = arith.constant 0 : index
    %131 = vector.load %arg22[%c116_147, %c0_148] : memref<136x128xf32, #tpu.memory_space<vmem>>, vector<2x128xf32>
    tpu.vector_store %arg22[%c116_147, %c0_148], %130 {strides = array<i32>} : memref<136x128xf32, #tpu.memory_space<vmem>>, vector<2x128xf32>,
    %c14_149 = arith.constant 14 : index
    %c0_150 = arith.constant 0 : index
    %132 = vector.load %arg22[%c14_149, %c0_150] : memref<136x128xf32, #tpu.memory_space<vmem>>, vector<104x128xf32>
    %c15_151 = arith.constant 15 : index
    %c0_152 = arith.constant 0 : index
    %133 = vector.load %arg22[%c15_151, %c0_152] : memref<136x128xf32, #tpu.memory_space<vmem>>, vector<104x128xf32>
    %134 = arith.addf %132, %133 : vector<104x128xf32>
    %c16_153 = arith.constant 16 : index
    %c0_154 = arith.constant 0 : index
    %135 = vector.load %arg22[%c16_153, %c0_154] : memref<136x128xf32, #tpu.memory_space<vmem>>, vector<104x128xf32>
    %136 = arith.addf %134, %135 : vector<104x128xf32>
    %c17_155 = arith.constant 17 : index
    %c0_156 = arith.constant 0 : index
    %137 = vector.load %arg22[%c17_155, %c0_156] : memref<136x128xf32, #tpu.memory_space<vmem>>, vector<104x128xf32>
    %138 = arith.addf %136, %137 : vector<104x128xf32>
    %c18_157 = arith.constant 18 : index
    %c0_158 = arith.constant 0 : index
    %139 = vector.load %arg22[%c18_157, %c0_158] : memref<136x128xf32, #tpu.memory_space<vmem>>, vector<104x128xf32>
    %140 = arith.addf %138, %139 : vector<104x128xf32>
    %141 = arith.mulf %140, %0 : vector<104x128xf32>
    %cst_159 = arith.constant 0.000000e+00 : f32
    %142 = vector.broadcast %cst_159 : f32 to vector<104x128xf32>
    %143 = arith.maximumf %141, %142 : vector<104x128xf32>
    %c16_160 = arith.constant 16 : index
    %c0_161 = arith.constant 0 : index
    %144 = vector.load %arg23[%c16_160, %c0_161] : memref<136x128xf32, #tpu.memory_space<vmem>>, vector<104x128xf32>
    tpu.vector_store %arg23[%c16_160, %c0_161], %143 {strides = array<i32>} : memref<136x128xf32, #tpu.memory_space<vmem>>, vector<104x128xf32>,
    %c17_162 = arith.constant 17 : index
    %c0_163 = arith.constant 0 : index
    %145 = vector.load %arg23[%c17_162, %c0_163] : memref<136x128xf32, #tpu.memory_space<vmem>>, vector<16x128xf32>
    %cst_164 = arith.constant dense<0.000000e+00> : vector<16x128xf32>
    %146 = tpu.matmul %1, %145, %cst_164 {dimension_numbers = #tpu.dot_dimension_numbers<[1], [0], [0], [1], [0, 0, 1, 1], [], []>} : vector<16x16xf32>, vector<16x128xf32>, vector<16x128xf32> -> vector<16x128xf32>
    %c0_165 = arith.constant 0 : index
    %c0_166 = arith.constant 0 : index
    %147 = vector.load %arg23[%c0_165, %c0_166] : memref<136x128xf32, #tpu.memory_space<vmem>>, vector<16x128xf32>
    tpu.vector_store %arg23[%c0_165, %c0_166], %146 {strides = array<i32>} : memref<136x128xf32, #tpu.memory_space<vmem>>, vector<16x128xf32>,
    %c99_167 = arith.constant 99 : index
    %c0_168 = arith.constant 0 : index
    %148 = vector.load %arg23[%c99_167, %c0_168] : memref<136x128xf32, #tpu.memory_space<vmem>>, vector<16x128xf32>
    %cst_169 = arith.constant dense<0.000000e+00> : vector<16x128xf32>
    %149 = tpu.matmul %1, %148, %cst_169 {dimension_numbers = #tpu.dot_dimension_numbers<[1], [0], [0], [1], [0, 0, 1, 1], [], []>} : vector<16x16xf32>, vector<16x128xf32>, vector<16x128xf32> -> vector<16x128xf32>
    %c116_170 = arith.constant 116 : index
    %c0_171 = arith.constant 0 : index
    %150 = vector.load %arg23[%c116_170, %c0_171] : memref<136x128xf32, #tpu.memory_space<vmem>>, vector<16x128xf32>
    tpu.vector_store %arg23[%c116_170, %c0_171], %149 {strides = array<i32>} : memref<136x128xf32, #tpu.memory_space<vmem>>, vector<16x128xf32>,
    %c1_172 = arith.constant 1 : index
    %c0_173 = arith.constant 0 : index
    %151 = vector.load %arg23[%c1_172, %c0_173] : memref<136x128xf32, #tpu.memory_space<vmem>>, vector<104x128xf32>
    %c0_174 = arith.constant 0 : index
    %c0_175 = arith.constant 0 : index
    %c0_176 = arith.constant 0 : index
    %152 = vector.load %arg10[%c0_174, %c0_175, %c0_176] : memref<7x128x128xf32, #tpu.memory_space<vmem>>, vector<1x128x128xf32>
    %153 = vector.shape_cast %152 : vector<1x128x128xf32> to vector<128x128xf32>
    %cst_177 = arith.constant dense<0.000000e+00> : vector<104x128xf32>
    %154 = tpu.matmul %151, %153, %cst_177 {dimension_numbers = #tpu.dot_dimension_numbers<[1], [0], [0], [1], [0, 0, 1, 1], [], []>} : vector<104x128xf32>, vector<128x128xf32>, vector<104x128xf32> -> vector<104x128xf32>
    %c6_178 = arith.constant 6 : index
    %c0_179 = arith.constant 0 : index
    %155 = vector.load %arg23[%c6_178, %c0_179] : memref<136x128xf32, #tpu.memory_space<vmem>>, vector<104x128xf32>
    %c1_180 = arith.constant 1 : index
    %c0_181 = arith.constant 0 : index
    %c0_182 = arith.constant 0 : index
    %156 = vector.load %arg10[%c1_180, %c0_181, %c0_182] : memref<7x128x128xf32, #tpu.memory_space<vmem>>, vector<1x128x128xf32>
    %157 = vector.shape_cast %156 : vector<1x128x128xf32> to vector<128x128xf32>
    %cst_183 = arith.constant dense<0.000000e+00> : vector<104x128xf32>
    %158 = tpu.matmul %155, %157, %cst_183 {dimension_numbers = #tpu.dot_dimension_numbers<[1], [0], [0], [1], [0, 0, 1, 1], [], []>} : vector<104x128xf32>, vector<128x128xf32>, vector<104x128xf32> -> vector<104x128xf32>
    %159 = arith.addf %154, %158 : vector<104x128xf32>
    %c11_184 = arith.constant 11 : index
    %c0_185 = arith.constant 0 : index
    %160 = vector.load %arg23[%c11_184, %c0_185] : memref<136x128xf32, #tpu.memory_space<vmem>>, vector<104x128xf32>
    %c2_186 = arith.constant 2 : index
    %c0_187 = arith.constant 0 : index
    %c0_188 = arith.constant 0 : index
    %161 = vector.load %arg10[%c2_186, %c0_187, %c0_188] : memref<7x128x128xf32, #tpu.memory_space<vmem>>, vector<1x128x128xf32>
    %162 = vector.shape_cast %161 : vector<1x128x128xf32> to vector<128x128xf32>
    %cst_189 = arith.constant dense<0.000000e+00> : vector<104x128xf32>
    %163 = tpu.matmul %160, %162, %cst_189 {dimension_numbers = #tpu.dot_dimension_numbers<[1], [0], [0], [1], [0, 0, 1, 1], [], []>} : vector<104x128xf32>, vector<128x128xf32>, vector<104x128xf32> -> vector<104x128xf32>
    %164 = arith.addf %159, %163 : vector<104x128xf32>
    %c16_190 = arith.constant 16 : index
    %c0_191 = arith.constant 0 : index
    %165 = vector.load %arg23[%c16_190, %c0_191] : memref<136x128xf32, #tpu.memory_space<vmem>>, vector<104x128xf32>
    %c3_192 = arith.constant 3 : index
    %c0_193 = arith.constant 0 : index
    %c0_194 = arith.constant 0 : index
    %166 = vector.load %arg10[%c3_192, %c0_193, %c0_194] : memref<7x128x128xf32, #tpu.memory_space<vmem>>, vector<1x128x128xf32>
    %167 = vector.shape_cast %166 : vector<1x128x128xf32> to vector<128x128xf32>
    %cst_195 = arith.constant dense<0.000000e+00> : vector<104x128xf32>
    %168 = tpu.matmul %165, %167, %cst_195 {dimension_numbers = #tpu.dot_dimension_numbers<[1], [0], [0], [1], [0, 0, 1, 1], [], []>} : vector<104x128xf32>, vector<128x128xf32>, vector<104x128xf32> -> vector<104x128xf32>
    %169 = arith.addf %164, %168 : vector<104x128xf32>
    %c21_196 = arith.constant 21 : index
    %c0_197 = arith.constant 0 : index
    %170 = vector.load %arg23[%c21_196, %c0_197] : memref<136x128xf32, #tpu.memory_space<vmem>>, vector<104x128xf32>
    %c4_198 = arith.constant 4 : index
    %c0_199 = arith.constant 0 : index
    %c0_200 = arith.constant 0 : index
    %171 = vector.load %arg10[%c4_198, %c0_199, %c0_200] : memref<7x128x128xf32, #tpu.memory_space<vmem>>, vector<1x128x128xf32>
    %172 = vector.shape_cast %171 : vector<1x128x128xf32> to vector<128x128xf32>
    %cst_201 = arith.constant dense<0.000000e+00> : vector<104x128xf32>
    %173 = tpu.matmul %170, %172, %cst_201 {dimension_numbers = #tpu.dot_dimension_numbers<[1], [0], [0], [1], [0, 0, 1, 1], [], []>} : vector<104x128xf32>, vector<128x128xf32>, vector<104x128xf32> -> vector<104x128xf32>
    %174 = arith.addf %169, %173 : vector<104x128xf32>
    %c26_202 = arith.constant 26 : index
    %c0_203 = arith.constant 0 : index
    %175 = vector.load %arg23[%c26_202, %c0_203] : memref<136x128xf32, #tpu.memory_space<vmem>>, vector<104x128xf32>
    %c5_204 = arith.constant 5 : index
    %c0_205 = arith.constant 0 : index
    %c0_206 = arith.constant 0 : index
    %176 = vector.load %arg10[%c5_204, %c0_205, %c0_206] : memref<7x128x128xf32, #tpu.memory_space<vmem>>, vector<1x128x128xf32>
    %177 = vector.shape_cast %176 : vector<1x128x128xf32> to vector<128x128xf32>
    %cst_207 = arith.constant dense<0.000000e+00> : vector<104x128xf32>
    %178 = tpu.matmul %175, %177, %cst_207 {dimension_numbers = #tpu.dot_dimension_numbers<[1], [0], [0], [1], [0, 0, 1, 1], [], []>} : vector<104x128xf32>, vector<128x128xf32>, vector<104x128xf32> -> vector<104x128xf32>
    %179 = arith.addf %174, %178 : vector<104x128xf32>
    %c31_208 = arith.constant 31 : index
    %c0_209 = arith.constant 0 : index
    %180 = vector.load %arg23[%c31_208, %c0_209] : memref<136x128xf32, #tpu.memory_space<vmem>>, vector<104x128xf32>
    %c6_210 = arith.constant 6 : index
    %c0_211 = arith.constant 0 : index
    %c0_212 = arith.constant 0 : index
    %181 = vector.load %arg10[%c6_210, %c0_211, %c0_212] : memref<7x128x128xf32, #tpu.memory_space<vmem>>, vector<1x128x128xf32>
    %182 = vector.shape_cast %181 : vector<1x128x128xf32> to vector<128x128xf32>
    %cst_213 = arith.constant dense<0.000000e+00> : vector<104x128xf32>
    %183 = tpu.matmul %180, %182, %cst_213 {dimension_numbers = #tpu.dot_dimension_numbers<[1], [0], [0], [1], [0, 0, 1, 1], [], []>} : vector<104x128xf32>, vector<128x128xf32>, vector<104x128xf32> -> vector<104x128xf32>
    %184 = arith.addf %179, %183 : vector<104x128xf32>
    %c0_214 = arith.constant 0 : index
    %c0_215 = arith.constant 0 : index
    %185 = vector.load %arg11[%c0_214, %c0_215] : memref<1x128xf32, #tpu.memory_space<vmem>>, vector<1x128xf32>
    %186 = vector.broadcast %185 : vector<1x128xf32> to vector<104x128xf32>
    %187 = arith.addf %184, %186 : vector<104x128xf32>
    %c16_216 = arith.constant 16 : index
    %c0_217 = arith.constant 0 : index
    %188 = vector.load %arg22[%c16_216, %c0_217] : memref<136x128xf32, #tpu.memory_space<vmem>>, vector<104x128xf32>
    tpu.vector_store %arg22[%c16_216, %c0_217], %187 {strides = array<i32>} : memref<136x128xf32, #tpu.memory_space<vmem>>, vector<104x128xf32>,
    %cst_218 = arith.constant 0.000000e+00 : f32
    %189 = vector.broadcast %cst_218 : f32 to vector<2x128xf32>
    %c14_219 = arith.constant 14 : index
    %c0_220 = arith.constant 0 : index
    %190 = vector.load %arg22[%c14_219, %c0_220] : memref<136x128xf32, #tpu.memory_space<vmem>>, vector<2x128xf32>
    tpu.vector_store %arg22[%c14_219, %c0_220], %189 {strides = array<i32>} : memref<136x128xf32, #tpu.memory_space<vmem>>, vector<2x128xf32>,
    %cst_221 = arith.constant 0.000000e+00 : f32
    %191 = vector.broadcast %cst_221 : f32 to vector<2x128xf32>
    %c116_222 = arith.constant 116 : index
    %c0_223 = arith.constant 0 : index
    %192 = vector.load %arg22[%c116_222, %c0_223] : memref<136x128xf32, #tpu.memory_space<vmem>>, vector<2x128xf32>
    tpu.vector_store %arg22[%c116_222, %c0_223], %191 {strides = array<i32>} : memref<136x128xf32, #tpu.memory_space<vmem>>, vector<2x128xf32>,
    %c14_224 = arith.constant 14 : index
    %c0_225 = arith.constant 0 : index
    %193 = vector.load %arg22[%c14_224, %c0_225] : memref<136x128xf32, #tpu.memory_space<vmem>>, vector<104x128xf32>
    %c15_226 = arith.constant 15 : index
    %c0_227 = arith.constant 0 : index
    %194 = vector.load %arg22[%c15_226, %c0_227] : memref<136x128xf32, #tpu.memory_space<vmem>>, vector<104x128xf32>
    %195 = arith.addf %193, %194 : vector<104x128xf32>
    %c16_228 = arith.constant 16 : index
    %c0_229 = arith.constant 0 : index
    %196 = vector.load %arg22[%c16_228, %c0_229] : memref<136x128xf32, #tpu.memory_space<vmem>>, vector<104x128xf32>
    %197 = arith.addf %195, %196 : vector<104x128xf32>
    %c17_230 = arith.constant 17 : index
    %c0_231 = arith.constant 0 : index
    %198 = vector.load %arg22[%c17_230, %c0_231] : memref<136x128xf32, #tpu.memory_space<vmem>>, vector<104x128xf32>
    %199 = arith.addf %197, %198 : vector<104x128xf32>
    %c18_232 = arith.constant 18 : index
    %c0_233 = arith.constant 0 : index
    %200 = vector.load %arg22[%c18_232, %c0_233] : memref<136x128xf32, #tpu.memory_space<vmem>>, vector<104x128xf32>
    %201 = arith.addf %199, %200 : vector<104x128xf32>
    %202 = arith.mulf %201, %0 : vector<104x128xf32>
    %cst_234 = arith.constant 0.000000e+00 : f32
    %203 = vector.broadcast %cst_234 : f32 to vector<104x128xf32>
    %204 = arith.maximumf %202, %203 : vector<104x128xf32>
    %c16_235 = arith.constant 16 : index
    %c0_236 = arith.constant 0 : index
    %205 = vector.load %arg23[%c16_235, %c0_236] : memref<136x128xf32, #tpu.memory_space<vmem>>, vector<104x128xf32>
    tpu.vector_store %arg23[%c16_235, %c0_236], %204 {strides = array<i32>} : memref<136x128xf32, #tpu.memory_space<vmem>>, vector<104x128xf32>,
    %c17_237 = arith.constant 17 : index
    %c0_238 = arith.constant 0 : index
    %206 = vector.load %arg23[%c17_237, %c0_238] : memref<136x128xf32, #tpu.memory_space<vmem>>, vector<16x128xf32>
    %cst_239 = arith.constant dense<0.000000e+00> : vector<16x128xf32>
    %207 = tpu.matmul %1, %206, %cst_239 {dimension_numbers = #tpu.dot_dimension_numbers<[1], [0], [0], [1], [0, 0, 1, 1], [], []>} : vector<16x16xf32>, vector<16x128xf32>, vector<16x128xf32> -> vector<16x128xf32>
    %c0_240 = arith.constant 0 : index
    %c0_241 = arith.constant 0 : index
    %208 = vector.load %arg23[%c0_240, %c0_241] : memref<136x128xf32, #tpu.memory_space<vmem>>, vector<16x128xf32>
    tpu.vector_store %arg23[%c0_240, %c0_241], %207 {strides = array<i32>} : memref<136x128xf32, #tpu.memory_space<vmem>>, vector<16x128xf32>,
    %c99_242 = arith.constant 99 : index
    %c0_243 = arith.constant 0 : index
    %209 = vector.load %arg23[%c99_242, %c0_243] : memref<136x128xf32, #tpu.memory_space<vmem>>, vector<16x128xf32>
    %cst_244 = arith.constant dense<0.000000e+00> : vector<16x128xf32>
    %210 = tpu.matmul %1, %209, %cst_244 {dimension_numbers = #tpu.dot_dimension_numbers<[1], [0], [0], [1], [0, 0, 1, 1], [], []>} : vector<16x16xf32>, vector<16x128xf32>, vector<16x128xf32> -> vector<16x128xf32>
    %c116_245 = arith.constant 116 : index
    %c0_246 = arith.constant 0 : index
    %211 = vector.load %arg23[%c116_245, %c0_246] : memref<136x128xf32, #tpu.memory_space<vmem>>, vector<16x128xf32>
    tpu.vector_store %arg23[%c116_245, %c0_246], %210 {strides = array<i32>} : memref<136x128xf32, #tpu.memory_space<vmem>>, vector<16x128xf32>,
    %c1_247 = arith.constant 1 : index
    %c0_248 = arith.constant 0 : index
    %212 = vector.load %arg23[%c1_247, %c0_248] : memref<136x128xf32, #tpu.memory_space<vmem>>, vector<104x128xf32>
    %c0_249 = arith.constant 0 : index
    %c0_250 = arith.constant 0 : index
    %c0_251 = arith.constant 0 : index
    %213 = vector.load %arg12[%c0_249, %c0_250, %c0_251] : memref<7x128x128xf32, #tpu.memory_space<vmem>>, vector<1x128x128xf32>
    %214 = vector.shape_cast %213 : vector<1x128x128xf32> to vector<128x128xf32>
    %cst_252 = arith.constant dense<0.000000e+00> : vector<104x128xf32>
    %215 = tpu.matmul %212, %214, %cst_252 {dimension_numbers = #tpu.dot_dimension_numbers<[1], [0], [0], [1], [0, 0, 1, 1], [], []>} : vector<104x128xf32>, vector<128x128xf32>, vector<104x128xf32> -> vector<104x128xf32>
    %c6_253 = arith.constant 6 : index
    %c0_254 = arith.constant 0 : index
    %216 = vector.load %arg23[%c6_253, %c0_254] : memref<136x128xf32, #tpu.memory_space<vmem>>, vector<104x128xf32>
    %c1_255 = arith.constant 1 : index
    %c0_256 = arith.constant 0 : index
    %c0_257 = arith.constant 0 : index
    %217 = vector.load %arg12[%c1_255, %c0_256, %c0_257] : memref<7x128x128xf32, #tpu.memory_space<vmem>>, vector<1x128x128xf32>
    %218 = vector.shape_cast %217 : vector<1x128x128xf32> to vector<128x128xf32>
    %cst_258 = arith.constant dense<0.000000e+00> : vector<104x128xf32>
    %219 = tpu.matmul %216, %218, %cst_258 {dimension_numbers = #tpu.dot_dimension_numbers<[1], [0], [0], [1], [0, 0, 1, 1], [], []>} : vector<104x128xf32>, vector<128x128xf32>, vector<104x128xf32> -> vector<104x128xf32>
    %220 = arith.addf %215, %219 : vector<104x128xf32>
    %c11_259 = arith.constant 11 : index
    %c0_260 = arith.constant 0 : index
    %221 = vector.load %arg23[%c11_259, %c0_260] : memref<136x128xf32, #tpu.memory_space<vmem>>, vector<104x128xf32>
    %c2_261 = arith.constant 2 : index
    %c0_262 = arith.constant 0 : index
    %c0_263 = arith.constant 0 : index
    %222 = vector.load %arg12[%c2_261, %c0_262, %c0_263] : memref<7x128x128xf32, #tpu.memory_space<vmem>>, vector<1x128x128xf32>
    %223 = vector.shape_cast %222 : vector<1x128x128xf32> to vector<128x128xf32>
    %cst_264 = arith.constant dense<0.000000e+00> : vector<104x128xf32>
    %224 = tpu.matmul %221, %223, %cst_264 {dimension_numbers = #tpu.dot_dimension_numbers<[1], [0], [0], [1], [0, 0, 1, 1], [], []>} : vector<104x128xf32>, vector<128x128xf32>, vector<104x128xf32> -> vector<104x128xf32>
    %225 = arith.addf %220, %224 : vector<104x128xf32>
    %c16_265 = arith.constant 16 : index
    %c0_266 = arith.constant 0 : index
    %226 = vector.load %arg23[%c16_265, %c0_266] : memref<136x128xf32, #tpu.memory_space<vmem>>, vector<104x128xf32>
    %c3_267 = arith.constant 3 : index
    %c0_268 = arith.constant 0 : index
    %c0_269 = arith.constant 0 : index
    %227 = vector.load %arg12[%c3_267, %c0_268, %c0_269] : memref<7x128x128xf32, #tpu.memory_space<vmem>>, vector<1x128x128xf32>
    %228 = vector.shape_cast %227 : vector<1x128x128xf32> to vector<128x128xf32>
    %cst_270 = arith.constant dense<0.000000e+00> : vector<104x128xf32>
    %229 = tpu.matmul %226, %228, %cst_270 {dimension_numbers = #tpu.dot_dimension_numbers<[1], [0], [0], [1], [0, 0, 1, 1], [], []>} : vector<104x128xf32>, vector<128x128xf32>, vector<104x128xf32> -> vector<104x128xf32>
    %230 = arith.addf %225, %229 : vector<104x128xf32>
    %c21_271 = arith.constant 21 : index
    %c0_272 = arith.constant 0 : index
    %231 = vector.load %arg23[%c21_271, %c0_272] : memref<136x128xf32, #tpu.memory_space<vmem>>, vector<104x128xf32>
    %c4_273 = arith.constant 4 : index
    %c0_274 = arith.constant 0 : index
    %c0_275 = arith.constant 0 : index
    %232 = vector.load %arg12[%c4_273, %c0_274, %c0_275] : memref<7x128x128xf32, #tpu.memory_space<vmem>>, vector<1x128x128xf32>
    %233 = vector.shape_cast %232 : vector<1x128x128xf32> to vector<128x128xf32>
    %cst_276 = arith.constant dense<0.000000e+00> : vector<104x128xf32>
    %234 = tpu.matmul %231, %233, %cst_276 {dimension_numbers = #tpu.dot_dimension_numbers<[1], [0], [0], [1], [0, 0, 1, 1], [], []>} : vector<104x128xf32>, vector<128x128xf32>, vector<104x128xf32> -> vector<104x128xf32>
    %235 = arith.addf %230, %234 : vector<104x128xf32>
    %c26_277 = arith.constant 26 : index
    %c0_278 = arith.constant 0 : index
    %236 = vector.load %arg23[%c26_277, %c0_278] : memref<136x128xf32, #tpu.memory_space<vmem>>, vector<104x128xf32>
    %c5_279 = arith.constant 5 : index
    %c0_280 = arith.constant 0 : index
    %c0_281 = arith.constant 0 : index
    %237 = vector.load %arg12[%c5_279, %c0_280, %c0_281] : memref<7x128x128xf32, #tpu.memory_space<vmem>>, vector<1x128x128xf32>
    %238 = vector.shape_cast %237 : vector<1x128x128xf32> to vector<128x128xf32>
    %cst_282 = arith.constant dense<0.000000e+00> : vector<104x128xf32>
    %239 = tpu.matmul %236, %238, %cst_282 {dimension_numbers = #tpu.dot_dimension_numbers<[1], [0], [0], [1], [0, 0, 1, 1], [], []>} : vector<104x128xf32>, vector<128x128xf32>, vector<104x128xf32> -> vector<104x128xf32>
    %240 = arith.addf %235, %239 : vector<104x128xf32>
    %c31_283 = arith.constant 31 : index
    %c0_284 = arith.constant 0 : index
    %241 = vector.load %arg23[%c31_283, %c0_284] : memref<136x128xf32, #tpu.memory_space<vmem>>, vector<104x128xf32>
    %c6_285 = arith.constant 6 : index
    %c0_286 = arith.constant 0 : index
    %c0_287 = arith.constant 0 : index
    %242 = vector.load %arg12[%c6_285, %c0_286, %c0_287] : memref<7x128x128xf32, #tpu.memory_space<vmem>>, vector<1x128x128xf32>
    %243 = vector.shape_cast %242 : vector<1x128x128xf32> to vector<128x128xf32>
    %cst_288 = arith.constant dense<0.000000e+00> : vector<104x128xf32>
    %244 = tpu.matmul %241, %243, %cst_288 {dimension_numbers = #tpu.dot_dimension_numbers<[1], [0], [0], [1], [0, 0, 1, 1], [], []>} : vector<104x128xf32>, vector<128x128xf32>, vector<104x128xf32> -> vector<104x128xf32>
    %245 = arith.addf %240, %244 : vector<104x128xf32>
    %c0_289 = arith.constant 0 : index
    %c0_290 = arith.constant 0 : index
    %246 = vector.load %arg13[%c0_289, %c0_290] : memref<1x128xf32, #tpu.memory_space<vmem>>, vector<1x128xf32>
    %247 = vector.broadcast %246 : vector<1x128xf32> to vector<104x128xf32>
    %248 = arith.addf %245, %247 : vector<104x128xf32>
    %c16_291 = arith.constant 16 : index
    %c0_292 = arith.constant 0 : index
    %249 = vector.load %arg22[%c16_291, %c0_292] : memref<136x128xf32, #tpu.memory_space<vmem>>, vector<104x128xf32>
    tpu.vector_store %arg22[%c16_291, %c0_292], %248 {strides = array<i32>} : memref<136x128xf32, #tpu.memory_space<vmem>>, vector<104x128xf32>,
    %cst_293 = arith.constant 0.000000e+00 : f32
    %250 = vector.broadcast %cst_293 : f32 to vector<2x128xf32>
    %c14_294 = arith.constant 14 : index
    %c0_295 = arith.constant 0 : index
    %251 = vector.load %arg22[%c14_294, %c0_295] : memref<136x128xf32, #tpu.memory_space<vmem>>, vector<2x128xf32>
    tpu.vector_store %arg22[%c14_294, %c0_295], %250 {strides = array<i32>} : memref<136x128xf32, #tpu.memory_space<vmem>>, vector<2x128xf32>,
    %cst_296 = arith.constant 0.000000e+00 : f32
    %252 = vector.broadcast %cst_296 : f32 to vector<2x128xf32>
    %c116_297 = arith.constant 116 : index
    %c0_298 = arith.constant 0 : index
    %253 = vector.load %arg22[%c116_297, %c0_298] : memref<136x128xf32, #tpu.memory_space<vmem>>, vector<2x128xf32>
    tpu.vector_store %arg22[%c116_297, %c0_298], %252 {strides = array<i32>} : memref<136x128xf32, #tpu.memory_space<vmem>>, vector<2x128xf32>,
    %c14_299 = arith.constant 14 : index
    %c0_300 = arith.constant 0 : index
    %254 = vector.load %arg22[%c14_299, %c0_300] : memref<136x128xf32, #tpu.memory_space<vmem>>, vector<104x128xf32>
    %c15_301 = arith.constant 15 : index
    %c0_302 = arith.constant 0 : index
    %255 = vector.load %arg22[%c15_301, %c0_302] : memref<136x128xf32, #tpu.memory_space<vmem>>, vector<104x128xf32>
    %256 = arith.addf %254, %255 : vector<104x128xf32>
    %c16_303 = arith.constant 16 : index
    %c0_304 = arith.constant 0 : index
    %257 = vector.load %arg22[%c16_303, %c0_304] : memref<136x128xf32, #tpu.memory_space<vmem>>, vector<104x128xf32>
    %258 = arith.addf %256, %257 : vector<104x128xf32>
    %c17_305 = arith.constant 17 : index
    %c0_306 = arith.constant 0 : index
    %259 = vector.load %arg22[%c17_305, %c0_306] : memref<136x128xf32, #tpu.memory_space<vmem>>, vector<104x128xf32>
    %260 = arith.addf %258, %259 : vector<104x128xf32>
    %c18_307 = arith.constant 18 : index
    %c0_308 = arith.constant 0 : index
    %261 = vector.load %arg22[%c18_307, %c0_308] : memref<136x128xf32, #tpu.memory_space<vmem>>, vector<104x128xf32>
    %262 = arith.addf %260, %261 : vector<104x128xf32>
    %263 = arith.mulf %262, %0 : vector<104x128xf32>
    %cst_309 = arith.constant 0.000000e+00 : f32
    %264 = vector.broadcast %cst_309 : f32 to vector<104x128xf32>
    %265 = arith.maximumf %263, %264 : vector<104x128xf32>
    %c16_310 = arith.constant 16 : index
    %c0_311 = arith.constant 0 : index
    %266 = vector.load %arg23[%c16_310, %c0_311] : memref<136x128xf32, #tpu.memory_space<vmem>>, vector<104x128xf32>
    tpu.vector_store %arg23[%c16_310, %c0_311], %265 {strides = array<i32>} : memref<136x128xf32, #tpu.memory_space<vmem>>, vector<104x128xf32>,
    %c17_312 = arith.constant 17 : index
    %c0_313 = arith.constant 0 : index
    %267 = vector.load %arg23[%c17_312, %c0_313] : memref<136x128xf32, #tpu.memory_space<vmem>>, vector<16x128xf32>
    %cst_314 = arith.constant dense<0.000000e+00> : vector<16x128xf32>
    %268 = tpu.matmul %1, %267, %cst_314 {dimension_numbers = #tpu.dot_dimension_numbers<[1], [0], [0], [1], [0, 0, 1, 1], [], []>} : vector<16x16xf32>, vector<16x128xf32>, vector<16x128xf32> -> vector<16x128xf32>
    %c0_315 = arith.constant 0 : index
    %c0_316 = arith.constant 0 : index
    %269 = vector.load %arg23[%c0_315, %c0_316] : memref<136x128xf32, #tpu.memory_space<vmem>>, vector<16x128xf32>
    tpu.vector_store %arg23[%c0_315, %c0_316], %268 {strides = array<i32>} : memref<136x128xf32, #tpu.memory_space<vmem>>, vector<16x128xf32>,
    %c99_317 = arith.constant 99 : index
    %c0_318 = arith.constant 0 : index
    %270 = vector.load %arg23[%c99_317, %c0_318] : memref<136x128xf32, #tpu.memory_space<vmem>>, vector<16x128xf32>
    %cst_319 = arith.constant dense<0.000000e+00> : vector<16x128xf32>
    %271 = tpu.matmul %1, %270, %cst_319 {dimension_numbers = #tpu.dot_dimension_numbers<[1], [0], [0], [1], [0, 0, 1, 1], [], []>} : vector<16x16xf32>, vector<16x128xf32>, vector<16x128xf32> -> vector<16x128xf32>
    %c116_320 = arith.constant 116 : index
    %c0_321 = arith.constant 0 : index
    %272 = vector.load %arg23[%c116_320, %c0_321] : memref<136x128xf32, #tpu.memory_space<vmem>>, vector<16x128xf32>
    tpu.vector_store %arg23[%c116_320, %c0_321], %271 {strides = array<i32>} : memref<136x128xf32, #tpu.memory_space<vmem>>, vector<16x128xf32>,
    %c1_322 = arith.constant 1 : index
    %c0_323 = arith.constant 0 : index
    %273 = vector.load %arg23[%c1_322, %c0_323] : memref<136x128xf32, #tpu.memory_space<vmem>>, vector<104x128xf32>
    %c0_324 = arith.constant 0 : index
    %c0_325 = arith.constant 0 : index
    %c0_326 = arith.constant 0 : index
    %274 = vector.load %arg14[%c0_324, %c0_325, %c0_326] : memref<7x128x128xf32, #tpu.memory_space<vmem>>, vector<1x128x128xf32>
    %275 = vector.shape_cast %274 : vector<1x128x128xf32> to vector<128x128xf32>
    %cst_327 = arith.constant dense<0.000000e+00> : vector<104x128xf32>
    %276 = tpu.matmul %273, %275, %cst_327 {dimension_numbers = #tpu.dot_dimension_numbers<[1], [0], [0], [1], [0, 0, 1, 1], [], []>} : vector<104x128xf32>, vector<128x128xf32>, vector<104x128xf32> -> vector<104x128xf32>
    %c6_328 = arith.constant 6 : index
    %c0_329 = arith.constant 0 : index
    %277 = vector.load %arg23[%c6_328, %c0_329] : memref<136x128xf32, #tpu.memory_space<vmem>>, vector<104x128xf32>
    %c1_330 = arith.constant 1 : index
    %c0_331 = arith.constant 0 : index
    %c0_332 = arith.constant 0 : index
    %278 = vector.load %arg14[%c1_330, %c0_331, %c0_332] : memref<7x128x128xf32, #tpu.memory_space<vmem>>, vector<1x128x128xf32>
    %279 = vector.shape_cast %278 : vector<1x128x128xf32> to vector<128x128xf32>
    %cst_333 = arith.constant dense<0.000000e+00> : vector<104x128xf32>
    %280 = tpu.matmul %277, %279, %cst_333 {dimension_numbers = #tpu.dot_dimension_numbers<[1], [0], [0], [1], [0, 0, 1, 1], [], []>} : vector<104x128xf32>, vector<128x128xf32>, vector<104x128xf32> -> vector<104x128xf32>
    %281 = arith.addf %276, %280 : vector<104x128xf32>
    %c11_334 = arith.constant 11 : index
    %c0_335 = arith.constant 0 : index
    %282 = vector.load %arg23[%c11_334, %c0_335] : memref<136x128xf32, #tpu.memory_space<vmem>>, vector<104x128xf32>
    %c2_336 = arith.constant 2 : index
    %c0_337 = arith.constant 0 : index
    %c0_338 = arith.constant 0 : index
    %283 = vector.load %arg14[%c2_336, %c0_337, %c0_338] : memref<7x128x128xf32, #tpu.memory_space<vmem>>, vector<1x128x128xf32>
    %284 = vector.shape_cast %283 : vector<1x128x128xf32> to vector<128x128xf32>
    %cst_339 = arith.constant dense<0.000000e+00> : vector<104x128xf32>
    %285 = tpu.matmul %282, %284, %cst_339 {dimension_numbers = #tpu.dot_dimension_numbers<[1], [0], [0], [1], [0, 0, 1, 1], [], []>} : vector<104x128xf32>, vector<128x128xf32>, vector<104x128xf32> -> vector<104x128xf32>
    %286 = arith.addf %281, %285 : vector<104x128xf32>
    %c16_340 = arith.constant 16 : index
    %c0_341 = arith.constant 0 : index
    %287 = vector.load %arg23[%c16_340, %c0_341] : memref<136x128xf32, #tpu.memory_space<vmem>>, vector<104x128xf32>
    %c3_342 = arith.constant 3 : index
    %c0_343 = arith.constant 0 : index
    %c0_344 = arith.constant 0 : index
    %288 = vector.load %arg14[%c3_342, %c0_343, %c0_344] : memref<7x128x128xf32, #tpu.memory_space<vmem>>, vector<1x128x128xf32>
    %289 = vector.shape_cast %288 : vector<1x128x128xf32> to vector<128x128xf32>
    %cst_345 = arith.constant dense<0.000000e+00> : vector<104x128xf32>
    %290 = tpu.matmul %287, %289, %cst_345 {dimension_numbers = #tpu.dot_dimension_numbers<[1], [0], [0], [1], [0, 0, 1, 1], [], []>} : vector<104x128xf32>, vector<128x128xf32>, vector<104x128xf32> -> vector<104x128xf32>
    %291 = arith.addf %286, %290 : vector<104x128xf32>
    %c21_346 = arith.constant 21 : index
    %c0_347 = arith.constant 0 : index
    %292 = vector.load %arg23[%c21_346, %c0_347] : memref<136x128xf32, #tpu.memory_space<vmem>>, vector<104x128xf32>
    %c4_348 = arith.constant 4 : index
    %c0_349 = arith.constant 0 : index
    %c0_350 = arith.constant 0 : index
    %293 = vector.load %arg14[%c4_348, %c0_349, %c0_350] : memref<7x128x128xf32, #tpu.memory_space<vmem>>, vector<1x128x128xf32>
    %294 = vector.shape_cast %293 : vector<1x128x128xf32> to vector<128x128xf32>
    %cst_351 = arith.constant dense<0.000000e+00> : vector<104x128xf32>
    %295 = tpu.matmul %292, %294, %cst_351 {dimension_numbers = #tpu.dot_dimension_numbers<[1], [0], [0], [1], [0, 0, 1, 1], [], []>} : vector<104x128xf32>, vector<128x128xf32>, vector<104x128xf32> -> vector<104x128xf32>
    %296 = arith.addf %291, %295 : vector<104x128xf32>
    %c26_352 = arith.constant 26 : index
    %c0_353 = arith.constant 0 : index
    %297 = vector.load %arg23[%c26_352, %c0_353] : memref<136x128xf32, #tpu.memory_space<vmem>>, vector<104x128xf32>
    %c5_354 = arith.constant 5 : index
    %c0_355 = arith.constant 0 : index
    %c0_356 = arith.constant 0 : index
    %298 = vector.load %arg14[%c5_354, %c0_355, %c0_356] : memref<7x128x128xf32, #tpu.memory_space<vmem>>, vector<1x128x128xf32>
    %299 = vector.shape_cast %298 : vector<1x128x128xf32> to vector<128x128xf32>
    %cst_357 = arith.constant dense<0.000000e+00> : vector<104x128xf32>
    %300 = tpu.matmul %297, %299, %cst_357 {dimension_numbers = #tpu.dot_dimension_numbers<[1], [0], [0], [1], [0, 0, 1, 1], [], []>} : vector<104x128xf32>, vector<128x128xf32>, vector<104x128xf32> -> vector<104x128xf32>
    %301 = arith.addf %296, %300 : vector<104x128xf32>
    %c31_358 = arith.constant 31 : index
    %c0_359 = arith.constant 0 : index
    %302 = vector.load %arg23[%c31_358, %c0_359] : memref<136x128xf32, #tpu.memory_space<vmem>>, vector<104x128xf32>
    %c6_360 = arith.constant 6 : index
    %c0_361 = arith.constant 0 : index
    %c0_362 = arith.constant 0 : index
    %303 = vector.load %arg14[%c6_360, %c0_361, %c0_362] : memref<7x128x128xf32, #tpu.memory_space<vmem>>, vector<1x128x128xf32>
    %304 = vector.shape_cast %303 : vector<1x128x128xf32> to vector<128x128xf32>
    %cst_363 = arith.constant dense<0.000000e+00> : vector<104x128xf32>
    %305 = tpu.matmul %302, %304, %cst_363 {dimension_numbers = #tpu.dot_dimension_numbers<[1], [0], [0], [1], [0, 0, 1, 1], [], []>} : vector<104x128xf32>, vector<128x128xf32>, vector<104x128xf32> -> vector<104x128xf32>
    %306 = arith.addf %301, %305 : vector<104x128xf32>
    %c0_364 = arith.constant 0 : index
    %c0_365 = arith.constant 0 : index
    %307 = vector.load %arg15[%c0_364, %c0_365] : memref<1x128xf32, #tpu.memory_space<vmem>>, vector<1x128xf32>
    %308 = vector.broadcast %307 : vector<1x128xf32> to vector<104x128xf32>
    %309 = arith.addf %306, %308 : vector<104x128xf32>
    %cst_366 = arith.constant 0.000000e+00 : f32
    %310 = vector.broadcast %cst_366 : f32 to vector<104x128xf32>
    %311 = arith.maximumf %309, %310 : vector<104x128xf32>
    %c16_367 = arith.constant 16 : index
    %c0_368 = arith.constant 0 : index
    %312 = vector.load %arg22[%c16_367, %c0_368] : memref<136x128xf32, #tpu.memory_space<vmem>>, vector<104x128xf32>
    tpu.vector_store %arg22[%c16_367, %c0_368], %311 {strides = array<i32>} : memref<136x128xf32, #tpu.memory_space<vmem>>, vector<104x128xf32>,
    %c16_369 = arith.constant 16 : index
    %c0_370 = arith.constant 0 : index
    %313 = vector.load %arg22[%c16_369, %c0_370] : memref<136x128xf32, #tpu.memory_space<vmem>>, vector<104x128xf32>
    %c0_371 = arith.constant 0 : index
    %c0_372 = arith.constant 0 : index
    %314 = vector.load %arg16[%c0_371, %c0_372] : memref<128x128xf32, #tpu.memory_space<vmem>>, vector<128x128xf32>
    %cst_373 = arith.constant dense<0.000000e+00> : vector<104x128xf32>
    %315 = tpu.matmul %313, %314, %cst_373 {dimension_numbers = #tpu.dot_dimension_numbers<[1], [0], [0], [1], [0, 0, 1, 1], [], []>} : vector<104x128xf32>, vector<128x128xf32>, vector<104x128xf32> -> vector<104x128xf32>
    %c0_374 = arith.constant 0 : index
    %c0_375 = arith.constant 0 : index
    %316 = vector.load %arg24[%c0_374, %c0_375] : memref<104x128xf32, #tpu.memory_space<vmem>>, vector<104x128xf32>
    %317 = arith.addf %315, %316 : vector<104x128xf32>
    %c0_376 = arith.constant 0 : index
    %c0_377 = arith.constant 0 : index
    %318 = vector.load %arg18[%c0_376, %c0_377] : memref<1x128xf32, #tpu.memory_space<vmem>>, vector<1x128xf32>
    %319 = vector.broadcast %318 : vector<1x128xf32> to vector<104x128xf32>
    %320 = arith.addf %317, %319 : vector<104x128xf32>
    %cst_378 = arith.constant 0.000000e+00 : f32
    %321 = vector.broadcast %cst_378 : f32 to vector<104x128xf32>
    %322 = arith.maximumf %320, %321 : vector<104x128xf32>
    %c16_379 = arith.constant 16 : index
    %c0_380 = arith.constant 0 : index
    %323 = vector.load %arg23[%c16_379, %c0_380] : memref<136x128xf32, #tpu.memory_space<vmem>>, vector<104x128xf32>
    tpu.vector_store %arg23[%c16_379, %c0_380], %322 {strides = array<i32>} : memref<136x128xf32, #tpu.memory_space<vmem>>, vector<104x128xf32>,
    %c17_381 = arith.constant 17 : index
    %c0_382 = arith.constant 0 : index
    %324 = vector.load %arg23[%c17_381, %c0_382] : memref<136x128xf32, #tpu.memory_space<vmem>>, vector<16x128xf32>
    %cst_383 = arith.constant dense<0.000000e+00> : vector<16x128xf32>
    %325 = tpu.matmul %1, %324, %cst_383 {dimension_numbers = #tpu.dot_dimension_numbers<[1], [0], [0], [1], [0, 0, 1, 1], [], []>} : vector<16x16xf32>, vector<16x128xf32>, vector<16x128xf32> -> vector<16x128xf32>
    %c0_384 = arith.constant 0 : index
    %c0_385 = arith.constant 0 : index
    %326 = vector.load %arg23[%c0_384, %c0_385] : memref<136x128xf32, #tpu.memory_space<vmem>>, vector<16x128xf32>
    tpu.vector_store %arg23[%c0_384, %c0_385], %325 {strides = array<i32>} : memref<136x128xf32, #tpu.memory_space<vmem>>, vector<16x128xf32>,
    %c99_386 = arith.constant 99 : index
    %c0_387 = arith.constant 0 : index
    %327 = vector.load %arg23[%c99_386, %c0_387] : memref<136x128xf32, #tpu.memory_space<vmem>>, vector<16x128xf32>
    %cst_388 = arith.constant dense<0.000000e+00> : vector<16x128xf32>
    %328 = tpu.matmul %1, %327, %cst_388 {dimension_numbers = #tpu.dot_dimension_numbers<[1], [0], [0], [1], [0, 0, 1, 1], [], []>} : vector<16x16xf32>, vector<16x128xf32>, vector<16x128xf32> -> vector<16x128xf32>
    %c116_389 = arith.constant 116 : index
    %c0_390 = arith.constant 0 : index
    %329 = vector.load %arg23[%c116_389, %c0_390] : memref<136x128xf32, #tpu.memory_space<vmem>>, vector<16x128xf32>
    tpu.vector_store %arg23[%c116_389, %c0_390], %328 {strides = array<i32>} : memref<136x128xf32, #tpu.memory_space<vmem>>, vector<16x128xf32>,
    %c13_391 = arith.constant 13 : index
    %c0_392 = arith.constant 0 : index
    %330 = vector.load %arg23[%c13_391, %c0_392] : memref<136x128xf32, #tpu.memory_space<vmem>>, vector<104x128xf32>
    %c0_393 = arith.constant 0 : index
    %c0_394 = arith.constant 0 : index
    %c0_395 = arith.constant 0 : index
    %331 = vector.load %arg19[%c0_393, %c0_394, %c0_395] : memref<7x128x128xf32, #tpu.memory_space<vmem>>, vector<1x128x128xf32>
    %332 = vector.shape_cast %331 : vector<1x128x128xf32> to vector<128x128xf32>
    %cst_396 = arith.constant dense<0.000000e+00> : vector<104x128xf32>
    %333 = tpu.matmul %330, %332, %cst_396 {dimension_numbers = #tpu.dot_dimension_numbers<[1], [0], [0], [1], [0, 0, 1, 1], [], []>} : vector<104x128xf32>, vector<128x128xf32>, vector<104x128xf32> -> vector<104x128xf32>
    %c14_397 = arith.constant 14 : index
    %c0_398 = arith.constant 0 : index
    %334 = vector.load %arg23[%c14_397, %c0_398] : memref<136x128xf32, #tpu.memory_space<vmem>>, vector<104x128xf32>
    %c1_399 = arith.constant 1 : index
    %c0_400 = arith.constant 0 : index
    %c0_401 = arith.constant 0 : index
    %335 = vector.load %arg19[%c1_399, %c0_400, %c0_401] : memref<7x128x128xf32, #tpu.memory_space<vmem>>, vector<1x128x128xf32>
    %336 = vector.shape_cast %335 : vector<1x128x128xf32> to vector<128x128xf32>
    %cst_402 = arith.constant dense<0.000000e+00> : vector<104x128xf32>
    %337 = tpu.matmul %334, %336, %cst_402 {dimension_numbers = #tpu.dot_dimension_numbers<[1], [0], [0], [1], [0, 0, 1, 1], [], []>} : vector<104x128xf32>, vector<128x128xf32>, vector<104x128xf32> -> vector<104x128xf32>
    %338 = arith.addf %333, %337 : vector<104x128xf32>
    %c15_403 = arith.constant 15 : index
    %c0_404 = arith.constant 0 : index
    %339 = vector.load %arg23[%c15_403, %c0_404] : memref<136x128xf32, #tpu.memory_space<vmem>>, vector<104x128xf32>
    %c2_405 = arith.constant 2 : index
    %c0_406 = arith.constant 0 : index
    %c0_407 = arith.constant 0 : index
    %340 = vector.load %arg19[%c2_405, %c0_406, %c0_407] : memref<7x128x128xf32, #tpu.memory_space<vmem>>, vector<1x128x128xf32>
    %341 = vector.shape_cast %340 : vector<1x128x128xf32> to vector<128x128xf32>
    %cst_408 = arith.constant dense<0.000000e+00> : vector<104x128xf32>
    %342 = tpu.matmul %339, %341, %cst_408 {dimension_numbers = #tpu.dot_dimension_numbers<[1], [0], [0], [1], [0, 0, 1, 1], [], []>} : vector<104x128xf32>, vector<128x128xf32>, vector<104x128xf32> -> vector<104x128xf32>
    %343 = arith.addf %338, %342 : vector<104x128xf32>
    %c16_409 = arith.constant 16 : index
    %c0_410 = arith.constant 0 : index
    %344 = vector.load %arg23[%c16_409, %c0_410] : memref<136x128xf32, #tpu.memory_space<vmem>>, vector<104x128xf32>
    %c3_411 = arith.constant 3 : index
    %c0_412 = arith.constant 0 : index
    %c0_413 = arith.constant 0 : index
    %345 = vector.load %arg19[%c3_411, %c0_412, %c0_413] : memref<7x128x128xf32, #tpu.memory_space<vmem>>, vector<1x128x128xf32>
    %346 = vector.shape_cast %345 : vector<1x128x128xf32> to vector<128x128xf32>
    %cst_414 = arith.constant dense<0.000000e+00> : vector<104x128xf32>
    %347 = tpu.matmul %344, %346, %cst_414 {dimension_numbers = #tpu.dot_dimension_numbers<[1], [0], [0], [1], [0, 0, 1, 1], [], []>} : vector<104x128xf32>, vector<128x128xf32>, vector<104x128xf32> -> vector<104x128xf32>
    %348 = arith.addf %343, %347 : vector<104x128xf32>
    %c17_415 = arith.constant 17 : index
    %c0_416 = arith.constant 0 : index
    %349 = vector.load %arg23[%c17_415, %c0_416] : memref<136x128xf32, #tpu.memory_space<vmem>>, vector<104x128xf32>
    %c4_417 = arith.constant 4 : index
    %c0_418 = arith.constant 0 : index
    %c0_419 = arith.constant 0 : index
    %350 = vector.load %arg19[%c4_417, %c0_418, %c0_419] : memref<7x128x128xf32, #tpu.memory_space<vmem>>, vector<1x128x128xf32>
    %351 = vector.shape_cast %350 : vector<1x128x128xf32> to vector<128x128xf32>
    %cst_420 = arith.constant dense<0.000000e+00> : vector<104x128xf32>
    %352 = tpu.matmul %349, %351, %cst_420 {dimension_numbers = #tpu.dot_dimension_numbers<[1], [0], [0], [1], [0, 0, 1, 1], [], []>} : vector<104x128xf32>, vector<128x128xf32>, vector<104x128xf32> -> vector<104x128xf32>
    %353 = arith.addf %348, %352 : vector<104x128xf32>
    %c18_421 = arith.constant 18 : index
    %c0_422 = arith.constant 0 : index
    %354 = vector.load %arg23[%c18_421, %c0_422] : memref<136x128xf32, #tpu.memory_space<vmem>>, vector<104x128xf32>
    %c5_423 = arith.constant 5 : index
    %c0_424 = arith.constant 0 : index
    %c0_425 = arith.constant 0 : index
    %355 = vector.load %arg19[%c5_423, %c0_424, %c0_425] : memref<7x128x128xf32, #tpu.memory_space<vmem>>, vector<1x128x128xf32>
    %356 = vector.shape_cast %355 : vector<1x128x128xf32> to vector<128x128xf32>
    %cst_426 = arith.constant dense<0.000000e+00> : vector<104x128xf32>
    %357 = tpu.matmul %354, %356, %cst_426 {dimension_numbers = #tpu.dot_dimension_numbers<[1], [0], [0], [1], [0, 0, 1, 1], [], []>} : vector<104x128xf32>, vector<128x128xf32>, vector<104x128xf32> -> vector<104x128xf32>
    %358 = arith.addf %353, %357 : vector<104x128xf32>
    %c19_427 = arith.constant 19 : index
    %c0_428 = arith.constant 0 : index
    %359 = vector.load %arg23[%c19_427, %c0_428] : memref<136x128xf32, #tpu.memory_space<vmem>>, vector<104x128xf32>
    %c6_429 = arith.constant 6 : index
    %c0_430 = arith.constant 0 : index
    %c0_431 = arith.constant 0 : index
    %360 = vector.load %arg19[%c6_429, %c0_430, %c0_431] : memref<7x128x128xf32, #tpu.memory_space<vmem>>, vector<1x128x128xf32>
    %361 = vector.shape_cast %360 : vector<1x128x128xf32> to vector<128x128xf32>
    %cst_432 = arith.constant dense<0.000000e+00> : vector<104x128xf32>
    %362 = tpu.matmul %359, %361, %cst_432 {dimension_numbers = #tpu.dot_dimension_numbers<[1], [0], [0], [1], [0, 0, 1, 1], [], []>} : vector<104x128xf32>, vector<128x128xf32>, vector<104x128xf32> -> vector<104x128xf32>
    %363 = arith.addf %358, %362 : vector<104x128xf32>
    %c0_433 = arith.constant 0 : index
    %c0_434 = arith.constant 0 : index
    %364 = vector.load %arg20[%c0_433, %c0_434] : memref<1x128xf32, #tpu.memory_space<vmem>>, vector<1x128xf32>
    %365 = vector.broadcast %364 : vector<1x128xf32> to vector<104x128xf32>
    %366 = arith.addf %363, %365 : vector<104x128xf32>
    %367 = arith.negf %366 : vector<104x128xf32>
    %368 = math.exp %367 : vector<104x128xf32>
    %cst_435 = arith.constant 1.000000e+00 : f32
    %369 = vector.broadcast %cst_435 : f32 to vector<104x128xf32>
    %370 = arith.addf %369, %368 : vector<104x128xf32>
    %371 = arith.divf %369, %370 : vector<104x128xf32>
    %c0_436 = arith.constant 0 : index
    %c0_437 = arith.constant 0 : index
    %c0_438 = arith.constant 0 : index
    %372 = vector.load %arg21[%c0_436, %c0_437, %c0_438] : memref<1x104x128xf32, #tpu.memory_space<vmem>>, vector<1x104x128xf32>
    %373 = vector.shape_cast %372 : vector<1x104x128xf32> to vector<104x128xf32>
    %374 = vector.shape_cast %371 : vector<104x128xf32> to vector<1x104x128xf32>
    tpu.vector_store %arg21[%c0_436, %c0_437, %c0_438], %374 {strides = array<i32>} : memref<1x104x128xf32, #tpu.memory_space<vmem>>, vector<1x104x128xf32>,
    return
  }
  func.func @transform_0(%arg0: i32) -> (i32, i32, i32) {
    %c0_i32 = arith.constant 0 : i32
    %c0_i32_0 = arith.constant 0 : i32
    %c0_i32_1 = arith.constant 0 : i32
    return %arg0, %c0_i32, %c0_i32_0 : i32, i32, i32
  }
  func.func @transform_1(%arg0: i32) -> (i32, i32) {
    %c0_i32 = arith.constant 0 : i32
    %c0_i32_0 = arith.constant 0 : i32
    %c0_i32_1 = arith.constant 0 : i32
    return %c0_i32, %c0_i32_0 : i32, i32
  }
  func.func @transform_2(%arg0: i32) -> (i32, i32) {
    %c0_i32 = arith.constant 0 : i32
    %c0_i32_0 = arith.constant 0 : i32
    %c0_i32_1 = arith.constant 0 : i32
    return %c0_i32, %c0_i32_0 : i32, i32
  }
  func.func @transform_3(%arg0: i32) -> (i32, i32, i32) {
    %c0_i32 = arith.constant 0 : i32
    %c0_i32_0 = arith.constant 0 : i32
    %c0_i32_1 = arith.constant 0 : i32
    %c0_i32_2 = arith.constant 0 : i32
    return %c0_i32, %c0_i32_0, %c0_i32_1 : i32, i32, i32
  }
  func.func @transform_4(%arg0: i32) -> (i32, i32) {
    %c0_i32 = arith.constant 0 : i32
    %c0_i32_0 = arith.constant 0 : i32
    %c0_i32_1 = arith.constant 0 : i32
    return %c0_i32, %c0_i32_0 : i32, i32
  }
  func.func @transform_5(%arg0: i32) -> (i32, i32, i32) {
    %c0_i32 = arith.constant 0 : i32
    %c0_i32_0 = arith.constant 0 : i32
    %c0_i32_1 = arith.constant 0 : i32
    %c0_i32_2 = arith.constant 0 : i32
    return %c0_i32, %c0_i32_0, %c0_i32_1 : i32, i32, i32
  }
  func.func @transform_6(%arg0: i32) -> (i32, i32) {
    %c0_i32 = arith.constant 0 : i32
    %c0_i32_0 = arith.constant 0 : i32
    %c0_i32_1 = arith.constant 0 : i32
    return %c0_i32, %c0_i32_0 : i32, i32
  }
  func.func @transform_7(%arg0: i32) -> (i32, i32, i32) {
    %c0_i32 = arith.constant 0 : i32
    %c0_i32_0 = arith.constant 0 : i32
    %c0_i32_1 = arith.constant 0 : i32
    %c0_i32_2 = arith.constant 0 : i32
    return %c0_i32, %c0_i32_0, %c0_i32_1 : i32, i32, i32
  }
  func.func @transform_8(%arg0: i32) -> (i32, i32) {
    %c0_i32 = arith.constant 0 : i32
    %c0_i32_0 = arith.constant 0 : i32
    %c0_i32_1 = arith.constant 0 : i32
    return %c0_i32, %c0_i32_0 : i32, i32
  }
  func.func @transform_9(%arg0: i32) -> (i32, i32, i32) {
    %c0_i32 = arith.constant 0 : i32
    %c0_i32_0 = arith.constant 0 : i32
    %c0_i32_1 = arith.constant 0 : i32
    %c0_i32_2 = arith.constant 0 : i32
    return %c0_i32, %c0_i32_0, %c0_i32_1 : i32, i32, i32
  }
  func.func @transform_10(%arg0: i32) -> (i32, i32) {
    %c0_i32 = arith.constant 0 : i32
    %c0_i32_0 = arith.constant 0 : i32
    %c0_i32_1 = arith.constant 0 : i32
    return %c0_i32, %c0_i32_0 : i32, i32
  }
  func.func @transform_11(%arg0: i32) -> (i32, i32, i32) {
    %c0_i32 = arith.constant 0 : i32
    %c0_i32_0 = arith.constant 0 : i32
    %c0_i32_1 = arith.constant 0 : i32
    %c0_i32_2 = arith.constant 0 : i32
    return %c0_i32, %c0_i32_0, %c0_i32_1 : i32, i32, i32
  }
  func.func @transform_12(%arg0: i32) -> (i32, i32) {
    %c0_i32 = arith.constant 0 : i32
    %c0_i32_0 = arith.constant 0 : i32
    %c0_i32_1 = arith.constant 0 : i32
    return %c0_i32, %c0_i32_0 : i32, i32
  }
  func.func @transform_13(%arg0: i32) -> (i32, i32, i32) {
    %c0_i32 = arith.constant 0 : i32
    %c0_i32_0 = arith.constant 0 : i32
    %c0_i32_1 = arith.constant 0 : i32
    %c0_i32_2 = arith.constant 0 : i32
    return %c0_i32, %c0_i32_0, %c0_i32_1 : i32, i32, i32
  }
  func.func @transform_14(%arg0: i32) -> (i32, i32) {
    %c0_i32 = arith.constant 0 : i32
    %c0_i32_0 = arith.constant 0 : i32
    %c0_i32_1 = arith.constant 0 : i32
    return %c0_i32, %c0_i32_0 : i32, i32
  }
  func.func @transform_15(%arg0: i32) -> (i32, i32) {
    %c0_i32 = arith.constant 0 : i32
    %c0_i32_0 = arith.constant 0 : i32
    %c0_i32_1 = arith.constant 0 : i32
    return %c0_i32, %c0_i32_0 : i32, i32
  }
  func.func @transform_16(%arg0: i32) -> (i32, i32) {
    %c0_i32 = arith.constant 0 : i32
    %c0_i32_0 = arith.constant 0 : i32
    %c0_i32_1 = arith.constant 0 : i32
    return %c0_i32, %c0_i32_0 : i32, i32
  }
  func.func @transform_17(%arg0: i32) -> (i32, i32) {
    %c0_i32 = arith.constant 0 : i32
    %c0_i32_0 = arith.constant 0 : i32
    %c0_i32_1 = arith.constant 0 : i32
    return %c0_i32, %c0_i32_0 : i32, i32
  }
  func.func @transform_18(%arg0: i32) -> (i32, i32, i32) {
    %c0_i32 = arith.constant 0 : i32
    %c0_i32_0 = arith.constant 0 : i32
    %c0_i32_1 = arith.constant 0 : i32
    %c0_i32_2 = arith.constant 0 : i32
    return %c0_i32, %c0_i32_0, %c0_i32_1 : i32, i32, i32
  }
  func.func @transform_19(%arg0: i32) -> (i32, i32) {
    %c0_i32 = arith.constant 0 : i32
    %c0_i32_0 = arith.constant 0 : i32
    %c0_i32_1 = arith.constant 0 : i32
    return %c0_i32, %c0_i32_0 : i32, i32
  }
  func.func @transform_20(%arg0: i32) -> (i32, i32, i32) {
    %c0_i32 = arith.constant 0 : i32
    %c0_i32_0 = arith.constant 0 : i32
    %c0_i32_1 = arith.constant 0 : i32
    return %arg0, %c0_i32, %c0_i32_0 : i32, i32, i32
  }
}

</mosaic_0001>

<llo_original>
// kernel: _forward_batched.1
$region0: #{_forward_batched.1}
  #allocation0 [shape = 'u32[]', space=smem, size = 0x4, offset = 0x4, fixed_abs, tag = 'smem constant byte address 0x4 - core index']
  #allocation1 [shape = 'u32[144,128]{1,0:T(1,128)}', space=vmem, size = 0x12000, scoped, tag = 'internal scratch']
  #allocation2 [shape = 'f32[136,128]{1,0:T(8,128)}', space=vmem, size = 0x11000, scoped, tag = 'scratch operand']
  #allocation3 [shape = 'f32[136,128]{1,0:T(8,128)}', space=vmem, size = 0x11000, scoped, tag = 'scratch operand']
  #allocation4 [shape = 'f32[104,128]{1,0:T(8,128)}', space=vmem, size = 0xd000, scoped, tag = 'scratch operand']
  %s0 = inlined_call_operand.vmem [shape: f32[1,104,4], index: 0, kind: input, shape index: {}]
  %s1 = inlined_call_operand.hbm [shape: f32[104,128], index: 1, kind: input, shape index: {}]
  %s2 = inlined_call_operand.vmem [shape: f32[16,16], index: 2, kind: input, shape index: {}]
  %s3 = inlined_call_operand.hbm [shape: f32[7,128,128], index: 3, kind: input, shape index: {}]
  %s4 = inlined_call_operand.vmem [shape: f32[1,128], index: 4, kind: input, shape index: {}]
  %s5 = inlined_call_operand.vmem [shape: f32[1,128,128], index: 5, kind: input, shape index: {}]
  %s6 = inlined_call_operand.vmem [shape: f32[1,128], index: 6, kind: input, shape index: {}]
  %s7 = inlined_call_operand.hbm [shape: f32[7,128,128], index: 7, kind: input, shape index: {}]
  %s8 = inlined_call_operand.vmem [shape: f32[1,128], index: 8, kind: input, shape index: {}]
  %s9 = inlined_call_operand.hbm [shape: f32[7,128,128], index: 9, kind: input, shape index: {}]
  %s10 = inlined_call_operand.vmem [shape: f32[1,128], index: 10, kind: input, shape index: {}]
  %s11 = inlined_call_operand.hbm [shape: f32[7,128,128], index: 11, kind: input, shape index: {}]
  %s12 = inlined_call_operand.vmem [shape: f32[1,128], index: 12, kind: input, shape index: {}]
  %s13 = inlined_call_operand.hbm [shape: f32[7,128,128], index: 13, kind: input, shape index: {}]
  %s14 = inlined_call_operand.vmem [shape: f32[1,128], index: 14, kind: input, shape index: {}]
  %s15 = inlined_call_operand.vmem [shape: f32[128,128], index: 15, kind: input, shape index: {}]
  %s16 = inlined_call_operand.hbm [shape: f32[128,128], index: 16, kind: input, shape index: {}]
  %s17 = inlined_call_operand.vmem [shape: f32[1,128], index: 17, kind: input, shape index: {}]
  %s18 = inlined_call_operand.hbm [shape: f32[7,128,128], index: 18, kind: input, shape index: {}]
  %s19 = inlined_call_operand.vmem [shape: f32[1,128], index: 19, kind: input, shape index: {}]
  %s20 = inlined_call_operand.vmem [shape: f32[1,104,128], index: 20, kind: output, shape index: {}]
  %s21 = sld [smem:[#allocation0]]
  $region122: #{_forward_batched.1} parent=0
    _
  %s23 = ssub.s32 1, %s21
  %s24 = scalar_select 0, %s23, %s21
  $region1: #{_forward_batched.1} parent=0
    #allocation5 [shape = 'u8[53248]{0}', space=vmem, size = 0xd000, scoped, tag = 'input window, operand 1, single buffered']
    #allocation6 [shape = 's32[1]{0}', space=sflag, size = 0x4, scoped, tag = 'scoped memory for _forward_batched.1']
    #allocation7 [shape = 'u8[458752]{0}', space=vmem, size = 0x70000, scoped, tag = 'input window, operand 3, single buffered']
    #allocation8 [shape = 's32[1]{0}', space=sflag, size = 0x4, scoped, tag = 'scoped memory for _forward_batched.1']
    #allocation9 [shape = 'u8[458752]{0}', space=vmem, size = 0x70000, scoped, tag = 'input window, operand 7, single buffered']
    #allocation10 [shape = 'u8[458752]{0}', space=vmem, size = 0x70000, scoped, tag = 'input window, operand 9, single buffered']
    #allocation11 [shape = 's32[1]{0}', space=sflag, size = 0x4, scoped, tag = 'scoped memory for _forward_batched.1']
    #allocation12 [shape = 'u8[458752]{0}', space=vmem, size = 0x70000, scoped, tag = 'input window, operand 11, single buffered']
    #allocation13 [shape = 'u8[458752]{0}', space=vmem, size = 0x70000, scoped, tag = 'input window, operand 13, single buffered']
    #allocation14 [shape = 's32[1]{0}', space=sflag, size = 0x4, scoped, tag = 'scoped memory for _forward_batched.1']
    #allocation15 [shape = 'u8[65536]{0}', space=vmem, size = 0x10000, scoped, tag = 'input window, operand 16, single buffered']
    #allocation16 [shape = 'u8[458752]{0}', space=vmem, size = 0x70000, scoped, tag = 'input window, operand 18, single buffered']
    #allocation17 [shape = 's32[1]{0}', space=sflag, size = 0x4, scoped, tag = 'scoped memory for _forward_batched.1']
    %25 = vsyncpa [#allocation6], 0
    %26 = vsyncpa [#allocation8], 0
    %27 = vsyncpa [#allocation11], 0
    %28 = vsyncpa [#allocation14], 0
    %29 = vsyncpa [#allocation17], 0
    // Predicated region
    $region2: #{_forward_batched.1} parent=1 // pred_check
      _
    $region3: #{_forward_batched.1} parent=1 // pred_check_branch
      %31 = sbr.rel (0) target = $region5
    $region4: #{_forward_batched.1} parent=1 // pred_region
      _
    $region5: #{_forward_batched.1} parent=1 // pred_fallthru
      _
    // Predicated region
    $region6: #{_forward_batched.1} parent=1 // pred_check
      _
    $region7: #{_forward_batched.1} parent=1 // pred_check_branch
      %33 = sbr.rel (0) target = $region9
    $region8: #{_forward_batched.1} parent=1 // pred_region
      %s35 = ssub.s32 1664, 1664
      %36 = vsyncadd [#allocation6], %s35
      %s37 = sshll.u32 [#allocation5], 4
      %s38 = int_to_ptr.vmem [resolvable:$true] %s37
      %43 = dma.hbm_to_vmem [thread:$0]  %s1, 1664, %s38, [#allocation6], 128, 128, 8
    $region9: #{_forward_batched.1} parent=1 // pred_fallthru
      _
    // Predicated region
    $region10: #{_forward_batched.1} parent=1 // pred_check
      _
    $region11: #{_forward_batched.1} parent=1 // pred_check_branch
      %45 = sbr.rel (0) target = $region13
    $region12: #{_forward_batched.1} parent=1 // pred_region
      _
    $region13: #{_forward_batched.1} parent=1 // pred_fallthru
      _
    // Predicated region
    $region14: #{_forward_batched.1} parent=1 // pred_check
      _
    $region15: #{_forward_batched.1} parent=1 // pred_check_branch
      %47 = sbr.rel (0) target = $region17
    $region16: #{_forward_batched.1} parent=1 // pred_region
      %s49 = ssub.s32 14336, 14336
      %50 = vsyncadd [#allocation8], %s49
      %s51 = sshll.u32 [#allocation7], 4
      %s52 = int_to_ptr.vmem [resolvable:$true] %s51
      %57 = dma.hbm_to_vmem [thread:$0]  %s3, 14336, %s52, [#allocation8], 128, 128, 8
    $region17: #{_forward_batched.1} parent=1 // pred_fallthru
      _
    // Predicated region
    $region18: #{_forward_batched.1} parent=1 // pred_check
      _
    $region19: #{_forward_batched.1} parent=1 // pred_check_branch
      %59 = sbr.rel (0) target = $region21
    $region20: #{_forward_batched.1} parent=1 // pred_region
      _
    $region21: #{_forward_batched.1} parent=1 // pred_fallthru
      _
    // Predicated region
    $region22: #{_forward_batched.1} parent=1 // pred_check
      _
    $region23: #{_forward_batched.1} parent=1 // pred_check_branch
      %61 = sbr.rel (0) target = $region25
    $region24: #{_forward_batched.1} parent=1 // pred_region
      _
    $region25: #{_forward_batched.1} parent=1 // pred_fallthru
      _
    // Predicated region
    $region26: #{_forward_batched.1} parent=1 // pred_check
      _
    $region27: #{_forward_batched.1} parent=1 // pred_check_branch
      %63 = sbr.rel (0) target = $region29
    $region28: #{_forward_batched.1} parent=1 // pred_region
      _
    $region29: #{_forward_batched.1} parent=1 // pred_fallthru
      _
    // Predicated region
    $region30: #{_forward_batched.1} parent=1 // pred_check
      _
    $region31: #{_forward_batched.1} parent=1 // pred_check_branch
      %65 = sbr.rel (0) target = $region33
    $region32: #{_forward_batched.1} parent=1 // pred_region
      %s67 = ssub.s32 14336, 14336
      %68 = vsyncadd [#allocation8], %s67
      %s69 = sshll.u32 [#allocation9], 4
      %s70 = int_to_ptr.vmem [resolvable:$true] %s69
      %75 = dma.hbm_to_vmem [thread:$0]  %s7, 14336, %s70, [#allocation8], 128, 128, 8
    $region33: #{_forward_batched.1} parent=1 // pred_fallthru
      _
    // Predicated region
    $region34: #{_forward_batched.1} parent=1 // pred_check
      _
    $region35: #{_forward_batched.1} parent=1 // pred_check_branch
      %77 = sbr.rel (0) target = $region37
    $region36: #{_forward_batched.1} parent=1 // pred_region
      _
    $region37: #{_forward_batched.1} parent=1 // pred_fallthru
      _
    // Predicated region
    $region38: #{_forward_batched.1} parent=1 // pred_check
      _
    $region39: #{_forward_batched.1} parent=1 // pred_check_branch
      %79 = sbr.rel (0) target = $region41
    $region40: #{_forward_batched.1} parent=1 // pred_region
      %s81 = ssub.s32 14336, 14336
      %82 = vsyncadd [#allocation11], %s81
      %s83 = sshll.u32 [#allocation10], 4
      %s84 = int_to_ptr.vmem [resolvable:$true] %s83
      %89 = dma.hbm_to_vmem [thread:$0]  %s9, 14336, %s84, [#allocation11], 128, 128, 8
    $region41: #{_forward_batched.1} parent=1 // pred_fallthru
      _
    // Predicated region
    $region42: #{_forward_batched.1} parent=1 // pred_check
      _
    $region43: #{_forward_batched.1} parent=1 // pred_check_branch
      %91 = sbr.rel (0) target = $region45
    $region44: #{_forward_batched.1} parent=1 // pred_region
      _
    $region45: #{_forward_batched.1} parent=1 // pred_fallthru
      _
    // Predicated region
    $region46: #{_forward_batched.1} parent=1 // pred_check
      _
    $region47: #{_forward_batched.1} parent=1 // pred_check_branch
      %93 = sbr.rel (0) target = $region49
    $region48: #{_forward_batched.1} parent=1 // pred_region
      %s95 = ssub.s32 14336, 14336
      %96 = vsyncadd [#allocation11], %s95
      %s97 = sshll.u32 [#allocation12], 4
      %s98 = int_to_ptr.vmem [resolvable:$true] %s97
      %103 = dma.hbm_to_vmem [thread:$0]  %s11, 14336, %s98, [#allocation11], 128, 128, 8
    $region49: #{_forward_batched.1} parent=1 // pred_fallthru
      _
    // Predicated region
    $region50: #{_forward_batched.1} parent=1 // pred_check
      _
    $region51: #{_forward_batched.1} parent=1 // pred_check_branch
      %105 = sbr.rel (0) target = $region53
    $region52: #{_forward_batched.1} parent=1 // pred_region
      _
    $region53: #{_forward_batched.1} parent=1 // pred_fallthru
      _
    // Predicated region
    $region54: #{_forward_batched.1} parent=1 // pred_check
      _
    $region55: #{_forward_batched.1} parent=1 // pred_check_branch
      %107 = sbr.rel (0) target = $region57
    $region56: #{_forward_batched.1} parent=1 // pred_region
      %s109 = ssub.s32 14336, 14336
      %110 = vsyncadd [#allocation14], %s109
      %s111 = sshll.u32 [#allocation13], 4
      %s112 = int_to_ptr.vmem [resolvable:$true] %s111
      %117 = dma.hbm_to_vmem [thread:$0]  %s13, 14336, %s112, [#allocation14], 128, 128, 8
    $region57: #{_forward_batched.1} parent=1 // pred_fallthru
      _
    // Predicated region
    $region58: #{_forward_batched.1} parent=1 // pred_check
      _
    $region59: #{_forward_batched.1} parent=1 // pred_check_branch
      %119 = sbr.rel (0) target = $region61
    $region60: #{_forward_batched.1} parent=1 // pred_region
      _
    $region61: #{_forward_batched.1} parent=1 // pred_fallthru
      _
    // Predicated region
    $region62: #{_forward_batched.1} parent=1 // pred_check
      _
    $region63: #{_forward_batched.1} parent=1 // pred_check_branch
      %121 = sbr.rel (0) target = $region65
    $region64: #{_forward_batched.1} parent=1 // pred_region
      _
    $region65: #{_forward_batched.1} parent=1 // pred_fallthru
      _
    // Predicated region
    $region66: #{_forward_batched.1} parent=1 // pred_check
      _
    $region67: #{_forward_batched.1} parent=1 // pred_check_branch
      %123 = sbr.rel (0) target = $region69
    $region68: #{_forward_batched.1} parent=1 // pred_region
      %s125 = ssub.s32 2048, 2048
      %126 = vsyncadd [#allocation14], %s125
      %s127 = sshll.u32 [#allocation15], 4
      %s128 = int_to_ptr.vmem [resolvable:$true] %s127
      %133 = dma.hbm_to_vmem [thread:$0]  %s16, 2048, %s128, [#allocation14], 128, 128, 8
    $region69: #{_forward_batched.1} parent=1 // pred_fallthru
      _
    // Predicated region
    $region70: #{_forward_batched.1} parent=1 // pred_check
      _
    $region71: #{_forward_batched.1} parent=1 // pred_check_branch
      %135 = sbr.rel (0) target = $region73
    $region72: #{_forward_batched.1} parent=1 // pred_region
      _
    $region73: #{_forward_batched.1} parent=1 // pred_fallthru
      _
    // Predicated region
    $region74: #{_forward_batched.1} parent=1 // pred_check
      _
    $region75: #{_forward_batched.1} parent=1 // pred_check_branch
      %137 = sbr.rel (0) target = $region77
    $region76: #{_forward_batched.1} parent=1 // pred_region
      %s139 = ssub.s32 14336, 14336
      %140 = vsyncadd [#allocation17], %s139
      %s141 = sshll.u32 [#allocation16], 4
      %s142 = int_to_ptr.vmem [resolvable:$true] %s141
      %147 = dma.hbm_to_vmem [thread:$0]  %s18, 14336, %s142, [#allocation17], 128, 128, 8
    $region77: #{_forward_batched.1} parent=1 // pred_fallthru
      _
    // Predicated region
    $region78: #{_forward_batched.1} parent=1 // pred_check
      _
    $region79: #{_forward_batched.1} parent=1 // pred_check_branch
      %149 = sbr.rel (0) target = $region81
    $region80: #{_forward_batched.1} parent=1 // pred_region
      _
    $region81: #{_forward_batched.1} parent=1 // pred_fallthru
      _
    // Predicated region
    $region82: #{_forward_batched.1} parent=1 // pred_check
      _
    $region83: #{_forward_batched.1} parent=1 // pred_check_branch
      %151 = sbr.rel (0) target = $region85
    $region84: #{_forward_batched.1} parent=1 // pred_region
      %152 = dma.done [#allocation6], 1664
    $region85: #{_forward_batched.1} parent=1 // pred_fallthru
      _
    // Predicated region
    $region86: #{_forward_batched.1} parent=1 // pred_check
      _
    $region87: #{_forward_batched.1} parent=1 // pred_check_branch
      %154 = sbr.rel (0) target = $region89
    $region88: #{_forward_batched.1} parent=1 // pred_region
      %155 = dma.done [#allocation8], 14336
    $region89: #{_forward_batched.1} parent=1 // pred_fallthru
      _
    // Predicated region
    $region90: #{_forward_batched.1} parent=1 // pred_check
      _
    $region91: #{_forward_batched.1} parent=1 // pred_check_branch
      %157 = sbr.rel (0) target = $region93
    $region92: #{_forward_batched.1} parent=1 // pred_region
      %158 = dma.done [#allocation8], 14336
    $region93: #{_forward_batched.1} parent=1 // pred_fallthru
      _
    // Predicated region
    $region94: #{_forward_batched.1} parent=1 // pred_check
      _
    $region95: #{_forward_batched.1} parent=1 // pred_check_branch
      %160 = sbr.rel (0) target = $region97
    $region96: #{_forward_batched.1} parent=1 // pred_region
      %161 = dma.done [#allocation11], 14336
    $region97: #{_forward_batched.1} parent=1 // pred_fallthru
      _
    // Predicated region
    $region98: #{_forward_batched.1} parent=1 // pred_check
      _
    $region99: #{_forward_batched.1} parent=1 // pred_check_branch
      %163 = sbr.rel (0) target = $region101
    $region100: #{_forward_batched.1} parent=1 // pred_region
      %164 = dma.done [#allocation11], 14336
    $region101: #{_forward_batched.1} parent=1 // pred_fallthru
      _
    // Predicated region
    $region102: #{_forward_batched.1} parent=1 // pred_check
      _
    $region103: #{_forward_batched.1} parent=1 // pred_check_branch
      %166 = sbr.rel (0) target = $region105
    $region104: #{_forward_batched.1} parent=1 // pred_region
      %167 = dma.done [#allocation14], 14336
    $region105: #{_forward_batched.1} parent=1 // pred_fallthru
      _
    // Predicated region
    $region106: #{_forward_batched.1} parent=1 // pred_check
      _
    $region107: #{_forward_batched.1} parent=1 // pred_check_branch
      %169 = sbr.rel (0) target = $region109
    $region108: #{_forward_batched.1} parent=1 // pred_region
      %170 = dma.done [#allocation14], 2048
    $region109: #{_forward_batched.1} parent=1 // pred_fallthru
      _
    // Predicated region
    $region110: #{_forward_batched.1} parent=1 // pred_check
      _
    $region111: #{_forward_batched.1} parent=1 // pred_check_branch
      %172 = sbr.rel (0) target = $region113
    $region112: #{_forward_batched.1} parent=1 // pred_region
      %173 = dma.done [#allocation17], 14336
    $region113: #{_forward_batched.1} parent=1 // pred_fallthru
      _
    %v174 = vld [vmem:[#allocation5] sm:$0xff]
    %v175 = vld [vmem:[#allocation5 + $0x8] sm:$0xff]
    %v176 = vld [vmem:[#allocation5 + $0x10] sm:$0xff]
    %v177 = vld [vmem:[#allocation5 + $0x18] sm:$0xff]
    %v178 = vld [vmem:[#allocation5 + $0x20] sm:$0xff]
    %v179 = vld [vmem:[#allocation5 + $0x28] sm:$0xff]
    %v180 = vld [vmem:[#allocation5 + $0x30] sm:$0xff]
    %v181 = vld [vmem:[#allocation5 + $0x38] sm:$0xff]
    %v182 = vld [vmem:[#allocation5 + $0x40] sm:$0xff]
    %v183 = vld [vmem:[#allocation5 + $0x48] sm:$0xff]
    %v184 = vld [vmem:[#allocation5 + $0x50] sm:$0xff]
    %v185 = vld [vmem:[#allocation5 + $0x58] sm:$0xff]
    %v186 = vld [vmem:[#allocation5 + $0x60] sm:$0xff]
    %v187 = vld [vmem:[%s2] sm:$0xff]
    %v188 = vld [vmem:[%s2 + $0x8] sm:$0xff]
    %189 = vst [vmem:[#allocation2] sm:$0xff] 0.0
    %190 = vst [vmem:[#allocation2 + $0x8] sm:$0xff] 0.0
    %191 = vst [vmem:[#allocation2 + $0x10] sm:$0xff] 0.0
    %192 = vst [vmem:[#allocation2 + $0x18] sm:$0xff] 0.0
    %193 = vst [vmem:[#allocation2 + $0x20] sm:$0xff] 0.0
    %194 = vst [vmem:[#allocation2 + $0x28] sm:$0xff] 0.0
    %195 = vst [vmem:[#allocation2 + $0x30] sm:$0xff] 0.0
    %196 = vst [vmem:[#allocation2 + $0x38] sm:$0xff] 0.0
    %197 = vst [vmem:[#allocation2 + $0x40] sm:$0xff] 0.0
    %198 = vst [vmem:[#allocation2 + $0x48] sm:$0xff] 0.0
    %199 = vst [vmem:[#allocation2 + $0x50] sm:$0xff] 0.0
    %200 = vst [vmem:[#allocation2 + $0x58] sm:$0xff] 0.0
    %201 = vst [vmem:[#allocation2 + $0x60] sm:$0xff] 0.0
    %202 = vst [vmem:[#allocation2 + $0x68] sm:$0xff] 0.0
    %203 = vst [vmem:[#allocation2 + $0x70] sm:$0xff] 0.0
    %204 = vst [vmem:[#allocation2 + $0x78] sm:$0xff] 0.0
    %205 = vst [vmem:[#allocation2 + $0x80] sm:$0xff] 0.0
    %206 = vst [vmem:[#allocation3] sm:$0xff] 0.0
    %207 = vst [vmem:[#allocation3 + $0x8] sm:$0xff] 0.0
    %208 = vst [vmem:[#allocation3 + $0x10] sm:$0xff] 0.0
    %209 = vst [vmem:[#allocation3 + $0x18] sm:$0xff] 0.0
    %210 = vst [vmem:[#allocation3 + $0x20] sm:$0xff] 0.0
    %211 = vst [vmem:[#allocation3 + $0x28] sm:$0xff] 0.0
    %212 = vst [vmem:[#allocation3 + $0x30] sm:$0xff] 0.0
    %213 = vst [vmem:[#allocation3 + $0x38] sm:$0xff] 0.0
    %214 = vst [vmem:[#allocation3 + $0x40] sm:$0xff] 0.0
    %215 = vst [vmem:[#allocation3 + $0x48] sm:$0xff] 0.0
    %216 = vst [vmem:[#allocation3 + $0x50] sm:$0xff] 0.0
    %217 = vst [vmem:[#allocation3 + $0x58] sm:$0xff] 0.0
    %218 = vst [vmem:[#allocation3 + $0x60] sm:$0xff] 0.0
    %219 = vst [vmem:[#allocation3 + $0x68] sm:$0xff] 0.0
    %220 = vst [vmem:[#allocation3 + $0x70] sm:$0xff] 0.0
    %221 = vst [vmem:[#allocation3 + $0x78] sm:$0xff] 0.0
    %222 = vst [vmem:[#allocation3 + $0x80] sm:$0xff] 0.0
    %v223 = vld [vmem:[%s0] sm:$0xff]
    %v224 = vld [vmem:[%s0 + $0x8] sm:$0xff]
    %v225 = vld [vmem:[%s0 + $0x10] sm:$0xff]
    %v226 = vld [vmem:[%s0 + $0x18] sm:$0xff]
    %v227 = vld [vmem:[%s0 + $0x20] sm:$0xff]
    %v228 = vld [vmem:[%s0 + $0x28] sm:$0xff]
    %v229 = vld [vmem:[%s0 + $0x30] sm:$0xff]
    %v230 = vld [vmem:[%s0 + $0x38] sm:$0xff]
    %v231 = vld [vmem:[%s0 + $0x40] sm:$0xff]
    %v232 = vld [vmem:[%s0 + $0x48] sm:$0xff]
    %v233 = vld [vmem:[%s0 + $0x50] sm:$0xff]
    %v234 = vld [vmem:[%s0 + $0x58] sm:$0xff]
    %v235 = vld [vmem:[%s0 + $0x60] sm:$0xff]
    %vm236 = vcmask 31744
    %237 = vst.msk [vmem:[#allocation2 + $0x10] sm:$0xff] %vm236, %v223
    %238 = vst.msk [vmem:[#allocation2 + $0x18] sm:$0xff] %vm236, %v224
    %239 = vst.msk [vmem:[#allocation2 + $0x20] sm:$0xff] %vm236, %v225
    %240 = vst.msk [vmem:[#allocation2 + $0x28] sm:$0xff] %vm236, %v226
    %241 = vst.msk [vmem:[#allocation2 + $0x30] sm:$0xff] %vm236, %v227
    %242 = vst.msk [vmem:[#allocation2 + $0x38] sm:$0xff] %vm236, %v228
    %243 = vst.msk [vmem:[#allocation2 + $0x40] sm:$0xff] %vm236, %v229
    %244 = vst.msk [vmem:[#allocation2 + $0x48] sm:$0xff] %vm236, %v230
    %245 = vst.msk [vmem:[#allocation2 + $0x50] sm:$0xff] %vm236, %v231
    %246 = vst.msk [vmem:[#allocation2 + $0x58] sm:$0xff] %vm236, %v232
    %247 = vst.msk [vmem:[#allocation2 + $0x60] sm:$0xff] %vm236, %v233
    %248 = vst.msk [vmem:[#allocation2 + $0x68] sm:$0xff] %vm236, %v234
    %249 = vst.msk [vmem:[#allocation2 + $0x70] sm:$0xff] %vm236, %v235
    %v250 = vld [vmem:[#allocation2 + $0x10] sm:$0xff]
    %v251 = vld [vmem:[#allocation2 + $0x18] sm:$0xff]
    %v252 = vld [vmem:[#allocation2 + $0x20] sm:$0xff]
    %v253 = vld [vmem:[#allocation2 + $0x28] sm:$0xff]
    %v254 = vld [vmem:[#allocation2 + $0x30] sm:$0xff]
    %v255 = vld [vmem:[#allocation2 + $0x38] sm:$0xff]
    %v256 = vld [vmem:[#allocation2 + $0x40] sm:$0xff]
    %v257 = vld [vmem:[#allocation2 + $0x48] sm:$0xff]
    %v258 = vld [vmem:[#allocation2 + $0x50] sm:$0xff]
    %v259 = vld [vmem:[#allocation2 + $0x58] sm:$0xff]
    %v260 = vld [vmem:[#allocation2 + $0x60] sm:$0xff]
    %v261 = vld [vmem:[#allocation2 + $0x68] sm:$0xff]
    %v262 = vld [vmem:[#allocation2 + $0x70] sm:$0xff]
    %v263 = vld [vmem:[#allocation15] sm:$0xff]
    %v264 = vld [vmem:[#allocation15 + $0x8] sm:$0xff]
    %v265 = vld [vmem:[#allocation15 + $0x10] sm:$0xff]
    %v266 = vld [vmem:[#allocation15 + $0x18] sm:$0xff]
    %v267 = vld [vmem:[#allocation15 + $0x20] sm:$0xff]
    %v268 = vld [vmem:[#allocation15 + $0x28] sm:$0xff]
    %v269 = vld [vmem:[#allocation15 + $0x30] sm:$0xff]
    %v270 = vld [vmem:[#allocation15 + $0x38] sm:$0xff]
    %v271 = vld [vmem:[#allocation15 + $0x40] sm:$0xff]
    %v272 = vld [vmem:[#allocation15 + $0x48] sm:$0xff]
    %v273 = vld [vmem:[#allocation15 + $0x50] sm:$0xff]
    %v274 = vld [vmem:[#allocation15 + $0x58] sm:$0xff]
    %v275 = vld [vmem:[#allocation15 + $0x60] sm:$0xff]
    %v276 = vld [vmem:[#allocation15 + $0x68] sm:$0xff]
    %v277 = vld [vmem:[#allocation15 + $0x70] sm:$0xff]
    %v278 = vld [vmem:[#allocation15 + $0x78] sm:$0xff]
    %279 = vmatprep.subr.mxu0 0.0
    %280 = vmatpush1.msra.mxu0 %v278
    %281 = vmatprep.subr.mxu0 0.0
    %282 = vmatpush1.msra.mxu0 %v277
    %283 = vmatprep.subr.mxu0 0.0
    %284 = vmatpush1.msra.mxu0 %v276
    %285 = vmatprep.subr.mxu0 0.0
    %286 = vmatpush1.msra.mxu0 %v275
    %287 = vmatprep.subr.mxu0 0.0
    %288 = vmatpush1.msra.mxu0 %v274
    %289 = vmatprep.subr.mxu0 0.0
    %290 = vmatpush1.msra.mxu0 %v273
    %291 = vmatprep.subr.mxu0 0.0
    %292 = vmatpush1.msra.mxu0 %v272
    %293 = vmatprep.subr.mxu0 0.0
    %294 = vmatpush1.msra.mxu0 %v271
    %295 = vmatprep.subr.mxu0 0.0
    %296 = vmatpush1.msra.mxu0 %v270
    %297 = vmatprep.subr.mxu0 0.0
    %298 = vmatpush1.msra.mxu0 %v269
    %299 = vmatprep.subr.mxu0 0.0
    %300 = vmatpush1.msra.mxu0 %v268
    %301 = vmatprep.subr.mxu0 0.0
    %302 = vmatpush1.msra.mxu0 %v267
    %303 = vmatprep.subr.mxu0 0.0
    %304 = vmatpush1.msra.mxu0 %v266
    %305 = vmatprep.subr.mxu0 0.0
    %306 = vmatpush1.msra.mxu0 %v265
    %307 = vmatprep.subr.mxu0 0.0
    %308 = vmatpush1.msra.mxu0 %v264
    %309 = vmatprep.subr.mxu0 0.0
    %310 = vmatpush1.msra.mxu0 %v263
    %311 = vmatprep.subr.mxu0 0.0
    %312 = vmatpush2.msra.mxu0 0.0
    %313 = vmatprep.subr.mxu0 0.0
    %314 = vmatpush2.msra.mxu0 0.0
    %315 = vmatprep.subr.mxu0 0.0
    %316 = vmatpush2.msra.mxu0 0.0
    %317 = vmatprep.subr.mxu0 0.0
    %318 = vmatpush2.msra.mxu0 0.0
    %319 = vmatprep.subr.mxu0 0.0
    %320 = vmatpush2.msra.mxu0 0.0
    %321 = vmatprep.subr.mxu0 0.0
    %322 = vmatpush2.msra.mxu0 0.0
    %323 = vmatprep.subr.mxu0 0.0
    %324 = vmatpush2.msra.mxu0 0.0
    %325 = vmatprep.subr.mxu0 0.0
    %326 = vmatpush2.msra.mxu0 0.0
    %327 = vmatprep.subr.mxu0 0.0
    %328 = vmatpush2.msra.mxu0 0.0
    %329 = vmatprep.subr.mxu0 0.0
    %330 = vmatpush2.msra.mxu0 0.0
    %331 = vmatprep.subr.mxu0 0.0
    %332 = vmatpush2.msra.mxu0 0.0
    %333 = vmatprep.subr.mxu0 0.0
    %334 = vmatpush2.msra.mxu0 0.0
    %335 = vmatprep.subr.mxu0 0.0
    %336 = vmatpush2.msra.mxu0 0.0
    %337 = vmatprep.subr.mxu0 0.0
    %338 = vmatpush2.msra.mxu0 0.0
    %339 = vmatprep.subr.mxu0 0.0
    %340 = vmatpush2.msra.mxu0 0.0
    %341 = vmatprep.subr.mxu0 0.0
    %342 = vmatpush2.msra.mxu0 0.0
    %343 = vmatprep.mubr.f32.mxu0 0.0
    %344 = vmatmul.mubr.f32.gmra.mxu0 %v250
    %v345 = vpop.f32.mrf.mxu0
    %v346 = vadd.f32 0.0, %v345
    %v347 = vpop.f32.mrf.mxu0
    %348 = vmatprep.mubr.f32.mxu0 0.0
    %349 = vmatmul.mubr.f32.gmra.mxu0 %v251
    %v350 = vpop.f32.mrf.mxu0
    %v351 = vadd.f32 0.0, %v350
    %v352 = vpop.f32.mrf.mxu0
    %353 = vmatprep.mubr.f32.mxu0 0.0
    %354 = vmatmul.mubr.f32.gmra.mxu0 %v252
    %v355 = vpop.f32.mrf.mxu0
    %v356 = vadd.f32 0.0, %v355
    %v357 = vpop.f32.mrf.mxu0
    %358 = vmatprep.mubr.f32.mxu0 0.0
    %359 = vmatmul.mubr.f32.gmra.mxu0 %v253
    %v360 = vpop.f32.mrf.mxu0
    %v361 = vadd.f32 0.0, %v360
    %v362 = vpop.f32.mrf.mxu0
    %363 = vmatprep.mubr.f32.mxu0 0.0
    %364 = vmatmul.mubr.f32.gmra.mxu0 %v254
    %v365 = vpop.f32.mrf.mxu0
    %v366 = vadd.f32 0.0, %v365
    %v367 = vpop.f32.mrf.mxu0
    %368 = vmatprep.mubr.f32.mxu0 0.0
    %369 = vmatmul.mubr.f32.gmra.mxu0 %v255
    %v370 = vpop.f32.mrf.mxu0
    %v371 = vadd.f32 0.0, %v370
    %v372 = vpop.f32.mrf.mxu0
    %373 = vmatprep.mubr.f32.mxu0 0.0
    %374 = vmatmul.mubr.f32.gmra.mxu0 %v256
    %v375 = vpop.f32.mrf.mxu0
    %v376 = vadd.f32 0.0, %v375
    %v377 = vpop.f32.mrf.mxu0
    %378 = vmatprep.mubr.f32.mxu0 0.0
    %379 = vmatmul.mubr.f32.gmra.mxu0 %v257
    %v380 = vpop.f32.mrf.mxu0
    %v381 = vadd.f32 0.0, %v380
    %v382 = vpop.f32.mrf.mxu0
    %383 = vmatprep.mubr.f32.mxu0 0.0
    %384 = vmatmul.mubr.f32.gmra.mxu0 %v258
    %v385 = vpop.f32.mrf.mxu0
    %v386 = vadd.f32 0.0, %v385
    %v387 = vpop.f32.mrf.mxu0
    %388 = vmatprep.mubr.f32.mxu0 0.0
    %389 = vmatmul.mubr.f32.gmra.mxu0 %v259
    %v390 = vpop.f32.mrf.mxu0
    %v391 = vadd.f32 0.0, %v390
    %v392 = vpop.f32.mrf.mxu0
    %393 = vmatprep.mubr.f32.mxu0 0.0
    %394 = vmatmul.mubr.f32.gmra.mxu0 %v260
    %v395 = vpop.f32.mrf.mxu0
    %v396 = vadd.f32 0.0, %v395
    %v397 = vpop.f32.mrf.mxu0
    %398 = vmatprep.mubr.f32.mxu0 0.0
    %399 = vmatmul.mubr.f32.gmra.mxu0 %v261
    %v400 = vpop.f32.mrf.mxu0
    %v401 = vadd.f32 0.0, %v400
    %v402 = vpop.f32.mrf.mxu0
    %403 = vmatprep.mubr.f32.mxu0 0.0
    %404 = vmatmul.mubr.f32.gmra.mxu0 %v262
    %v405 = vpop.f32.mrf.mxu0
    %v406 = vadd.f32 0.0, %v405
    %v407 = vpop.f32.mrf.mxu0
    %408 = vdwg.mxu0
    %409 = vst [vmem:[#allocation4] sm:$0xff] %v346
    %410 = vst [vmem:[#allocation4 + $0x8] sm:$0xff] %v351
    %411 = vst [vmem:[#allocation4 + $0x10] sm:$0xff] %v356
    %412 = vst [vmem:[#allocation4 + $0x18] sm:$0xff] %v361
    %413 = vst [vmem:[#allocation4 + $0x20] sm:$0xff] %v366
    %414 = vst [vmem:[#allocation4 + $0x28] sm:$0xff] %v371
    %415 = vst [vmem:[#allocation4 + $0x30] sm:$0xff] %v376
    %416 = vst [vmem:[#allocation4 + $0x38] sm:$0xff] %v381
    %417 = vst [vmem:[#allocation4 + $0x40] sm:$0xff] %v386
    %418 = vst [vmem:[#allocation4 + $0x48] sm:$0xff] %v391
    %419 = vst [vmem:[#allocation4 + $0x50] sm:$0xff] %v396
    %420 = vst [vmem:[#allocation4 + $0x58] sm:$0xff] %v401
    %421 = vst [vmem:[#allocation4 + $0x60] sm:$0xff] %v406
    %v422 = vld [vmem:[#allocation2 + $0x11] sm:$0xff]
    %v423 = vld [vmem:[#allocation2 + $0x19] sm:$0xff]
    %vm424 = vcmask 130048
    %v426 = vsel %vm424, %v187, 0
    %v429 = vsel %vm424, %v188, 0
    %431 = vmatprep.subr.mxu0 0.0
    %432 = vmatpush1.msra.mxu0 0.0
    %433 = vmatprep.subr.mxu0 0.0
    %434 = vmatpush1.msra.mxu0 0.0
    %435 = vmatprep.subr.mxu0 0.0
    %436 = vmatpush1.msra.mxu0 0.0
    %437 = vmatprep.subr.mxu0 0.0
    %438 = vmatpush1.msra.mxu0 0.0
    %439 = vmatprep.subr.mxu0 0.0
    %440 = vmatpush1.msra.mxu0 0.0
    %441 = vmatprep.subr.mxu0 0.0
    %442 = vmatpush1.msra.mxu0 0.0
    %443 = vmatprep.subr.mxu0 0.0
    %444 = vmatpush1.msra.mxu0 0.0
    %445 = vmatprep.subr.mxu0 0.0
    %446 = vmatpush1.msra.mxu0 0.0
    %447 = vmatprep.subr.mxu0 0.0
    %448 = vmatpush1.msra.mxu0 0.0
    %449 = vmatprep.subr.mxu0 0.0
    %450 = vmatpush1.msra.mxu0 0.0
    %451 = vmatprep.subr.mxu0 0.0
    %452 = vmatpush1.msra.mxu0 0.0
    %453 = vmatprep.subr.mxu0 0.0
    %454 = vmatpush1.msra.mxu0 0.0
    %455 = vmatprep.subr.mxu0 0.0
    %456 = vmatpush1.msra.mxu0 0.0
    %457 = vmatprep.subr.mxu0 0.0
    %458 = vmatpush1.msra.mxu0 0.0
    %459 = vmatprep.subr.mxu0 0.0
    %460 = vmatpush1.msra.mxu0 %v423
    %461 = vmatprep.subr.mxu0 0.0
    %462 = vmatpush1.msra.mxu0 %v422
    %463 = vmatprep.subr.mxu0 0.0
    %464 = vmatpush2.msra.mxu0 0.0
    %465 = vmatprep.subr.mxu0 0.0
    %466 = vmatpush2.msra.mxu0 0.0
    %467 = vmatprep.subr.mxu0 0.0
    %468 = vmatpush2.msra.mxu0 0.0
    %469 = vmatprep.subr.mxu0 0.0
    %470 = vmatpush2.msra.mxu0 0.0
    %471 = vmatprep.subr.mxu0 0.0
    %472 = vmatpush2.msra.mxu0 0.0
    %473 = vmatprep.subr.mxu0 0.0
    %474 = vmatpush2.msra.mxu0 0.0
    %475 = vmatprep.subr.mxu0 0.0
    %476 = vmatpush2.msra.mxu0 0.0
    %477 = vmatprep.subr.mxu0 0.0
    %478 = vmatpush2.msra.mxu0 0.0
    %479 = vmatprep.subr.mxu0 0.0
    %480 = vmatpush2.msra.mxu0 0.0
    %481 = vmatprep.subr.mxu0 0.0
    %482 = vmatpush2.msra.mxu0 0.0
    %483 = vmatprep.subr.mxu0 0.0
    %484 = vmatpush2.msra.mxu0 0.0
    %485 = vmatprep.subr.mxu0 0.0
    %486 = vmatpush2.msra.mxu0 0.0
    %487 = vmatprep.subr.mxu0 0.0
    %488 = vmatpush2.msra.mxu0 0.0
    %489 = vmatprep.subr.mxu0 0.0
    %490 = vmatpush2.msra.mxu0 0.0
    %491 = vmatprep.subr.mxu0 0.0
    %492 = vmatpush2.msra.mxu0 0.0
    %493 = vmatprep.subr.mxu0 0.0
    %494 = vmatpush2.msra.mxu0 0.0
    %495 = vmatprep.mubr.f32.mxu0 0.0
    %496 = vmatmul.mubr.f32.gmra.mxu0 %v426
    %v497 = vpop.f32.mrf.mxu0
    %v498 = vadd.f32 0.0, %v497
    %v499 = vpop.f32.mrf.mxu0
    %500 = vmatprep.mubr.f32.mxu0 0.0
    %501 = vmatmul.mubr.f32.gmra.mxu0 %v429
    %v502 = vpop.f32.mrf.mxu0
    %v503 = vadd.f32 0.0, %v502
    %v504 = vpop.f32.mrf.mxu0
    %505 = vdwg.mxu0
    %506 = vst [vmem:[#allocation2] sm:$0xff] %v498
    %507 = vst [vmem:[#allocation2 + $0x8] sm:$0xff] %v503
    %v508 = vld [vmem:[#allocation2 + $0x63] sm:$0xff]
    %v509 = vld [vmem:[#allocation2 + $0x6b] sm:$0xff]
    %510 = vmatprep.subr.mxu0 0.0
    %511 = vmatpush1.msra.mxu0 0.0
    %512 = vmatprep.subr.mxu0 0.0
    %513 = vmatpush1.msra.mxu0 0.0
    %514 = vmatprep.subr.mxu0 0.0
    %515 = vmatpush1.msra.mxu0 0.0
    %516 = vmatprep.subr.mxu0 0.0
    %517 = vmatpush1.msra.mxu0 0.0
    %518 = vmatprep.subr.mxu0 0.0
    %519 = vmatpush1.msra.mxu0 0.0
    %520 = vmatprep.subr.mxu0 0.0
    %521 = vmatpush1.msra.mxu0 0.0
    %522 = vmatprep.subr.mxu0 0.0
    %523 = vmatpush1.msra.mxu0 0.0
    %524 = vmatprep.subr.mxu0 0.0
    %525 = vmatpush1.msra.mxu0 0.0
    %526 = vmatprep.subr.mxu0 0.0
    %527 = vmatpush1.msra.mxu0 0.0
    %528 = vmatprep.subr.mxu0 0.0
    %529 = vmatpush1.msra.mxu0 0.0
    %530 = vmatprep.subr.mxu0 0.0
    %531 = vmatpush1.msra.mxu0 0.0
    %532 = vmatprep.subr.mxu0 0.0
    %533 = vmatpush1.msra.mxu0 0.0
    %534 = vmatprep.subr.mxu0 0.0
    %535 = vmatpush1.msra.mxu0 0.0
    %536 = vmatprep.subr.mxu0 0.0
    %537 = vmatpush1.msra.mxu0 0.0
    %538 = vmatprep.subr.mxu0 0.0
    %539 = vmatpush1.msra.mxu0 %v509
    %540 = vmatprep.subr.mxu0 0.0
    %541 = vmatpush1.msra.mxu0 %v508
    %542 = vmatprep.subr.mxu0 0.0
    %543 = vmatpush2.msra.mxu0 0.0
    %544 = vmatprep.subr.mxu0 0.0
    %545 = vmatpush2.msra.mxu0 0.0
    %546 = vmatprep.subr.mxu0 0.0
    %547 = vmatpush2.msra.mxu0 0.0
    %548 = vmatprep.subr.mxu0 0.0
    %549 = vmatpush2.msra.mxu0 0.0
    %550 = vmatprep.subr.mxu0 0.0
    %551 = vmatpush2.msra.mxu0 0.0
    %552 = vmatprep.subr.mxu0 0.0
    %553 = vmatpush2.msra.mxu0 0.0
    %554 = vmatprep.subr.mxu0 0.0
    %555 = vmatpush2.msra.mxu0 0.0
    %556 = vmatprep.subr.mxu0 0.0
    %557 = vmatpush2.msra.mxu0 0.0
    %558 = vmatprep.subr.mxu0 0.0
    %559 = vmatpush2.msra.mxu0 0.0
    %560 = vmatprep.subr.mxu0 0.0
    %561 = vmatpush2.msra.mxu0 0.0
    %562 = vmatprep.subr.mxu0 0.0
    %563 = vmatpush2.msra.mxu0 0.0
    %564 = vmatprep.subr.mxu0 0.0
    %565 = vmatpush2.msra.mxu0 0.0
    %566 = vmatprep.subr.mxu0 0.0
    %567 = vmatpush2.msra.mxu0 0.0
    %568 = vmatprep.subr.mxu0 0.0
    %569 = vmatpush2.msra.mxu0 0.0
    %570 = vmatprep.subr.mxu0 0.0
    %571 = vmatpush2.msra.mxu0 0.0
    %572 = vmatprep.subr.mxu0 0.0
    %573 = vmatpush2.msra.mxu0 0.0
    %574 = vmatprep.mubr.f32.mxu0 0.0
    %575 = vmatmul.mubr.f32.gmra.mxu0 %v426
    %v576 = vpop.f32.mrf.mxu0
    %v577 = vadd.f32 0.0, %v576
    %v578 = vpop.f32.mrf.mxu0
    %579 = vmatprep.mubr.f32.mxu0 0.0
    %580 = vmatmul.mubr.f32.gmra.mxu0 %v429
    %v581 = vpop.f32.mrf.mxu0
    %v582 = vadd.f32 0.0, %v581
    %v583 = vpop.f32.mrf.mxu0
    %584 = vdwg.mxu0
    %585 = vst [vmem:[#allocation2 + $0x74] sm:$0xff] %v577
    %586 = vst [vmem:[#allocation2 + $0x7c] sm:$0xff] %v582
    %v587 = vld [vmem:[#allocation2 + $0xd] sm:$0xff]
    %v588 = vld [vmem:[#allocation2 + $0x15] sm:$0xff]
    %v589 = vld [vmem:[#allocation2 + $0x1d] sm:$0xff]
    %v590 = vld [vmem:[#allocation2 + $0x25] sm:$0xff]
    %v591 = vld [vmem:[#allocation2 + $0x2d] sm:$0xff]
    %v592 = vld [vmem:[#allocation2 + $0x35] sm:$0xff]
    %v593 = vld [vmem:[#allocation2 + $0x3d] sm:$0xff]
    %v594 = vld [vmem:[#allocation2 + $0x45] sm:$0xff]
    %v595 = vld [vmem:[#allocation2 + $0x4d] sm:$0xff]
    %v596 = vld [vmem:[#allocation2 + $0x55] sm:$0xff]
    %v597 = vld [vmem:[#allocation2 + $0x5d] sm:$0xff]
    %v598 = vld [vmem:[#allocation2 + $0x65] sm:$0xff]
    %v599 = vld [vmem:[#allocation2 + $0x6d] sm:$0xff]
    %v600 = vld [vmem:[#allocation7] sm:$0xff]
    %v601 = vld [vmem:[#allocation7 + $0x8] sm:$0xff]
    %v602 = vld [vmem:[#allocation7 + $0x10] sm:$0xff]
    %v603 = vld [vmem:[#allocation7 + $0x18] sm:$0xff]
    %v604 = vld [vmem:[#allocation7 + $0x20] sm:$0xff]
    %v605 = vld [vmem:[#allocation7 + $0x28] sm:$0xff]
    %v606 = vld [vmem:[#allocation7 + $0x30] sm:$0xff]
    %v607 = vld [vmem:[#allocation7 + $0x38] sm:$0xff]
    %v608 = vld [vmem:[#allocation7 + $0x40] sm:$0xff]
    %v609 = vld [vmem:[#allocation7 + $0x48] sm:$0xff]
    %v610 = vld [vmem:[#allocation7 + $0x50] sm:$0xff]
    %v611 = vld [vmem:[#allocation7 + $0x58] sm:$0xff]
    %v612 = vld [vmem:[#allocation7 + $0x60] sm:$0xff]
    %v613 = vld [vmem:[#allocation7 + $0x68] sm:$0xff]
    %v614 = vld [vmem:[#allocation7 + $0x70] sm:$0xff]
    %v615 = vld [vmem:[#allocation7 + $0x78] sm:$0xff]
    %v616 = vld [vmem:[#allocation2 + $0xe] sm:$0xff]
    %v617 = vld [vmem:[#allocation2 + $0x16] sm:$0xff]
    %v618 = vld [vmem:[#allocation2 + $0x1e] sm:$0xff]
    %v619 = vld [vmem:[#allocation2 + $0x26] sm:$0xff]
    %v620 = vld [vmem:[#allocation2 + $0x2e] sm:$0xff]
    %v621 = vld [vmem:[#allocation2 + $0x36] sm:$0xff]
    %v622 = vld [vmem:[#allocation2 + $0x3e] sm:$0xff]
    %v623 = vld [vmem:[#allocation2 + $0x46] sm:$0xff]
    %v624 = vld [vmem:[#allocation2 + $0x4e] sm:$0xff]
    %v625 = vld [vmem:[#allocation2 + $0x56] sm:$0xff]
    %v626 = vld [vmem:[#allocation2 + $0x5e] sm:$0xff]
    %v627 = vld [vmem:[#allocation2 + $0x66] sm:$0xff]
    %v628 = vld [vmem:[#allocation2 + $0x6e] sm:$0xff]
    %s629 = scalar_lea.vmem [#allocation7], 128
    %v630 = vld [vmem:[%s629] sm:$0xff]
    %v631 = vld [vmem:[%s629 + $0x8] sm:$0xff]
    %v632 = vld [vmem:[%s629 + $0x10] sm:$0xff]
    %v633 = vld [vmem:[%s629 + $0x18] sm:$0xff]
    %v634 = vld [vmem:[%s629 + $0x20] sm:$0xff]
    %v635 = vld [vmem:[%s629 + $0x28] sm:$0xff]
    %v636 = vld [vmem:[%s629 + $0x30] sm:$0xff]
    %v637 = vld [vmem:[%s629 + $0x38] sm:$0xff]
    %v638 = vld [vmem:[%s629 + $0x40] sm:$0xff]
    %v639 = vld [vmem:[%s629 + $0x48] sm:$0xff]
    %v640 = vld [vmem:[%s629 + $0x50] sm:$0xff]
    %v641 = vld [vmem:[%s629 + $0x58] sm:$0xff]
    %v642 = vld [vmem:[%s629 + $0x60] sm:$0xff]
    %v643 = vld [vmem:[%s629 + $0x68] sm:$0xff]
    %v644 = vld [vmem:[%s629 + $0x70] sm:$0xff]
    %v645 = vld [vmem:[%s629 + $0x78] sm:$0xff]
    %646 = vmatprep.subr.mxu0 0.0
    %647 = vmatpush1.msra.mxu0 %v645
    %648 = vmatprep.subr.mxu0 0.0
    %649 = vmatpush1.msra.mxu0 %v644
    %650 = vmatprep.subr.mxu0 0.0
    %651 = vmatpush1.msra.mxu0 %v643
    %652 = vmatprep.subr.mxu0 0.0
    %653 = vmatpush1.msra.mxu0 %v642
    %654 = vmatprep.subr.mxu0 0.0
    %655 = vmatpush1.msra.mxu0 %v641
    %656 = vmatprep.subr.mxu0 0.0
    %657 = vmatpush1.msra.mxu0 %v640
    %658 = vmatprep.subr.mxu0 0.0
    %659 = vmatpush1.msra.mxu0 %v639
    %660 = vmatprep.subr.mxu0 0.0
    %661 = vmatpush1.msra.mxu0 %v638
    %662 = vmatprep.subr.mxu0 0.0
    %663 = vmatpush1.msra.mxu0 %v637
    %664 = vmatprep.subr.mxu0 0.0
    %665 = vmatpush1.msra.mxu0 %v636
    %666 = vmatprep.subr.mxu0 0.0
    %667 = vmatpush1.msra.mxu0 %v635
    %668 = vmatprep.subr.mxu0 0.0
    %669 = vmatpush1.msra.mxu0 %v634
    %670 = vmatprep.subr.mxu0 0.0
    %671 = vmatpush1.msra.mxu0 %v633
    %672 = vmatprep.subr.mxu0 0.0
    %673 = vmatpush1.msra.mxu0 %v632
    %674 = vmatprep.subr.mxu0 0.0
    %675 = vmatpush1.msra.mxu0 %v631
    %676 = vmatprep.subr.mxu0 0.0
    %677 = vmatpush1.msra.mxu0 %v630
    %678 = vmatprep.subr.mxu0 0.0
    %679 = vmatpush2.msra.mxu0 0.0
    %680 = vmatprep.subr.mxu0 0.0
    %681 = vmatpush2.msra.mxu0 0.0
    %682 = vmatprep.subr.mxu0 0.0
    %683 = vmatpush2.msra.mxu0 0.0
    %684 = vmatprep.subr.mxu0 0.0
    %685 = vmatpush2.msra.mxu0 0.0
    %686 = vmatprep.subr.mxu0 0.0
    %687 = vmatpush2.msra.mxu0 0.0
    %688 = vmatprep.subr.mxu0 0.0
    %689 = vmatpush2.msra.mxu0 0.0
    %690 = vmatprep.subr.mxu0 0.0
    %691 = vmatpush2.msra.mxu0 0.0
    %692 = vmatprep.subr.mxu0 0.0
    %693 = vmatpush2.msra.mxu0 0.0
    %694 = vmatprep.subr.mxu0 0.0
    %695 = vmatpush2.msra.mxu0 0.0
    %696 = vmatprep.subr.mxu0 0.0
    %697 = vmatpush2.msra.mxu0 0.0
    %698 = vmatprep.subr.mxu0 0.0
    %699 = vmatpush2.msra.mxu0 0.0
    %700 = vmatprep.subr.mxu0 0.0
    %701 = vmatpush2.msra.mxu0 0.0
    %702 = vmatprep.subr.mxu0 0.0
    %703 = vmatpush2.msra.mxu0 0.0
    %704 = vmatprep.subr.mxu0 0.0
    %705 = vmatpush2.msra.mxu0 0.0
    %706 = vmatprep.subr.mxu0 0.0
    %707 = vmatpush2.msra.mxu0 0.0
    %708 = vmatprep.subr.mxu0 0.0
    %709 = vmatpush2.msra.mxu0 0.0
    %710 = vmatprep.mubr.f32.mxu0 0.0
    %711 = vmatmul.mubr.f32.gmra.mxu0 %v616
    %v712 = vpop.f32.mrf.mxu0
    %v713 = vadd.f32 0.0, %v712
    %v714 = vpop.f32.mrf.mxu0
    %715 = vmatprep.mubr.f32.mxu0 0.0
    %716 = vmatmul.mubr.f32.gmra.mxu0 %v617
    %v717 = vpop.f32.mrf.mxu0
    %v718 = vadd.f32 0.0, %v717
    %v719 = vpop.f32.mrf.mxu0
    %720 = vmatprep.mubr.f32.mxu0 0.0
    %721 = vmatmul.mubr.f32.gmra.mxu0 %v618
    %v722 = vpop.f32.mrf.mxu0
    %v723 = vadd.f32 0.0, %v722
    %v724 = vpop.f32.mrf.mxu0
    %725 = vmatprep.mubr.f32.mxu0 0.0
    %726 = vmatmul.mubr.f32.gmra.mxu0 %v619
    %v727 = vpop.f32.mrf.mxu0
    %v728 = vadd.f32 0.0, %v727
    %v729 = vpop.f32.mrf.mxu0
    %730 = vmatprep.mubr.f32.mxu0 0.0
    %731 = vmatmul.mubr.f32.gmra.mxu0 %v620
    %v732 = vpop.f32.mrf.mxu0
    %v733 = vadd.f32 0.0, %v732
    %v734 = vpop.f32.mrf.mxu0
    %735 = vmatprep.mubr.f32.mxu0 0.0
    %736 = vmatmul.mubr.f32.gmra.mxu0 %v621
    %v737 = vpop.f32.mrf.mxu0
    %v738 = vadd.f32 0.0, %v737
    %v739 = vpop.f32.mrf.mxu0
    %740 = vmatprep.mubr.f32.mxu0 0.0
    %741 = vmatmul.mubr.f32.gmra.mxu0 %v622
    %v742 = vpop.f32.mrf.mxu0
    %v743 = vadd.f32 0.0, %v742
    %v744 = vpop.f32.mrf.mxu0
    %745 = vmatprep.mubr.f32.mxu0 0.0
    %746 = vmatmul.mubr.f32.gmra.mxu0 %v623
    %v747 = vpop.f32.mrf.mxu0
    %v748 = vadd.f32 0.0, %v747
    %v749 = vpop.f32.mrf.mxu0
    %750 = vmatprep.mubr.f32.mxu0 0.0
    %751 = vmatmul.mubr.f32.gmra.mxu0 %v624
    %v752 = vpop.f32.mrf.mxu0
    %v753 = vadd.f32 0.0, %v752
    %v754 = vpop.f32.mrf.mxu0
    %755 = vmatprep.mubr.f32.mxu0 0.0
    %756 = vmatmul.mubr.f32.gmra.mxu0 %v625
    %v757 = vpop.f32.mrf.mxu0
    %v758 = vadd.f32 0.0, %v757
    %v759 = vpop.f32.mrf.mxu0
    %760 = vmatprep.mubr.f32.mxu0 0.0
    %761 = vmatmul.mubr.f32.gmra.mxu0 %v626
    %v762 = vpop.f32.mrf.mxu0
    %v763 = vadd.f32 0.0, %v762
    %v764 = vpop.f32.mrf.mxu0
    %765 = vmatprep.mubr.f32.mxu0 0.0
    %766 = vmatmul.mubr.f32.gmra.mxu0 %v627
    %v767 = vpop.f32.mrf.mxu0
    %v768 = vadd.f32 0.0, %v767
    %v769 = vpop.f32.mrf.mxu0
    %770 = vmatprep.mubr.f32.mxu0 0.0
    %771 = vmatmul.mubr.f32.gmra.mxu0 %v628
    %v772 = vpop.f32.mrf.mxu0
    %v773 = vadd.f32 0.0, %v772
    %v774 = vpop.f32.mrf.mxu0
    %775 = vdwg.mxu0
    %776 = vmatprep.subr.mxu0 0.0
    %777 = vmatpush1.msra.mxu0 %v615
    %778 = vmatprep.subr.mxu0 0.0
    %779 = vmatpush1.msra.mxu0 %v614
    %780 = vmatprep.subr.mxu0 0.0
    %781 = vmatpush1.msra.mxu0 %v613
    %782 = vmatprep.subr.mxu0 0.0
    %783 = vmatpush1.msra.mxu0 %v612
    %784 = vmatprep.subr.mxu0 0.0
    %785 = vmatpush1.msra.mxu0 %v611
    %786 = vmatprep.subr.mxu0 0.0
    %787 = vmatpush1.msra.mxu0 %v610
    %788 = vmatprep.subr.mxu0 0.0
    %789 = vmatpush1.msra.mxu0 %v609
    %790 = vmatprep.subr.mxu0 0.0
    %791 = vmatpush1.msra.mxu0 %v608
    %792 = vmatprep.subr.mxu0 0.0
    %793 = vmatpush1.msra.mxu0 %v607
    %794 = vmatprep.subr.mxu0 0.0
    %795 = vmatpush1.msra.mxu0 %v606
    %796 = vmatprep.subr.mxu0 0.0
    %797 = vmatpush1.msra.mxu0 %v605
    %798 = vmatprep.subr.mxu0 0.0
    %799 = vmatpush1.msra.mxu0 %v604
    %800 = vmatprep.subr.mxu0 0.0
    %801 = vmatpush1.msra.mxu0 %v603
    %802 = vmatprep.subr.mxu0 0.0
    %803 = vmatpush1.msra.mxu0 %v602
    %804 = vmatprep.subr.mxu0 0.0
    %805 = vmatpush1.msra.mxu0 %v601
    %806 = vmatprep.subr.mxu0 0.0
    %807 = vmatpush1.msra.mxu0 %v600
    %808 = vmatprep.subr.mxu0 0.0
    %809 = vmatpush2.msra.mxu0 0.0
    %810 = vmatprep.subr.mxu0 0.0
    %811 = vmatpush2.msra.mxu0 0.0
    %812 = vmatprep.subr.mxu0 0.0
    %813 = vmatpush2.msra.mxu0 0.0
    %814 = vmatprep.subr.mxu0 0.0
    %815 = vmatpush2.msra.mxu0 0.0
    %816 = vmatprep.subr.mxu0 0.0
    %817 = vmatpush2.msra.mxu0 0.0
    %818 = vmatprep.subr.mxu0 0.0
    %819 = vmatpush2.msra.mxu0 0.0
    %820 = vmatprep.subr.mxu0 0.0
    %821 = vmatpush2.msra.mxu0 0.0
    %822 = vmatprep.subr.mxu0 0.0
    %823 = vmatpush2.msra.mxu0 0.0
    %824 = vmatprep.subr.mxu0 0.0
    %825 = vmatpush2.msra.mxu0 0.0
    %826 = vmatprep.subr.mxu0 0.0
    %827 = vmatpush2.msra.mxu0 0.0
    %828 = vmatprep.subr.mxu0 0.0
    %829 = vmatpush2.msra.mxu0 0.0
    %830 = vmatprep.subr.mxu0 0.0
    %831 = vmatpush2.msra.mxu0 0.0
    %832 = vmatprep.subr.mxu0 0.0
    %833 = vmatpush2.msra.mxu0 0.0
    %834 = vmatprep.subr.mxu0 0.0
    %835 = vmatpush2.msra.mxu0 0.0
    %836 = vmatprep.subr.mxu0 0.0
    %837 = vmatpush2.msra.mxu0 0.0
    %838 = vmatprep.subr.mxu0 0.0
    %839 = vmatpush2.msra.mxu0 0.0
    %840 = vmatprep.mubr.f32.mxu0 0.0
    %841 = vmatmul.mubr.f32.gmra.mxu0 %v587
    %v842 = vpop.f32.mrf.mxu0
    %v843 = vadd.f32 %v713, %v842
    %v844 = vpop.f32.mrf.mxu0
    %845 = vmatprep.mubr.f32.mxu0 0.0
    %846 = vmatmul.mubr.f32.gmra.mxu0 %v588
    %v847 = vpop.f32.mrf.mxu0
    %v848 = vadd.f32 %v718, %v847
    %v849 = vpop.f32.mrf.mxu0
    %850 = vmatprep.mubr.f32.mxu0 0.0
    %851 = vmatmul.mubr.f32.gmra.mxu0 %v589
    %v852 = vpop.f32.mrf.mxu0
    %v853 = vadd.f32 %v723, %v852
    %v854 = vpop.f32.mrf.mxu0
    %855 = vmatprep.mubr.f32.mxu0 0.0
    %856 = vmatmul.mubr.f32.gmra.mxu0 %v590
    %v857 = vpop.f32.mrf.mxu0
    %v858 = vadd.f32 %v728, %v857
    %v859 = vpop.f32.mrf.mxu0
    %860 = vmatprep.mubr.f32.mxu0 0.0
    %861 = vmatmul.mubr.f32.gmra.mxu0 %v591
    %v862 = vpop.f32.mrf.mxu0
    %v863 = vadd.f32 %v733, %v862
    %v864 = vpop.f32.mrf.mxu0
    %865 = vmatprep.mubr.f32.mxu0 0.0
    %866 = vmatmul.mubr.f32.gmra.mxu0 %v592
    %v867 = vpop.f32.mrf.mxu0
    %v868 = vadd.f32 %v738, %v867
    %v869 = vpop.f32.mrf.mxu0
    %870 = vmatprep.mubr.f32.mxu0 0.0
    %871 = vmatmul.mubr.f32.gmra.mxu0 %v593
    %v872 = vpop.f32.mrf.mxu0
    %v873 = vadd.f32 %v743, %v872
    %v874 = vpop.f32.mrf.mxu0
    %875 = vmatprep.mubr.f32.mxu0 0.0
    %876 = vmatmul.mubr.f32.gmra.mxu0 %v594
    %v877 = vpop.f32.mrf.mxu0
    %v878 = vadd.f32 %v748, %v877
    %v879 = vpop.f32.mrf.mxu0
    %880 = vmatprep.mubr.f32.mxu0 0.0
    %881 = vmatmul.mubr.f32.gmra.mxu0 %v595
    %v882 = vpop.f32.mrf.mxu0
    %v883 = vadd.f32 %v753, %v882
    %v884 = vpop.f32.mrf.mxu0
    %885 = vmatprep.mubr.f32.mxu0 0.0
    %886 = vmatmul.mubr.f32.gmra.mxu0 %v596
    %v887 = vpop.f32.mrf.mxu0
    %v888 = vadd.f32 %v758, %v887
    %v889 = vpop.f32.mrf.mxu0
    %890 = vmatprep.mubr.f32.mxu0 0.0
    %891 = vmatmul.mubr.f32.gmra.mxu0 %v597
    %v892 = vpop.f32.mrf.mxu0
    %v893 = vadd.f32 %v763, %v892
    %v894 = vpop.f32.mrf.mxu0
    %895 = vmatprep.mubr.f32.mxu0 0.0
    %896 = vmatmul.mubr.f32.gmra.mxu0 %v598
    %v897 = vpop.f32.mrf.mxu0
    %v898 = vadd.f32 %v768, %v897
    %v899 = vpop.f32.mrf.mxu0
    %900 = vmatprep.mubr.f32.mxu0 0.0
    %901 = vmatmul.mubr.f32.gmra.mxu0 %v599
    %v902 = vpop.f32.mrf.mxu0
    %v903 = vadd.f32 %v773, %v902
    %v904 = vpop.f32.mrf.mxu0
    %905 = vdwg.mxu0
    %v906 = vld [vmem:[#allocation2 + $0xf] sm:$0xff]
    %v907 = vld [vmem:[#allocation2 + $0x17] sm:$0xff]
    %v908 = vld [vmem:[#allocation2 + $0x1f] sm:$0xff]
    %v909 = vld [vmem:[#allocation2 + $0x27] sm:$0xff]
    %v910 = vld [vmem:[#allocation2 + $0x2f] sm:$0xff]
    %v911 = vld [vmem:[#allocation2 + $0x37] sm:$0xff]
    %v912 = vld [vmem:[#allocation2 + $0x3f] sm:$0xff]
    %v913 = vld [vmem:[#allocation2 + $0x47] sm:$0xff]
    %v914 = vld [vmem:[#allocation2 + $0x4f] sm:$0xff]
    %v915 = vld [vmem:[#allocation2 + $0x57] sm:$0xff]
    %v916 = vld [vmem:[#allocation2 + $0x5f] sm:$0xff]
    %v917 = vld [vmem:[#allocation2 + $0x67] sm:$0xff]
    %v918 = vld [vmem:[#allocation2 + $0x6f] sm:$0xff]
    %s919 = scalar_lea.vmem [#allocation7], 256
    %v920 = vld [vmem:[%s919] sm:$0xff]
    %v921 = vld [vmem:[%s919 + $0x8] sm:$0xff]
    %v922 = vld [vmem:[%s919 + $0x10] sm:$0xff]
    %v923 = vld [vmem:[%s919 + $0x18] sm:$0xff]
    %v924 = vld [vmem:[%s919 + $0x20] sm:$0xff]
    %v925 = vld [vmem:[%s919 + $0x28] sm:$0xff]
    %v926 = vld [vmem:[%s919 + $0x30] sm:$0xff]
    %v927 = vld [vmem:[%s919 + $0x38] sm:$0xff]
    %v928 = vld [vmem:[%s919 + $0x40] sm:$0xff]
    %v929 = vld [vmem:[%s919 + $0x48] sm:$0xff]
    %v930 = vld [vmem:[%s919 + $0x50] sm:$0xff]
    %v931 = vld [vmem:[%s919 + $0x58] sm:$0xff]
    %v932 = vld [vmem:[%s919 + $0x60] sm:$0xff]
    %v933 = vld [vmem:[%s919 + $0x68] sm:$0xff]
    %v934 = vld [vmem:[%s919 + $0x70] sm:$0xff]
    %v935 = vld [vmem:[%s919 + $0x78] sm:$0xff]
    %936 = vmatprep.subr.mxu0 0.0
    %937 = vmatpush1.msra.mxu0 %v935
    %938 = vmatprep.subr.mxu0 0.0
    %939 = vmatpush1.msra.mxu0 %v934
    %940 = vmatprep.subr.mxu0 0.0
    %941 = vmatpush1.msra.mxu0 %v933
    %942 = vmatprep.subr.mxu0 0.0
    %943 = vmatpush1.msra.mxu0 %v932
    %944 = vmatprep.subr.mxu0 0.0
    %945 = vmatpush1.msra.mxu0 %v931
    %946 = vmatprep.subr.mxu0 0.0
    %947 = vmatpush1.msra.mxu0 %v930
    %948 = vmatprep.subr.mxu0 0.0
    %949 = vmatpush1.msra.mxu0 %v929
    %950 = vmatprep.subr.mxu0 0.0
    %951 = vmatpush1.msra.mxu0 %v928
    %952 = vmatprep.subr.mxu0 0.0
    %953 = vmatpush1.msra.mxu0 %v927
    %954 = vmatprep.subr.mxu0 0.0
    %955 = vmatpush1.msra.mxu0 %v926
    %956 = vmatprep.subr.mxu0 0.0
    %957 = vmatpush1.msra.mxu0 %v925
    %958 = vmatprep.subr.mxu0 0.0
    %959 = vmatpush1.msra.mxu0 %v924
    %960 = vmatprep.subr.mxu0 0.0
    %961 = vmatpush1.msra.mxu0 %v923
    %962 = vmatprep.subr.mxu0 0.0
    %963 = vmatpush1.msra.mxu0 %v922
    %964 = vmatprep.subr.mxu0 0.0
    %965 = vmatpush1.msra.mxu0 %v921
    %966 = vmatprep.subr.mxu0 0.0
    %967 = vmatpush1.msra.mxu0 %v920
    %968 = vmatprep.subr.mxu0 0.0
    %969 = vmatpush2.msra.mxu0 0.0
    %970 = vmatprep.subr.mxu0 0.0
    %971 = vmatpush2.msra.mxu0 0.0
    %972 = vmatprep.subr.mxu0 0.0
    %973 = vmatpush2.msra.mxu0 0.0
    %974 = vmatprep.subr.mxu0 0.0
    %975 = vmatpush2.msra.mxu0 0.0
    %976 = vmatprep.subr.mxu0 0.0
    %977 = vmatpush2.msra.mxu0 0.0
    %978 = vmatprep.subr.mxu0 0.0
    %979 = vmatpush2.msra.mxu0 0.0
    %980 = vmatprep.subr.mxu0 0.0
    %981 = vmatpush2.msra.mxu0 0.0
    %982 = vmatprep.subr.mxu0 0.0
    %983 = vmatpush2.msra.mxu0 0.0
    %984 = vmatprep.subr.mxu0 0.0
    %985 = vmatpush2.msra.mxu0 0.0
    %986 = vmatprep.subr.mxu0 0.0
    %987 = vmatpush2.msra.mxu0 0.0
    %988 = vmatprep.subr.mxu0 0.0
    %989 = vmatpush2.msra.mxu0 0.0
    %990 = vmatprep.subr.mxu0 0.0
    %991 = vmatpush2.msra.mxu0 0.0
    %992 = vmatprep.subr.mxu0 0.0
    %993 = vmatpush2.msra.mxu0 0.0
    %994 = vmatprep.subr.mxu0 0.0
    %995 = vmatpush2.msra.mxu0 0.0
    %996 = vmatprep.subr.mxu0 0.0
    %997 = vmatpush2.msra.mxu0 0.0
    %998 = vmatprep.subr.mxu0 0.0
    %999 = vmatpush2.msra.mxu0 0.0
    %1000 = vmatprep.mubr.f32.mxu0 0.0
    %1001 = vmatmul.mubr.f32.gmra.mxu0 %v906
    %v1002 = vpop.f32.mrf.mxu0
    %v1003 = vadd.f32 0.0, %v1002
    %v1004 = vpop.f32.mrf.mxu0
    %1005 = vmatprep.mubr.f32.mxu0 0.0
    %1006 = vmatmul.mubr.f32.gmra.mxu0 %v907
    %v1007 = vpop.f32.mrf.mxu0
    %v1008 = vadd.f32 0.0, %v1007
    %v1009 = vpop.f32.mrf.mxu0
    %1010 = vmatprep.mubr.f32.mxu0 0.0
    %1011 = vmatmul.mubr.f32.gmra.mxu0 %v908
    %v1012 = vpop.f32.mrf.mxu0
    %v1013 = vadd.f32 0.0, %v1012
    %v1014 = vpop.f32.mrf.mxu0
    %1015 = vmatprep.mubr.f32.mxu0 0.0
    %1016 = vmatmul.mubr.f32.gmra.mxu0 %v909
    %v1017 = vpop.f32.mrf.mxu0
    %v1018 = vadd.f32 0.0, %v1017
    %v1019 = vpop.f32.mrf.mxu0
    %1020 = vmatprep.mubr.f32.mxu0 0.0
    %1021 = vmatmul.mubr.f32.gmra.mxu0 %v910
    %v1022 = vpop.f32.mrf.mxu0
    %v1023 = vadd.f32 0.0, %v1022
    %v1024 = vpop.f32.mrf.mxu0
    %1025 = vmatprep.mubr.f32.mxu0 0.0
    %1026 = vmatmul.mubr.f32.gmra.mxu0 %v911
    %v1027 = vpop.f32.mrf.mxu0
    %v1028 = vadd.f32 0.0, %v1027
    %v1029 = vpop.f32.mrf.mxu0
    %1030 = vmatprep.mubr.f32.mxu0 0.0
    %1031 = vmatmul.mubr.f32.gmra.mxu0 %v912
    %v1032 = vpop.f32.mrf.mxu0
    %v1033 = vadd.f32 0.0, %v1032
    %v1034 = vpop.f32.mrf.mxu0
    %1035 = vmatprep.mubr.f32.mxu0 0.0
    %1036 = vmatmul.mubr.f32.gmra.mxu0 %v913
    %v1037 = vpop.f32.mrf.mxu0
    %v1038 = vadd.f32 0.0, %v1037
    %v1039 = vpop.f32.mrf.mxu0
    %1040 = vmatprep.mubr.f32.mxu0 0.0
    %1041 = vmatmul.mubr.f32.gmra.mxu0 %v914
    %v1042 = vpop.f32.mrf.mxu0
    %v1043 = vadd.f32 0.0, %v1042
    %v1044 = vpop.f32.mrf.mxu0
    %1045 = vmatprep.mubr.f32.mxu0 0.0
    %1046 = vmatmul.mubr.f32.gmra.mxu0 %v915
    %v1047 = vpop.f32.mrf.mxu0
    %v1048 = vadd.f32 0.0, %v1047
    %v1049 = vpop.f32.mrf.mxu0
    %1050 = vmatprep.mubr.f32.mxu0 0.0
    %1051 = vmatmul.mubr.f32.gmra.mxu0 %v916
    %v1052 = vpop.f32.mrf.mxu0
    %v1053 = vadd.f32 0.0, %v1052
    %v1054 = vpop.f32.mrf.mxu0
    %1055 = vmatprep.mubr.f32.mxu0 0.0
    %1056 = vmatmul.mubr.f32.gmra.mxu0 %v917
    %v1057 = vpop.f32.mrf.mxu0
    %v1058 = vadd.f32 0.0, %v1057
    %v1059 = vpop.f32.mrf.mxu0
    %1060 = vmatprep.mubr.f32.mxu0 0.0
    %1061 = vmatmul.mubr.f32.gmra.mxu0 %v918
    %v1062 = vpop.f32.mrf.mxu0
    %v1063 = vadd.f32 0.0, %v1062
    %v1064 = vpop.f32.mrf.mxu0
    %1065 = vdwg.mxu0
    %v1066 = vadd.f32 %v843, %v1003
    %v1067 = vadd.f32 %v848, %v1008
    %v1068 = vadd.f32 %v853, %v1013
    %v1069 = vadd.f32 %v858, %v1018
    %v1070 = vadd.f32 %v863, %v1023
    %v1071 = vadd.f32 %v868, %v1028
    %v1072 = vadd.f32 %v873, %v1033
    %v1073 = vadd.f32 %v878, %v1038
    %v1074 = vadd.f32 %v883, %v1043
    %v1075 = vadd.f32 %v888, %v1048
    %v1076 = vadd.f32 %v893, %v1053
    %v1077 = vadd.f32 %v898, %v1058
    %v1078 = vadd.f32 %v903, %v1063
    %v1079 = vld [vmem:[#allocation2 + $0x10] sm:$0xff]
    %v1080 = vld [vmem:[#allocation2 + $0x18] sm:$0xff]
    %v1081 = vld [vmem:[#allocation2 + $0x20] sm:$0xff]
    %v1082 = vld [vmem:[#allocation2 + $0x28] sm:$0xff]
    %v1083 = vld [vmem:[#allocation2 + $0x30] sm:$0xff]
    %v1084 = vld [vmem:[#allocation2 + $0x38] sm:$0xff]
    %v1085 = vld [vmem:[#allocation2 + $0x40] sm:$0xff]
    %v1086 = vld [vmem:[#allocation2 + $0x48] sm:$0xff]
    %v1087 = vld [vmem:[#allocation2 + $0x50] sm:$0xff]
    %v1088 = vld [vmem:[#allocation2 + $0x58] sm:$0xff]
    %v1089 = vld [vmem:[#allocation2 + $0x60] sm:$0xff]
    %v1090 = vld [vmem:[#allocation2 + $0x68] sm:$0xff]
    %v1091 = vld [vmem:[#allocation2 + $0x70] sm:$0xff]
    %s1092 = scalar_lea.vmem [#allocation7], 384
    %v1093 = vld [vmem:[%s1092] sm:$0xff]
    %v1094 = vld [vmem:[%s1092 + $0x8] sm:$0xff]
    %v1095 = vld [vmem:[%s1092 + $0x10] sm:$0xff]
    %v1096 = vld [vmem:[%s1092 + $0x18] sm:$0xff]
    %v1097 = vld [vmem:[%s1092 + $0x20] sm:$0xff]
    %v1098 = vld [vmem:[%s1092 + $0x28] sm:$0xff]
    %v1099 = vld [vmem:[%s1092 + $0x30] sm:$0xff]
    %v1100 = vld [vmem:[%s1092 + $0x38] sm:$0xff]
    %v1101 = vld [vmem:[%s1092 + $0x40] sm:$0xff]
    %v1102 = vld [vmem:[%s1092 + $0x48] sm:$0xff]
    %v1103 = vld [vmem:[%s1092 + $0x50] sm:$0xff]
    %v1104 = vld [vmem:[%s1092 + $0x58] sm:$0xff]
    %v1105 = vld [vmem:[%s1092 + $0x60] sm:$0xff]
    %v1106 = vld [vmem:[%s1092 + $0x68] sm:$0xff]
    %v1107 = vld [vmem:[%s1092 + $0x70] sm:$0xff]
    %v1108 = vld [vmem:[%s1092 + $0x78] sm:$0xff]
    %1109 = vmatprep.subr.mxu0 0.0
    %1110 = vmatpush1.msra.mxu0 %v1108
    %1111 = vmatprep.subr.mxu0 0.0
    %1112 = vmatpush1.msra.mxu0 %v1107
    %1113 = vmatprep.subr.mxu0 0.0
    %1114 = vmatpush1.msra.mxu0 %v1106
    %1115 = vmatprep.subr.mxu0 0.0
    %1116 = vmatpush1.msra.mxu0 %v1105
    %1117 = vmatprep.subr.mxu0 0.0
    %1118 = vmatpush1.msra.mxu0 %v1104
    %1119 = vmatprep.subr.mxu0 0.0
    %1120 = vmatpush1.msra.mxu0 %v1103
    %1121 = vmatprep.subr.mxu0 0.0
    %1122 = vmatpush1.msra.mxu0 %v1102
    %1123 = vmatprep.subr.mxu0 0.0
    %1124 = vmatpush1.msra.mxu0 %v1101
    %1125 = vmatprep.subr.mxu0 0.0
    %1126 = vmatpush1.msra.mxu0 %v1100
    %1127 = vmatprep.subr.mxu0 0.0
    %1128 = vmatpush1.msra.mxu0 %v1099
    %1129 = vmatprep.subr.mxu0 0.0
    %1130 = vmatpush1.msra.mxu0 %v1098
    %1131 = vmatprep.subr.mxu0 0.0
    %1132 = vmatpush1.msra.mxu0 %v1097
    %1133 = vmatprep.subr.mxu0 0.0
    %1134 = vmatpush1.msra.mxu0 %v1096
    %1135 = vmatprep.subr.mxu0 0.0
    %1136 = vmatpush1.msra.mxu0 %v1095
    %1137 = vmatprep.subr.mxu0 0.0
    %1138 = vmatpush1.msra.mxu0 %v1094
    %1139 = vmatprep.subr.mxu0 0.0
    %1140 = vmatpush1.msra.mxu0 %v1093
    %1141 = vmatprep.subr.mxu0 0.0
    %1142 = vmatpush2.msra.mxu0 0.0
    %1143 = vmatprep.subr.mxu0 0.0
    %1144 = vmatpush2.msra.mxu0 0.0
    %1145 = vmatprep.subr.mxu0 0.0
    %1146 = vmatpush2.msra.mxu0 0.0
    %1147 = vmatprep.subr.mxu0 0.0
    %1148 = vmatpush2.msra.mxu0 0.0
    %1149 = vmatprep.subr.mxu0 0.0
    %1150 = vmatpush2.msra.mxu0 0.0
    %1151 = vmatprep.subr.mxu0 0.0
    %1152 = vmatpush2.msra.mxu0 0.0
    %1153 = vmatprep.subr.mxu0 0.0
    %1154 = vmatpush2.msra.mxu0 0.0
    %1155 = vmatprep.subr.mxu0 0.0
    %1156 = vmatpush2.msra.mxu0 0.0
    %1157 = vmatprep.subr.mxu0 0.0
    %1158 = vmatpush2.msra.mxu0 0.0
    %1159 = vmatprep.subr.mxu0 0.0
    %1160 = vmatpush2.msra.mxu0 0.0
    %1161 = vmatprep.subr.mxu0 0.0
    %1162 = vmatpush2.msra.mxu0 0.0
    %1163 = vmatprep.subr.mxu0 0.0
    %1164 = vmatpush2.msra.mxu0 0.0
    %1165 = vmatprep.subr.mxu0 0.0
    %1166 = vmatpush2.msra.mxu0 0.0
    %1167 = vmatprep.subr.mxu0 0.0
    %1168 = vmatpush2.msra.mxu0 0.0
    %1169 = vmatprep.subr.mxu0 0.0
    %1170 = vmatpush2.msra.mxu0 0.0
    %1171 = vmatprep.subr.mxu0 0.0
    %1172 = vmatpush2.msra.mxu0 0.0
    %1173 = vmatprep.mubr.f32.mxu0 0.0
    %1174 = vmatmul.mubr.f32.gmra.mxu0 %v1079
    %v1175 = vpop.f32.mrf.mxu0
    %v1176 = vadd.f32 0.0, %v1175
    %v1177 = vpop.f32.mrf.mxu0
    %1178 = vmatprep.mubr.f32.mxu0 0.0
    %1179 = vmatmul.mubr.f32.gmra.mxu0 %v1080
    %v1180 = vpop.f32.mrf.mxu0
    %v1181 = vadd.f32 0.0, %v1180
    %v1182 = vpop.f32.mrf.mxu0
    %1183 = vmatprep.mubr.f32.mxu0 0.0
    %1184 = vmatmul.mubr.f32.gmra.mxu0 %v1081
    %v1185 = vpop.f32.mrf.mxu0
    %v1186 = vadd.f32 0.0, %v1185
    %v1187 = vpop.f32.mrf.mxu0
    %1188 = vmatprep.mubr.f32.mxu0 0.0
    %1189 = vmatmul.mubr.f32.gmra.mxu0 %v1082
    %v1190 = vpop.f32.mrf.mxu0
    %v1191 = vadd.f32 0.0, %v1190
    %v1192 = vpop.f32.mrf.mxu0
    %1193 = vmatprep.mubr.f32.mxu0 0.0
    %1194 = vmatmul.mubr.f32.gmra.mxu0 %v1083
    %v1195 = vpop.f32.mrf.mxu0
    %v1196 = vadd.f32 0.0, %v1195
    %v1197 = vpop.f32.mrf.mxu0
    %1198 = vmatprep.mubr.f32.mxu0 0.0
    %1199 = vmatmul.mubr.f32.gmra.mxu0 %v1084
    %v1200 = vpop.f32.mrf.mxu0
    %v1201 = vadd.f32 0.0, %v1200
    %v1202 = vpop.f32.mrf.mxu0
    %1203 = vmatprep.mubr.f32.mxu0 0.0
    %1204 = vmatmul.mubr.f32.gmra.mxu0 %v1085
    %v1205 = vpop.f32.mrf.mxu0
    %v1206 = vadd.f32 0.0, %v1205
    %v1207 = vpop.f32.mrf.mxu0
    %1208 = vmatprep.mubr.f32.mxu0 0.0
    %1209 = vmatmul.mubr.f32.gmra.mxu0 %v1086
    %v1210 = vpop.f32.mrf.mxu0
    %v1211 = vadd.f32 0.0, %v1210
    %v1212 = vpop.f32.mrf.mxu0
    %1213 = vmatprep.mubr.f32.mxu0 0.0
    %1214 = vmatmul.mubr.f32.gmra.mxu0 %v1087
    %v1215 = vpop.f32.mrf.mxu0
    %v1216 = vadd.f32 0.0, %v1215
    %v1217 = vpop.f32.mrf.mxu0
    %1218 = vmatprep.mubr.f32.mxu0 0.0
    %1219 = vmatmul.mubr.f32.gmra.mxu0 %v1088
    %v1220 = vpop.f32.mrf.mxu0
    %v1221 = vadd.f32 0.0, %v1220
    %v1222 = vpop.f32.mrf.mxu0
    %1223 = vmatprep.mubr.f32.mxu0 0.0
    %1224 = vmatmul.mubr.f32.gmra.mxu0 %v1089
    %v1225 = vpop.f32.mrf.mxu0
    %v1226 = vadd.f32 0.0, %v1225
    %v1227 = vpop.f32.mrf.mxu0
    %1228 = vmatprep.mubr.f32.mxu0 0.0
    %1229 = vmatmul.mubr.f32.gmra.mxu0 %v1090
    %v1230 = vpop.f32.mrf.mxu0
    %v1231 = vadd.f32 0.0, %v1230
    %v1232 = vpop.f32.mrf.mxu0
    %1233 = vmatprep.mubr.f32.mxu0 0.0
    %1234 = vmatmul.mubr.f32.gmra.mxu0 %v1091
    %v1235 = vpop.f32.mrf.mxu0
    %v1236 = vadd.f32 0.0, %v1235
    %v1237 = vpop.f32.mrf.mxu0
    %1238 = vdwg.mxu0
    %v1239 = vadd.f32 %v1066, %v1176
    %v1240 = vadd.f32 %v1067, %v1181
    %v1241 = vadd.f32 %v1068, %v1186
    %v1242 = vadd.f32 %v1069, %v1191
    %v1243 = vadd.f32 %v1070, %v1196
    %v1244 = vadd.f32 %v1071, %v1201
    %v1245 = vadd.f32 %v1072, %v1206
    %v1246 = vadd.f32 %v1073, %v1211
    %v1247 = vadd.f32 %v1074, %v1216
    %v1248 = vadd.f32 %v1075, %v1221
    %v1249 = vadd.f32 %v1076, %v1226
    %v1250 = vadd.f32 %v1077, %v1231
    %v1251 = vadd.f32 %v1078, %v1236
    %v1252 = vld [vmem:[#allocation2 + $0x11] sm:$0xff]
    %v1253 = vld [vmem:[#allocation2 + $0x19] sm:$0xff]
    %v1254 = vld [vmem:[#allocation2 + $0x21] sm:$0xff]
    %v1255 = vld [vmem:[#allocation2 + $0x29] sm:$0xff]
    %v1256 = vld [vmem:[#allocation2 + $0x31] sm:$0xff]
    %v1257 = vld [vmem:[#allocation2 + $0x39] sm:$0xff]
    %v1258 = vld [vmem:[#allocation2 + $0x41] sm:$0xff]
    %v1259 = vld [vmem:[#allocation2 + $0x49] sm:$0xff]
    %v1260 = vld [vmem:[#allocation2 + $0x51] sm:$0xff]
    %v1261 = vld [vmem:[#allocation2 + $0x59] sm:$0xff]
    %v1262 = vld [vmem:[#allocation2 + $0x61] sm:$0xff]
    %v1263 = vld [vmem:[#allocation2 + $0x69] sm:$0xff]
    %v1264 = vld [vmem:[#allocation2 + $0x71] sm:$0xff]
    %s1265 = scalar_lea.vmem [#allocation7], 512
    %v1266 = vld [vmem:[%s1265] sm:$0xff]
    %v1267 = vld [vmem:[%s1265 + $0x8] sm:$0xff]
    %v1268 = vld [vmem:[%s1265 + $0x10] sm:$0xff]
    %v1269 = vld [vmem:[%s1265 + $0x18] sm:$0xff]
    %v1270 = vld [vmem:[%s1265 + $0x20] sm:$0xff]
    %v1271 = vld [vmem:[%s1265 + $0x28] sm:$0xff]
    %v1272 = vld [vmem:[%s1265 + $0x30] sm:$0xff]
    %v1273 = vld [vmem:[%s1265 + $0x38] sm:$0xff]
    %v1274 = vld [vmem:[%s1265 + $0x40] sm:$0xff]
    %v1275 = vld [vmem:[%s1265 + $0x48] sm:$0xff]
    %v1276 = vld [vmem:[%s1265 + $0x50] sm:$0xff]
    %v1277 = vld [vmem:[%s1265 + $0x58] sm:$0xff]
    %v1278 = vld [vmem:[%s1265 + $0x60] sm:$0xff]
    %v1279 = vld [vmem:[%s1265 + $0x68] sm:$0xff]
    %v1280 = vld [vmem:[%s1265 + $0x70] sm:$0xff]
    %v1281 = vld [vmem:[%s1265 + $0x78] sm:$0xff]
    %1282 = vmatprep.subr.mxu0 0.0
    %1283 = vmatpush1.msra.mxu0 %v1281
    %1284 = vmatprep.subr.mxu0 0.0
    %1285 = vmatpush1.msra.mxu0 %v1280
    %1286 = vmatprep.subr.mxu0 0.0
    %1287 = vmatpush1.msra.mxu0 %v1279
    %1288 = vmatprep.subr.mxu0 0.0
    %1289 = vmatpush1.msra.mxu0 %v1278
    %1290 = vmatprep.subr.mxu0 0.0
    %1291 = vmatpush1.msra.mxu0 %v1277
    %1292 = vmatprep.subr.mxu0 0.0
    %1293 = vmatpush1.msra.mxu0 %v1276
    %1294 = vmatprep.subr.mxu0 0.0
    %1295 = vmatpush1.msra.mxu0 %v1275
    %1296 = vmatprep.subr.mxu0 0.0
    %1297 = vmatpush1.msra.mxu0 %v1274
    %1298 = vmatprep.subr.mxu0 0.0
    %1299 = vmatpush1.msra.mxu0 %v1273
    %1300 = vmatprep.subr.mxu0 0.0
    %1301 = vmatpush1.msra.mxu0 %v1272
    %1302 = vmatprep.subr.mxu0 0.0
    %1303 = vmatpush1.msra.mxu0 %v1271
    %1304 = vmatprep.subr.mxu0 0.0
    %1305 = vmatpush1.msra.mxu0 %v1270
    %1306 = vmatprep.subr.mxu0 0.0
    %1307 = vmatpush1.msra.mxu0 %v1269
    %1308 = vmatprep.subr.mxu0 0.0
    %1309 = vmatpush1.msra.mxu0 %v1268
    %1310 = vmatprep.subr.mxu0 0.0
    %1311 = vmatpush1.msra.mxu0 %v1267
    %1312 = vmatprep.subr.mxu0 0.0
    %1313 = vmatpush1.msra.mxu0 %v1266
    %1314 = vmatprep.subr.mxu0 0.0
    %1315 = vmatpush2.msra.mxu0 0.0
    %1316 = vmatprep.subr.mxu0 0.0
    %1317 = vmatpush2.msra.mxu0 0.0
    %1318 = vmatprep.subr.mxu0 0.0
    %1319 = vmatpush2.msra.mxu0 0.0
    %1320 = vmatprep.subr.mxu0 0.0
    %1321 = vmatpush2.msra.mxu0 0.0
    %1322 = vmatprep.subr.mxu0 0.0
    %1323 = vmatpush2.msra.mxu0 0.0
    %1324 = vmatprep.subr.mxu0 0.0
    %1325 = vmatpush2.msra.mxu0 0.0
    %1326 = vmatprep.subr.mxu0 0.0
    %1327 = vmatpush2.msra.mxu0 0.0
    %1328 = vmatprep.subr.mxu0 0.0
    %1329 = vmatpush2.msra.mxu0 0.0
    %1330 = vmatprep.subr.mxu0 0.0
    %1331 = vmatpush2.msra.mxu0 0.0
    %1332 = vmatprep.subr.mxu0 0.0
    %1333 = vmatpush2.msra.mxu0 0.0
    %1334 = vmatprep.subr.mxu0 0.0
    %1335 = vmatpush2.msra.mxu0 0.0
    %1336 = vmatprep.subr.mxu0 0.0
    %1337 = vmatpush2.msra.mxu0 0.0
    %1338 = vmatprep.subr.mxu0 0.0
    %1339 = vmatpush2.msra.mxu0 0.0
    %1340 = vmatprep.subr.mxu0 0.0
    %1341 = vmatpush2.msra.mxu0 0.0
    %1342 = vmatprep.subr.mxu0 0.0
    %1343 = vmatpush2.msra.mxu0 0.0
    %1344 = vmatprep.subr.mxu0 0.0
    %1345 = vmatpush2.msra.mxu0 0.0
    %1346 = vmatprep.mubr.f32.mxu0 0.0
    %1347 = vmatmul.mubr.f32.gmra.mxu0 %v1252
    %v1348 = vpop.f32.mrf.mxu0
    %v1349 = vadd.f32 0.0, %v1348
    %v1350 = vpop.f32.mrf.mxu0
    %1351 = vmatprep.mubr.f32.mxu0 0.0
    %1352 = vmatmul.mubr.f32.gmra.mxu0 %v1253
    %v1353 = vpop.f32.mrf.mxu0
    %v1354 = vadd.f32 0.0, %v1353
    %v1355 = vpop.f32.mrf.mxu0
    %1356 = vmatprep.mubr.f32.mxu0 0.0
    %1357 = vmatmul.mubr.f32.gmra.mxu0 %v1254
    %v1358 = vpop.f32.mrf.mxu0
    %v1359 = vadd.f32 0.0, %v1358
    %v1360 = vpop.f32.mrf.mxu0
    %1361 = vmatprep.mubr.f32.mxu0 0.0
    %1362 = vmatmul.mubr.f32.gmra.mxu0 %v1255
    %v1363 = vpop.f32.mrf.mxu0
    %v1364 = vadd.f32 0.0, %v1363
    %v1365 = vpop.f32.mrf.mxu0
    %1366 = vmatprep.mubr.f32.mxu0 0.0
    %1367 = vmatmul.mubr.f32.gmra.mxu0 %v1256
    %v1368 = vpop.f32.mrf.mxu0
    %v1369 = vadd.f32 0.0, %v1368
    %v1370 = vpop.f32.mrf.mxu0
    %1371 = vmatprep.mubr.f32.mxu0 0.0
    %1372 = vmatmul.mubr.f32.gmra.mxu0 %v1257
    %v1373 = vpop.f32.mrf.mxu0
    %v1374 = vadd.f32 0.0, %v1373
    %v1375 = vpop.f32.mrf.mxu0
    %1376 = vmatprep.mubr.f32.mxu0 0.0
    %1377 = vmatmul.mubr.f32.gmra.mxu0 %v1258
    %v1378 = vpop.f32.mrf.mxu0
    %v1379 = vadd.f32 0.0, %v1378
    %v1380 = vpop.f32.mrf.mxu0
    %1381 = vmatprep.mubr.f32.mxu0 0.0
    %1382 = vmatmul.mubr.f32.gmra.mxu0 %v1259
    %v1383 = vpop.f32.mrf.mxu0
    %v1384 = vadd.f32 0.0, %v1383
    %v1385 = vpop.f32.mrf.mxu0
    %1386 = vmatprep.mubr.f32.mxu0 0.0
    %1387 = vmatmul.mubr.f32.gmra.mxu0 %v1260
    %v1388 = vpop.f32.mrf.mxu0
    %v1389 = vadd.f32 0.0, %v1388
    %v1390 = vpop.f32.mrf.mxu0
    %1391 = vmatprep.mubr.f32.mxu0 0.0
    %1392 = vmatmul.mubr.f32.gmra.mxu0 %v1261
    %v1393 = vpop.f32.mrf.mxu0
    %v1394 = vadd.f32 0.0, %v1393
    %v1395 = vpop.f32.mrf.mxu0
    %1396 = vmatprep.mubr.f32.mxu0 0.0
    %1397 = vmatmul.mubr.f32.gmra.mxu0 %v1262
    %v1398 = vpop.f32.mrf.mxu0
    %v1399 = vadd.f32 0.0, %v1398
    %v1400 = vpop.f32.mrf.mxu0
    %1401 = vmatprep.mubr.f32.mxu0 0.0
    %1402 = vmatmul.mubr.f32.gmra.mxu0 %v1263
    %v1403 = vpop.f32.mrf.mxu0
    %v1404 = vadd.f32 0.0, %v1403
    %v1405 = vpop.f32.mrf.mxu0
    %1406 = vmatprep.mubr.f32.mxu0 0.0
    %1407 = vmatmul.mubr.f32.gmra.mxu0 %v1264
    %v1408 = vpop.f32.mrf.mxu0
    %v1409 = vadd.f32 0.0, %v1408
    %v1410 = vpop.f32.mrf.mxu0
    %1411 = vdwg.mxu0
    %v1412 = vadd.f32 %v1239, %v1349
    %v1413 = vadd.f32 %v1240, %v1354
    %v1414 = vadd.f32 %v1241, %v1359
    %v1415 = vadd.f32 %v1242, %v1364
    %v1416 = vadd.f32 %v1243, %v1369
    %v1417 = vadd.f32 %v1244, %v1374
    %v1418 = vadd.f32 %v1245, %v1379
    %v1419 = vadd.f32 %v1246, %v1384
    %v1420 = vadd.f32 %v1247, %v1389
    %v1421 = vadd.f32 %v1248, %v1394
    %v1422 = vadd.f32 %v1249, %v1399
    %v1423 = vadd.f32 %v1250, %v1404
    %v1424 = vadd.f32 %v1251, %v1409
    %v1425 = vld [vmem:[#allocation2 + $0x12] sm:$0xff]
    %v1426 = vld [vmem:[#allocation2 + $0x1a] sm:$0xff]
    %v1427 = vld [vmem:[#allocation2 + $0x22] sm:$0xff]
    %v1428 = vld [vmem:[#allocation2 + $0x2a] sm:$0xff]
    %v1429 = vld [vmem:[#allocation2 + $0x32] sm:$0xff]
    %v1430 = vld [vmem:[#allocation2 + $0x3a] sm:$0xff]
    %v1431 = vld [vmem:[#allocation2 + $0x42] sm:$0xff]
    %v1432 = vld [vmem:[#allocation2 + $0x4a] sm:$0xff]
    %v1433 = vld [vmem:[#allocation2 + $0x52] sm:$0xff]
    %v1434 = vld [vmem:[#allocation2 + $0x5a] sm:$0xff]
    %v1435 = vld [vmem:[#allocation2 + $0x62] sm:$0xff]
    %v1436 = vld [vmem:[#allocation2 + $0x6a] sm:$0xff]
    %v1437 = vld [vmem:[#allocation2 + $0x72] sm:$0xff]
    %s1438 = scalar_lea.vmem [#allocation7], 640
    %v1439 = vld [vmem:[%s1438] sm:$0xff]
    %v1440 = vld [vmem:[%s1438 + $0x8] sm:$0xff]
    %v1441 = vld [vmem:[%s1438 + $0x10] sm:$0xff]
    %v1442 = vld [vmem:[%s1438 + $0x18] sm:$0xff]
    %v1443 = vld [vmem:[%s1438 + $0x20] sm:$0xff]
    %v1444 = vld [vmem:[%s1438 + $0x28] sm:$0xff]
    %v1445 = vld [vmem:[%s1438 + $0x30] sm:$0xff]
    %v1446 = vld [vmem:[%s1438 + $0x38] sm:$0xff]
    %v1447 = vld [vmem:[%s1438 + $0x40] sm:$0xff]
    %v1448 = vld [vmem:[%s1438 + $0x48] sm:$0xff]
    %v1449 = vld [vmem:[%s1438 + $0x50] sm:$0xff]
    %v1450 = vld [vmem:[%s1438 + $0x58] sm:$0xff]
    %v1451 = vld [vmem:[%s1438 + $0x60] sm:$0xff]
    %v1452 = vld [vmem:[%s1438 + $0x68] sm:$0xff]
    %v1453 = vld [vmem:[%s1438 + $0x70] sm:$0xff]
    %v1454 = vld [vmem:[%s1438 + $0x78] sm:$0xff]
    %1455 = vmatprep.subr.mxu0 0.0
    %1456 = vmatpush1.msra.mxu0 %v1454
    %1457 = vmatprep.subr.mxu0 0.0
    %1458 = vmatpush1.msra.mxu0 %v1453
    %1459 = vmatprep.subr.mxu0 0.0
    %1460 = vmatpush1.msra.mxu0 %v1452
    %1461 = vmatprep.subr.mxu0 0.0
    %1462 = vmatpush1.msra.mxu0 %v1451
    %1463 = vmatprep.subr.mxu0 0.0
    %1464 = vmatpush1.msra.mxu0 %v1450
    %1465 = vmatprep.subr.mxu0 0.0
    %1466 = vmatpush1.msra.mxu0 %v1449
    %1467 = vmatprep.subr.mxu0 0.0
    %1468 = vmatpush1.msra.mxu0 %v1448
    %1469 = vmatprep.subr.mxu0 0.0
    %1470 = vmatpush1.msra.mxu0 %v1447
    %1471 = vmatprep.subr.mxu0 0.0
    %1472 = vmatpush1.msra.mxu0 %v1446
    %1473 = vmatprep.subr.mxu0 0.0
    %1474 = vmatpush1.msra.mxu0 %v1445
    %1475 = vmatprep.subr.mxu0 0.0
    %1476 = vmatpush1.msra.mxu0 %v1444
    %1477 = vmatprep.subr.mxu0 0.0
    %1478 = vmatpush1.msra.mxu0 %v1443
    %1479 = vmatprep.subr.mxu0 0.0
    %1480 = vmatpush1.msra.mxu0 %v1442
    %1481 = vmatprep.subr.mxu0 0.0
    %1482 = vmatpush1.msra.mxu0 %v1441
    %1483 = vmatprep.subr.mxu0 0.0
    %1484 = vmatpush1.msra.mxu0 %v1440
    %1485 = vmatprep.subr.mxu0 0.0
    %1486 = vmatpush1.msra.mxu0 %v1439
    %1487 = vmatprep.subr.mxu0 0.0
    %1488 = vmatpush2.msra.mxu0 0.0
    %1489 = vmatprep.subr.mxu0 0.0
    %1490 = vmatpush2.msra.mxu0 0.0
    %1491 = vmatprep.subr.mxu0 0.0
    %1492 = vmatpush2.msra.mxu0 0.0
    %1493 = vmatprep.subr.mxu0 0.0
    %1494 = vmatpush2.msra.mxu0 0.0
    %1495 = vmatprep.subr.mxu0 0.0
    %1496 = vmatpush2.msra.mxu0 0.0
    %1497 = vmatprep.subr.mxu0 0.0
    %1498 = vmatpush2.msra.mxu0 0.0
    %1499 = vmatprep.subr.mxu0 0.0
    %1500 = vmatpush2.msra.mxu0 0.0
    %1501 = vmatprep.subr.mxu0 0.0
    %1502 = vmatpush2.msra.mxu0 0.0
    %1503 = vmatprep.subr.mxu0 0.0
    %1504 = vmatpush2.msra.mxu0 0.0
    %1505 = vmatprep.subr.mxu0 0.0
    %1506 = vmatpush2.msra.mxu0 0.0
    %1507 = vmatprep.subr.mxu0 0.0
    %1508 = vmatpush2.msra.mxu0 0.0
    %1509 = vmatprep.subr.mxu0 0.0
    %1510 = vmatpush2.msra.mxu0 0.0
    %1511 = vmatprep.subr.mxu0 0.0
    %1512 = vmatpush2.msra.mxu0 0.0
    %1513 = vmatprep.subr.mxu0 0.0
    %1514 = vmatpush2.msra.mxu0 0.0
    %1515 = vmatprep.subr.mxu0 0.0
    %1516 = vmatpush2.msra.mxu0 0.0
    %1517 = vmatprep.subr.mxu0 0.0
    %1518 = vmatpush2.msra.mxu0 0.0
    %1519 = vmatprep.mubr.f32.mxu0 0.0
    %1520 = vmatmul.mubr.f32.gmra.mxu0 %v1425
    %v1521 = vpop.f32.mrf.mxu0
    %v1522 = vadd.f32 0.0, %v1521
    %v1523 = vpop.f32.mrf.mxu0
    %1524 = vmatprep.mubr.f32.mxu0 0.0
    %1525 = vmatmul.mubr.f32.gmra.mxu0 %v1426
    %v1526 = vpop.f32.mrf.mxu0
    %v1527 = vadd.f32 0.0, %v1526
    %v1528 = vpop.f32.mrf.mxu0
    %1529 = vmatprep.mubr.f32.mxu0 0.0
    %1530 = vmatmul.mubr.f32.gmra.mxu0 %v1427
    %v1531 = vpop.f32.mrf.mxu0
    %v1532 = vadd.f32 0.0, %v1531
    %v1533 = vpop.f32.mrf.mxu0
    %1534 = vmatprep.mubr.f32.mxu0 0.0
    %1535 = vmatmul.mubr.f32.gmra.mxu0 %v1428
    %v1536 = vpop.f32.mrf.mxu0
    %v1537 = vadd.f32 0.0, %v1536
    %v1538 = vpop.f32.mrf.mxu0
    %1539 = vmatprep.mubr.f32.mxu0 0.0
    %1540 = vmatmul.mubr.f32.gmra.mxu0 %v1429
    %v1541 = vpop.f32.mrf.mxu0
    %v1542 = vadd.f32 0.0, %v1541
    %v1543 = vpop.f32.mrf.mxu0
    %1544 = vmatprep.mubr.f32.mxu0 0.0
    %1545 = vmatmul.mubr.f32.gmra.mxu0 %v1430
    %v1546 = vpop.f32.mrf.mxu0
    %v1547 = vadd.f32 0.0, %v1546
    %v1548 = vpop.f32.mrf.mxu0
    %1549 = vmatprep.mubr.f32.mxu0 0.0
    %1550 = vmatmul.mubr.f32.gmra.mxu0 %v1431
    %v1551 = vpop.f32.mrf.mxu0
    %v1552 = vadd.f32 0.0, %v1551
    %v1553 = vpop.f32.mrf.mxu0
    %1554 = vmatprep.mubr.f32.mxu0 0.0
    %1555 = vmatmul.mubr.f32.gmra.mxu0 %v1432
    %v1556 = vpop.f32.mrf.mxu0
    %v1557 = vadd.f32 0.0, %v1556
    %v1558 = vpop.f32.mrf.mxu0
    %1559 = vmatprep.mubr.f32.mxu0 0.0
    %1560 = vmatmul.mubr.f32.gmra.mxu0 %v1433
    %v1561 = vpop.f32.mrf.mxu0
    %v1562 = vadd.f32 0.0, %v1561
    %v1563 = vpop.f32.mrf.mxu0
    %1564 = vmatprep.mubr.f32.mxu0 0.0
    %1565 = vmatmul.mubr.f32.gmra.mxu0 %v1434
    %v1566 = vpop.f32.mrf.mxu0
    %v1567 = vadd.f32 0.0, %v1566
    %v1568 = vpop.f32.mrf.mxu0
    %1569 = vmatprep.mubr.f32.mxu0 0.0
    %1570 = vmatmul.mubr.f32.gmra.mxu0 %v1435
    %v1571 = vpop.f32.mrf.mxu0
    %v1572 = vadd.f32 0.0, %v1571
    %v1573 = vpop.f32.mrf.mxu0
    %1574 = vmatprep.mubr.f32.mxu0 0.0
    %1575 = vmatmul.mubr.f32.gmra.mxu0 %v1436
    %v1576 = vpop.f32.mrf.mxu0
    %v1577 = vadd.f32 0.0, %v1576
    %v1578 = vpop.f32.mrf.mxu0
    %1579 = vmatprep.mubr.f32.mxu0 0.0
    %1580 = vmatmul.mubr.f32.gmra.mxu0 %v1437
    %v1581 = vpop.f32.mrf.mxu0
    %v1582 = vadd.f32 0.0, %v1581
    %v1583 = vpop.f32.mrf.mxu0
    %1584 = vdwg.mxu0
    %v1585 = vadd.f32 %v1412, %v1522
    %v1586 = vadd.f32 %v1413, %v1527
    %v1587 = vadd.f32 %v1414, %v1532
    %v1588 = vadd.f32 %v1415, %v1537
    %v1589 = vadd.f32 %v1416, %v1542
    %v1590 = vadd.f32 %v1417, %v1547
    %v1591 = vadd.f32 %v1418, %v1552
    %v1592 = vadd.f32 %v1419, %v1557
    %v1593 = vadd.f32 %v1420, %v1562
    %v1594 = vadd.f32 %v1421, %v1567
    %v1595 = vadd.f32 %v1422, %v1572
    %v1596 = vadd.f32 %v1423, %v1577
    %v1597 = vadd.f32 %v1424, %v1582
    %v1598 = vld [vmem:[#allocation2 + $0x13] sm:$0xff]
    %v1599 = vld [vmem:[#allocation2 + $0x1b] sm:$0xff]
    %v1600 = vld [vmem:[#allocation2 + $0x23] sm:$0xff]
    %v1601 = vld [vmem:[#allocation2 + $0x2b] sm:$0xff]
    %v1602 = vld [vmem:[#allocation2 + $0x33] sm:$0xff]
    %v1603 = vld [vmem:[#allocation2 + $0x3b] sm:$0xff]
    %v1604 = vld [vmem:[#allocation2 + $0x43] sm:$0xff]
    %v1605 = vld [vmem:[#allocation2 + $0x4b] sm:$0xff]
    %v1606 = vld [vmem:[#allocation2 + $0x53] sm:$0xff]
    %v1607 = vld [vmem:[#allocation2 + $0x5b] sm:$0xff]
    %v1608 = vld [vmem:[#allocation2 + $0x63] sm:$0xff]
    %v1609 = vld [vmem:[#allocation2 + $0x6b] sm:$0xff]
    %v1610 = vld [vmem:[#allocation2 + $0x73] sm:$0xff]
    %s1611 = scalar_lea.vmem [#allocation7], 768
    %v1612 = vld [vmem:[%s1611] sm:$0xff]
    %v1613 = vld [vmem:[%s1611 + $0x8] sm:$0xff]
    %v1614 = vld [vmem:[%s1611 + $0x10] sm:$0xff]
    %v1615 = vld [vmem:[%s1611 + $0x18] sm:$0xff]
    %v1616 = vld [vmem:[%s1611 + $0x20] sm:$0xff]
    %v1617 = vld [vmem:[%s1611 + $0x28] sm:$0xff]
    %v1618 = vld [vmem:[%s1611 + $0x30] sm:$0xff]
    %v1619 = vld [vmem:[%s1611 + $0x38] sm:$0xff]
    %v1620 = vld [vmem:[%s1611 + $0x40] sm:$0xff]
    %v1621 = vld [vmem:[%s1611 + $0x48] sm:$0xff]
    %v1622 = vld [vmem:[%s1611 + $0x50] sm:$0xff]
    %v1623 = vld [vmem:[%s1611 + $0x58] sm:$0xff]
    %v1624 = vld [vmem:[%s1611 + $0x60] sm:$0xff]
    %v1625 = vld [vmem:[%s1611 + $0x68] sm:$0xff]
    %v1626 = vld [vmem:[%s1611 + $0x70] sm:$0xff]
    %v1627 = vld [vmem:[%s1611 + $0x78] sm:$0xff]
    %1628 = vmatprep.subr.mxu0 0.0
    %1629 = vmatpush1.msra.mxu0 %v1627
    %1630 = vmatprep.subr.mxu0 0.0
    %1631 = vmatpush1.msra.mxu0 %v1626
    %1632 = vmatprep.subr.mxu0 0.0
    %1633 = vmatpush1.msra.mxu0 %v1625
    %1634 = vmatprep.subr.mxu0 0.0
    %1635 = vmatpush1.msra.mxu0 %v1624
    %1636 = vmatprep.subr.mxu0 0.0
    %1637 = vmatpush1.msra.mxu0 %v1623
    %1638 = vmatprep.subr.mxu0 0.0
    %1639 = vmatpush1.msra.mxu0 %v1622
    %1640 = vmatprep.subr.mxu0 0.0
    %1641 = vmatpush1.msra.mxu0 %v1621
    %1642 = vmatprep.subr.mxu0 0.0
    %1643 = vmatpush1.msra.mxu0 %v1620
    %1644 = vmatprep.subr.mxu0 0.0
    %1645 = vmatpush1.msra.mxu0 %v1619
    %1646 = vmatprep.subr.mxu0 0.0
    %1647 = vmatpush1.msra.mxu0 %v1618
    %1648 = vmatprep.subr.mxu0 0.0
    %1649 = vmatpush1.msra.mxu0 %v1617
    %1650 = vmatprep.subr.mxu0 0.0
    %1651 = vmatpush1.msra.mxu0 %v1616
    %1652 = vmatprep.subr.mxu0 0.0
    %1653 = vmatpush1.msra.mxu0 %v1615
    %1654 = vmatprep.subr.mxu0 0.0
    %1655 = vmatpush1.msra.mxu0 %v1614
    %1656 = vmatprep.subr.mxu0 0.0
    %1657 = vmatpush1.msra.mxu0 %v1613
    %1658 = vmatprep.subr.mxu0 0.0
    %1659 = vmatpush1.msra.mxu0 %v1612
    %1660 = vmatprep.subr.mxu0 0.0
    %1661 = vmatpush2.msra.mxu0 0.0
    %1662 = vmatprep.subr.mxu0 0.0
    %1663 = vmatpush2.msra.mxu0 0.0
    %1664 = vmatprep.subr.mxu0 0.0
    %1665 = vmatpush2.msra.mxu0 0.0
    %1666 = vmatprep.subr.mxu0 0.0
    %1667 = vmatpush2.msra.mxu0 0.0
    %1668 = vmatprep.subr.mxu0 0.0
    %1669 = vmatpush2.msra.mxu0 0.0
    %1670 = vmatprep.subr.mxu0 0.0
    %1671 = vmatpush2.msra.mxu0 0.0
    %1672 = vmatprep.subr.mxu0 0.0
    %1673 = vmatpush2.msra.mxu0 0.0
    %1674 = vmatprep.subr.mxu0 0.0
    %1675 = vmatpush2.msra.mxu0 0.0
    %1676 = vmatprep.subr.mxu0 0.0
    %1677 = vmatpush2.msra.mxu0 0.0
    %1678 = vmatprep.subr.mxu0 0.0
    %1679 = vmatpush2.msra.mxu0 0.0
    %1680 = vmatprep.subr.mxu0 0.0
    %1681 = vmatpush2.msra.mxu0 0.0
    %1682 = vmatprep.subr.mxu0 0.0
    %1683 = vmatpush2.msra.mxu0 0.0
    %1684 = vmatprep.subr.mxu0 0.0
    %1685 = vmatpush2.msra.mxu0 0.0
    %1686 = vmatprep.subr.mxu0 0.0
    %1687 = vmatpush2.msra.mxu0 0.0
    %1688 = vmatprep.subr.mxu0 0.0
    %1689 = vmatpush2.msra.mxu0 0.0
    %1690 = vmatprep.subr.mxu0 0.0
    %1691 = vmatpush2.msra.mxu0 0.0
    %1692 = vmatprep.mubr.f32.mxu0 0.0
    %1693 = vmatmul.mubr.f32.gmra.mxu0 %v1598
    %v1694 = vpop.f32.mrf.mxu0
    %v1695 = vadd.f32 0.0, %v1694
    %v1696 = vpop.f32.mrf.mxu0
    %1697 = vmatprep.mubr.f32.mxu0 0.0
    %1698 = vmatmul.mubr.f32.gmra.mxu0 %v1599
    %v1699 = vpop.f32.mrf.mxu0
    %v1700 = vadd.f32 0.0, %v1699
    %v1701 = vpop.f32.mrf.mxu0
    %1702 = vmatprep.mubr.f32.mxu0 0.0
    %1703 = vmatmul.mubr.f32.gmra.mxu0 %v1600
    %v1704 = vpop.f32.mrf.mxu0
    %v1705 = vadd.f32 0.0, %v1704
    %v1706 = vpop.f32.mrf.mxu0
    %1707 = vmatprep.mubr.f32.mxu0 0.0
    %1708 = vmatmul.mubr.f32.gmra.mxu0 %v1601
    %v1709 = vpop.f32.mrf.mxu0
    %v1710 = vadd.f32 0.0, %v1709
    %v1711 = vpop.f32.mrf.mxu0
    %1712 = vmatprep.mubr.f32.mxu0 0.0
    %1713 = vmatmul.mubr.f32.gmra.mxu0 %v1602
    %v1714 = vpop.f32.mrf.mxu0
    %v1715 = vadd.f32 0.0, %v1714
    %v1716 = vpop.f32.mrf.mxu0
    %1717 = vmatprep.mubr.f32.mxu0 0.0
    %1718 = vmatmul.mubr.f32.gmra.mxu0 %v1603
    %v1719 = vpop.f32.mrf.mxu0
    %v1720 = vadd.f32 0.0, %v1719
    %v1721 = vpop.f32.mrf.mxu0
    %1722 = vmatprep.mubr.f32.mxu0 0.0
    %1723 = vmatmul.mubr.f32.gmra.mxu0 %v1604
    %v1724 = vpop.f32.mrf.mxu0
    %v1725 = vadd.f32 0.0, %v1724
    %v1726 = vpop.f32.mrf.mxu0
    %1727 = vmatprep.mubr.f32.mxu0 0.0
    %1728 = vmatmul.mubr.f32.gmra.mxu0 %v1605
    %v1729 = vpop.f32.mrf.mxu0
    %v1730 = vadd.f32 0.0, %v1729
    %v1731 = vpop.f32.mrf.mxu0
    %1732 = vmatprep.mubr.f32.mxu0 0.0
    %1733 = vmatmul.mubr.f32.gmra.mxu0 %v1606
    %v1734 = vpop.f32.mrf.mxu0
    %v1735 = vadd.f32 0.0, %v1734
    %v1736 = vpop.f32.mrf.mxu0
    %1737 = vmatprep.mubr.f32.mxu0 0.0
    %1738 = vmatmul.mubr.f32.gmra.mxu0 %v1607
    %v1739 = vpop.f32.mrf.mxu0
    %v1740 = vadd.f32 0.0, %v1739
    %v1741 = vpop.f32.mrf.mxu0
    %1742 = vmatprep.mubr.f32.mxu0 0.0
    %1743 = vmatmul.mubr.f32.gmra.mxu0 %v1608
    %v1744 = vpop.f32.mrf.mxu0
    %v1745 = vadd.f32 0.0, %v1744
    %v1746 = vpop.f32.mrf.mxu0
    %1747 = vmatprep.mubr.f32.mxu0 0.0
    %1748 = vmatmul.mubr.f32.gmra.mxu0 %v1609
    %v1749 = vpop.f32.mrf.mxu0
    %v1750 = vadd.f32 0.0, %v1749
    %v1751 = vpop.f32.mrf.mxu0
    %1752 = vmatprep.mubr.f32.mxu0 0.0
    %1753 = vmatmul.mubr.f32.gmra.mxu0 %v1610
    %v1754 = vpop.f32.mrf.mxu0
    %v1755 = vadd.f32 0.0, %v1754
    %v1756 = vpop.f32.mrf.mxu0
    %1757 = vdwg.mxu0
    %v1758 = vadd.f32 %v1585, %v1695
    %v1759 = vadd.f32 %v1586, %v1700
    %v1760 = vadd.f32 %v1587, %v1705
    %v1761 = vadd.f32 %v1588, %v1710
    %v1762 = vadd.f32 %v1589, %v1715
    %v1763 = vadd.f32 %v1590, %v1720
    %v1764 = vadd.f32 %v1591, %v1725
    %v1765 = vadd.f32 %v1592, %v1730
    %v1766 = vadd.f32 %v1593, %v1735
    %v1767 = vadd.f32 %v1594, %v1740
    %v1768 = vadd.f32 %v1595, %v1745
    %v1769 = vadd.f32 %v1596, %v1750
    %v1770 = vadd.f32 %v1597, %v1755
    %v1771 = vld [vmem:[%s4] sm:$0x1]
    %v1773 = vlaneseq
    %v1774 = vshrl.u32 %v1773, 7
    %v1775 = vsub.s32 0, %v1774
    %v1776 = vrot.slane %v1771, %v1775
    %v1778 = vadd.f32 %v1758, %v1776
    %v1779 = vadd.f32 %v1759, %v1776
    %v1780 = vadd.f32 %v1760, %v1776
    %v1781 = vadd.f32 %v1761, %v1776
    %v1782 = vadd.f32 %v1762, %v1776
    %v1783 = vadd.f32 %v1763, %v1776
    %v1784 = vadd.f32 %v1764, %v1776
    %v1785 = vadd.f32 %v1765, %v1776
    %v1786 = vadd.f32 %v1766, %v1776
    %v1787 = vadd.f32 %v1767, %v1776
    %v1788 = vadd.f32 %v1768, %v1776
    %v1789 = vadd.f32 %v1769, %v1776
    %v1790 = vadd.f32 %v1770, %v1776
    %v1791 = vmax.f32 %v1778, 0.0
    %v1792 = vmax.f32 %v1779, 0.0
    %v1793 = vmax.f32 %v1780, 0.0
    %v1794 = vmax.f32 %v1781, 0.0
    %v1795 = vmax.f32 %v1782, 0.0
    %v1796 = vmax.f32 %v1783, 0.0
    %v1797 = vmax.f32 %v1784, 0.0
    %v1798 = vmax.f32 %v1785, 0.0
    %v1799 = vmax.f32 %v1786, 0.0
    %v1800 = vmax.f32 %v1787, 0.0
    %v1801 = vmax.f32 %v1788, 0.0
    %v1802 = vmax.f32 %v1789, 0.0
    %v1803 = vmax.f32 %v1790, 0.0
    %1804 = vst [vmem:[#allocation3 + $0x10] sm:$0xff] %v1791
    %1805 = vst [vmem:[#allocation3 + $0x18] sm:$0xff] %v1792
    %1806 = vst [vmem:[#allocation3 + $0x20] sm:$0xff] %v1793
    %1807 = vst [vmem:[#allocation3 + $0x28] sm:$0xff] %v1794
    %1808 = vst [vmem:[#allocation3 + $0x30] sm:$0xff] %v1795
    %1809 = vst [vmem:[#allocation3 + $0x38] sm:$0xff] %v1796
    %1810 = vst [vmem:[#allocation3 + $0x40] sm:$0xff] %v1797
    %1811 = vst [vmem:[#allocation3 + $0x48] sm:$0xff] %v1798
    %1812 = vst [vmem:[#allocation3 + $0x50] sm:$0xff] %v1799
    %1813 = vst [vmem:[#allocation3 + $0x58] sm:$0xff] %v1800
    %1814 = vst [vmem:[#allocation3 + $0x60] sm:$0xff] %v1801
    %1815 = vst [vmem:[#allocation3 + $0x68] sm:$0xff] %v1802
    %1816 = vst [vmem:[#allocation3 + $0x70] sm:$0xff] %v1803
    %v1817 = vld [vmem:[#allocation3 + $0x10] sm:$0xff]
    %v1818 = vld [vmem:[#allocation3 + $0x18] sm:$0xff]
    %v1819 = vld [vmem:[#allocation3 + $0x20] sm:$0xff]
    %v1820 = vld [vmem:[#allocation3 + $0x28] sm:$0xff]
    %v1821 = vld [vmem:[#allocation3 + $0x30] sm:$0xff]
    %v1822 = vld [vmem:[#allocation3 + $0x38] sm:$0xff]
    %v1823 = vld [vmem:[#allocation3 + $0x40] sm:$0xff]
    %v1824 = vld [vmem:[#allocation3 + $0x48] sm:$0xff]
    %v1825 = vld [vmem:[#allocation3 + $0x50] sm:$0xff]
    %v1826 = vld [vmem:[#allocation3 + $0x58] sm:$0xff]
    %v1827 = vld [vmem:[#allocation3 + $0x60] sm:$0xff]
    %v1828 = vld [vmem:[#allocation3 + $0x68] sm:$0xff]
    %v1829 = vld [vmem:[#allocation3 + $0x70] sm:$0xff]
    %v1830 = vld [vmem:[%s5] sm:$0xff]
    %v1831 = vld [vmem:[%s5 + $0x8] sm:$0xff]
    %v1832 = vld [vmem:[%s5 + $0x10] sm:$0xff]
    %v1833 = vld [vmem:[%s5 + $0x18] sm:$0xff]
    %v1834 = vld [vmem:[%s5 + $0x20] sm:$0xff]
    %v1835 = vld [vmem:[%s5 + $0x28] sm:$0xff]
    %v1836 = vld [vmem:[%s5 + $0x30] sm:$0xff]
    %v1837 = vld [vmem:[%s5 + $0x38] sm:$0xff]
    %v1838 = vld [vmem:[%s5 + $0x40] sm:$0xff]
    %v1839 = vld [vmem:[%s5 + $0x48] sm:$0xff]
    %v1840 = vld [vmem:[%s5 + $0x50] sm:$0xff]
    %v1841 = vld [vmem:[%s5 + $0x58] sm:$0xff]
    %v1842 = vld [vmem:[%s5 + $0x60] sm:$0xff]
    %v1843 = vld [vmem:[%s5 + $0x68] sm:$0xff]
    %v1844 = vld [vmem:[%s5 + $0x70] sm:$0xff]
    %v1845 = vld [vmem:[%s5 + $0x78] sm:$0xff]
    %v1846 = vld [vmem:[%s6] sm:$0x1]
    %v1848 = vlaneseq
    %v1849 = vshrl.u32 %v1848, 7
    %v1850 = vsub.s32 0, %v1849
    %v1851 = vrot.slane %v1846, %v1850
    %1853 = vmatprep.subr.mxu0 0.0
    %1854 = vmatpush1.msra.mxu0 %v1845
    %1855 = vmatprep.subr.mxu0 0.0
    %1856 = vmatpush1.msra.mxu0 %v1844
    %1857 = vmatprep.subr.mxu0 0.0
    %1858 = vmatpush1.msra.mxu0 %v1843
    %1859 = vmatprep.subr.mxu0 0.0
    %1860 = vmatpush1.msra.mxu0 %v1842
    %1861 = vmatprep.subr.mxu0 0.0
    %1862 = vmatpush1.msra.mxu0 %v1841
    %1863 = vmatprep.subr.mxu0 0.0
    %1864 = vmatpush1.msra.mxu0 %v1840
    %1865 = vmatprep.subr.mxu0 0.0
    %1866 = vmatpush1.msra.mxu0 %v1839
    %1867 = vmatprep.subr.mxu0 0.0
    %1868 = vmatpush1.msra.mxu0 %v1838
    %1869 = vmatprep.subr.mxu0 0.0
    %1870 = vmatpush1.msra.mxu0 %v1837
    %1871 = vmatprep.subr.mxu0 0.0
    %1872 = vmatpush1.msra.mxu0 %v1836
    %1873 = vmatprep.subr.mxu0 0.0
    %1874 = vmatpush1.msra.mxu0 %v1835
    %1875 = vmatprep.subr.mxu0 0.0
    %1876 = vmatpush1.msra.mxu0 %v1834
    %1877 = vmatprep.subr.mxu0 0.0
    %1878 = vmatpush1.msra.mxu0 %v1833
    %1879 = vmatprep.subr.mxu0 0.0
    %1880 = vmatpush1.msra.mxu0 %v1832
    %1881 = vmatprep.subr.mxu0 0.0
    %1882 = vmatpush1.msra.mxu0 %v1831
    %1883 = vmatprep.subr.mxu0 0.0
    %1884 = vmatpush1.msra.mxu0 %v1830
    %1885 = vmatprep.subr.mxu0 0.0
    %1886 = vmatpush2.msra.mxu0 0.0
    %1887 = vmatprep.subr.mxu0 0.0
    %1888 = vmatpush2.msra.mxu0 0.0
    %1889 = vmatprep.subr.mxu0 0.0
    %1890 = vmatpush2.msra.mxu0 0.0
    %1891 = vmatprep.subr.mxu0 0.0
    %1892 = vmatpush2.msra.mxu0 0.0
    %1893 = vmatprep.subr.mxu0 0.0
    %1894 = vmatpush2.msra.mxu0 0.0
    %1895 = vmatprep.subr.mxu0 0.0
    %1896 = vmatpush2.msra.mxu0 0.0
    %1897 = vmatprep.subr.mxu0 0.0
    %1898 = vmatpush2.msra.mxu0 0.0
    %1899 = vmatprep.subr.mxu0 0.0
    %1900 = vmatpush2.msra.mxu0 0.0
    %1901 = vmatprep.subr.mxu0 0.0
    %1902 = vmatpush2.msra.mxu0 0.0
    %1903 = vmatprep.subr.mxu0 0.0
    %1904 = vmatpush2.msra.mxu0 0.0
    %1905 = vmatprep.subr.mxu0 0.0
    %1906 = vmatpush2.msra.mxu0 0.0
    %1907 = vmatprep.subr.mxu0 0.0
    %1908 = vmatpush2.msra.mxu0 0.0
    %1909 = vmatprep.subr.mxu0 0.0
    %1910 = vmatpush2.msra.mxu0 0.0
    %1911 = vmatprep.subr.mxu0 0.0
    %1912 = vmatpush2.msra.mxu0 0.0
    %1913 = vmatprep.subr.mxu0 0.0
    %1914 = vmatpush2.msra.mxu0 0.0
    %1915 = vmatprep.subr.mxu0 0.0
    %1916 = vmatpush2.msra.mxu0 0.0
    %1917 = vmatprep.mubr.f32.mxu0 0.0
    %1918 = vmatmul.mubr.f32.gmra.mxu0 %v1817
    %v1919 = vpop.f32.mrf.mxu0
    %v1920 = vadd.f32 %v1851, %v1919
    %v1921 = vpop.f32.mrf.mxu0
    %1922 = vmatprep.mubr.f32.mxu0 0.0
    %1923 = vmatmul.mubr.f32.gmra.mxu0 %v1818
    %v1924 = vpop.f32.mrf.mxu0
    %v1925 = vadd.f32 %v1851, %v1924
    %v1926 = vpop.f32.mrf.mxu0
    %1927 = vmatprep.mubr.f32.mxu0 0.0
    %1928 = vmatmul.mubr.f32.gmra.mxu0 %v1819
    %v1929 = vpop.f32.mrf.mxu0
    %v1930 = vadd.f32 %v1851, %v1929
    %v1931 = vpop.f32.mrf.mxu0
    %1932 = vmatprep.mubr.f32.mxu0 0.0
    %1933 = vmatmul.mubr.f32.gmra.mxu0 %v1820
    %v1934 = vpop.f32.mrf.mxu0
    %v1935 = vadd.f32 %v1851, %v1934
    %v1936 = vpop.f32.mrf.mxu0
    %1937 = vmatprep.mubr.f32.mxu0 0.0
    %1938 = vmatmul.mubr.f32.gmra.mxu0 %v1821
    %v1939 = vpop.f32.mrf.mxu0
    %v1940 = vadd.f32 %v1851, %v1939
    %v1941 = vpop.f32.mrf.mxu0
    %1942 = vmatprep.mubr.f32.mxu0 0.0
    %1943 = vmatmul.mubr.f32.gmra.mxu0 %v1822
    %v1944 = vpop.f32.mrf.mxu0
    %v1945 = vadd.f32 %v1851, %v1944
    %v1946 = vpop.f32.mrf.mxu0
    %1947 = vmatprep.mubr.f32.mxu0 0.0
    %1948 = vmatmul.mubr.f32.gmra.mxu0 %v1823
    %v1949 = vpop.f32.mrf.mxu0
    %v1950 = vadd.f32 %v1851, %v1949
    %v1951 = vpop.f32.mrf.mxu0
    %1952 = vmatprep.mubr.f32.mxu0 0.0
    %1953 = vmatmul.mubr.f32.gmra.mxu0 %v1824
    %v1954 = vpop.f32.mrf.mxu0
    %v1955 = vadd.f32 %v1851, %v1954
    %v1956 = vpop.f32.mrf.mxu0
    %1957 = vmatprep.mubr.f32.mxu0 0.0
    %1958 = vmatmul.mubr.f32.gmra.mxu0 %v1825
    %v1959 = vpop.f32.mrf.mxu0
    %v1960 = vadd.f32 %v1851, %v1959
    %v1961 = vpop.f32.mrf.mxu0
    %1962 = vmatprep.mubr.f32.mxu0 0.0
    %1963 = vmatmul.mubr.f32.gmra.mxu0 %v1826
    %v1964 = vpop.f32.mrf.mxu0
    %v1965 = vadd.f32 %v1851, %v1964
    %v1966 = vpop.f32.mrf.mxu0
    %1967 = vmatprep.mubr.f32.mxu0 0.0
    %1968 = vmatmul.mubr.f32.gmra.mxu0 %v1827
    %v1969 = vpop.f32.mrf.mxu0
    %v1970 = vadd.f32 %v1851, %v1969
    %v1971 = vpop.f32.mrf.mxu0
    %1972 = vmatprep.mubr.f32.mxu0 0.0
    %1973 = vmatmul.mubr.f32.gmra.mxu0 %v1828
    %v1974 = vpop.f32.mrf.mxu0
    %v1975 = vadd.f32 %v1851, %v1974
    %v1976 = vpop.f32.mrf.mxu0
    %1977 = vmatprep.mubr.f32.mxu0 0.0
    %1978 = vmatmul.mubr.f32.gmra.mxu0 %v1829
    %v1979 = vpop.f32.mrf.mxu0
    %v1980 = vadd.f32 %v1851, %v1979
    %v1981 = vpop.f32.mrf.mxu0
    %1982 = vdwg.mxu0
    %1983 = vst [vmem:[#allocation2 + $0x10] sm:$0xff] %v1920
    %1984 = vst [vmem:[#allocation2 + $0x18] sm:$0xff] %v1925
    %1985 = vst [vmem:[#allocation2 + $0x20] sm:$0xff] %v1930
    %1986 = vst [vmem:[#allocation2 + $0x28] sm:$0xff] %v1935
    %1987 = vst [vmem:[#allocation2 + $0x30] sm:$0xff] %v1940
    %1988 = vst [vmem:[#allocation2 + $0x38] sm:$0xff] %v1945
    %1989 = vst [vmem:[#allocation2 + $0x40] sm:$0xff] %v1950
    %1990 = vst [vmem:[#allocation2 + $0x48] sm:$0xff] %v1955
    %1991 = vst [vmem:[#allocation2 + $0x50] sm:$0xff] %v1960
    %1992 = vst [vmem:[#allocation2 + $0x58] sm:$0xff] %v1965
    %1993 = vst [vmem:[#allocation2 + $0x60] sm:$0xff] %v1970
    %1994 = vst [vmem:[#allocation2 + $0x68] sm:$0xff] %v1975
    %1995 = vst [vmem:[#allocation2 + $0x70] sm:$0xff] %v1980
    %1996 = vst [vmem:[#allocation2 + $0xe] sm:$0x3] 0.0
    %1997 = vst [vmem:[#allocation2 + $0x74] sm:$0x3] 0.0
    %v1998 = vld [vmem:[#allocation2 + $0xe] sm:$0xff]
    %v1999 = vld [vmem:[#allocation2 + $0x16] sm:$0xff]
    %v2000 = vld [vmem:[#allocation2 + $0x1e] sm:$0xff]
    %v2001 = vld [vmem:[#allocation2 + $0x26] sm:$0xff]
    %v2002 = vld [vmem:[#allocation2 + $0x2e] sm:$0xff]
    %v2003 = vld [vmem:[#allocation2 + $0x36] sm:$0xff]
    %v2004 = vld [vmem:[#allocation2 + $0x3e] sm:$0xff]
    %v2005 = vld [vmem:[#allocation2 + $0x46] sm:$0xff]
    %v2006 = vld [vmem:[#allocation2 + $0x4e] sm:$0xff]
    %v2007 = vld [vmem:[#allocation2 + $0x56] sm:$0xff]
    %v2008 = vld [vmem:[#allocation2 + $0x5e] sm:$0xff]
    %v2009 = vld [vmem:[#allocation2 + $0x66] sm:$0xff]
    %v2010 = vld [vmem:[#allocation2 + $0x6e] sm:$0xff]
    %v2011 = vld [vmem:[#allocation2 + $0xf] sm:$0xff]
    %v2012 = vld [vmem:[#allocation2 + $0x17] sm:$0xff]
    %v2013 = vld [vmem:[#allocation2 + $0x1f] sm:$0xff]
    %v2014 = vld [vmem:[#allocation2 + $0x27] sm:$0xff]
    %v2015 = vld [vmem:[#allocation2 + $0x2f] sm:$0xff]
    %v2016 = vld [vmem:[#allocation2 + $0x37] sm:$0xff]
    %v2017 = vld [vmem:[#allocation2 + $0x3f] sm:$0xff]
    %v2018 = vld [vmem:[#allocation2 + $0x47] sm:$0xff]
    %v2019 = vld [vmem:[#allocation2 + $0x4f] sm:$0xff]
    %v2020 = vld [vmem:[#allocation2 + $0x57] sm:$0xff]
    %v2021 = vld [vmem:[#allocation2 + $0x5f] sm:$0xff]
    %v2022 = vld [vmem:[#allocation2 + $0x67] sm:$0xff]
    %v2023 = vld [vmem:[#allocation2 + $0x6f] sm:$0xff]
    %v2024 = vadd.f32 %v1998, %v2011
    %v2025 = vadd.f32 %v1999, %v2012
    %v2026 = vadd.f32 %v2000, %v2013
    %v2027 = vadd.f32 %v2001, %v2014
    %v2028 = vadd.f32 %v2002, %v2015
    %v2029 = vadd.f32 %v2003, %v2016
    %v2030 = vadd.f32 %v2004, %v2017
    %v2031 = vadd.f32 %v2005, %v2018
    %v2032 = vadd.f32 %v2006, %v2019
    %v2033 = vadd.f32 %v2007, %v2020
    %v2034 = vadd.f32 %v2008, %v2021
    %v2035 = vadd.f32 %v2009, %v2022
    %v2036 = vadd.f32 %v2010, %v2023
    %v2037 = vld [vmem:[#allocation2 + $0x10] sm:$0xff]
    %v2038 = vld [vmem:[#allocation2 + $0x18] sm:$0xff]
    %v2039 = vld [vmem:[#allocation2 + $0x20] sm:$0xff]
    %v2040 = vld [vmem:[#allocation2 + $0x28] sm:$0xff]
    %v2041 = vld [vmem:[#allocation2 + $0x30] sm:$0xff]
    %v2042 = vld [vmem:[#allocation2 + $0x38] sm:$0xff]
    %v2043 = vld [vmem:[#allocation2 + $0x40] sm:$0xff]
    %v2044 = vld [vmem:[#allocation2 + $0x48] sm:$0xff]
    %v2045 = vld [vmem:[#allocation2 + $0x50] sm:$0xff]
    %v2046 = vld [vmem:[#allocation2 + $0x58] sm:$0xff]
    %v2047 = vld [vmem:[#allocation2 + $0x60] sm:$0xff]
    %v2048 = vld [vmem:[#allocation2 + $0x68] sm:$0xff]
    %v2049 = vld [vmem:[#allocation2 + $0x70] sm:$0xff]
    %v2050 = vadd.f32 %v2024, %v2037
    %v2051 = vadd.f32 %v2025, %v2038
    %v2052 = vadd.f32 %v2026, %v2039
    %v2053 = vadd.f32 %v2027, %v2040
    %v2054 = vadd.f32 %v2028, %v2041
    %v2055 = vadd.f32 %v2029, %v2042
    %v2056 = vadd.f32 %v2030, %v2043
    %v2057 = vadd.f32 %v2031, %v2044
    %v2058 = vadd.f32 %v2032, %v2045
    %v2059 = vadd.f32 %v2033, %v2046
    %v2060 = vadd.f32 %v2034, %v2047
    %v2061 = vadd.f32 %v2035, %v2048
    %v2062 = vadd.f32 %v2036, %v2049
    %v2063 = vld [vmem:[#allocation2 + $0x11] sm:$0xff]
    %v2064 = vld [vmem:[#allocation2 + $0x19] sm:$0xff]
    %v2065 = vld [vmem:[#allocation2 + $0x21] sm:$0xff]
    %v2066 = vld [vmem:[#allocation2 + $0x29] sm:$0xff]
    %v2067 = vld [vmem:[#allocation2 + $0x31] sm:$0xff]
    %v2068 = vld [vmem:[#allocation2 + $0x39] sm:$0xff]
    %v2069 = vld [vmem:[#allocation2 + $0x41] sm:$0xff]
    %v2070 = vld [vmem:[#allocation2 + $0x49] sm:$0xff]
    %v2071 = vld [vmem:[#allocation2 + $0x51] sm:$0xff]
    %v2072 = vld [vmem:[#allocation2 + $0x59] sm:$0xff]
    %v2073 = vld [vmem:[#allocation2 + $0x61] sm:$0xff]
    %v2074 = vld [vmem:[#allocation2 + $0x69] sm:$0xff]
    %v2075 = vld [vmem:[#allocation2 + $0x71] sm:$0xff]
    %v2076 = vadd.f32 %v2050, %v2063
    %v2077 = vadd.f32 %v2051, %v2064
    %v2078 = vadd.f32 %v2052, %v2065
    %v2079 = vadd.f32 %v2053, %v2066
    %v2080 = vadd.f32 %v2054, %v2067
    %v2081 = vadd.f32 %v2055, %v2068
    %v2082 = vadd.f32 %v2056, %v2069
    %v2083 = vadd.f32 %v2057, %v2070
    %v2084 = vadd.f32 %v2058, %v2071
    %v2085 = vadd.f32 %v2059, %v2072
    %v2086 = vadd.f32 %v2060, %v2073
    %v2087 = vadd.f32 %v2061, %v2074
    %v2088 = vadd.f32 %v2062, %v2075
    %v2089 = vld [vmem:[#allocation2 + $0x12] sm:$0xff]
    %v2090 = vld [vmem:[#allocation2 + $0x1a] sm:$0xff]
    %v2091 = vld [vmem:[#allocation2 + $0x22] sm:$0xff]
    %v2092 = vld [vmem:[#allocation2 + $0x2a] sm:$0xff]
    %v2093 = vld [vmem:[#allocation2 + $0x32] sm:$0xff]
    %v2094 = vld [vmem:[#allocation2 + $0x3a] sm:$0xff]
    %v2095 = vld [vmem:[#allocation2 + $0x42] sm:$0xff]
    %v2096 = vld [vmem:[#allocation2 + $0x4a] sm:$0xff]
    %v2097 = vld [vmem:[#allocation2 + $0x52] sm:$0xff]
    %v2098 = vld [vmem:[#allocation2 + $0x5a] sm:$0xff]
    %v2099 = vld [vmem:[#allocation2 + $0x62] sm:$0xff]
    %v2100 = vld [vmem:[#allocation2 + $0x6a] sm:$0xff]
    %v2101 = vld [vmem:[#allocation2 + $0x72] sm:$0xff]
    %v2102 = vadd.f32 %v2076, %v2089
    %v2103 = vadd.f32 %v2077, %v2090
    %v2104 = vadd.f32 %v2078, %v2091
    %v2105 = vadd.f32 %v2079, %v2092
    %v2106 = vadd.f32 %v2080, %v2093
    %v2107 = vadd.f32 %v2081, %v2094
    %v2108 = vadd.f32 %v2082, %v2095
    %v2109 = vadd.f32 %v2083, %v2096
    %v2110 = vadd.f32 %v2084, %v2097
    %v2111 = vadd.f32 %v2085, %v2098
    %v2112 = vadd.f32 %v2086, %v2099
    %v2113 = vadd.f32 %v2087, %v2100
    %v2114 = vadd.f32 %v2088, %v2101
    %v2115 = vmul.f32 %v2102, %v174
    %v2116 = vmul.f32 %v2103, %v175
    %v2117 = vmul.f32 %v2104, %v176
    %v2118 = vmul.f32 %v2105, %v177
    %v2119 = vmul.f32 %v2106, %v178
    %v2120 = vmul.f32 %v2107, %v179
    %v2121 = vmul.f32 %v2108, %v180
    %v2122 = vmul.f32 %v2109, %v181
    %v2123 = vmul.f32 %v2110, %v182
    %v2124 = vmul.f32 %v2111, %v183
    %v2125 = vmul.f32 %v2112, %v184
    %v2126 = vmul.f32 %v2113, %v185
    %v2127 = vmul.f32 %v2114, %v186
    %v2128 = vmax.f32 %v2115, 0.0
    %v2129 = vmax.f32 %v2116, 0.0
    %v2130 = vmax.f32 %v2117, 0.0
    %v2131 = vmax.f32 %v2118, 0.0
    %v2132 = vmax.f32 %v2119, 0.0
    %v2133 = vmax.f32 %v2120, 0.0
    %v2134 = vmax.f32 %v2121, 0.0
    %v2135 = vmax.f32 %v2122, 0.0
    %v2136 = vmax.f32 %v2123, 0.0
    %v2137 = vmax.f32 %v2124, 0.0
    %v2138 = vmax.f32 %v2125, 0.0
    %v2139 = vmax.f32 %v2126, 0.0
    %v2140 = vmax.f32 %v2127, 0.0
    %2141 = vst [vmem:[#allocation3 + $0x10] sm:$0xff] %v2128
    %2142 = vst [vmem:[#allocation3 + $0x18] sm:$0xff] %v2129
    %2143 = vst [vmem:[#allocation3 + $0x20] sm:$0xff] %v2130
    %2144 = vst [vmem:[#allocation3 + $0x28] sm:$0xff] %v2131
    %2145 = vst [vmem:[#allocation3 + $0x30] sm:$0xff] %v2132
    %2146 = vst [vmem:[#allocation3 + $0x38] sm:$0xff] %v2133
    %2147 = vst [vmem:[#allocation3 + $0x40] sm:$0xff] %v2134
    %2148 = vst [vmem:[#allocation3 + $0x48] sm:$0xff] %v2135
    %2149 = vst [vmem:[#allocation3 + $0x50] sm:$0xff] %v2136
    %2150 = vst [vmem:[#allocation3 + $0x58] sm:$0xff] %v2137
    %2151 = vst [vmem:[#allocation3 + $0x60] sm:$0xff] %v2138
    %2152 = vst [vmem:[#allocation3 + $0x68] sm:$0xff] %v2139
    %2153 = vst [vmem:[#allocation3 + $0x70] sm:$0xff] %v2140
    %v2154 = vld [vmem:[#allocation3 + $0x11] sm:$0xff]
    %v2155 = vld [vmem:[#allocation3 + $0x19] sm:$0xff]
    %2156 = vmatprep.subr.mxu0 0.0
    %2157 = vmatpush1.msra.mxu0 0.0
    %2158 = vmatprep.subr.mxu0 0.0
    %2159 = vmatpush1.msra.mxu0 0.0
    %2160 = vmatprep.subr.mxu0 0.0
    %2161 = vmatpush1.msra.mxu0 0.0
    %2162 = vmatprep.subr.mxu0 0.0
    %2163 = vmatpush1.msra.mxu0 0.0
    %2164 = vmatprep.subr.mxu0 0.0
    %2165 = vmatpush1.msra.mxu0 0.0
    %2166 = vmatprep.subr.mxu0 0.0
    %2167 = vmatpush1.msra.mxu0 0.0
    %2168 = vmatprep.subr.mxu0 0.0
    %2169 = vmatpush1.msra.mxu0 0.0
    %2170 = vmatprep.subr.mxu0 0.0
    %2171 = vmatpush1.msra.mxu0 0.0
    %2172 = vmatprep.subr.mxu0 0.0
    %2173 = vmatpush1.msra.mxu0 0.0
    %2174 = vmatprep.subr.mxu0 0.0
    %2175 = vmatpush1.msra.mxu0 0.0
    %2176 = vmatprep.subr.mxu0 0.0
    %2177 = vmatpush1.msra.mxu0 0.0
    %2178 = vmatprep.subr.mxu0 0.0
    %2179 = vmatpush1.msra.mxu0 0.0
    %2180 = vmatprep.subr.mxu0 0.0
    %2181 = vmatpush1.msra.mxu0 0.0
    %2182 = vmatprep.subr.mxu0 0.0
    %2183 = vmatpush1.msra.mxu0 0.0
    %2184 = vmatprep.subr.mxu0 0.0
    %2185 = vmatpush1.msra.mxu0 %v2155
    %2186 = vmatprep.subr.mxu0 0.0
    %2187 = vmatpush1.msra.mxu0 %v2154
    %2188 = vmatprep.subr.mxu0 0.0
    %2189 = vmatpush2.msra.mxu0 0.0
    %2190 = vmatprep.subr.mxu0 0.0
    %2191 = vmatpush2.msra.mxu0 0.0
    %2192 = vmatprep.subr.mxu0 0.0
    %2193 = vmatpush2.msra.mxu0 0.0
    %2194 = vmatprep.subr.mxu0 0.0
    %2195 = vmatpush2.msra.mxu0 0.0
    %2196 = vmatprep.subr.mxu0 0.0
    %2197 = vmatpush2.msra.mxu0 0.0
    %2198 = vmatprep.subr.mxu0 0.0
    %2199 = vmatpush2.msra.mxu0 0.0
    %2200 = vmatprep.subr.mxu0 0.0
    %2201 = vmatpush2.msra.mxu0 0.0
    %2202 = vmatprep.subr.mxu0 0.0
    %2203 = vmatpush2.msra.mxu0 0.0
    %2204 = vmatprep.subr.mxu0 0.0
    %2205 = vmatpush2.msra.mxu0 0.0
    %2206 = vmatprep.subr.mxu0 0.0
    %2207 = vmatpush2.msra.mxu0 0.0
    %2208 = vmatprep.subr.mxu0 0.0
    %2209 = vmatpush2.msra.mxu0 0.0
    %2210 = vmatprep.subr.mxu0 0.0
    %2211 = vmatpush2.msra.mxu0 0.0
    %2212 = vmatprep.subr.mxu0 0.0
    %2213 = vmatpush2.msra.mxu0 0.0
    %2214 = vmatprep.subr.mxu0 0.0
    %2215 = vmatpush2.msra.mxu0 0.0
    %2216 = vmatprep.subr.mxu0 0.0
    %2217 = vmatpush2.msra.mxu0 0.0
    %2218 = vmatprep.subr.mxu0 0.0
    %2219 = vmatpush2.msra.mxu0 0.0
    %2220 = vmatprep.mubr.f32.mxu0 0.0
    %2221 = vmatmul.mubr.f32.gmra.mxu0 %v426
    %v2222 = vpop.f32.mrf.mxu0
    %v2223 = vadd.f32 0.0, %v2222
    %v2224 = vpop.f32.mrf.mxu0
    %2225 = vmatprep.mubr.f32.mxu0 0.0
    %2226 = vmatmul.mubr.f32.gmra.mxu0 %v429
    %v2227 = vpop.f32.mrf.mxu0
    %v2228 = vadd.f32 0.0, %v2227
    %v2229 = vpop.f32.mrf.mxu0
    %2230 = vdwg.mxu0
    %2231 = vst [vmem:[#allocation3] sm:$0xff] %v2223
    %2232 = vst [vmem:[#allocation3 + $0x8] sm:$0xff] %v2228
    %v2233 = vld [vmem:[#allocation3 + $0x63] sm:$0xff]
    %v2234 = vld [vmem:[#allocation3 + $0x6b] sm:$0xff]
    %2235 = vmatprep.subr.mxu0 0.0
    %2236 = vmatpush1.msra.mxu0 0.0
    %2237 = vmatprep.subr.mxu0 0.0
    %2238 = vmatpush1.msra.mxu0 0.0
    %2239 = vmatprep.subr.mxu0 0.0
    %2240 = vmatpush1.msra.mxu0 0.0
    %2241 = vmatprep.subr.mxu0 0.0
    %2242 = vmatpush1.msra.mxu0 0.0
    %2243 = vmatprep.subr.mxu0 0.0
    %2244 = vmatpush1.msra.mxu0 0.0
    %2245 = vmatprep.subr.mxu0 0.0
    %2246 = vmatpush1.msra.mxu0 0.0
    %2247 = vmatprep.subr.mxu0 0.0
    %2248 = vmatpush1.msra.mxu0 0.0
    %2249 = vmatprep.subr.mxu0 0.0
    %2250 = vmatpush1.msra.mxu0 0.0
    %2251 = vmatprep.subr.mxu0 0.0
    %2252 = vmatpush1.msra.mxu0 0.0
    %2253 = vmatprep.subr.mxu0 0.0
    %2254 = vmatpush1.msra.mxu0 0.0
    %2255 = vmatprep.subr.mxu0 0.0
    %2256 = vmatpush1.msra.mxu0 0.0
    %2257 = vmatprep.subr.mxu0 0.0
    %2258 = vmatpush1.msra.mxu0 0.0
    %2259 = vmatprep.subr.mxu0 0.0
    %2260 = vmatpush1.msra.mxu0 0.0
    %2261 = vmatprep.subr.mxu0 0.0
    %2262 = vmatpush1.msra.mxu0 0.0
    %2263 = vmatprep.subr.mxu0 0.0
    %2264 = vmatpush1.msra.mxu0 %v2234
    %2265 = vmatprep.subr.mxu0 0.0
    %2266 = vmatpush1.msra.mxu0 %v2233
    %2267 = vmatprep.subr.mxu0 0.0
    %2268 = vmatpush2.msra.mxu0 0.0
    %2269 = vmatprep.subr.mxu0 0.0
    %2270 = vmatpush2.msra.mxu0 0.0
    %2271 = vmatprep.subr.mxu0 0.0
    %2272 = vmatpush2.msra.mxu0 0.0
    %2273 = vmatprep.subr.mxu0 0.0
    %2274 = vmatpush2.msra.mxu0 0.0
    %2275 = vmatprep.subr.mxu0 0.0
    %2276 = vmatpush2.msra.mxu0 0.0
    %2277 = vmatprep.subr.mxu0 0.0
    %2278 = vmatpush2.msra.mxu0 0.0
    %2279 = vmatprep.subr.mxu0 0.0
    %2280 = vmatpush2.msra.mxu0 0.0
    %2281 = vmatprep.subr.mxu0 0.0
    %2282 = vmatpush2.msra.mxu0 0.0
    %2283 = vmatprep.subr.mxu0 0.0
    %2284 = vmatpush2.msra.mxu0 0.0
    %2285 = vmatprep.subr.mxu0 0.0
    %2286 = vmatpush2.msra.mxu0 0.0
    %2287 = vmatprep.subr.mxu0 0.0
    %2288 = vmatpush2.msra.mxu0 0.0
    %2289 = vmatprep.subr.mxu0 0.0
    %2290 = vmatpush2.msra.mxu0 0.0
    %2291 = vmatprep.subr.mxu0 0.0
    %2292 = vmatpush2.msra.mxu0 0.0
    %2293 = vmatprep.subr.mxu0 0.0
    %2294 = vmatpush2.msra.mxu0 0.0
    %2295 = vmatprep.subr.mxu0 0.0
    %2296 = vmatpush2.msra.mxu0 0.0
    %2297 = vmatprep.subr.mxu0 0.0
    %2298 = vmatpush2.msra.mxu0 0.0
    %2299 = vmatprep.mubr.f32.mxu0 0.0
    %2300 = vmatmul.mubr.f32.gmra.mxu0 %v426
    %v2301 = vpop.f32.mrf.mxu0
    %v2302 = vadd.f32 0.0, %v2301
    %v2303 = vpop.f32.mrf.mxu0
    %2304 = vmatprep.mubr.f32.mxu0 0.0
    %2305 = vmatmul.mubr.f32.gmra.mxu0 %v429
    %v2306 = vpop.f32.mrf.mxu0
    %v2307 = vadd.f32 0.0, %v2306
    %v2308 = vpop.f32.mrf.mxu0
    %2309 = vdwg.mxu0
    %2310 = vst [vmem:[#allocation3 + $0x74] sm:$0xff] %v2302
    %2311 = vst [vmem:[#allocation3 + $0x7c] sm:$0xff] %v2307
    %v2312 = vld [vmem:[#allocation3 + $0x1] sm:$0xff]
    %v2313 = vld [vmem:[#allocation3 + $0x9] sm:$0xff]
    %v2314 = vld [vmem:[#allocation3 + $0x11] sm:$0xff]
    %v2315 = vld [vmem:[#allocation3 + $0x19] sm:$0xff]
    %v2316 = vld [vmem:[#allocation3 + $0x21] sm:$0xff]
    %v2317 = vld [vmem:[#allocation3 + $0x29] sm:$0xff]
    %v2318 = vld [vmem:[#allocation3 + $0x31] sm:$0xff]
    %v2319 = vld [vmem:[#allocation3 + $0x39] sm:$0xff]
    %v2320 = vld [vmem:[#allocation3 + $0x41] sm:$0xff]
    %v2321 = vld [vmem:[#allocation3 + $0x49] sm:$0xff]
    %v2322 = vld [vmem:[#allocation3 + $0x51] sm:$0xff]
    %v2323 = vld [vmem:[#allocation3 + $0x59] sm:$0xff]
    %v2324 = vld [vmem:[#allocation3 + $0x61] sm:$0xff]
    %v2325 = vld [vmem:[#allocation9] sm:$0xff]
    %v2326 = vld [vmem:[#allocation9 + $0x8] sm:$0xff]
    %v2327 = vld [vmem:[#allocation9 + $0x10] sm:$0xff]
    %v2328 = vld [vmem:[#allocation9 + $0x18] sm:$0xff]
    %v2329 = vld [vmem:[#allocation9 + $0x20] sm:$0xff]
    %v2330 = vld [vmem:[#allocation9 + $0x28] sm:$0xff]
    %v2331 = vld [vmem:[#allocation9 + $0x30] sm:$0xff]
    %v2332 = vld [vmem:[#allocation9 + $0x38] sm:$0xff]
    %v2333 = vld [vmem:[#allocation9 + $0x40] sm:$0xff]
    %v2334 = vld [vmem:[#allocation9 + $0x48] sm:$0xff]
    %v2335 = vld [vmem:[#allocation9 + $0x50] sm:$0xff]
    %v2336 = vld [vmem:[#allocation9 + $0x58] sm:$0xff]
    %v2337 = vld [vmem:[#allocation9 + $0x60] sm:$0xff]
    %v2338 = vld [vmem:[#allocation9 + $0x68] sm:$0xff]
    %v2339 = vld [vmem:[#allocation9 + $0x70] sm:$0xff]
    %v2340 = vld [vmem:[#allocation9 + $0x78] sm:$0xff]
    %v2341 = vld [vmem:[#allocation3 + $0x6] sm:$0xff]
    %v2342 = vld [vmem:[#allocation3 + $0xe] sm:$0xff]
    %v2343 = vld [vmem:[#allocation3 + $0x16] sm:$0xff]
    %v2344 = vld [vmem:[#allocation3 + $0x1e] sm:$0xff]
    %v2345 = vld [vmem:[#allocation3 + $0x26] sm:$0xff]
    %v2346 = vld [vmem:[#allocation3 + $0x2e] sm:$0xff]
    %v2347 = vld [vmem:[#allocation3 + $0x36] sm:$0xff]
    %v2348 = vld [vmem:[#allocation3 + $0x3e] sm:$0xff]
    %v2349 = vld [vmem:[#allocation3 + $0x46] sm:$0xff]
    %v2350 = vld [vmem:[#allocation3 + $0x4e] sm:$0xff]
    %v2351 = vld [vmem:[#allocation3 + $0x56] sm:$0xff]
    %v2352 = vld [vmem:[#allocation3 + $0x5e] sm:$0xff]
    %v2353 = vld [vmem:[#allocation3 + $0x66] sm:$0xff]
    %s2354 = scalar_lea.vmem [#allocation9], 128
    %v2355 = vld [vmem:[%s2354] sm:$0xff]
    %v2356 = vld [vmem:[%s2354 + $0x8] sm:$0xff]
    %v2357 = vld [vmem:[%s2354 + $0x10] sm:$0xff]
    %v2358 = vld [vmem:[%s2354 + $0x18] sm:$0xff]
    %v2359 = vld [vmem:[%s2354 + $0x20] sm:$0xff]
    %v2360 = vld [vmem:[%s2354 + $0x28] sm:$0xff]
    %v2361 = vld [vmem:[%s2354 + $0x30] sm:$0xff]
    %v2362 = vld [vmem:[%s2354 + $0x38] sm:$0xff]
    %v2363 = vld [vmem:[%s2354 + $0x40] sm:$0xff]
    %v2364 = vld [vmem:[%s2354 + $0x48] sm:$0xff]
    %v2365 = vld [vmem:[%s2354 + $0x50] sm:$0xff]
    %v2366 = vld [vmem:[%s2354 + $0x58] sm:$0xff]
    %v2367 = vld [vmem:[%s2354 + $0x60] sm:$0xff]
    %v2368 = vld [vmem:[%s2354 + $0x68] sm:$0xff]
    %v2369 = vld [vmem:[%s2354 + $0x70] sm:$0xff]
    %v2370 = vld [vmem:[%s2354 + $0x78] sm:$0xff]
    %2371 = vmatprep.subr.mxu0 0.0
    %2372 = vmatpush1.msra.mxu0 %v2370
    %2373 = vmatprep.subr.mxu0 0.0
    %2374 = vmatpush1.msra.mxu0 %v2369
    %2375 = vmatprep.subr.mxu0 0.0
    %2376 = vmatpush1.msra.mxu0 %v2368
    %2377 = vmatprep.subr.mxu0 0.0
    %2378 = vmatpush1.msra.mxu0 %v2367
    %2379 = vmatprep.subr.mxu0 0.0
    %2380 = vmatpush1.msra.mxu0 %v2366
    %2381 = vmatprep.subr.mxu0 0.0
    %2382 = vmatpush1.msra.mxu0 %v2365
    %2383 = vmatprep.subr.mxu0 0.0
    %2384 = vmatpush1.msra.mxu0 %v2364
    %2385 = vmatprep.subr.mxu0 0.0
    %2386 = vmatpush1.msra.mxu0 %v2363
    %2387 = vmatprep.subr.mxu0 0.0
    %2388 = vmatpush1.msra.mxu0 %v2362
    %2389 = vmatprep.subr.mxu0 0.0
    %2390 = vmatpush1.msra.mxu0 %v2361
    %2391 = vmatprep.subr.mxu0 0.0
    %2392 = vmatpush1.msra.mxu0 %v2360
    %2393 = vmatprep.subr.mxu0 0.0
    %2394 = vmatpush1.msra.mxu0 %v2359
    %2395 = vmatprep.subr.mxu0 0.0
    %2396 = vmatpush1.msra.mxu0 %v2358
    %2397 = vmatprep.subr.mxu0 0.0
    %2398 = vmatpush1.msra.mxu0 %v2357
    %2399 = vmatprep.subr.mxu0 0.0
    %2400 = vmatpush1.msra.mxu0 %v2356
    %2401 = vmatprep.subr.mxu0 0.0
    %2402 = vmatpush1.msra.mxu0 %v2355
    %2403 = vmatprep.subr.mxu0 0.0
    %2404 = vmatpush2.msra.mxu0 0.0
    %2405 = vmatprep.subr.mxu0 0.0
    %2406 = vmatpush2.msra.mxu0 0.0
    %2407 = vmatprep.subr.mxu0 0.0
    %2408 = vmatpush2.msra.mxu0 0.0
    %2409 = vmatprep.subr.mxu0 0.0
    %2410 = vmatpush2.msra.mxu0 0.0
    %2411 = vmatprep.subr.mxu0 0.0
    %2412 = vmatpush2.msra.mxu0 0.0
    %2413 = vmatprep.subr.mxu0 0.0
    %2414 = vmatpush2.msra.mxu0 0.0
    %2415 = vmatprep.subr.mxu0 0.0
    %2416 = vmatpush2.msra.mxu0 0.0
    %2417 = vmatprep.subr.mxu0 0.0
    %2418 = vmatpush2.msra.mxu0 0.0
    %2419 = vmatprep.subr.mxu0 0.0
    %2420 = vmatpush2.msra.mxu0 0.0
    %2421 = vmatprep.subr.mxu0 0.0
    %2422 = vmatpush2.msra.mxu0 0.0
    %2423 = vmatprep.subr.mxu0 0.0
    %2424 = vmatpush2.msra.mxu0 0.0
    %2425 = vmatprep.subr.mxu0 0.0
    %2426 = vmatpush2.msra.mxu0 0.0
    %2427 = vmatprep.subr.mxu0 0.0
    %2428 = vmatpush2.msra.mxu0 0.0
    %2429 = vmatprep.subr.mxu0 0.0
    %2430 = vmatpush2.msra.mxu0 0.0
    %2431 = vmatprep.subr.mxu0 0.0
    %2432 = vmatpush2.msra.mxu0 0.0
    %2433 = vmatprep.subr.mxu0 0.0
    %2434 = vmatpush2.msra.mxu0 0.0
    %2435 = vmatprep.mubr.f32.mxu0 0.0
    %2436 = vmatmul.mubr.f32.gmra.mxu0 %v2341
    %v2437 = vpop.f32.mrf.mxu0
    %v2438 = vadd.f32 0.0, %v2437
    %v2439 = vpop.f32.mrf.mxu0
    %2440 = vmatprep.mubr.f32.mxu0 0.0
    %2441 = vmatmul.mubr.f32.gmra.mxu0 %v2342
    %v2442 = vpop.f32.mrf.mxu0
    %v2443 = vadd.f32 0.0, %v2442
    %v2444 = vpop.f32.mrf.mxu0
    %2445 = vmatprep.mubr.f32.mxu0 0.0
    %2446 = vmatmul.mubr.f32.gmra.mxu0 %v2343
    %v2447 = vpop.f32.mrf.mxu0
    %v2448 = vadd.f32 0.0, %v2447
    %v2449 = vpop.f32.mrf.mxu0
    %2450 = vmatprep.mubr.f32.mxu0 0.0
    %2451 = vmatmul.mubr.f32.gmra.mxu0 %v2344
    %v2452 = vpop.f32.mrf.mxu0
    %v2453 = vadd.f32 0.0, %v2452
    %v2454 = vpop.f32.mrf.mxu0
    %2455 = vmatprep.mubr.f32.mxu0 0.0
    %2456 = vmatmul.mubr.f32.gmra.mxu0 %v2345
    %v2457 = vpop.f32.mrf.mxu0
    %v2458 = vadd.f32 0.0, %v2457
    %v2459 = vpop.f32.mrf.mxu0
    %2460 = vmatprep.mubr.f32.mxu0 0.0
    %2461 = vmatmul.mubr.f32.gmra.mxu0 %v2346
    %v2462 = vpop.f32.mrf.mxu0
    %v2463 = vadd.f32 0.0, %v2462
    %v2464 = vpop.f32.mrf.mxu0
    %2465 = vmatprep.mubr.f32.mxu0 0.0
    %2466 = vmatmul.mubr.f32.gmra.mxu0 %v2347
    %v2467 = vpop.f32.mrf.mxu0
    %v2468 = vadd.f32 0.0, %v2467
    %v2469 = vpop.f32.mrf.mxu0
    %2470 = vmatprep.mubr.f32.mxu0 0.0
    %2471 = vmatmul.mubr.f32.gmra.mxu0 %v2348
    %v2472 = vpop.f32.mrf.mxu0
    %v2473 = vadd.f32 0.0, %v2472
    %v2474 = vpop.f32.mrf.mxu0
    %2475 = vmatprep.mubr.f32.mxu0 0.0
    %2476 = vmatmul.mubr.f32.gmra.mxu0 %v2349
    %v2477 = vpop.f32.mrf.mxu0
    %v2478 = vadd.f32 0.0, %v2477
    %v2479 = vpop.f32.mrf.mxu0
    %2480 = vmatprep.mubr.f32.mxu0 0.0
    %2481 = vmatmul.mubr.f32.gmra.mxu0 %v2350
    %v2482 = vpop.f32.mrf.mxu0
    %v2483 = vadd.f32 0.0, %v2482
    %v2484 = vpop.f32.mrf.mxu0
    %2485 = vmatprep.mubr.f32.mxu0 0.0
    %2486 = vmatmul.mubr.f32.gmra.mxu0 %v2351
    %v2487 = vpop.f32.mrf.mxu0
    %v2488 = vadd.f32 0.0, %v2487
    %v2489 = vpop.f32.mrf.mxu0
    %2490 = vmatprep.mubr.f32.mxu0 0.0
    %2491 = vmatmul.mubr.f32.gmra.mxu0 %v2352
    %v2492 = vpop.f32.mrf.mxu0
    %v2493 = vadd.f32 0.0, %v2492
    %v2494 = vpop.f32.mrf.mxu0
    %2495 = vmatprep.mubr.f32.mxu0 0.0
    %2496 = vmatmul.mubr.f32.gmra.mxu0 %v2353
    %v2497 = vpop.f32.mrf.mxu0
    %v2498 = vadd.f32 0.0, %v2497
    %v2499 = vpop.f32.mrf.mxu0
    %2500 = vdwg.mxu0
    %2501 = vmatprep.subr.mxu0 0.0
    %2502 = vmatpush1.msra.mxu0 %v2340
    %2503 = vmatprep.subr.mxu0 0.0
    %2504 = vmatpush1.msra.mxu0 %v2339
    %2505 = vmatprep.subr.mxu0 0.0
    %2506 = vmatpush1.msra.mxu0 %v2338
    %2507 = vmatprep.subr.mxu0 0.0
    %2508 = vmatpush1.msra.mxu0 %v2337
    %2509 = vmatprep.subr.mxu0 0.0
    %2510 = vmatpush1.msra.mxu0 %v2336
    %2511 = vmatprep.subr.mxu0 0.0
    %2512 = vmatpush1.msra.mxu0 %v2335
    %2513 = vmatprep.subr.mxu0 0.0
    %2514 = vmatpush1.msra.mxu0 %v2334
    %2515 = vmatprep.subr.mxu0 0.0
    %2516 = vmatpush1.msra.mxu0 %v2333
    %2517 = vmatprep.subr.mxu0 0.0
    %2518 = vmatpush1.msra.mxu0 %v2332
    %2519 = vmatprep.subr.mxu0 0.0
    %2520 = vmatpush1.msra.mxu0 %v2331
    %2521 = vmatprep.subr.mxu0 0.0
    %2522 = vmatpush1.msra.mxu0 %v2330
    %2523 = vmatprep.subr.mxu0 0.0
    %2524 = vmatpush1.msra.mxu0 %v2329
    %2525 = vmatprep.subr.mxu0 0.0
    %2526 = vmatpush1.msra.mxu0 %v2328
    %2527 = vmatprep.subr.mxu0 0.0
    %2528 = vmatpush1.msra.mxu0 %v2327
    %2529 = vmatprep.subr.mxu0 0.0
    %2530 = vmatpush1.msra.mxu0 %v2326
    %2531 = vmatprep.subr.mxu0 0.0
    %2532 = vmatpush1.msra.mxu0 %v2325
    %2533 = vmatprep.subr.mxu0 0.0
    %2534 = vmatpush2.msra.mxu0 0.0
    %2535 = vmatprep.subr.mxu0 0.0
    %2536 = vmatpush2.msra.mxu0 0.0
    %2537 = vmatprep.subr.mxu0 0.0
    %2538 = vmatpush2.msra.mxu0 0.0
    %2539 = vmatprep.subr.mxu0 0.0
    %2540 = vmatpush2.msra.mxu0 0.0
    %2541 = vmatprep.subr.mxu0 0.0
    %2542 = vmatpush2.msra.mxu0 0.0
    %2543 = vmatprep.subr.mxu0 0.0
    %2544 = vmatpush2.msra.mxu0 0.0
    %2545 = vmatprep.subr.mxu0 0.0
    %2546 = vmatpush2.msra.mxu0 0.0
    %2547 = vmatprep.subr.mxu0 0.0
    %2548 = vmatpush2.msra.mxu0 0.0
    %2549 = vmatprep.subr.mxu0 0.0
    %2550 = vmatpush2.msra.mxu0 0.0
    %2551 = vmatprep.subr.mxu0 0.0
    %2552 = vmatpush2.msra.mxu0 0.0
    %2553 = vmatprep.subr.mxu0 0.0
    %2554 = vmatpush2.msra.mxu0 0.0
    %2555 = vmatprep.subr.mxu0 0.0
    %2556 = vmatpush2.msra.mxu0 0.0
    %2557 = vmatprep.subr.mxu0 0.0
    %2558 = vmatpush2.msra.mxu0 0.0
    %2559 = vmatprep.subr.mxu0 0.0
    %2560 = vmatpush2.msra.mxu0 0.0
    %2561 = vmatprep.subr.mxu0 0.0
    %2562 = vmatpush2.msra.mxu0 0.0
    %2563 = vmatprep.subr.mxu0 0.0
    %2564 = vmatpush2.msra.mxu0 0.0
    %2565 = vmatprep.mubr.f32.mxu0 0.0
    %2566 = vmatmul.mubr.f32.gmra.mxu0 %v2312
    %v2567 = vpop.f32.mrf.mxu0
    %v2568 = vadd.f32 %v2438, %v2567
    %v2569 = vpop.f32.mrf.mxu0
    %2570 = vmatprep.mubr.f32.mxu0 0.0
    %2571 = vmatmul.mubr.f32.gmra.mxu0 %v2313
    %v2572 = vpop.f32.mrf.mxu0
    %v2573 = vadd.f32 %v2443, %v2572
    %v2574 = vpop.f32.mrf.mxu0
    %2575 = vmatprep.mubr.f32.mxu0 0.0
    %2576 = vmatmul.mubr.f32.gmra.mxu0 %v2314
    %v2577 = vpop.f32.mrf.mxu0
    %v2578 = vadd.f32 %v2448, %v2577
    %v2579 = vpop.f32.mrf.mxu0
    %2580 = vmatprep.mubr.f32.mxu0 0.0
    %2581 = vmatmul.mubr.f32.gmra.mxu0 %v2315
    %v2582 = vpop.f32.mrf.mxu0
    %v2583 = vadd.f32 %v2453, %v2582
    %v2584 = vpop.f32.mrf.mxu0
    %2585 = vmatprep.mubr.f32.mxu0 0.0
    %2586 = vmatmul.mubr.f32.gmra.mxu0 %v2316
    %v2587 = vpop.f32.mrf.mxu0
    %v2588 = vadd.f32 %v2458, %v2587
    %v2589 = vpop.f32.mrf.mxu0
    %2590 = vmatprep.mubr.f32.mxu0 0.0
    %2591 = vmatmul.mubr.f32.gmra.mxu0 %v2317
    %v2592 = vpop.f32.mrf.mxu0
    %v2593 = vadd.f32 %v2463, %v2592
    %v2594 = vpop.f32.mrf.mxu0
    %2595 = vmatprep.mubr.f32.mxu0 0.0
    %2596 = vmatmul.mubr.f32.gmra.mxu0 %v2318
    %v2597 = vpop.f32.mrf.mxu0
    %v2598 = vadd.f32 %v2468, %v2597
    %v2599 = vpop.f32.mrf.mxu0
    %2600 = vmatprep.mubr.f32.mxu0 0.0
    %2601 = vmatmul.mubr.f32.gmra.mxu0 %v2319
    %v2602 = vpop.f32.mrf.mxu0
    %v2603 = vadd.f32 %v2473, %v2602
    %v2604 = vpop.f32.mrf.mxu0
    %2605 = vmatprep.mubr.f32.mxu0 0.0
    %2606 = vmatmul.mubr.f32.gmra.mxu0 %v2320
    %v2607 = vpop.f32.mrf.mxu0
    %v2608 = vadd.f32 %v2478, %v2607
    %v2609 = vpop.f32.mrf.mxu0
    %2610 = vmatprep.mubr.f32.mxu0 0.0
    %2611 = vmatmul.mubr.f32.gmra.mxu0 %v2321
    %v2612 = vpop.f32.mrf.mxu0
    %v2613 = vadd.f32 %v2483, %v2612
    %v2614 = vpop.f32.mrf.mxu0
    %2615 = vmatprep.mubr.f32.mxu0 0.0
    %2616 = vmatmul.mubr.f32.gmra.mxu0 %v2322
    %v2617 = vpop.f32.mrf.mxu0
    %v2618 = vadd.f32 %v2488, %v2617
    %v2619 = vpop.f32.mrf.mxu0
    %2620 = vmatprep.mubr.f32.mxu0 0.0
    %2621 = vmatmul.mubr.f32.gmra.mxu0 %v2323
    %v2622 = vpop.f32.mrf.mxu0
    %v2623 = vadd.f32 %v2493, %v2622
    %v2624 = vpop.f32.mrf.mxu0
    %2625 = vmatprep.mubr.f32.mxu0 0.0
    %2626 = vmatmul.mubr.f32.gmra.mxu0 %v2324
    %v2627 = vpop.f32.mrf.mxu0
    %v2628 = vadd.f32 %v2498, %v2627
    %v2629 = vpop.f32.mrf.mxu0
    %2630 = vdwg.mxu0
    %v2631 = vld [vmem:[#allocation3 + $0xb] sm:$0xff]
    %v2632 = vld [vmem:[#allocation3 + $0x13] sm:$0xff]
    %v2633 = vld [vmem:[#allocation3 + $0x1b] sm:$0xff]
    %v2634 = vld [vmem:[#allocation3 + $0x23] sm:$0xff]
    %v2635 = vld [vmem:[#allocation3 + $0x2b] sm:$0xff]
    %v2636 = vld [vmem:[#allocation3 + $0x33] sm:$0xff]
    %v2637 = vld [vmem:[#allocation3 + $0x3b] sm:$0xff]
    %v2638 = vld [vmem:[#allocation3 + $0x43] sm:$0xff]
    %v2639 = vld [vmem:[#allocation3 + $0x4b] sm:$0xff]
    %v2640 = vld [vmem:[#allocation3 + $0x53] sm:$0xff]
    %v2641 = vld [vmem:[#allocation3 + $0x5b] sm:$0xff]
    %v2642 = vld [vmem:[#allocation3 + $0x63] sm:$0xff]
    %v2643 = vld [vmem:[#allocation3 + $0x6b] sm:$0xff]
    %s2644 = scalar_lea.vmem [#allocation9], 256
    %v2645 = vld [vmem:[%s2644] sm:$0xff]
    %v2646 = vld [vmem:[%s2644 + $0x8] sm:$0xff]
    %v2647 = vld [vmem:[%s2644 + $0x10] sm:$0xff]
    %v2648 = vld [vmem:[%s2644 + $0x18] sm:$0xff]
    %v2649 = vld [vmem:[%s2644 + $0x20] sm:$0xff]
    %v2650 = vld [vmem:[%s2644 + $0x28] sm:$0xff]
    %v2651 = vld [vmem:[%s2644 + $0x30] sm:$0xff]
    %v2652 = vld [vmem:[%s2644 + $0x38] sm:$0xff]
    %v2653 = vld [vmem:[%s2644 + $0x40] sm:$0xff]
    %v2654 = vld [vmem:[%s2644 + $0x48] sm:$0xff]
    %v2655 = vld [vmem:[%s2644 + $0x50] sm:$0xff]
    %v2656 = vld [vmem:[%s2644 + $0x58] sm:$0xff]
    %v2657 = vld [vmem:[%s2644 + $0x60] sm:$0xff]
    %v2658 = vld [vmem:[%s2644 + $0x68] sm:$0xff]
    %v2659 = vld [vmem:[%s2644 + $0x70] sm:$0xff]
    %v2660 = vld [vmem:[%s2644 + $0x78] sm:$0xff]
    %2661 = vmatprep.subr.mxu0 0.0
    %2662 = vmatpush1.msra.mxu0 %v2660
    %2663 = vmatprep.subr.mxu0 0.0
    %2664 = vmatpush1.msra.mxu0 %v2659
    %2665 = vmatprep.subr.mxu0 0.0
    %2666 = vmatpush1.msra.mxu0 %v2658
    %2667 = vmatprep.subr.mxu0 0.0
    %2668 = vmatpush1.msra.mxu0 %v2657
    %2669 = vmatprep.subr.mxu0 0.0
    %2670 = vmatpush1.msra.mxu0 %v2656
    %2671 = vmatprep.subr.mxu0 0.0
    %2672 = vmatpush1.msra.mxu0 %v2655
    %2673 = vmatprep.subr.mxu0 0.0
    %2674 = vmatpush1.msra.mxu0 %v2654
    %2675 = vmatprep.subr.mxu0 0.0
    %2676 = vmatpush1.msra.mxu0 %v2653
    %2677 = vmatprep.subr.mxu0 0.0
    %2678 = vmatpush1.msra.mxu0 %v2652
    %2679 = vmatprep.subr.mxu0 0.0
    %2680 = vmatpush1.msra.mxu0 %v2651
    %2681 = vmatprep.subr.mxu0 0.0
    %2682 = vmatpush1.msra.mxu0 %v2650
    %2683 = vmatprep.subr.mxu0 0.0
    %2684 = vmatpush1.msra.mxu0 %v2649
    %2685 = vmatprep.subr.mxu0 0.0
    %2686 = vmatpush1.msra.mxu0 %v2648
    %2687 = vmatprep.subr.mxu0 0.0
    %2688 = vmatpush1.msra.mxu0 %v2647
    %2689 = vmatprep.subr.mxu0 0.0
    %2690 = vmatpush1.msra.mxu0 %v2646
    %2691 = vmatprep.subr.mxu0 0.0
    %2692 = vmatpush1.msra.mxu0 %v2645
    %2693 = vmatprep.subr.mxu0 0.0
    %2694 = vmatpush2.msra.mxu0 0.0
    %2695 = vmatprep.subr.mxu0 0.0
    %2696 = vmatpush2.msra.mxu0 0.0
    %2697 = vmatprep.subr.mxu0 0.0
    %2698 = vmatpush2.msra.mxu0 0.0
    %2699 = vmatprep.subr.mxu0 0.0
    %2700 = vmatpush2.msra.mxu0 0.0
    %2701 = vmatprep.subr.mxu0 0.0
    %2702 = vmatpush2.msra.mxu0 0.0
    %2703 = vmatprep.subr.mxu0 0.0
    %2704 = vmatpush2.msra.mxu0 0.0
    %2705 = vmatprep.subr.mxu0 0.0
    %2706 = vmatpush2.msra.mxu0 0.0
    %2707 = vmatprep.subr.mxu0 0.0
    %2708 = vmatpush2.msra.mxu0 0.0
    %2709 = vmatprep.subr.mxu0 0.0
    %2710 = vmatpush2.msra.mxu0 0.0
    %2711 = vmatprep.subr.mxu0 0.0
    %2712 = vmatpush2.msra.mxu0 0.0
    %2713 = vmatprep.subr.mxu0 0.0
    %2714 = vmatpush2.msra.mxu0 0.0
    %2715 = vmatprep.subr.mxu0 0.0
    %2716 = vmatpush2.msra.mxu0 0.0
    %2717 = vmatprep.subr.mxu0 0.0
    %2718 = vmatpush2.msra.mxu0 0.0
    %2719 = vmatprep.subr.mxu0 0.0
    %2720 = vmatpush2.msra.mxu0 0.0
    %2721 = vmatprep.subr.mxu0 0.0
    %2722 = vmatpush2.msra.mxu0 0.0
    %2723 = vmatprep.subr.mxu0 0.0
    %2724 = vmatpush2.msra.mxu0 0.0
    %2725 = vmatprep.mubr.f32.mxu0 0.0
    %2726 = vmatmul.mubr.f32.gmra.mxu0 %v2631
    %v2727 = vpop.f32.mrf.mxu0
    %v2728 = vadd.f32 0.0, %v2727
    %v2729 = vpop.f32.mrf.mxu0
    %2730 = vmatprep.mubr.f32.mxu0 0.0
    %2731 = vmatmul.mubr.f32.gmra.mxu0 %v2632
    %v2732 = vpop.f32.mrf.mxu0
    %v2733 = vadd.f32 0.0, %v2732
    %v2734 = vpop.f32.mrf.mxu0
    %2735 = vmatprep.mubr.f32.mxu0 0.0
    %2736 = vmatmul.mubr.f32.gmra.mxu0 %v2633
    %v2737 = vpop.f32.mrf.mxu0
    %v2738 = vadd.f32 0.0, %v2737
    %v2739 = vpop.f32.mrf.mxu0
    %2740 = vmatprep.mubr.f32.mxu0 0.0
    %2741 = vmatmul.mubr.f32.gmra.mxu0 %v2634
    %v2742 = vpop.f32.mrf.mxu0
    %v2743 = vadd.f32 0.0, %v2742
    %v2744 = vpop.f32.mrf.mxu0
    %2745 = vmatprep.mubr.f32.mxu0 0.0
    %2746 = vmatmul.mubr.f32.gmra.mxu0 %v2635
    %v2747 = vpop.f32.mrf.mxu0
    %v2748 = vadd.f32 0.0, %v2747
    %v2749 = vpop.f32.mrf.mxu0
    %2750 = vmatprep.mubr.f32.mxu0 0.0
    %2751 = vmatmul.mubr.f32.gmra.mxu0 %v2636
    %v2752 = vpop.f32.mrf.mxu0
    %v2753 = vadd.f32 0.0, %v2752
    %v2754 = vpop.f32.mrf.mxu0
    %2755 = vmatprep.mubr.f32.mxu0 0.0
    %2756 = vmatmul.mubr.f32.gmra.mxu0 %v2637
    %v2757 = vpop.f32.mrf.mxu0
    %v2758 = vadd.f32 0.0, %v2757
    %v2759 = vpop.f32.mrf.mxu0
    %2760 = vmatprep.mubr.f32.mxu0 0.0
    %2761 = vmatmul.mubr.f32.gmra.mxu0 %v2638
    %v2762 = vpop.f32.mrf.mxu0
    %v2763 = vadd.f32 0.0, %v2762
    %v2764 = vpop.f32.mrf.mxu0
    %2765 = vmatprep.mubr.f32.mxu0 0.0
    %2766 = vmatmul.mubr.f32.gmra.mxu0 %v2639
    %v2767 = vpop.f32.mrf.mxu0
    %v2768 = vadd.f32 0.0, %v2767
    %v2769 = vpop.f32.mrf.mxu0
    %2770 = vmatprep.mubr.f32.mxu0 0.0
    %2771 = vmatmul.mubr.f32.gmra.mxu0 %v2640
    %v2772 = vpop.f32.mrf.mxu0
    %v2773 = vadd.f32 0.0, %v2772
    %v2774 = vpop.f32.mrf.mxu0
    %2775 = vmatprep.mubr.f32.mxu0 0.0
    %2776 = vmatmul.mubr.f32.gmra.mxu0 %v2641
    %v2777 = vpop.f32.mrf.mxu0
    %v2778 = vadd.f32 0.0, %v2777
    %v2779 = vpop.f32.mrf.mxu0
    %2780 = vmatprep.mubr.f32.mxu0 0.0
    %2781 = vmatmul.mubr.f32.gmra.mxu0 %v2642
    %v2782 = vpop.f32.mrf.mxu0
    %v2783 = vadd.f32 0.0, %v2782
    %v2784 = vpop.f32.mrf.mxu0
    %2785 = vmatprep.mubr.f32.mxu0 0.0
    %2786 = vmatmul.mubr.f32.gmra.mxu0 %v2643
    %v2787 = vpop.f32.mrf.mxu0
    %v2788 = vadd.f32 0.0, %v2787
    %v2789 = vpop.f32.mrf.mxu0
    %2790 = vdwg.mxu0
    %v2791 = vadd.f32 %v2568, %v2728
    %v2792 = vadd.f32 %v2573, %v2733
    %v2793 = vadd.f32 %v2578, %v2738
    %v2794 = vadd.f32 %v2583, %v2743
    %v2795 = vadd.f32 %v2588, %v2748
    %v2796 = vadd.f32 %v2593, %v2753
    %v2797 = vadd.f32 %v2598, %v2758
    %v2798 = vadd.f32 %v2603, %v2763
    %v2799 = vadd.f32 %v2608, %v2768
    %v2800 = vadd.f32 %v2613, %v2773
    %v2801 = vadd.f32 %v2618, %v2778
    %v2802 = vadd.f32 %v2623, %v2783
    %v2803 = vadd.f32 %v2628, %v2788
    %v2804 = vld [vmem:[#allocation3 + $0x10] sm:$0xff]
    %v2805 = vld [vmem:[#allocation3 + $0x18] sm:$0xff]
    %v2806 = vld [vmem:[#allocation3 + $0x20] sm:$0xff]
    %v2807 = vld [vmem:[#allocation3 + $0x28] sm:$0xff]
    %v2808 = vld [vmem:[#allocation3 + $0x30] sm:$0xff]
    %v2809 = vld [vmem:[#allocation3 + $0x38] sm:$0xff]
    %v2810 = vld [vmem:[#allocation3 + $0x40] sm:$0xff]
    %v2811 = vld [vmem:[#allocation3 + $0x48] sm:$0xff]
    %v2812 = vld [vmem:[#allocation3 + $0x50] sm:$0xff]
    %v2813 = vld [vmem:[#allocation3 + $0x58] sm:$0xff]
    %v2814 = vld [vmem:[#allocation3 + $0x60] sm:$0xff]
    %v2815 = vld [vmem:[#allocation3 + $0x68] sm:$0xff]
    %v2816 = vld [vmem:[#allocation3 + $0x70] sm:$0xff]
    %s2817 = scalar_lea.vmem [#allocation9], 384
    %v2818 = vld [vmem:[%s2817] sm:$0xff]
    %v2819 = vld [vmem:[%s2817 + $0x8] sm:$0xff]
    %v2820 = vld [vmem:[%s2817 + $0x10] sm:$0xff]
    %v2821 = vld [vmem:[%s2817 + $0x18] sm:$0xff]
    %v2822 = vld [vmem:[%s2817 + $0x20] sm:$0xff]
    %v2823 = vld [vmem:[%s2817 + $0x28] sm:$0xff]
    %v2824 = vld [vmem:[%s2817 + $0x30] sm:$0xff]
    %v2825 = vld [vmem:[%s2817 + $0x38] sm:$0xff]
    %v2826 = vld [vmem:[%s2817 + $0x40] sm:$0xff]
    %v2827 = vld [vmem:[%s2817 + $0x48] sm:$0xff]
    %v2828 = vld [vmem:[%s2817 + $0x50] sm:$0xff]
    %v2829 = vld [vmem:[%s2817 + $0x58] sm:$0xff]
    %v2830 = vld [vmem:[%s2817 + $0x60] sm:$0xff]
    %v2831 = vld [vmem:[%s2817 + $0x68] sm:$0xff]
    %v2832 = vld [vmem:[%s2817 + $0x70] sm:$0xff]
    %v2833 = vld [vmem:[%s2817 + $0x78] sm:$0xff]
    %2834 = vmatprep.subr.mxu0 0.0
    %2835 = vmatpush1.msra.mxu0 %v2833
    %2836 = vmatprep.subr.mxu0 0.0
    %2837 = vmatpush1.msra.mxu0 %v2832
    %2838 = vmatprep.subr.mxu0 0.0
    %2839 = vmatpush1.msra.mxu0 %v2831
    %2840 = vmatprep.subr.mxu0 0.0
    %2841 = vmatpush1.msra.mxu0 %v2830
    %2842 = vmatprep.subr.mxu0 0.0
    %2843 = vmatpush1.msra.mxu0 %v2829
    %2844 = vmatprep.subr.mxu0 0.0
    %2845 = vmatpush1.msra.mxu0 %v2828
    %2846 = vmatprep.subr.mxu0 0.0
    %2847 = vmatpush1.msra.mxu0 %v2827
    %2848 = vmatprep.subr.mxu0 0.0
    %2849 = vmatpush1.msra.mxu0 %v2826
    %2850 = vmatprep.subr.mxu0 0.0
    %2851 = vmatpush1.msra.mxu0 %v2825
    %2852 = vmatprep.subr.mxu0 0.0
    %2853 = vmatpush1.msra.mxu0 %v2824
    %2854 = vmatprep.subr.mxu0 0.0
    %2855 = vmatpush1.msra.mxu0 %v2823
    %2856 = vmatprep.subr.mxu0 0.0
    %2857 = vmatpush1.msra.mxu0 %v2822
    %2858 = vmatprep.subr.mxu0 0.0
    %2859 = vmatpush1.msra.mxu0 %v2821
    %2860 = vmatprep.subr.mxu0 0.0
    %2861 = vmatpush1.msra.mxu0 %v2820
    %2862 = vmatprep.subr.mxu0 0.0
    %2863 = vmatpush1.msra.mxu0 %v2819
    %2864 = vmatprep.subr.mxu0 0.0
    %2865 = vmatpush1.msra.mxu0 %v2818
    %2866 = vmatprep.subr.mxu0 0.0
    %2867 = vmatpush2.msra.mxu0 0.0
    %2868 = vmatprep.subr.mxu0 0.0
    %2869 = vmatpush2.msra.mxu0 0.0
    %2870 = vmatprep.subr.mxu0 0.0
    %2871 = vmatpush2.msra.mxu0 0.0
    %2872 = vmatprep.subr.mxu0 0.0
    %2873 = vmatpush2.msra.mxu0 0.0
    %2874 = vmatprep.subr.mxu0 0.0
    %2875 = vmatpush2.msra.mxu0 0.0
    %2876 = vmatprep.subr.mxu0 0.0
    %2877 = vmatpush2.msra.mxu0 0.0
    %2878 = vmatprep.subr.mxu0 0.0
    %2879 = vmatpush2.msra.mxu0 0.0
    %2880 = vmatprep.subr.mxu0 0.0
    %2881 = vmatpush2.msra.mxu0 0.0
    %2882 = vmatprep.subr.mxu0 0.0
    %2883 = vmatpush2.msra.mxu0 0.0
    %2884 = vmatprep.subr.mxu0 0.0
    %2885 = vmatpush2.msra.mxu0 0.0
    %2886 = vmatprep.subr.mxu0 0.0
    %2887 = vmatpush2.msra.mxu0 0.0
    %2888 = vmatprep.subr.mxu0 0.0
    %2889 = vmatpush2.msra.mxu0 0.0
    %2890 = vmatprep.subr.mxu0 0.0
    %2891 = vmatpush2.msra.mxu0 0.0
    %2892 = vmatprep.subr.mxu0 0.0
    %2893 = vmatpush2.msra.mxu0 0.0
    %2894 = vmatprep.subr.mxu0 0.0
    %2895 = vmatpush2.msra.mxu0 0.0
    %2896 = vmatprep.subr.mxu0 0.0
    %2897 = vmatpush2.msra.mxu0 0.0
    %2898 = vmatprep.mubr.f32.mxu0 0.0
    %2899 = vmatmul.mubr.f32.gmra.mxu0 %v2804
    %v2900 = vpop.f32.mrf.mxu0
    %v2901 = vadd.f32 0.0, %v2900
    %v2902 = vpop.f32.mrf.mxu0
    %2903 = vmatprep.mubr.f32.mxu0 0.0
    %2904 = vmatmul.mubr.f32.gmra.mxu0 %v2805
    %v2905 = vpop.f32.mrf.mxu0
    %v2906 = vadd.f32 0.0, %v2905
    %v2907 = vpop.f32.mrf.mxu0
    %2908 = vmatprep.mubr.f32.mxu0 0.0
    %2909 = vmatmul.mubr.f32.gmra.mxu0 %v2806
    %v2910 = vpop.f32.mrf.mxu0
    %v2911 = vadd.f32 0.0, %v2910
    %v2912 = vpop.f32.mrf.mxu0
    %2913 = vmatprep.mubr.f32.mxu0 0.0
    %2914 = vmatmul.mubr.f32.gmra.mxu0 %v2807
    %v2915 = vpop.f32.mrf.mxu0
    %v2916 = vadd.f32 0.0, %v2915
    %v2917 = vpop.f32.mrf.mxu0
    %2918 = vmatprep.mubr.f32.mxu0 0.0
    %2919 = vmatmul.mubr.f32.gmra.mxu0 %v2808
    %v2920 = vpop.f32.mrf.mxu0
    %v2921 = vadd.f32 0.0, %v2920
    %v2922 = vpop.f32.mrf.mxu0
    %2923 = vmatprep.mubr.f32.mxu0 0.0
    %2924 = vmatmul.mubr.f32.gmra.mxu0 %v2809
    %v2925 = vpop.f32.mrf.mxu0
    %v2926 = vadd.f32 0.0, %v2925
    %v2927 = vpop.f32.mrf.mxu0
    %2928 = vmatprep.mubr.f32.mxu0 0.0
    %2929 = vmatmul.mubr.f32.gmra.mxu0 %v2810
    %v2930 = vpop.f32.mrf.mxu0
    %v2931 = vadd.f32 0.0, %v2930
    %v2932 = vpop.f32.mrf.mxu0
    %2933 = vmatprep.mubr.f32.mxu0 0.0
    %2934 = vmatmul.mubr.f32.gmra.mxu0 %v2811
    %v2935 = vpop.f32.mrf.mxu0
    %v2936 = vadd.f32 0.0, %v2935
    %v2937 = vpop.f32.mrf.mxu0
    %2938 = vmatprep.mubr.f32.mxu0 0.0
    %2939 = vmatmul.mubr.f32.gmra.mxu0 %v2812
    %v2940 = vpop.f32.mrf.mxu0
    %v2941 = vadd.f32 0.0, %v2940
    %v2942 = vpop.f32.mrf.mxu0
    %2943 = vmatprep.mubr.f32.mxu0 0.0
    %2944 = vmatmul.mubr.f32.gmra.mxu0 %v2813
    %v2945 = vpop.f32.mrf.mxu0
    %v2946 = vadd.f32 0.0, %v2945
    %v2947 = vpop.f32.mrf.mxu0
    %2948 = vmatprep.mubr.f32.mxu0 0.0
    %2949 = vmatmul.mubr.f32.gmra.mxu0 %v2814
    %v2950 = vpop.f32.mrf.mxu0
    %v2951 = vadd.f32 0.0, %v2950
    %v2952 = vpop.f32.mrf.mxu0
    %2953 = vmatprep.mubr.f32.mxu0 0.0
    %2954 = vmatmul.mubr.f32.gmra.mxu0 %v2815
    %v2955 = vpop.f32.mrf.mxu0
    %v2956 = vadd.f32 0.0, %v2955
    %v2957 = vpop.f32.mrf.mxu0
    %2958 = vmatprep.mubr.f32.mxu0 0.0
    %2959 = vmatmul.mubr.f32.gmra.mxu0 %v2816
    %v2960 = vpop.f32.mrf.mxu0
    %v2961 = vadd.f32 0.0, %v2960
    %v2962 = vpop.f32.mrf.mxu0
    %2963 = vdwg.mxu0
    %v2964 = vadd.f32 %v2791, %v2901
    %v2965 = vadd.f32 %v2792, %v2906
    %v2966 = vadd.f32 %v2793, %v2911
    %v2967 = vadd.f32 %v2794, %v2916
    %v2968 = vadd.f32 %v2795, %v2921
    %v2969 = vadd.f32 %v2796, %v2926
    %v2970 = vadd.f32 %v2797, %v2931
    %v2971 = vadd.f32 %v2798, %v2936
    %v2972 = vadd.f32 %v2799, %v2941
    %v2973 = vadd.f32 %v2800, %v2946
    %v2974 = vadd.f32 %v2801, %v2951
    %v2975 = vadd.f32 %v2802, %v2956
    %v2976 = vadd.f32 %v2803, %v2961
    %v2977 = vld [vmem:[#allocation3 + $0x15] sm:$0xff]
    %v2978 = vld [vmem:[#allocation3 + $0x1d] sm:$0xff]
    %v2979 = vld [vmem:[#allocation3 + $0x25] sm:$0xff]
    %v2980 = vld [vmem:[#allocation3 + $0x2d] sm:$0xff]
    %v2981 = vld [vmem:[#allocation3 + $0x35] sm:$0xff]
    %v2982 = vld [vmem:[#allocation3 + $0x3d] sm:$0xff]
    %v2983 = vld [vmem:[#allocation3 + $0x45] sm:$0xff]
    %v2984 = vld [vmem:[#allocation3 + $0x4d] sm:$0xff]
    %v2985 = vld [vmem:[#allocation3 + $0x55] sm:$0xff]
    %v2986 = vld [vmem:[#allocation3 + $0x5d] sm:$0xff]
    %v2987 = vld [vmem:[#allocation3 + $0x65] sm:$0xff]
    %v2988 = vld [vmem:[#allocation3 + $0x6d] sm:$0xff]
    %v2989 = vld [vmem:[#allocation3 + $0x75] sm:$0xff]
    %s2990 = scalar_lea.vmem [#allocation9], 512
    %v2991 = vld [vmem:[%s2990] sm:$0xff]
    %v2992 = vld [vmem:[%s2990 + $0x8] sm:$0xff]
    %v2993 = vld [vmem:[%s2990 + $0x10] sm:$0xff]
    %v2994 = vld [vmem:[%s2990 + $0x18] sm:$0xff]
    %v2995 = vld [vmem:[%s2990 + $0x20] sm:$0xff]
    %v2996 = vld [vmem:[%s2990 + $0x28] sm:$0xff]
    %v2997 = vld [vmem:[%s2990 + $0x30] sm:$0xff]
    %v2998 = vld [vmem:[%s2990 + $0x38] sm:$0xff]
    %v2999 = vld [vmem:[%s2990 + $0x40] sm:$0xff]
    %v3000 = vld [vmem:[%s2990 + $0x48] sm:$0xff]
    %v3001 = vld [vmem:[%s2990 + $0x50] sm:$0xff]
    %v3002 = vld [vmem:[%s2990 + $0x58] sm:$0xff]
    %v3003 = vld [vmem:[%s2990 + $0x60] sm:$0xff]
    %v3004 = vld [vmem:[%s2990 + $0x68] sm:$0xff]
    %v3005 = vld [vmem:[%s2990 + $0x70] sm:$0xff]
    %v3006 = vld [vmem:[%s2990 + $0x78] sm:$0xff]
    %3007 = vmatprep.subr.mxu0 0.0
    %3008 = vmatpush1.msra.mxu0 %v3006
    %3009 = vmatprep.subr.mxu0 0.0
    %3010 = vmatpush1.msra.mxu0 %v3005
    %3011 = vmatprep.subr.mxu0 0.0
    %3012 = vmatpush1.msra.mxu0 %v3004
    %3013 = vmatprep.subr.mxu0 0.0
    %3014 = vmatpush1.msra.mxu0 %v3003
    %3015 = vmatprep.subr.mxu0 0.0
    %3016 = vmatpush1.msra.mxu0 %v3002
    %3017 = vmatprep.subr.mxu0 0.0
    %3018 = vmatpush1.msra.mxu0 %v3001
    %3019 = vmatprep.subr.mxu0 0.0
    %3020 = vmatpush1.msra.mxu0 %v3000
    %3021 = vmatprep.subr.mxu0 0.0
    %3022 = vmatpush1.msra.mxu0 %v2999
    %3023 = vmatprep.subr.mxu0 0.0
    %3024 = vmatpush1.msra.mxu0 %v2998
    %3025 = vmatprep.subr.mxu0 0.0
    %3026 = vmatpush1.msra.mxu0 %v2997
    %3027 = vmatprep.subr.mxu0 0.0
    %3028 = vmatpush1.msra.mxu0 %v2996
    %3029 = vmatprep.subr.mxu0 0.0
    %3030 = vmatpush1.msra.mxu0 %v2995
    %3031 = vmatprep.subr.mxu0 0.0
    %3032 = vmatpush1.msra.mxu0 %v2994
    %3033 = vmatprep.subr.mxu0 0.0
    %3034 = vmatpush1.msra.mxu0 %v2993
    %3035 = vmatprep.subr.mxu0 0.0
    %3036 = vmatpush1.msra.mxu0 %v2992
    %3037 = vmatprep.subr.mxu0 0.0
    %3038 = vmatpush1.msra.mxu0 %v2991
    %3039 = vmatprep.subr.mxu0 0.0
    %3040 = vmatpush2.msra.mxu0 0.0
    %3041 = vmatprep.subr.mxu0 0.0
    %3042 = vmatpush2.msra.mxu0 0.0
    %3043 = vmatprep.subr.mxu0 0.0
    %3044 = vmatpush2.msra.mxu0 0.0
    %3045 = vmatprep.subr.mxu0 0.0
    %3046 = vmatpush2.msra.mxu0 0.0
    %3047 = vmatprep.subr.mxu0 0.0
    %3048 = vmatpush2.msra.mxu0 0.0
    %3049 = vmatprep.subr.mxu0 0.0
    %3050 = vmatpush2.msra.mxu0 0.0
    %3051 = vmatprep.subr.mxu0 0.0
    %3052 = vmatpush2.msra.mxu0 0.0
    %3053 = vmatprep.subr.mxu0 0.0
    %3054 = vmatpush2.msra.mxu0 0.0
    %3055 = vmatprep.subr.mxu0 0.0
    %3056 = vmatpush2.msra.mxu0 0.0
    %3057 = vmatprep.subr.mxu0 0.0
    %3058 = vmatpush2.msra.mxu0 0.0
    %3059 = vmatprep.subr.mxu0 0.0
    %3060 = vmatpush2.msra.mxu0 0.0
    %3061 = vmatprep.subr.mxu0 0.0
    %3062 = vmatpush2.msra.mxu0 0.0
    %3063 = vmatprep.subr.mxu0 0.0
    %3064 = vmatpush2.msra.mxu0 0.0
    %3065 = vmatprep.subr.mxu0 0.0
    %3066 = vmatpush2.msra.mxu0 0.0
    %3067 = vmatprep.subr.mxu0 0.0
    %3068 = vmatpush2.msra.mxu0 0.0
    %3069 = vmatprep.subr.mxu0 0.0
    %3070 = vmatpush2.msra.mxu0 0.0
    %3071 = vmatprep.mubr.f32.mxu0 0.0
    %3072 = vmatmul.mubr.f32.gmra.mxu0 %v2977
    %v3073 = vpop.f32.mrf.mxu0
    %v3074 = vadd.f32 0.0, %v3073
    %v3075 = vpop.f32.mrf.mxu0
    %3076 = vmatprep.mubr.f32.mxu0 0.0
    %3077 = vmatmul.mubr.f32.gmra.mxu0 %v2978
    %v3078 = vpop.f32.mrf.mxu0
    %v3079 = vadd.f32 0.0, %v3078
    %v3080 = vpop.f32.mrf.mxu0
    %3081 = vmatprep.mubr.f32.mxu0 0.0
    %3082 = vmatmul.mubr.f32.gmra.mxu0 %v2979
    %v3083 = vpop.f32.mrf.mxu0
    %v3084 = vadd.f32 0.0, %v3083
    %v3085 = vpop.f32.mrf.mxu0
    %3086 = vmatprep.mubr.f32.mxu0 0.0
    %3087 = vmatmul.mubr.f32.gmra.mxu0 %v2980
    %v3088 = vpop.f32.mrf.mxu0
    %v3089 = vadd.f32 0.0, %v3088
    %v3090 = vpop.f32.mrf.mxu0
    %3091 = vmatprep.mubr.f32.mxu0 0.0
    %3092 = vmatmul.mubr.f32.gmra.mxu0 %v2981
    %v3093 = vpop.f32.mrf.mxu0
    %v3094 = vadd.f32 0.0, %v3093
    %v3095 = vpop.f32.mrf.mxu0
    %3096 = vmatprep.mubr.f32.mxu0 0.0
    %3097 = vmatmul.mubr.f32.gmra.mxu0 %v2982
    %v3098 = vpop.f32.mrf.mxu0
    %v3099 = vadd.f32 0.0, %v3098
    %v3100 = vpop.f32.mrf.mxu0
    %3101 = vmatprep.mubr.f32.mxu0 0.0
    %3102 = vmatmul.mubr.f32.gmra.mxu0 %v2983
    %v3103 = vpop.f32.mrf.mxu0
    %v3104 = vadd.f32 0.0, %v3103
    %v3105 = vpop.f32.mrf.mxu0
    %3106 = vmatprep.mubr.f32.mxu0 0.0
    %3107 = vmatmul.mubr.f32.gmra.mxu0 %v2984
    %v3108 = vpop.f32.mrf.mxu0
    %v3109 = vadd.f32 0.0, %v3108
    %v3110 = vpop.f32.mrf.mxu0
    %3111 = vmatprep.mubr.f32.mxu0 0.0
    %3112 = vmatmul.mubr.f32.gmra.mxu0 %v2985
    %v3113 = vpop.f32.mrf.mxu0
    %v3114 = vadd.f32 0.0, %v3113
    %v3115 = vpop.f32.mrf.mxu0
    %3116 = vmatprep.mubr.f32.mxu0 0.0
    %3117 = vmatmul.mubr.f32.gmra.mxu0 %v2986
    %v3118 = vpop.f32.mrf.mxu0
    %v3119 = vadd.f32 0.0, %v3118
    %v3120 = vpop.f32.mrf.mxu0
    %3121 = vmatprep.mubr.f32.mxu0 0.0
    %3122 = vmatmul.mubr.f32.gmra.mxu0 %v2987
    %v3123 = vpop.f32.mrf.mxu0
    %v3124 = vadd.f32 0.0, %v3123
    %v3125 = vpop.f32.mrf.mxu0
    %3126 = vmatprep.mubr.f32.mxu0 0.0
    %3127 = vmatmul.mubr.f32.gmra.mxu0 %v2988
    %v3128 = vpop.f32.mrf.mxu0
    %v3129 = vadd.f32 0.0, %v3128
    %v3130 = vpop.f32.mrf.mxu0
    %3131 = vmatprep.mubr.f32.mxu0 0.0
    %3132 = vmatmul.mubr.f32.gmra.mxu0 %v2989
    %v3133 = vpop.f32.mrf.mxu0
    %v3134 = vadd.f32 0.0, %v3133
    %v3135 = vpop.f32.mrf.mxu0
    %3136 = vdwg.mxu0
    %v3137 = vadd.f32 %v2964, %v3074
    %v3138 = vadd.f32 %v2965, %v3079
    %v3139 = vadd.f32 %v2966, %v3084
    %v3140 = vadd.f32 %v2967, %v3089
    %v3141 = vadd.f32 %v2968, %v3094
    %v3142 = vadd.f32 %v2969, %v3099
    %v3143 = vadd.f32 %v2970, %v3104
    %v3144 = vadd.f32 %v2971, %v3109
    %v3145 = vadd.f32 %v2972, %v3114
    %v3146 = vadd.f32 %v2973, %v3119
    %v3147 = vadd.f32 %v2974, %v3124
    %v3148 = vadd.f32 %v2975, %v3129
    %v3149 = vadd.f32 %v2976, %v3134
    %v3150 = vld [vmem:[#allocation3 + $0x1a] sm:$0xff]
    %v3151 = vld [vmem:[#allocation3 + $0x22] sm:$0xff]
    %v3152 = vld [vmem:[#allocation3 + $0x2a] sm:$0xff]
    %v3153 = vld [vmem:[#allocation3 + $0x32] sm:$0xff]
    %v3154 = vld [vmem:[#allocation3 + $0x3a] sm:$0xff]
    %v3155 = vld [vmem:[#allocation3 + $0x42] sm:$0xff]
    %v3156 = vld [vmem:[#allocation3 + $0x4a] sm:$0xff]
    %v3157 = vld [vmem:[#allocation3 + $0x52] sm:$0xff]
    %v3158 = vld [vmem:[#allocation3 + $0x5a] sm:$0xff]
    %v3159 = vld [vmem:[#allocation3 + $0x62] sm:$0xff]
    %v3160 = vld [vmem:[#allocation3 + $0x6a] sm:$0xff]
    %v3161 = vld [vmem:[#allocation3 + $0x72] sm:$0xff]
    %v3162 = vld [vmem:[#allocation3 + $0x7a] sm:$0xff]
    %s3163 = scalar_lea.vmem [#allocation9], 640
    %v3164 = vld [vmem:[%s3163] sm:$0xff]
    %v3165 = vld [vmem:[%s3163 + $0x8] sm:$0xff]
    %v3166 = vld [vmem:[%s3163 + $0x10] sm:$0xff]
    %v3167 = vld [vmem:[%s3163 + $0x18] sm:$0xff]
    %v3168 = vld [vmem:[%s3163 + $0x20] sm:$0xff]
    %v3169 = vld [vmem:[%s3163 + $0x28] sm:$0xff]
    %v3170 = vld [vmem:[%s3163 + $0x30] sm:$0xff]
    %v3171 = vld [vmem:[%s3163 + $0x38] sm:$0xff]
    %v3172 = vld [vmem:[%s3163 + $0x40] sm:$0xff]
    %v3173 = vld [vmem:[%s3163 + $0x48] sm:$0xff]
    %v3174 = vld [vmem:[%s3163 + $0x50] sm:$0xff]
    %v3175 = vld [vmem:[%s3163 + $0x58] sm:$0xff]
    %v3176 = vld [vmem:[%s3163 + $0x60] sm:$0xff]
    %v3177 = vld [vmem:[%s3163 + $0x68] sm:$0xff]
    %v3178 = vld [vmem:[%s3163 + $0x70] sm:$0xff]
    %v3179 = vld [vmem:[%s3163 + $0x78] sm:$0xff]
    %3180 = vmatprep.subr.mxu0 0.0
    %3181 = vmatpush1.msra.mxu0 %v3179
    %3182 = vmatprep.subr.mxu0 0.0
    %3183 = vmatpush1.msra.mxu0 %v3178
    %3184 = vmatprep.subr.mxu0 0.0
    %3185 = vmatpush1.msra.mxu0 %v3177
    %3186 = vmatprep.subr.mxu0 0.0
    %3187 = vmatpush1.msra.mxu0 %v3176
    %3188 = vmatprep.subr.mxu0 0.0
    %3189 = vmatpush1.msra.mxu0 %v3175
    %3190 = vmatprep.subr.mxu0 0.0
    %3191 = vmatpush1.msra.mxu0 %v3174
    %3192 = vmatprep.subr.mxu0 0.0
    %3193 = vmatpush1.msra.mxu0 %v3173
    %3194 = vmatprep.subr.mxu0 0.0
    %3195 = vmatpush1.msra.mxu0 %v3172
    %3196 = vmatprep.subr.mxu0 0.0
    %3197 = vmatpush1.msra.mxu0 %v3171
    %3198 = vmatprep.subr.mxu0 0.0
    %3199 = vmatpush1.msra.mxu0 %v3170
    %3200 = vmatprep.subr.mxu0 0.0
    %3201 = vmatpush1.msra.mxu0 %v3169
    %3202 = vmatprep.subr.mxu0 0.0
    %3203 = vmatpush1.msra.mxu0 %v3168
    %3204 = vmatprep.subr.mxu0 0.0
    %3205 = vmatpush1.msra.mxu0 %v3167
    %3206 = vmatprep.subr.mxu0 0.0
    %3207 = vmatpush1.msra.mxu0 %v3166
    %3208 = vmatprep.subr.mxu0 0.0
    %3209 = vmatpush1.msra.mxu0 %v3165
    %3210 = vmatprep.subr.mxu0 0.0
    %3211 = vmatpush1.msra.mxu0 %v3164
    %3212 = vmatprep.subr.mxu0 0.0
    %3213 = vmatpush2.msra.mxu0 0.0
    %3214 = vmatprep.subr.mxu0 0.0
    %3215 = vmatpush2.msra.mxu0 0.0
    %3216 = vmatprep.subr.mxu0 0.0
    %3217 = vmatpush2.msra.mxu0 0.0
    %3218 = vmatprep.subr.mxu0 0.0
    %3219 = vmatpush2.msra.mxu0 0.0
    %3220 = vmatprep.subr.mxu0 0.0
    %3221 = vmatpush2.msra.mxu0 0.0
    %3222 = vmatprep.subr.mxu0 0.0
    %3223 = vmatpush2.msra.mxu0 0.0
    %3224 = vmatprep.subr.mxu0 0.0
    %3225 = vmatpush2.msra.mxu0 0.0
    %3226 = vmatprep.subr.mxu0 0.0
    %3227 = vmatpush2.msra.mxu0 0.0
    %3228 = vmatprep.subr.mxu0 0.0
    %3229 = vmatpush2.msra.mxu0 0.0
    %3230 = vmatprep.subr.mxu0 0.0
    %3231 = vmatpush2.msra.mxu0 0.0
    %3232 = vmatprep.subr.mxu0 0.0
    %3233 = vmatpush2.msra.mxu0 0.0
    %3234 = vmatprep.subr.mxu0 0.0
    %3235 = vmatpush2.msra.mxu0 0.0
    %3236 = vmatprep.subr.mxu0 0.0
    %3237 = vmatpush2.msra.mxu0 0.0
    %3238 = vmatprep.subr.mxu0 0.0
    %3239 = vmatpush2.msra.mxu0 0.0
    %3240 = vmatprep.subr.mxu0 0.0
    %3241 = vmatpush2.msra.mxu0 0.0
    %3242 = vmatprep.subr.mxu0 0.0
    %3243 = vmatpush2.msra.mxu0 0.0
    %3244 = vmatprep.mubr.f32.mxu0 0.0
    %3245 = vmatmul.mubr.f32.gmra.mxu0 %v3150
    %v3246 = vpop.f32.mrf.mxu0
    %v3247 = vadd.f32 0.0, %v3246
    %v3248 = vpop.f32.mrf.mxu0
    %3249 = vmatprep.mubr.f32.mxu0 0.0
    %3250 = vmatmul.mubr.f32.gmra.mxu0 %v3151
    %v3251 = vpop.f32.mrf.mxu0
    %v3252 = vadd.f32 0.0, %v3251
    %v3253 = vpop.f32.mrf.mxu0
    %3254 = vmatprep.mubr.f32.mxu0 0.0
    %3255 = vmatmul.mubr.f32.gmra.mxu0 %v3152
    %v3256 = vpop.f32.mrf.mxu0
    %v3257 = vadd.f32 0.0, %v3256
    %v3258 = vpop.f32.mrf.mxu0
    %3259 = vmatprep.mubr.f32.mxu0 0.0
    %3260 = vmatmul.mubr.f32.gmra.mxu0 %v3153
    %v3261 = vpop.f32.mrf.mxu0
    %v3262 = vadd.f32 0.0, %v3261
    %v3263 = vpop.f32.mrf.mxu0
    %3264 = vmatprep.mubr.f32.mxu0 0.0
    %3265 = vmatmul.mubr.f32.gmra.mxu0 %v3154
    %v3266 = vpop.f32.mrf.mxu0
    %v3267 = vadd.f32 0.0, %v3266
    %v3268 = vpop.f32.mrf.mxu0
    %3269 = vmatprep.mubr.f32.mxu0 0.0
    %3270 = vmatmul.mubr.f32.gmra.mxu0 %v3155
    %v3271 = vpop.f32.mrf.mxu0
    %v3272 = vadd.f32 0.0, %v3271
    %v3273 = vpop.f32.mrf.mxu0
    %3274 = vmatprep.mubr.f32.mxu0 0.0
    %3275 = vmatmul.mubr.f32.gmra.mxu0 %v3156
    %v3276 = vpop.f32.mrf.mxu0
    %v3277 = vadd.f32 0.0, %v3276
    %v3278 = vpop.f32.mrf.mxu0
    %3279 = vmatprep.mubr.f32.mxu0 0.0
    %3280 = vmatmul.mubr.f32.gmra.mxu0 %v3157
    %v3281 = vpop.f32.mrf.mxu0
    %v3282 = vadd.f32 0.0, %v3281
    %v3283 = vpop.f32.mrf.mxu0
    %3284 = vmatprep.mubr.f32.mxu0 0.0
    %3285 = vmatmul.mubr.f32.gmra.mxu0 %v3158
    %v3286 = vpop.f32.mrf.mxu0
    %v3287 = vadd.f32 0.0, %v3286
    %v3288 = vpop.f32.mrf.mxu0
    %3289 = vmatprep.mubr.f32.mxu0 0.0
    %3290 = vmatmul.mubr.f32.gmra.mxu0 %v3159
    %v3291 = vpop.f32.mrf.mxu0
    %v3292 = vadd.f32 0.0, %v3291
    %v3293 = vpop.f32.mrf.mxu0
    %3294 = vmatprep.mubr.f32.mxu0 0.0
    %3295 = vmatmul.mubr.f32.gmra.mxu0 %v3160
    %v3296 = vpop.f32.mrf.mxu0
    %v3297 = vadd.f32 0.0, %v3296
    %v3298 = vpop.f32.mrf.mxu0
    %3299 = vmatprep.mubr.f32.mxu0 0.0
    %3300 = vmatmul.mubr.f32.gmra.mxu0 %v3161
    %v3301 = vpop.f32.mrf.mxu0
    %v3302 = vadd.f32 0.0, %v3301
    %v3303 = vpop.f32.mrf.mxu0
    %3304 = vmatprep.mubr.f32.mxu0 0.0
    %3305 = vmatmul.mubr.f32.gmra.mxu0 %v3162
    %v3306 = vpop.f32.mrf.mxu0
    %v3307 = vadd.f32 0.0, %v3306
    %v3308 = vpop.f32.mrf.mxu0
    %3309 = vdwg.mxu0
    %v3310 = vadd.f32 %v3137, %v3247
    %v3311 = vadd.f32 %v3138, %v3252
    %v3312 = vadd.f32 %v3139, %v3257
    %v3313 = vadd.f32 %v3140, %v3262
    %v3314 = vadd.f32 %v3141, %v3267
    %v3315 = vadd.f32 %v3142, %v3272
    %v3316 = vadd.f32 %v3143, %v3277
    %v3317 = vadd.f32 %v3144, %v3282
    %v3318 = vadd.f32 %v3145, %v3287
    %v3319 = vadd.f32 %v3146, %v3292
    %v3320 = vadd.f32 %v3147, %v3297
    %v3321 = vadd.f32 %v3148, %v3302
    %v3322 = vadd.f32 %v3149, %v3307
    %v3323 = vld [vmem:[#allocation3 + $0x1f] sm:$0xff]
    %v3324 = vld [vmem:[#allocation3 + $0x27] sm:$0xff]
    %v3325 = vld [vmem:[#allocation3 + $0x2f] sm:$0xff]
    %v3326 = vld [vmem:[#allocation3 + $0x37] sm:$0xff]
    %v3327 = vld [vmem:[#allocation3 + $0x3f] sm:$0xff]
    %v3328 = vld [vmem:[#allocation3 + $0x47] sm:$0xff]
    %v3329 = vld [vmem:[#allocation3 + $0x4f] sm:$0xff]
    %v3330 = vld [vmem:[#allocation3 + $0x57] sm:$0xff]
    %v3331 = vld [vmem:[#allocation3 + $0x5f] sm:$0xff]
    %v3332 = vld [vmem:[#allocation3 + $0x67] sm:$0xff]
    %v3333 = vld [vmem:[#allocation3 + $0x6f] sm:$0xff]
    %v3334 = vld [vmem:[#allocation3 + $0x77] sm:$0xff]
    %v3335 = vld [vmem:[#allocation3 + $0x7f] sm:$0xff]
    %s3336 = scalar_lea.vmem [#allocation9], 768
    %v3337 = vld [vmem:[%s3336] sm:$0xff]
    %v3338 = vld [vmem:[%s3336 + $0x8] sm:$0xff]
    %v3339 = vld [vmem:[%s3336 + $0x10] sm:$0xff]
    %v3340 = vld [vmem:[%s3336 + $0x18] sm:$0xff]
    %v3341 = vld [vmem:[%s3336 + $0x20] sm:$0xff]
    %v3342 = vld [vmem:[%s3336 + $0x28] sm:$0xff]
    %v3343 = vld [vmem:[%s3336 + $0x30] sm:$0xff]
    %v3344 = vld [vmem:[%s3336 + $0x38] sm:$0xff]
    %v3345 = vld [vmem:[%s3336 + $0x40] sm:$0xff]
    %v3346 = vld [vmem:[%s3336 + $0x48] sm:$0xff]
    %v3347 = vld [vmem:[%s3336 + $0x50] sm:$0xff]
    %v3348 = vld [vmem:[%s3336 + $0x58] sm:$0xff]
    %v3349 = vld [vmem:[%s3336 + $0x60] sm:$0xff]
    %v3350 = vld [vmem:[%s3336 + $0x68] sm:$0xff]
    %v3351 = vld [vmem:[%s3336 + $0x70] sm:$0xff]
    %v3352 = vld [vmem:[%s3336 + $0x78] sm:$0xff]
    %3353 = vmatprep.subr.mxu0 0.0
    %3354 = vmatpush1.msra.mxu0 %v3352
    %3355 = vmatprep.subr.mxu0 0.0
    %3356 = vmatpush1.msra.mxu0 %v3351
    %3357 = vmatprep.subr.mxu0 0.0
    %3358 = vmatpush1.msra.mxu0 %v3350
    %3359 = vmatprep.subr.mxu0 0.0
    %3360 = vmatpush1.msra.mxu0 %v3349
    %3361 = vmatprep.subr.mxu0 0.0
    %3362 = vmatpush1.msra.mxu0 %v3348
    %3363 = vmatprep.subr.mxu0 0.0
    %3364 = vmatpush1.msra.mxu0 %v3347
    %3365 = vmatprep.subr.mxu0 0.0
    %3366 = vmatpush1.msra.mxu0 %v3346
    %3367 = vmatprep.subr.mxu0 0.0
    %3368 = vmatpush1.msra.mxu0 %v3345
    %3369 = vmatprep.subr.mxu0 0.0
    %3370 = vmatpush1.msra.mxu0 %v3344
    %3371 = vmatprep.subr.mxu0 0.0
    %3372 = vmatpush1.msra.mxu0 %v3343
    %3373 = vmatprep.subr.mxu0 0.0
    %3374 = vmatpush1.msra.mxu0 %v3342
    %3375 = vmatprep.subr.mxu0 0.0
    %3376 = vmatpush1.msra.mxu0 %v3341
    %3377 = vmatprep.subr.mxu0 0.0
    %3378 = vmatpush1.msra.mxu0 %v3340
    %3379 = vmatprep.subr.mxu0 0.0
    %3380 = vmatpush1.msra.mxu0 %v3339
    %3381 = vmatprep.subr.mxu0 0.0
    %3382 = vmatpush1.msra.mxu0 %v3338
    %3383 = vmatprep.subr.mxu0 0.0
    %3384 = vmatpush1.msra.mxu0 %v3337
    %3385 = vmatprep.subr.mxu0 0.0
    %3386 = vmatpush2.msra.mxu0 0.0
    %3387 = vmatprep.subr.mxu0 0.0
    %3388 = vmatpush2.msra.mxu0 0.0
    %3389 = vmatprep.subr.mxu0 0.0
    %3390 = vmatpush2.msra.mxu0 0.0
    %3391 = vmatprep.subr.mxu0 0.0
    %3392 = vmatpush2.msra.mxu0 0.0
    %3393 = vmatprep.subr.mxu0 0.0
    %3394 = vmatpush2.msra.mxu0 0.0
    %3395 = vmatprep.subr.mxu0 0.0
    %3396 = vmatpush2.msra.mxu0 0.0
    %3397 = vmatprep.subr.mxu0 0.0
    %3398 = vmatpush2.msra.mxu0 0.0
    %3399 = vmatprep.subr.mxu0 0.0
    %3400 = vmatpush2.msra.mxu0 0.0
    %3401 = vmatprep.subr.mxu0 0.0
    %3402 = vmatpush2.msra.mxu0 0.0
    %3403 = vmatprep.subr.mxu0 0.0
    %3404 = vmatpush2.msra.mxu0 0.0
    %3405 = vmatprep.subr.mxu0 0.0
    %3406 = vmatpush2.msra.mxu0 0.0
    %3407 = vmatprep.subr.mxu0 0.0
    %3408 = vmatpush2.msra.mxu0 0.0
    %3409 = vmatprep.subr.mxu0 0.0
    %3410 = vmatpush2.msra.mxu0 0.0
    %3411 = vmatprep.subr.mxu0 0.0
    %3412 = vmatpush2.msra.mxu0 0.0
    %3413 = vmatprep.subr.mxu0 0.0
    %3414 = vmatpush2.msra.mxu0 0.0
    %3415 = vmatprep.subr.mxu0 0.0
    %3416 = vmatpush2.msra.mxu0 0.0
    %3417 = vmatprep.mubr.f32.mxu0 0.0
    %3418 = vmatmul.mubr.f32.gmra.mxu0 %v3323
    %v3419 = vpop.f32.mrf.mxu0
    %v3420 = vadd.f32 0.0, %v3419
    %v3421 = vpop.f32.mrf.mxu0
    %3422 = vmatprep.mubr.f32.mxu0 0.0
    %3423 = vmatmul.mubr.f32.gmra.mxu0 %v3324
    %v3424 = vpop.f32.mrf.mxu0
    %v3425 = vadd.f32 0.0, %v3424
    %v3426 = vpop.f32.mrf.mxu0
    %3427 = vmatprep.mubr.f32.mxu0 0.0
    %3428 = vmatmul.mubr.f32.gmra.mxu0 %v3325
    %v3429 = vpop.f32.mrf.mxu0
    %v3430 = vadd.f32 0.0, %v3429
    %v3431 = vpop.f32.mrf.mxu0
    %3432 = vmatprep.mubr.f32.mxu0 0.0
    %3433 = vmatmul.mubr.f32.gmra.mxu0 %v3326
    %v3434 = vpop.f32.mrf.mxu0
    %v3435 = vadd.f32 0.0, %v3434
    %v3436 = vpop.f32.mrf.mxu0
    %3437 = vmatprep.mubr.f32.mxu0 0.0
    %3438 = vmatmul.mubr.f32.gmra.mxu0 %v3327
    %v3439 = vpop.f32.mrf.mxu0
    %v3440 = vadd.f32 0.0, %v3439
    %v3441 = vpop.f32.mrf.mxu0
    %3442 = vmatprep.mubr.f32.mxu0 0.0
    %3443 = vmatmul.mubr.f32.gmra.mxu0 %v3328
    %v3444 = vpop.f32.mrf.mxu0
    %v3445 = vadd.f32 0.0, %v3444
    %v3446 = vpop.f32.mrf.mxu0
    %3447 = vmatprep.mubr.f32.mxu0 0.0
    %3448 = vmatmul.mubr.f32.gmra.mxu0 %v3329
    %v3449 = vpop.f32.mrf.mxu0
    %v3450 = vadd.f32 0.0, %v3449
    %v3451 = vpop.f32.mrf.mxu0
    %3452 = vmatprep.mubr.f32.mxu0 0.0
    %3453 = vmatmul.mubr.f32.gmra.mxu0 %v3330
    %v3454 = vpop.f32.mrf.mxu0
    %v3455 = vadd.f32 0.0, %v3454
    %v3456 = vpop.f32.mrf.mxu0
    %3457 = vmatprep.mubr.f32.mxu0 0.0
    %3458 = vmatmul.mubr.f32.gmra.mxu0 %v3331
    %v3459 = vpop.f32.mrf.mxu0
    %v3460 = vadd.f32 0.0, %v3459
    %v3461 = vpop.f32.mrf.mxu0
    %3462 = vmatprep.mubr.f32.mxu0 0.0
    %3463 = vmatmul.mubr.f32.gmra.mxu0 %v3332
    %v3464 = vpop.f32.mrf.mxu0
    %v3465 = vadd.f32 0.0, %v3464
    %v3466 = vpop.f32.mrf.mxu0
    %3467 = vmatprep.mubr.f32.mxu0 0.0
    %3468 = vmatmul.mubr.f32.gmra.mxu0 %v3333
    %v3469 = vpop.f32.mrf.mxu0
    %v3470 = vadd.f32 0.0, %v3469
    %v3471 = vpop.f32.mrf.mxu0
    %3472 = vmatprep.mubr.f32.mxu0 0.0
    %3473 = vmatmul.mubr.f32.gmra.mxu0 %v3334
    %v3474 = vpop.f32.mrf.mxu0
    %v3475 = vadd.f32 0.0, %v3474
    %v3476 = vpop.f32.mrf.mxu0
    %3477 = vmatprep.mubr.f32.mxu0 0.0
    %3478 = vmatmul.mubr.f32.gmra.mxu0 %v3335
    %v3479 = vpop.f32.mrf.mxu0
    %v3480 = vadd.f32 0.0, %v3479
    %v3481 = vpop.f32.mrf.mxu0
    %3482 = vdwg.mxu0
    %v3483 = vadd.f32 %v3310, %v3420
    %v3484 = vadd.f32 %v3311, %v3425
    %v3485 = vadd.f32 %v3312, %v3430
    %v3486 = vadd.f32 %v3313, %v3435
    %v3487 = vadd.f32 %v3314, %v3440
    %v3488 = vadd.f32 %v3315, %v3445
    %v3489 = vadd.f32 %v3316, %v3450
    %v3490 = vadd.f32 %v3317, %v3455
    %v3491 = vadd.f32 %v3318, %v3460
    %v3492 = vadd.f32 %v3319, %v3465
    %v3493 = vadd.f32 %v3320, %v3470
    %v3494 = vadd.f32 %v3321, %v3475
    %v3495 = vadd.f32 %v3322, %v3480
    %v3496 = vld [vmem:[%s8] sm:$0x1]
    %v3498 = vlaneseq
    %v3499 = vshrl.u32 %v3498, 7
    %v3500 = vsub.s32 0, %v3499
    %v3501 = vrot.slane %v3496, %v3500
    %v3503 = vadd.f32 %v3483, %v3501
    %v3504 = vadd.f32 %v3484, %v3501
    %v3505 = vadd.f32 %v3485, %v3501
    %v3506 = vadd.f32 %v3486, %v3501
    %v3507 = vadd.f32 %v3487, %v3501
    %v3508 = vadd.f32 %v3488, %v3501
    %v3509 = vadd.f32 %v3489, %v3501
    %v3510 = vadd.f32 %v3490, %v3501
    %v3511 = vadd.f32 %v3491, %v3501
    %v3512 = vadd.f32 %v3492, %v3501
    %v3513 = vadd.f32 %v3493, %v3501
    %v3514 = vadd.f32 %v3494, %v3501
    %v3515 = vadd.f32 %v3495, %v3501
    %3516 = vst [vmem:[#allocation2 + $0x10] sm:$0xff] %v3503
    %3517 = vst [vmem:[#allocation2 + $0x18] sm:$0xff] %v3504
    %3518 = vst [vmem:[#allocation2 + $0x20] sm:$0xff] %v3505
    %3519 = vst [vmem:[#allocation2 + $0x28] sm:$0xff] %v3506
    %3520 = vst [vmem:[#allocation2 + $0x30] sm:$0xff] %v3507
    %3521 = vst [vmem:[#allocation2 + $0x38] sm:$0xff] %v3508
    %3522 = vst [vmem:[#allocation2 + $0x40] sm:$0xff] %v3509
    %3523 = vst [vmem:[#allocation2 + $0x48] sm:$0xff] %v3510
    %3524 = vst [vmem:[#allocation2 + $0x50] sm:$0xff] %v3511
    %3525 = vst [vmem:[#allocation2 + $0x58] sm:$0xff] %v3512
    %3526 = vst [vmem:[#allocation2 + $0x60] sm:$0xff] %v3513
    %3527 = vst [vmem:[#allocation2 + $0x68] sm:$0xff] %v3514
    %3528 = vst [vmem:[#allocation2 + $0x70] sm:$0xff] %v3515
    %3529 = vst [vmem:[#allocation2 + $0xe] sm:$0x3] 0.0
    %3530 = vst [vmem:[#allocation2 + $0x74] sm:$0x3] 0.0
    %v3531 = vld [vmem:[#allocation2 + $0xe] sm:$0xff]
    %v3532 = vld [vmem:[#allocation2 + $0x16] sm:$0xff]
    %v3533 = vld [vmem:[#allocation2 + $0x1e] sm:$0xff]
    %v3534 = vld [vmem:[#allocation2 + $0x26] sm:$0xff]
    %v3535 = vld [vmem:[#allocation2 + $0x2e] sm:$0xff]
    %v3536 = vld [vmem:[#allocation2 + $0x36] sm:$0xff]
    %v3537 = vld [vmem:[#allocation2 + $0x3e] sm:$0xff]
    %v3538 = vld [vmem:[#allocation2 + $0x46] sm:$0xff]
    %v3539 = vld [vmem:[#allocation2 + $0x4e] sm:$0xff]
    %v3540 = vld [vmem:[#allocation2 + $0x56] sm:$0xff]
    %v3541 = vld [vmem:[#allocation2 + $0x5e] sm:$0xff]
    %v3542 = vld [vmem:[#allocation2 + $0x66] sm:$0xff]
    %v3543 = vld [vmem:[#allocation2 + $0x6e] sm:$0xff]
    %v3544 = vld [vmem:[#allocation2 + $0xf] sm:$0xff]
    %v3545 = vld [vmem:[#allocation2 + $0x17] sm:$0xff]
    %v3546 = vld [vmem:[#allocation2 + $0x1f] sm:$0xff]
    %v3547 = vld [vmem:[#allocation2 + $0x27] sm:$0xff]
    %v3548 = vld [vmem:[#allocation2 + $0x2f] sm:$0xff]
    %v3549 = vld [vmem:[#allocation2 + $0x37] sm:$0xff]
    %v3550 = vld [vmem:[#allocation2 + $0x3f] sm:$0xff]
    %v3551 = vld [vmem:[#allocation2 + $0x47] sm:$0xff]
    %v3552 = vld [vmem:[#allocation2 + $0x4f] sm:$0xff]
    %v3553 = vld [vmem:[#allocation2 + $0x57] sm:$0xff]
    %v3554 = vld [vmem:[#allocation2 + $0x5f] sm:$0xff]
    %v3555 = vld [vmem:[#allocation2 + $0x67] sm:$0xff]
    %v3556 = vld [vmem:[#allocation2 + $0x6f] sm:$0xff]
    %v3557 = vadd.f32 %v3531, %v3544
    %v3558 = vadd.f32 %v3532, %v3545
    %v3559 = vadd.f32 %v3533, %v3546
    %v3560 = vadd.f32 %v3534, %v3547
    %v3561 = vadd.f32 %v3535, %v3548
    %v3562 = vadd.f32 %v3536, %v3549
    %v3563 = vadd.f32 %v3537, %v3550
    %v3564 = vadd.f32 %v3538, %v3551
    %v3565 = vadd.f32 %v3539, %v3552
    %v3566 = vadd.f32 %v3540, %v3553
    %v3567 = vadd.f32 %v3541, %v3554
    %v3568 = vadd.f32 %v3542, %v3555
    %v3569 = vadd.f32 %v3543, %v3556
    %v3570 = vld [vmem:[#allocation2 + $0x10] sm:$0xff]
    %v3571 = vld [vmem:[#allocation2 + $0x18] sm:$0xff]
    %v3572 = vld [vmem:[#allocation2 + $0x20] sm:$0xff]
    %v3573 = vld [vmem:[#allocation2 + $0x28] sm:$0xff]
    %v3574 = vld [vmem:[#allocation2 + $0x30] sm:$0xff]
    %v3575 = vld [vmem:[#allocation2 + $0x38] sm:$0xff]
    %v3576 = vld [vmem:[#allocation2 + $0x40] sm:$0xff]
    %v3577 = vld [vmem:[#allocation2 + $0x48] sm:$0xff]
    %v3578 = vld [vmem:[#allocation2 + $0x50] sm:$0xff]
    %v3579 = vld [vmem:[#allocation2 + $0x58] sm:$0xff]
    %v3580 = vld [vmem:[#allocation2 + $0x60] sm:$0xff]
    %v3581 = vld [vmem:[#allocation2 + $0x68] sm:$0xff]
    %v3582 = vld [vmem:[#allocation2 + $0x70] sm:$0xff]
    %v3583 = vadd.f32 %v3557, %v3570
    %v3584 = vadd.f32 %v3558, %v3571
    %v3585 = vadd.f32 %v3559, %v3572
    %v3586 = vadd.f32 %v3560, %v3573
    %v3587 = vadd.f32 %v3561, %v3574
    %v3588 = vadd.f32 %v3562, %v3575
    %v3589 = vadd.f32 %v3563, %v3576
    %v3590 = vadd.f32 %v3564, %v3577
    %v3591 = vadd.f32 %v3565, %v3578
    %v3592 = vadd.f32 %v3566, %v3579
    %v3593 = vadd.f32 %v3567, %v3580
    %v3594 = vadd.f32 %v3568, %v3581
    %v3595 = vadd.f32 %v3569, %v3582
    %v3596 = vld [vmem:[#allocation2 + $0x11] sm:$0xff]
    %v3597 = vld [vmem:[#allocation2 + $0x19] sm:$0xff]
    %v3598 = vld [vmem:[#allocation2 + $0x21] sm:$0xff]
    %v3599 = vld [vmem:[#allocation2 + $0x29] sm:$0xff]
    %v3600 = vld [vmem:[#allocation2 + $0x31] sm:$0xff]
    %v3601 = vld [vmem:[#allocation2 + $0x39] sm:$0xff]
    %v3602 = vld [vmem:[#allocation2 + $0x41] sm:$0xff]
    %v3603 = vld [vmem:[#allocation2 + $0x49] sm:$0xff]
    %v3604 = vld [vmem:[#allocation2 + $0x51] sm:$0xff]
    %v3605 = vld [vmem:[#allocation2 + $0x59] sm:$0xff]
    %v3606 = vld [vmem:[#allocation2 + $0x61] sm:$0xff]
    %v3607 = vld [vmem:[#allocation2 + $0x69] sm:$0xff]
    %v3608 = vld [vmem:[#allocation2 + $0x71] sm:$0xff]
    %v3609 = vadd.f32 %v3583, %v3596
    %v3610 = vadd.f32 %v3584, %v3597
    %v3611 = vadd.f32 %v3585, %v3598
    %v3612 = vadd.f32 %v3586, %v3599
    %v3613 = vadd.f32 %v3587, %v3600
    %v3614 = vadd.f32 %v3588, %v3601
    %v3615 = vadd.f32 %v3589, %v3602
    %v3616 = vadd.f32 %v3590, %v3603
    %v3617 = vadd.f32 %v3591, %v3604
    %v3618 = vadd.f32 %v3592, %v3605
    %v3619 = vadd.f32 %v3593, %v3606
    %v3620 = vadd.f32 %v3594, %v3607
    %v3621 = vadd.f32 %v3595, %v3608
    %v3622 = vld [vmem:[#allocation2 + $0x12] sm:$0xff]
    %v3623 = vld [vmem:[#allocation2 + $0x1a] sm:$0xff]
    %v3624 = vld [vmem:[#allocation2 + $0x22] sm:$0xff]
    %v3625 = vld [vmem:[#allocation2 + $0x2a] sm:$0xff]
    %v3626 = vld [vmem:[#allocation2 + $0x32] sm:$0xff]
    %v3627 = vld [vmem:[#allocation2 + $0x3a] sm:$0xff]
    %v3628 = vld [vmem:[#allocation2 + $0x42] sm:$0xff]
    %v3629 = vld [vmem:[#allocation2 + $0x4a] sm:$0xff]
    %v3630 = vld [vmem:[#allocation2 + $0x52] sm:$0xff]
    %v3631 = vld [vmem:[#allocation2 + $0x5a] sm:$0xff]
    %v3632 = vld [vmem:[#allocation2 + $0x62] sm:$0xff]
    %v3633 = vld [vmem:[#allocation2 + $0x6a] sm:$0xff]
    %v3634 = vld [vmem:[#allocation2 + $0x72] sm:$0xff]
    %v3635 = vadd.f32 %v3609, %v3622
    %v3636 = vadd.f32 %v3610, %v3623
    %v3637 = vadd.f32 %v3611, %v3624
    %v3638 = vadd.f32 %v3612, %v3625
    %v3639 = vadd.f32 %v3613, %v3626
    %v3640 = vadd.f32 %v3614, %v3627
    %v3641 = vadd.f32 %v3615, %v3628
    %v3642 = vadd.f32 %v3616, %v3629
    %v3643 = vadd.f32 %v3617, %v3630
    %v3644 = vadd.f32 %v3618, %v3631
    %v3645 = vadd.f32 %v3619, %v3632
    %v3646 = vadd.f32 %v3620, %v3633
    %v3647 = vadd.f32 %v3621, %v3634
    %v3648 = vmul.f32 %v3635, %v174
    %v3649 = vmul.f32 %v3636, %v175
    %v3650 = vmul.f32 %v3637, %v176
    %v3651 = vmul.f32 %v3638, %v177
    %v3652 = vmul.f32 %v3639, %v178
    %v3653 = vmul.f32 %v3640, %v179
    %v3654 = vmul.f32 %v3641, %v180
    %v3655 = vmul.f32 %v3642, %v181
    %v3656 = vmul.f32 %v3643, %v182
    %v3657 = vmul.f32 %v3644, %v183
    %v3658 = vmul.f32 %v3645, %v184
    %v3659 = vmul.f32 %v3646, %v185
    %v3660 = vmul.f32 %v3647, %v186
    %v3661 = vmax.f32 %v3648, 0.0
    %v3662 = vmax.f32 %v3649, 0.0
    %v3663 = vmax.f32 %v3650, 0.0
    %v3664 = vmax.f32 %v3651, 0.0
    %v3665 = vmax.f32 %v3652, 0.0
    %v3666 = vmax.f32 %v3653, 0.0
    %v3667 = vmax.f32 %v3654, 0.0
    %v3668 = vmax.f32 %v3655, 0.0
    %v3669 = vmax.f32 %v3656, 0.0
    %v3670 = vmax.f32 %v3657, 0.0
    %v3671 = vmax.f32 %v3658, 0.0
    %v3672 = vmax.f32 %v3659, 0.0
    %v3673 = vmax.f32 %v3660, 0.0
    %3674 = vst [vmem:[#allocation3 + $0x10] sm:$0xff] %v3661
    %3675 = vst [vmem:[#allocation3 + $0x18] sm:$0xff] %v3662
    %3676 = vst [vmem:[#allocation3 + $0x20] sm:$0xff] %v3663
    %3677 = vst [vmem:[#allocation3 + $0x28] sm:$0xff] %v3664
    %3678 = vst [vmem:[#allocation3 + $0x30] sm:$0xff] %v3665
    %3679 = vst [vmem:[#allocation3 + $0x38] sm:$0xff] %v3666
    %3680 = vst [vmem:[#allocation3 + $0x40] sm:$0xff] %v3667
    %3681 = vst [vmem:[#allocation3 + $0x48] sm:$0xff] %v3668
    %3682 = vst [vmem:[#allocation3 + $0x50] sm:$0xff] %v3669
    %3683 = vst [vmem:[#allocation3 + $0x58] sm:$0xff] %v3670
    %3684 = vst [vmem:[#allocation3 + $0x60] sm:$0xff] %v3671
    %3685 = vst [vmem:[#allocation3 + $0x68] sm:$0xff] %v3672
    %3686 = vst [vmem:[#allocation3 + $0x70] sm:$0xff] %v3673
    %v3687 = vld [vmem:[#allocation3 + $0x11] sm:$0xff]
    %v3688 = vld [vmem:[#allocation3 + $0x19] sm:$0xff]
    %3689 = vmatprep.subr.mxu0 0.0
    %3690 = vmatpush1.msra.mxu0 0.0
    %3691 = vmatprep.subr.mxu0 0.0
    %3692 = vmatpush1.msra.mxu0 0.0
    %3693 = vmatprep.subr.mxu0 0.0
    %3694 = vmatpush1.msra.mxu0 0.0
    %3695 = vmatprep.subr.mxu0 0.0
    %3696 = vmatpush1.msra.mxu0 0.0
    %3697 = vmatprep.subr.mxu0 0.0
    %3698 = vmatpush1.msra.mxu0 0.0
    %3699 = vmatprep.subr.mxu0 0.0
    %3700 = vmatpush1.msra.mxu0 0.0
    %3701 = vmatprep.subr.mxu0 0.0
    %3702 = vmatpush1.msra.mxu0 0.0
    %3703 = vmatprep.subr.mxu0 0.0
    %3704 = vmatpush1.msra.mxu0 0.0
    %3705 = vmatprep.subr.mxu0 0.0
    %3706 = vmatpush1.msra.mxu0 0.0
    %3707 = vmatprep.subr.mxu0 0.0
    %3708 = vmatpush1.msra.mxu0 0.0
    %3709 = vmatprep.subr.mxu0 0.0
    %3710 = vmatpush1.msra.mxu0 0.0
    %3711 = vmatprep.subr.mxu0 0.0
    %3712 = vmatpush1.msra.mxu0 0.0
    %3713 = vmatprep.subr.mxu0 0.0
    %3714 = vmatpush1.msra.mxu0 0.0
    %3715 = vmatprep.subr.mxu0 0.0
    %3716 = vmatpush1.msra.mxu0 0.0
    %3717 = vmatprep.subr.mxu0 0.0
    %3718 = vmatpush1.msra.mxu0 %v3688
    %3719 = vmatprep.subr.mxu0 0.0
    %3720 = vmatpush1.msra.mxu0 %v3687
    %3721 = vmatprep.subr.mxu0 0.0
    %3722 = vmatpush2.msra.mxu0 0.0
    %3723 = vmatprep.subr.mxu0 0.0
    %3724 = vmatpush2.msra.mxu0 0.0
    %3725 = vmatprep.subr.mxu0 0.0
    %3726 = vmatpush2.msra.mxu0 0.0
    %3727 = vmatprep.subr.mxu0 0.0
    %3728 = vmatpush2.msra.mxu0 0.0
    %3729 = vmatprep.subr.mxu0 0.0
    %3730 = vmatpush2.msra.mxu0 0.0
    %3731 = vmatprep.subr.mxu0 0.0
    %3732 = vmatpush2.msra.mxu0 0.0
    %3733 = vmatprep.subr.mxu0 0.0
    %3734 = vmatpush2.msra.mxu0 0.0
    %3735 = vmatprep.subr.mxu0 0.0
    %3736 = vmatpush2.msra.mxu0 0.0
    %3737 = vmatprep.subr.mxu0 0.0
    %3738 = vmatpush2.msra.mxu0 0.0
    %3739 = vmatprep.subr.mxu0 0.0
    %3740 = vmatpush2.msra.mxu0 0.0
    %3741 = vmatprep.subr.mxu0 0.0
    %3742 = vmatpush2.msra.mxu0 0.0
    %3743 = vmatprep.subr.mxu0 0.0
    %3744 = vmatpush2.msra.mxu0 0.0
    %3745 = vmatprep.subr.mxu0 0.0
    %3746 = vmatpush2.msra.mxu0 0.0
    %3747 = vmatprep.subr.mxu0 0.0
    %3748 = vmatpush2.msra.mxu0 0.0
    %3749 = vmatprep.subr.mxu0 0.0
    %3750 = vmatpush2.msra.mxu0 0.0
    %3751 = vmatprep.subr.mxu0 0.0
    %3752 = vmatpush2.msra.mxu0 0.0
    %3753 = vmatprep.mubr.f32.mxu0 0.0
    %3754 = vmatmul.mubr.f32.gmra.mxu0 %v426
    %v3755 = vpop.f32.mrf.mxu0
    %v3756 = vadd.f32 0.0, %v3755
    %v3757 = vpop.f32.mrf.mxu0
    %3758 = vmatprep.mubr.f32.mxu0 0.0
    %3759 = vmatmul.mubr.f32.gmra.mxu0 %v429
    %v3760 = vpop.f32.mrf.mxu0
    %v3761 = vadd.f32 0.0, %v3760
    %v3762 = vpop.f32.mrf.mxu0
    %3763 = vdwg.mxu0
    %3764 = vst [vmem:[#allocation3] sm:$0xff] %v3756
    %3765 = vst [vmem:[#allocation3 + $0x8] sm:$0xff] %v3761
    %v3766 = vld [vmem:[#allocation3 + $0x63] sm:$0xff]
    %v3767 = vld [vmem:[#allocation3 + $0x6b] sm:$0xff]
    %3768 = vmatprep.subr.mxu0 0.0
    %3769 = vmatpush1.msra.mxu0 0.0
    %3770 = vmatprep.subr.mxu0 0.0
    %3771 = vmatpush1.msra.mxu0 0.0
    %3772 = vmatprep.subr.mxu0 0.0
    %3773 = vmatpush1.msra.mxu0 0.0
    %3774 = vmatprep.subr.mxu0 0.0
    %3775 = vmatpush1.msra.mxu0 0.0
    %3776 = vmatprep.subr.mxu0 0.0
    %3777 = vmatpush1.msra.mxu0 0.0
    %3778 = vmatprep.subr.mxu0 0.0
    %3779 = vmatpush1.msra.mxu0 0.0
    %3780 = vmatprep.subr.mxu0 0.0
    %3781 = vmatpush1.msra.mxu0 0.0
    %3782 = vmatprep.subr.mxu0 0.0
    %3783 = vmatpush1.msra.mxu0 0.0
    %3784 = vmatprep.subr.mxu0 0.0
    %3785 = vmatpush1.msra.mxu0 0.0
    %3786 = vmatprep.subr.mxu0 0.0
    %3787 = vmatpush1.msra.mxu0 0.0
    %3788 = vmatprep.subr.mxu0 0.0
    %3789 = vmatpush1.msra.mxu0 0.0
    %3790 = vmatprep.subr.mxu0 0.0
    %3791 = vmatpush1.msra.mxu0 0.0
    %3792 = vmatprep.subr.mxu0 0.0
    %3793 = vmatpush1.msra.mxu0 0.0
    %3794 = vmatprep.subr.mxu0 0.0
    %3795 = vmatpush1.msra.mxu0 0.0
    %3796 = vmatprep.subr.mxu0 0.0
    %3797 = vmatpush1.msra.mxu0 %v3767
    %3798 = vmatprep.subr.mxu0 0.0
    %3799 = vmatpush1.msra.mxu0 %v3766
    %3800 = vmatprep.subr.mxu0 0.0
    %3801 = vmatpush2.msra.mxu0 0.0
    %3802 = vmatprep.subr.mxu0 0.0
    %3803 = vmatpush2.msra.mxu0 0.0
    %3804 = vmatprep.subr.mxu0 0.0
    %3805 = vmatpush2.msra.mxu0 0.0
    %3806 = vmatprep.subr.mxu0 0.0
    %3807 = vmatpush2.msra.mxu0 0.0
    %3808 = vmatprep.subr.mxu0 0.0
    %3809 = vmatpush2.msra.mxu0 0.0
    %3810 = vmatprep.subr.mxu0 0.0
    %3811 = vmatpush2.msra.mxu0 0.0
    %3812 = vmatprep.subr.mxu0 0.0
    %3813 = vmatpush2.msra.mxu0 0.0
    %3814 = vmatprep.subr.mxu0 0.0
    %3815 = vmatpush2.msra.mxu0 0.0
    %3816 = vmatprep.subr.mxu0 0.0
    %3817 = vmatpush2.msra.mxu0 0.0
    %3818 = vmatprep.subr.mxu0 0.0
    %3819 = vmatpush2.msra.mxu0 0.0
    %3820 = vmatprep.subr.mxu0 0.0
    %3821 = vmatpush2.msra.mxu0 0.0
    %3822 = vmatprep.subr.mxu0 0.0
    %3823 = vmatpush2.msra.mxu0 0.0
    %3824 = vmatprep.subr.mxu0 0.0
    %3825 = vmatpush2.msra.mxu0 0.0
    %3826 = vmatprep.subr.mxu0 0.0
    %3827 = vmatpush2.msra.mxu0 0.0
    %3828 = vmatprep.subr.mxu0 0.0
    %3829 = vmatpush2.msra.mxu0 0.0
    %3830 = vmatprep.subr.mxu0 0.0
    %3831 = vmatpush2.msra.mxu0 0.0
    %3832 = vmatprep.mubr.f32.mxu0 0.0
    %3833 = vmatmul.mubr.f32.gmra.mxu0 %v426
    %v3834 = vpop.f32.mrf.mxu0
    %v3835 = vadd.f32 0.0, %v3834
    %v3836 = vpop.f32.mrf.mxu0
    %3837 = vmatprep.mubr.f32.mxu0 0.0
    %3838 = vmatmul.mubr.f32.gmra.mxu0 %v429
    %v3839 = vpop.f32.mrf.mxu0
    %v3840 = vadd.f32 0.0, %v3839
    %v3841 = vpop.f32.mrf.mxu0
    %3842 = vdwg.mxu0
    %3843 = vst [vmem:[#allocation3 + $0x74] sm:$0xff] %v3835
    %3844 = vst [vmem:[#allocation3 + $0x7c] sm:$0xff] %v3840
    %v3845 = vld [vmem:[#allocation3 + $0x1] sm:$0xff]
    %v3846 = vld [vmem:[#allocation3 + $0x9] sm:$0xff]
    %v3847 = vld [vmem:[#allocation3 + $0x11] sm:$0xff]
    %v3848 = vld [vmem:[#allocation3 + $0x19] sm:$0xff]
    %v3849 = vld [vmem:[#allocation3 + $0x21] sm:$0xff]
    %v3850 = vld [vmem:[#allocation3 + $0x29] sm:$0xff]
    %v3851 = vld [vmem:[#allocation3 + $0x31] sm:$0xff]
    %v3852 = vld [vmem:[#allocation3 + $0x39] sm:$0xff]
    %v3853 = vld [vmem:[#allocation3 + $0x41] sm:$0xff]
    %v3854 = vld [vmem:[#allocation3 + $0x49] sm:$0xff]
    %v3855 = vld [vmem:[#allocation3 + $0x51] sm:$0xff]
    %v3856 = vld [vmem:[#allocation3 + $0x59] sm:$0xff]
    %v3857 = vld [vmem:[#allocation3 + $0x61] sm:$0xff]
    %v3858 = vld [vmem:[#allocation10] sm:$0xff]
    %v3859 = vld [vmem:[#allocation10 + $0x8] sm:$0xff]
    %v3860 = vld [vmem:[#allocation10 + $0x10] sm:$0xff]
    %v3861 = vld [vmem:[#allocation10 + $0x18] sm:$0xff]
    %v3862 = vld [vmem:[#allocation10 + $0x20] sm:$0xff]
    %v3863 = vld [vmem:[#allocation10 + $0x28] sm:$0xff]
    %v3864 = vld [vmem:[#allocation10 + $0x30] sm:$0xff]
    %v3865 = vld [vmem:[#allocation10 + $0x38] sm:$0xff]
    %v3866 = vld [vmem:[#allocation10 + $0x40] sm:$0xff]
    %v3867 = vld [vmem:[#allocation10 + $0x48] sm:$0xff]
    %v3868 = vld [vmem:[#allocation10 + $0x50] sm:$0xff]
    %v3869 = vld [vmem:[#allocation10 + $0x58] sm:$0xff]
    %v3870 = vld [vmem:[#allocation10 + $0x60] sm:$0xff]
    %v3871 = vld [vmem:[#allocation10 + $0x68] sm:$0xff]
    %v3872 = vld [vmem:[#allocation10 + $0x70] sm:$0xff]
    %v3873 = vld [vmem:[#allocation10 + $0x78] sm:$0xff]
    %v3874 = vld [vmem:[#allocation3 + $0x6] sm:$0xff]
    %v3875 = vld [vmem:[#allocation3 + $0xe] sm:$0xff]
    %v3876 = vld [vmem:[#allocation3 + $0x16] sm:$0xff]
    %v3877 = vld [vmem:[#allocation3 + $0x1e] sm:$0xff]
    %v3878 = vld [vmem:[#allocation3 + $0x26] sm:$0xff]
    %v3879 = vld [vmem:[#allocation3 + $0x2e] sm:$0xff]
    %v3880 = vld [vmem:[#allocation3 + $0x36] sm:$0xff]
    %v3881 = vld [vmem:[#allocation3 + $0x3e] sm:$0xff]
    %v3882 = vld [vmem:[#allocation3 + $0x46] sm:$0xff]
    %v3883 = vld [vmem:[#allocation3 + $0x4e] sm:$0xff]
    %v3884 = vld [vmem:[#allocation3 + $0x56] sm:$0xff]
    %v3885 = vld [vmem:[#allocation3 + $0x5e] sm:$0xff]
    %v3886 = vld [vmem:[#allocation3 + $0x66] sm:$0xff]
    %s3887 = scalar_lea.vmem [#allocation10], 128
    %v3888 = vld [vmem:[%s3887] sm:$0xff]
    %v3889 = vld [vmem:[%s3887 + $0x8] sm:$0xff]
    %v3890 = vld [vmem:[%s3887 + $0x10] sm:$0xff]
    %v3891 = vld [vmem:[%s3887 + $0x18] sm:$0xff]
    %v3892 = vld [vmem:[%s3887 + $0x20] sm:$0xff]
    %v3893 = vld [vmem:[%s3887 + $0x28] sm:$0xff]
    %v3894 = vld [vmem:[%s3887 + $0x30] sm:$0xff]
    %v3895 = vld [vmem:[%s3887 + $0x38] sm:$0xff]
    %v3896 = vld [vmem:[%s3887 + $0x40] sm:$0xff]
    %v3897 = vld [vmem:[%s3887 + $0x48] sm:$0xff]
    %v3898 = vld [vmem:[%s3887 + $0x50] sm:$0xff]
    %v3899 = vld [vmem:[%s3887 + $0x58] sm:$0xff]
    %v3900 = vld [vmem:[%s3887 + $0x60] sm:$0xff]
    %v3901 = vld [vmem:[%s3887 + $0x68] sm:$0xff]
    %v3902 = vld [vmem:[%s3887 + $0x70] sm:$0xff]
    %v3903 = vld [vmem:[%s3887 + $0x78] sm:$0xff]
    %3904 = vmatprep.subr.mxu0 0.0
    %3905 = vmatpush1.msra.mxu0 %v3903
    %3906 = vmatprep.subr.mxu0 0.0
    %3907 = vmatpush1.msra.mxu0 %v3902
    %3908 = vmatprep.subr.mxu0 0.0
    %3909 = vmatpush1.msra.mxu0 %v3901
    %3910 = vmatprep.subr.mxu0 0.0
    %3911 = vmatpush1.msra.mxu0 %v3900
    %3912 = vmatprep.subr.mxu0 0.0
    %3913 = vmatpush1.msra.mxu0 %v3899
    %3914 = vmatprep.subr.mxu0 0.0
    %3915 = vmatpush1.msra.mxu0 %v3898
    %3916 = vmatprep.subr.mxu0 0.0
    %3917 = vmatpush1.msra.mxu0 %v3897
    %3918 = vmatprep.subr.mxu0 0.0
    %3919 = vmatpush1.msra.mxu0 %v3896
    %3920 = vmatprep.subr.mxu0 0.0
    %3921 = vmatpush1.msra.mxu0 %v3895
    %3922 = vmatprep.subr.mxu0 0.0
    %3923 = vmatpush1.msra.mxu0 %v3894
    %3924 = vmatprep.subr.mxu0 0.0
    %3925 = vmatpush1.msra.mxu0 %v3893
    %3926 = vmatprep.subr.mxu0 0.0
    %3927 = vmatpush1.msra.mxu0 %v3892
    %3928 = vmatprep.subr.mxu0 0.0
    %3929 = vmatpush1.msra.mxu0 %v3891
    %3930 = vmatprep.subr.mxu0 0.0
    %3931 = vmatpush1.msra.mxu0 %v3890
    %3932 = vmatprep.subr.mxu0 0.0
    %3933 = vmatpush1.msra.mxu0 %v3889
    %3934 = vmatprep.subr.mxu0 0.0
    %3935 = vmatpush1.msra.mxu0 %v3888
    %3936 = vmatprep.subr.mxu0 0.0
    %3937 = vmatpush2.msra.mxu0 0.0
    %3938 = vmatprep.subr.mxu0 0.0
    %3939 = vmatpush2.msra.mxu0 0.0
    %3940 = vmatprep.subr.mxu0 0.0
    %3941 = vmatpush2.msra.mxu0 0.0
    %3942 = vmatprep.subr.mxu0 0.0
    %3943 = vmatpush2.msra.mxu0 0.0
    %3944 = vmatprep.subr.mxu0 0.0
    %3945 = vmatpush2.msra.mxu0 0.0
    %3946 = vmatprep.subr.mxu0 0.0
    %3947 = vmatpush2.msra.mxu0 0.0
    %3948 = vmatprep.subr.mxu0 0.0
    %3949 = vmatpush2.msra.mxu0 0.0
    %3950 = vmatprep.subr.mxu0 0.0
    %3951 = vmatpush2.msra.mxu0 0.0
    %3952 = vmatprep.subr.mxu0 0.0
    %3953 = vmatpush2.msra.mxu0 0.0
    %3954 = vmatprep.subr.mxu0 0.0
    %3955 = vmatpush2.msra.mxu0 0.0
    %3956 = vmatprep.subr.mxu0 0.0
    %3957 = vmatpush2.msra.mxu0 0.0
    %3958 = vmatprep.subr.mxu0 0.0
    %3959 = vmatpush2.msra.mxu0 0.0
    %3960 = vmatprep.subr.mxu0 0.0
    %3961 = vmatpush2.msra.mxu0 0.0
    %3962 = vmatprep.subr.mxu0 0.0
    %3963 = vmatpush2.msra.mxu0 0.0
    %3964 = vmatprep.subr.mxu0 0.0
    %3965 = vmatpush2.msra.mxu0 0.0
    %3966 = vmatprep.subr.mxu0 0.0
    %3967 = vmatpush2.msra.mxu0 0.0
    %3968 = vmatprep.mubr.f32.mxu0 0.0
    %3969 = vmatmul.mubr.f32.gmra.mxu0 %v3874
    %v3970 = vpop.f32.mrf.mxu0
    %v3971 = vadd.f32 0.0, %v3970
    %v3972 = vpop.f32.mrf.mxu0
    %3973 = vmatprep.mubr.f32.mxu0 0.0
    %3974 = vmatmul.mubr.f32.gmra.mxu0 %v3875
    %v3975 = vpop.f32.mrf.mxu0
    %v3976 = vadd.f32 0.0, %v3975
    %v3977 = vpop.f32.mrf.mxu0
    %3978 = vmatprep.mubr.f32.mxu0 0.0
    %3979 = vmatmul.mubr.f32.gmra.mxu0 %v3876
    %v3980 = vpop.f32.mrf.mxu0
    %v3981 = vadd.f32 0.0, %v3980
    %v3982 = vpop.f32.mrf.mxu0
    %3983 = vmatprep.mubr.f32.mxu0 0.0
    %3984 = vmatmul.mubr.f32.gmra.mxu0 %v3877
    %v3985 = vpop.f32.mrf.mxu0
    %v3986 = vadd.f32 0.0, %v3985
    %v3987 = vpop.f32.mrf.mxu0
    %3988 = vmatprep.mubr.f32.mxu0 0.0
    %3989 = vmatmul.mubr.f32.gmra.mxu0 %v3878
    %v3990 = vpop.f32.mrf.mxu0
    %v3991 = vadd.f32 0.0, %v3990
    %v3992 = vpop.f32.mrf.mxu0
    %3993 = vmatprep.mubr.f32.mxu0 0.0
    %3994 = vmatmul.mubr.f32.gmra.mxu0 %v3879
    %v3995 = vpop.f32.mrf.mxu0
    %v3996 = vadd.f32 0.0, %v3995
    %v3997 = vpop.f32.mrf.mxu0
    %3998 = vmatprep.mubr.f32.mxu0 0.0
    %3999 = vmatmul.mubr.f32.gmra.mxu0 %v3880
    %v4000 = vpop.f32.mrf.mxu0
    %v4001 = vadd.f32 0.0, %v4000
    %v4002 = vpop.f32.mrf.mxu0
    %4003 = vmatprep.mubr.f32.mxu0 0.0
    %4004 = vmatmul.mubr.f32.gmra.mxu0 %v3881
    %v4005 = vpop.f32.mrf.mxu0
    %v4006 = vadd.f32 0.0, %v4005
    %v4007 = vpop.f32.mrf.mxu0
    %4008 = vmatprep.mubr.f32.mxu0 0.0
    %4009 = vmatmul.mubr.f32.gmra.mxu0 %v3882
    %v4010 = vpop.f32.mrf.mxu0
    %v4011 = vadd.f32 0.0, %v4010
    %v4012 = vpop.f32.mrf.mxu0
    %4013 = vmatprep.mubr.f32.mxu0 0.0
    %4014 = vmatmul.mubr.f32.gmra.mxu0 %v3883
    %v4015 = vpop.f32.mrf.mxu0
    %v4016 = vadd.f32 0.0, %v4015
    %v4017 = vpop.f32.mrf.mxu0
    %4018 = vmatprep.mubr.f32.mxu0 0.0
    %4019 = vmatmul.mubr.f32.gmra.mxu0 %v3884
    %v4020 = vpop.f32.mrf.mxu0
    %v4021 = vadd.f32 0.0, %v4020
    %v4022 = vpop.f32.mrf.mxu0
    %4023 = vmatprep.mubr.f32.mxu0 0.0
    %4024 = vmatmul.mubr.f32.gmra.mxu0 %v3885
    %v4025 = vpop.f32.mrf.mxu0
    %v4026 = vadd.f32 0.0, %v4025
    %v4027 = vpop.f32.mrf.mxu0
    %4028 = vmatprep.mubr.f32.mxu0 0.0
    %4029 = vmatmul.mubr.f32.gmra.mxu0 %v3886
    %v4030 = vpop.f32.mrf.mxu0
    %v4031 = vadd.f32 0.0, %v4030
    %v4032 = vpop.f32.mrf.mxu0
    %4033 = vdwg.mxu0
    %4034 = vmatprep.subr.mxu0 0.0
    %4035 = vmatpush1.msra.mxu0 %v3873
    %4036 = vmatprep.subr.mxu0 0.0
    %4037 = vmatpush1.msra.mxu0 %v3872
    %4038 = vmatprep.subr.mxu0 0.0
    %4039 = vmatpush1.msra.mxu0 %v3871
    %4040 = vmatprep.subr.mxu0 0.0
    %4041 = vmatpush1.msra.mxu0 %v3870
    %4042 = vmatprep.subr.mxu0 0.0
    %4043 = vmatpush1.msra.mxu0 %v3869
    %4044 = vmatprep.subr.mxu0 0.0
    %4045 = vmatpush1.msra.mxu0 %v3868
    %4046 = vmatprep.subr.mxu0 0.0
    %4047 = vmatpush1.msra.mxu0 %v3867
    %4048 = vmatprep.subr.mxu0 0.0
    %4049 = vmatpush1.msra.mxu0 %v3866
    %4050 = vmatprep.subr.mxu0 0.0
    %4051 = vmatpush1.msra.mxu0 %v3865
    %4052 = vmatprep.subr.mxu0 0.0
    %4053 = vmatpush1.msra.mxu0 %v3864
    %4054 = vmatprep.subr.mxu0 0.0
    %4055 = vmatpush1.msra.mxu0 %v3863
    %4056 = vmatprep.subr.mxu0 0.0
    %4057 = vmatpush1.msra.mxu0 %v3862
    %4058 = vmatprep.subr.mxu0 0.0
    %4059 = vmatpush1.msra.mxu0 %v3861
    %4060 = vmatprep.subr.mxu0 0.0
    %4061 = vmatpush1.msra.mxu0 %v3860
    %4062 = vmatprep.subr.mxu0 0.0
    %4063 = vmatpush1.msra.mxu0 %v3859
    %4064 = vmatprep.subr.mxu0 0.0
    %4065 = vmatpush1.msra.mxu0 %v3858
    %4066 = vmatprep.subr.mxu0 0.0
    %4067 = vmatpush2.msra.mxu0 0.0
    %4068 = vmatprep.subr.mxu0 0.0
    %4069 = vmatpush2.msra.mxu0 0.0
    %4070 = vmatprep.subr.mxu0 0.0
    %4071 = vmatpush2.msra.mxu0 0.0
    %4072 = vmatprep.subr.mxu0 0.0
    %4073 = vmatpush2.msra.mxu0 0.0
    %4074 = vmatprep.subr.mxu0 0.0
    %4075 = vmatpush2.msra.mxu0 0.0
    %4076 = vmatprep.subr.mxu0 0.0
    %4077 = vmatpush2.msra.mxu0 0.0
    %4078 = vmatprep.subr.mxu0 0.0
    %4079 = vmatpush2.msra.mxu0 0.0
    %4080 = vmatprep.subr.mxu0 0.0
    %4081 = vmatpush2.msra.mxu0 0.0
    %4082 = vmatprep.subr.mxu0 0.0
    %4083 = vmatpush2.msra.mxu0 0.0
    %4084 = vmatprep.subr.mxu0 0.0
    %4085 = vmatpush2.msra.mxu0 0.0
    %4086 = vmatprep.subr.mxu0 0.0
    %4087 = vmatpush2.msra.mxu0 0.0
    %4088 = vmatprep.subr.mxu0 0.0
    %4089 = vmatpush2.msra.mxu0 0.0
    %4090 = vmatprep.subr.mxu0 0.0
    %4091 = vmatpush2.msra.mxu0 0.0
    %4092 = vmatprep.subr.mxu0 0.0
    %4093 = vmatpush2.msra.mxu0 0.0
    %4094 = vmatprep.subr.mxu0 0.0
    %4095 = vmatpush2.msra.mxu0 0.0
    %4096 = vmatprep.subr.mxu0 0.0
    %4097 = vmatpush2.msra.mxu0 0.0
    %4098 = vmatprep.mubr.f32.mxu0 0.0
    %4099 = vmatmul.mubr.f32.gmra.mxu0 %v3845
    %v4100 = vpop.f32.mrf.mxu0
    %v4101 = vadd.f32 %v3971, %v4100
    %v4102 = vpop.f32.mrf.mxu0
    %4103 = vmatprep.mubr.f32.mxu0 0.0
    %4104 = vmatmul.mubr.f32.gmra.mxu0 %v3846
    %v4105 = vpop.f32.mrf.mxu0
    %v4106 = vadd.f32 %v3976, %v4105
    %v4107 = vpop.f32.mrf.mxu0
    %4108 = vmatprep.mubr.f32.mxu0 0.0
    %4109 = vmatmul.mubr.f32.gmra.mxu0 %v3847
    %v4110 = vpop.f32.mrf.mxu0
    %v4111 = vadd.f32 %v3981, %v4110
    %v4112 = vpop.f32.mrf.mxu0
    %4113 = vmatprep.mubr.f32.mxu0 0.0
    %4114 = vmatmul.mubr.f32.gmra.mxu0 %v3848
    %v4115 = vpop.f32.mrf.mxu0
    %v4116 = vadd.f32 %v3986, %v4115
    %v4117 = vpop.f32.mrf.mxu0
    %4118 = vmatprep.mubr.f32.mxu0 0.0
    %4119 = vmatmul.mubr.f32.gmra.mxu0 %v3849
    %v4120 = vpop.f32.mrf.mxu0
    %v4121 = vadd.f32 %v3991, %v4120
    %v4122 = vpop.f32.mrf.mxu0
    %4123 = vmatprep.mubr.f32.mxu0 0.0
    %4124 = vmatmul.mubr.f32.gmra.mxu0 %v3850
    %v4125 = vpop.f32.mrf.mxu0
    %v4126 = vadd.f32 %v3996, %v4125
    %v4127 = vpop.f32.mrf.mxu0
    %4128 = vmatprep.mubr.f32.mxu0 0.0
    %4129 = vmatmul.mubr.f32.gmra.mxu0 %v3851
    %v4130 = vpop.f32.mrf.mxu0
    %v4131 = vadd.f32 %v4001, %v4130
    %v4132 = vpop.f32.mrf.mxu0
    %4133 = vmatprep.mubr.f32.mxu0 0.0
    %4134 = vmatmul.mubr.f32.gmra.mxu0 %v3852
    %v4135 = vpop.f32.mrf.mxu0
    %v4136 = vadd.f32 %v4006, %v4135
    %v4137 = vpop.f32.mrf.mxu0
    %4138 = vmatprep.mubr.f32.mxu0 0.0
    %4139 = vmatmul.mubr.f32.gmra.mxu0 %v3853
    %v4140 = vpop.f32.mrf.mxu0
    %v4141 = vadd.f32 %v4011, %v4140
    %v4142 = vpop.f32.mrf.mxu0
    %4143 = vmatprep.mubr.f32.mxu0 0.0
    %4144 = vmatmul.mubr.f32.gmra.mxu0 %v3854
    %v4145 = vpop.f32.mrf.mxu0
    %v4146 = vadd.f32 %v4016, %v4145
    %v4147 = vpop.f32.mrf.mxu0
    %4148 = vmatprep.mubr.f32.mxu0 0.0
    %4149 = vmatmul.mubr.f32.gmra.mxu0 %v3855
    %v4150 = vpop.f32.mrf.mxu0
    %v4151 = vadd.f32 %v4021, %v4150
    %v4152 = vpop.f32.mrf.mxu0
    %4153 = vmatprep.mubr.f32.mxu0 0.0
    %4154 = vmatmul.mubr.f32.gmra.mxu0 %v3856
    %v4155 = vpop.f32.mrf.mxu0
    %v4156 = vadd.f32 %v4026, %v4155
    %v4157 = vpop.f32.mrf.mxu0
    %4158 = vmatprep.mubr.f32.mxu0 0.0
    %4159 = vmatmul.mubr.f32.gmra.mxu0 %v3857
    %v4160 = vpop.f32.mrf.mxu0
    %v4161 = vadd.f32 %v4031, %v4160
    %v4162 = vpop.f32.mrf.mxu0
    %4163 = vdwg.mxu0
    %v4164 = vld [vmem:[#allocation3 + $0xb] sm:$0xff]
    %v4165 = vld [vmem:[#allocation3 + $0x13] sm:$0xff]
    %v4166 = vld [vmem:[#allocation3 + $0x1b] sm:$0xff]
    %v4167 = vld [vmem:[#allocation3 + $0x23] sm:$0xff]
    %v4168 = vld [vmem:[#allocation3 + $0x2b] sm:$0xff]
    %v4169 = vld [vmem:[#allocation3 + $0x33] sm:$0xff]
    %v4170 = vld [vmem:[#allocation3 + $0x3b] sm:$0xff]
    %v4171 = vld [vmem:[#allocation3 + $0x43] sm:$0xff]
    %v4172 = vld [vmem:[#allocation3 + $0x4b] sm:$0xff]
    %v4173 = vld [vmem:[#allocation3 + $0x53] sm:$0xff]
    %v4174 = vld [vmem:[#allocation3 + $0x5b] sm:$0xff]
    %v4175 = vld [vmem:[#allocation3 + $0x63] sm:$0xff]
    %v4176 = vld [vmem:[#allocation3 + $0x6b] sm:$0xff]
    %s4177 = scalar_lea.vmem [#allocation10], 256
    %v4178 = vld [vmem:[%s4177] sm:$0xff]
    %v4179 = vld [vmem:[%s4177 + $0x8] sm:$0xff]
    %v4180 = vld [vmem:[%s4177 + $0x10] sm:$0xff]
    %v4181 = vld [vmem:[%s4177 + $0x18] sm:$0xff]
    %v4182 = vld [vmem:[%s4177 + $0x20] sm:$0xff]
    %v4183 = vld [vmem:[%s4177 + $0x28] sm:$0xff]
    %v4184 = vld [vmem:[%s4177 + $0x30] sm:$0xff]
    %v4185 = vld [vmem:[%s4177 + $0x38] sm:$0xff]
    %v4186 = vld [vmem:[%s4177 + $0x40] sm:$0xff]
    %v4187 = vld [vmem:[%s4177 + $0x48] sm:$0xff]
    %v4188 = vld [vmem:[%s4177 + $0x50] sm:$0xff]
    %v4189 = vld [vmem:[%s4177 + $0x58] sm:$0xff]
    %v4190 = vld [vmem:[%s4177 + $0x60] sm:$0xff]
    %v4191 = vld [vmem:[%s4177 + $0x68] sm:$0xff]
    %v4192 = vld [vmem:[%s4177 + $0x70] sm:$0xff]
    %v4193 = vld [vmem:[%s4177 + $0x78] sm:$0xff]
    %4194 = vmatprep.subr.mxu0 0.0
    %4195 = vmatpush1.msra.mxu0 %v4193
    %4196 = vmatprep.subr.mxu0 0.0
    %4197 = vmatpush1.msra.mxu0 %v4192
    %4198 = vmatprep.subr.mxu0 0.0
    %4199 = vmatpush1.msra.mxu0 %v4191
    %4200 = vmatprep.subr.mxu0 0.0
    %4201 = vmatpush1.msra.mxu0 %v4190
    %4202 = vmatprep.subr.mxu0 0.0
    %4203 = vmatpush1.msra.mxu0 %v4189
    %4204 = vmatprep.subr.mxu0 0.0
    %4205 = vmatpush1.msra.mxu0 %v4188
    %4206 = vmatprep.subr.mxu0 0.0
    %4207 = vmatpush1.msra.mxu0 %v4187
    %4208 = vmatprep.subr.mxu0 0.0
    %4209 = vmatpush1.msra.mxu0 %v4186
    %4210 = vmatprep.subr.mxu0 0.0
    %4211 = vmatpush1.msra.mxu0 %v4185
    %4212 = vmatprep.subr.mxu0 0.0
    %4213 = vmatpush1.msra.mxu0 %v4184
    %4214 = vmatprep.subr.mxu0 0.0
    %4215 = vmatpush1.msra.mxu0 %v4183
    %4216 = vmatprep.subr.mxu0 0.0
    %4217 = vmatpush1.msra.mxu0 %v4182
    %4218 = vmatprep.subr.mxu0 0.0
    %4219 = vmatpush1.msra.mxu0 %v4181
    %4220 = vmatprep.subr.mxu0 0.0
    %4221 = vmatpush1.msra.mxu0 %v4180
    %4222 = vmatprep.subr.mxu0 0.0
    %4223 = vmatpush1.msra.mxu0 %v4179
    %4224 = vmatprep.subr.mxu0 0.0
    %4225 = vmatpush1.msra.mxu0 %v4178
    %4226 = vmatprep.subr.mxu0 0.0
    %4227 = vmatpush2.msra.mxu0 0.0
    %4228 = vmatprep.subr.mxu0 0.0
    %4229 = vmatpush2.msra.mxu0 0.0
    %4230 = vmatprep.subr.mxu0 0.0
    %4231 = vmatpush2.msra.mxu0 0.0
    %4232 = vmatprep.subr.mxu0 0.0
    %4233 = vmatpush2.msra.mxu0 0.0
    %4234 = vmatprep.subr.mxu0 0.0
    %4235 = vmatpush2.msra.mxu0 0.0
    %4236 = vmatprep.subr.mxu0 0.0
    %4237 = vmatpush2.msra.mxu0 0.0
    %4238 = vmatprep.subr.mxu0 0.0
    %4239 = vmatpush2.msra.mxu0 0.0
    %4240 = vmatprep.subr.mxu0 0.0
    %4241 = vmatpush2.msra.mxu0 0.0
    %4242 = vmatprep.subr.mxu0 0.0
    %4243 = vmatpush2.msra.mxu0 0.0
    %4244 = vmatprep.subr.mxu0 0.0
    %4245 = vmatpush2.msra.mxu0 0.0
    %4246 = vmatprep.subr.mxu0 0.0
    %4247 = vmatpush2.msra.mxu0 0.0
    %4248 = vmatprep.subr.mxu0 0.0
    %4249 = vmatpush2.msra.mxu0 0.0
    %4250 = vmatprep.subr.mxu0 0.0
    %4251 = vmatpush2.msra.mxu0 0.0
    %4252 = vmatprep.subr.mxu0 0.0
    %4253 = vmatpush2.msra.mxu0 0.0
    %4254 = vmatprep.subr.mxu0 0.0
    %4255 = vmatpush2.msra.mxu0 0.0
    %4256 = vmatprep.subr.mxu0 0.0
    %4257 = vmatpush2.msra.mxu0 0.0
    %4258 = vmatprep.mubr.f32.mxu0 0.0
    %4259 = vmatmul.mubr.f32.gmra.mxu0 %v4164
    %v4260 = vpop.f32.mrf.mxu0
    %v4261 = vadd.f32 0.0, %v4260
    %v4262 = vpop.f32.mrf.mxu0
    %4263 = vmatprep.mubr.f32.mxu0 0.0
    %4264 = vmatmul.mubr.f32.gmra.mxu0 %v4165
    %v4265 = vpop.f32.mrf.mxu0
    %v4266 = vadd.f32 0.0, %v4265
    %v4267 = vpop.f32.mrf.mxu0
    %4268 = vmatprep.mubr.f32.mxu0 0.0
    %4269 = vmatmul.mubr.f32.gmra.mxu0 %v4166
    %v4270 = vpop.f32.mrf.mxu0
    %v4271 = vadd.f32 0.0, %v4270
    %v4272 = vpop.f32.mrf.mxu0
    %4273 = vmatprep.mubr.f32.mxu0 0.0
    %4274 = vmatmul.mubr.f32.gmra.mxu0 %v4167
    %v4275 = vpop.f32.mrf.mxu0
    %v4276 = vadd.f32 0.0, %v4275
    %v4277 = vpop.f32.mrf.mxu0
    %4278 = vmatprep.mubr.f32.mxu0 0.0
    %4279 = vmatmul.mubr.f32.gmra.mxu0 %v4168
    %v4280 = vpop.f32.mrf.mxu0
    %v4281 = vadd.f32 0.0, %v4280
    %v4282 = vpop.f32.mrf.mxu0
    %4283 = vmatprep.mubr.f32.mxu0 0.0
    %4284 = vmatmul.mubr.f32.gmra.mxu0 %v4169
    %v4285 = vpop.f32.mrf.mxu0
    %v4286 = vadd.f32 0.0, %v4285
    %v4287 = vpop.f32.mrf.mxu0
    %4288 = vmatprep.mubr.f32.mxu0 0.0
    %4289 = vmatmul.mubr.f32.gmra.mxu0 %v4170
    %v4290 = vpop.f32.mrf.mxu0
    %v4291 = vadd.f32 0.0, %v4290
    %v4292 = vpop.f32.mrf.mxu0
    %4293 = vmatprep.mubr.f32.mxu0 0.0
    %4294 = vmatmul.mubr.f32.gmra.mxu0 %v4171
    %v4295 = vpop.f32.mrf.mxu0
    %v4296 = vadd.f32 0.0, %v4295
    %v4297 = vpop.f32.mrf.mxu0
    %4298 = vmatprep.mubr.f32.mxu0 0.0
    %4299 = vmatmul.mubr.f32.gmra.mxu0 %v4172
    %v4300 = vpop.f32.mrf.mxu0
    %v4301 = vadd.f32 0.0, %v4300
    %v4302 = vpop.f32.mrf.mxu0
    %4303 = vmatprep.mubr.f32.mxu0 0.0
    %4304 = vmatmul.mubr.f32.gmra.mxu0 %v4173
    %v4305 = vpop.f32.mrf.mxu0
    %v4306 = vadd.f32 0.0, %v4305
    %v4307 = vpop.f32.mrf.mxu0
    %4308 = vmatprep.mubr.f32.mxu0 0.0
    %4309 = vmatmul.mubr.f32.gmra.mxu0 %v4174
    %v4310 = vpop.f32.mrf.mxu0
    %v4311 = vadd.f32 0.0, %v4310
    %v4312 = vpop.f32.mrf.mxu0
    %4313 = vmatprep.mubr.f32.mxu0 0.0
    %4314 = vmatmul.mubr.f32.gmra.mxu0 %v4175
    %v4315 = vpop.f32.mrf.mxu0
    %v4316 = vadd.f32 0.0, %v4315
    %v4317 = vpop.f32.mrf.mxu0
    %4318 = vmatprep.mubr.f32.mxu0 0.0
    %4319 = vmatmul.mubr.f32.gmra.mxu0 %v4176
    %v4320 = vpop.f32.mrf.mxu0
    %v4321 = vadd.f32 0.0, %v4320
    %v4322 = vpop.f32.mrf.mxu0
    %4323 = vdwg.mxu0
    %v4324 = vadd.f32 %v4101, %v4261
    %v4325 = vadd.f32 %v4106, %v4266
    %v4326 = vadd.f32 %v4111, %v4271
    %v4327 = vadd.f32 %v4116, %v4276
    %v4328 = vadd.f32 %v4121, %v4281
    %v4329 = vadd.f32 %v4126, %v4286
    %v4330 = vadd.f32 %v4131, %v4291
    %v4331 = vadd.f32 %v4136, %v4296
    %v4332 = vadd.f32 %v4141, %v4301
    %v4333 = vadd.f32 %v4146, %v4306
    %v4334 = vadd.f32 %v4151, %v4311
    %v4335 = vadd.f32 %v4156, %v4316
    %v4336 = vadd.f32 %v4161, %v4321
    %v4337 = vld [vmem:[#allocation3 + $0x10] sm:$0xff]
    %v4338 = vld [vmem:[#allocation3 + $0x18] sm:$0xff]
    %v4339 = vld [vmem:[#allocation3 + $0x20] sm:$0xff]
    %v4340 = vld [vmem:[#allocation3 + $0x28] sm:$0xff]
    %v4341 = vld [vmem:[#allocation3 + $0x30] sm:$0xff]
    %v4342 = vld [vmem:[#allocation3 + $0x38] sm:$0xff]
    %v4343 = vld [vmem:[#allocation3 + $0x40] sm:$0xff]
    %v4344 = vld [vmem:[#allocation3 + $0x48] sm:$0xff]
    %v4345 = vld [vmem:[#allocation3 + $0x50] sm:$0xff]
    %v4346 = vld [vmem:[#allocation3 + $0x58] sm:$0xff]
    %v4347 = vld [vmem:[#allocation3 + $0x60] sm:$0xff]
    %v4348 = vld [vmem:[#allocation3 + $0x68] sm:$0xff]
    %v4349 = vld [vmem:[#allocation3 + $0x70] sm:$0xff]
    %s4350 = scalar_lea.vmem [#allocation10], 384
    %v4351 = vld [vmem:[%s4350] sm:$0xff]
    %v4352 = vld [vmem:[%s4350 + $0x8] sm:$0xff]
    %v4353 = vld [vmem:[%s4350 + $0x10] sm:$0xff]
    %v4354 = vld [vmem:[%s4350 + $0x18] sm:$0xff]
    %v4355 = vld [vmem:[%s4350 + $0x20] sm:$0xff]
    %v4356 = vld [vmem:[%s4350 + $0x28] sm:$0xff]
    %v4357 = vld [vmem:[%s4350 + $0x30] sm:$0xff]
    %v4358 = vld [vmem:[%s4350 + $0x38] sm:$0xff]
    %v4359 = vld [vmem:[%s4350 + $0x40] sm:$0xff]
    %v4360 = vld [vmem:[%s4350 + $0x48] sm:$0xff]
    %v4361 = vld [vmem:[%s4350 + $0x50] sm:$0xff]
    %v4362 = vld [vmem:[%s4350 + $0x58] sm:$0xff]
    %v4363 = vld [vmem:[%s4350 + $0x60] sm:$0xff]
    %v4364 = vld [vmem:[%s4350 + $0x68] sm:$0xff]
    %v4365 = vld [vmem:[%s4350 + $0x70] sm:$0xff]
    %v4366 = vld [vmem:[%s4350 + $0x78] sm:$0xff]
    %4367 = vmatprep.subr.mxu0 0.0
    %4368 = vmatpush1.msra.mxu0 %v4366
    %4369 = vmatprep.subr.mxu0 0.0
    %4370 = vmatpush1.msra.mxu0 %v4365
    %4371 = vmatprep.subr.mxu0 0.0
    %4372 = vmatpush1.msra.mxu0 %v4364
    %4373 = vmatprep.subr.mxu0 0.0
    %4374 = vmatpush1.msra.mxu0 %v4363
    %4375 = vmatprep.subr.mxu0 0.0
    %4376 = vmatpush1.msra.mxu0 %v4362
    %4377 = vmatprep.subr.mxu0 0.0
    %4378 = vmatpush1.msra.mxu0 %v4361
    %4379 = vmatprep.subr.mxu0 0.0
    %4380 = vmatpush1.msra.mxu0 %v4360
    %4381 = vmatprep.subr.mxu0 0.0
    %4382 = vmatpush1.msra.mxu0 %v4359
    %4383 = vmatprep.subr.mxu0 0.0
    %4384 = vmatpush1.msra.mxu0 %v4358
    %4385 = vmatprep.subr.mxu0 0.0
    %4386 = vmatpush1.msra.mxu0 %v4357
    %4387 = vmatprep.subr.mxu0 0.0
    %4388 = vmatpush1.msra.mxu0 %v4356
    %4389 = vmatprep.subr.mxu0 0.0
    %4390 = vmatpush1.msra.mxu0 %v4355
    %4391 = vmatprep.subr.mxu0 0.0
    %4392 = vmatpush1.msra.mxu0 %v4354
    %4393 = vmatprep.subr.mxu0 0.0
    %4394 = vmatpush1.msra.mxu0 %v4353
    %4395 = vmatprep.subr.mxu0 0.0
    %4396 = vmatpush1.msra.mxu0 %v4352
    %4397 = vmatprep.subr.mxu0 0.0
    %4398 = vmatpush1.msra.mxu0 %v4351
    %4399 = vmatprep.subr.mxu0 0.0
    %4400 = vmatpush2.msra.mxu0 0.0
    %4401 = vmatprep.subr.mxu0 0.0
    %4402 = vmatpush2.msra.mxu0 0.0
    %4403 = vmatprep.subr.mxu0 0.0
    %4404 = vmatpush2.msra.mxu0 0.0
    %4405 = vmatprep.subr.mxu0 0.0
    %4406 = vmatpush2.msra.mxu0 0.0
    %4407 = vmatprep.subr.mxu0 0.0
    %4408 = vmatpush2.msra.mxu0 0.0
    %4409 = vmatprep.subr.mxu0 0.0
    %4410 = vmatpush2.msra.mxu0 0.0
    %4411 = vmatprep.subr.mxu0 0.0
    %4412 = vmatpush2.msra.mxu0 0.0
    %4413 = vmatprep.subr.mxu0 0.0
    %4414 = vmatpush2.msra.mxu0 0.0
    %4415 = vmatprep.subr.mxu0 0.0
    %4416 = vmatpush2.msra.mxu0 0.0
    %4417 = vmatprep.subr.mxu0 0.0
    %4418 = vmatpush2.msra.mxu0 0.0
    %4419 = vmatprep.subr.mxu0 0.0
    %4420 = vmatpush2.msra.mxu0 0.0
    %4421 = vmatprep.subr.mxu0 0.0
    %4422 = vmatpush2.msra.mxu0 0.0
    %4423 = vmatprep.subr.mxu0 0.0
    %4424 = vmatpush2.msra.mxu0 0.0
    %4425 = vmatprep.subr.mxu0 0.0
    %4426 = vmatpush2.msra.mxu0 0.0
    %4427 = vmatprep.subr.mxu0 0.0
    %4428 = vmatpush2.msra.mxu0 0.0
    %4429 = vmatprep.subr.mxu0 0.0
    %4430 = vmatpush2.msra.mxu0 0.0
    %4431 = vmatprep.mubr.f32.mxu0 0.0
    %4432 = vmatmul.mubr.f32.gmra.mxu0 %v4337
    %v4433 = vpop.f32.mrf.mxu0
    %v4434 = vadd.f32 0.0, %v4433
    %v4435 = vpop.f32.mrf.mxu0
    %4436 = vmatprep.mubr.f32.mxu0 0.0
    %4437 = vmatmul.mubr.f32.gmra.mxu0 %v4338
    %v4438 = vpop.f32.mrf.mxu0
    %v4439 = vadd.f32 0.0, %v4438
    %v4440 = vpop.f32.mrf.mxu0
    %4441 = vmatprep.mubr.f32.mxu0 0.0
    %4442 = vmatmul.mubr.f32.gmra.mxu0 %v4339
    %v4443 = vpop.f32.mrf.mxu0
    %v4444 = vadd.f32 0.0, %v4443
    %v4445 = vpop.f32.mrf.mxu0
    %4446 = vmatprep.mubr.f32.mxu0 0.0
    %4447 = vmatmul.mubr.f32.gmra.mxu0 %v4340
    %v4448 = vpop.f32.mrf.mxu0
    %v4449 = vadd.f32 0.0, %v4448
    %v4450 = vpop.f32.mrf.mxu0
    %4451 = vmatprep.mubr.f32.mxu0 0.0
    %4452 = vmatmul.mubr.f32.gmra.mxu0 %v4341
    %v4453 = vpop.f32.mrf.mxu0
    %v4454 = vadd.f32 0.0, %v4453
    %v4455 = vpop.f32.mrf.mxu0
    %4456 = vmatprep.mubr.f32.mxu0 0.0
    %4457 = vmatmul.mubr.f32.gmra.mxu0 %v4342
    %v4458 = vpop.f32.mrf.mxu0
    %v4459 = vadd.f32 0.0, %v4458
    %v4460 = vpop.f32.mrf.mxu0
    %4461 = vmatprep.mubr.f32.mxu0 0.0
    %4462 = vmatmul.mubr.f32.gmra.mxu0 %v4343
    %v4463 = vpop.f32.mrf.mxu0
    %v4464 = vadd.f32 0.0, %v4463
    %v4465 = vpop.f32.mrf.mxu0
    %4466 = vmatprep.mubr.f32.mxu0 0.0
    %4467 = vmatmul.mubr.f32.gmra.mxu0 %v4344
    %v4468 = vpop.f32.mrf.mxu0
    %v4469 = vadd.f32 0.0, %v4468
    %v4470 = vpop.f32.mrf.mxu0
    %4471 = vmatprep.mubr.f32.mxu0 0.0
    %4472 = vmatmul.mubr.f32.gmra.mxu0 %v4345
    %v4473 = vpop.f32.mrf.mxu0
    %v4474 = vadd.f32 0.0, %v4473
    %v4475 = vpop.f32.mrf.mxu0
    %4476 = vmatprep.mubr.f32.mxu0 0.0
    %4477 = vmatmul.mubr.f32.gmra.mxu0 %v4346
    %v4478 = vpop.f32.mrf.mxu0
    %v4479 = vadd.f32 0.0, %v4478
    %v4480 = vpop.f32.mrf.mxu0
    %4481 = vmatprep.mubr.f32.mxu0 0.0
    %4482 = vmatmul.mubr.f32.gmra.mxu0 %v4347
    %v4483 = vpop.f32.mrf.mxu0
    %v4484 = vadd.f32 0.0, %v4483
    %v4485 = vpop.f32.mrf.mxu0
    %4486 = vmatprep.mubr.f32.mxu0 0.0
    %4487 = vmatmul.mubr.f32.gmra.mxu0 %v4348
    %v4488 = vpop.f32.mrf.mxu0
    %v4489 = vadd.f32 0.0, %v4488
    %v4490 = vpop.f32.mrf.mxu0
    %4491 = vmatprep.mubr.f32.mxu0 0.0
    %4492 = vmatmul.mubr.f32.gmra.mxu0 %v4349
    %v4493 = vpop.f32.mrf.mxu0
    %v4494 = vadd.f32 0.0, %v4493
    %v4495 = vpop.f32.mrf.mxu0
    %4496 = vdwg.mxu0
    %v4497 = vadd.f32 %v4324, %v4434
    %v4498 = vadd.f32 %v4325, %v4439
    %v4499 = vadd.f32 %v4326, %v4444
    %v4500 = vadd.f32 %v4327, %v4449
    %v4501 = vadd.f32 %v4328, %v4454
    %v4502 = vadd.f32 %v4329, %v4459
    %v4503 = vadd.f32 %v4330, %v4464
    %v4504 = vadd.f32 %v4331, %v4469
    %v4505 = vadd.f32 %v4332, %v4474
    %v4506 = vadd.f32 %v4333, %v4479
    %v4507 = vadd.f32 %v4334, %v4484
    %v4508 = vadd.f32 %v4335, %v4489
    %v4509 = vadd.f32 %v4336, %v4494
    %v4510 = vld [vmem:[#allocation3 + $0x15] sm:$0xff]
    %v4511 = vld [vmem:[#allocation3 + $0x1d] sm:$0xff]
    %v4512 = vld [vmem:[#allocation3 + $0x25] sm:$0xff]
    %v4513 = vld [vmem:[#allocation3 + $0x2d] sm:$0xff]
    %v4514 = vld [vmem:[#allocation3 + $0x35] sm:$0xff]
    %v4515 = vld [vmem:[#allocation3 + $0x3d] sm:$0xff]
    %v4516 = vld [vmem:[#allocation3 + $0x45] sm:$0xff]
    %v4517 = vld [vmem:[#allocation3 + $0x4d] sm:$0xff]
    %v4518 = vld [vmem:[#allocation3 + $0x55] sm:$0xff]
    %v4519 = vld [vmem:[#allocation3 + $0x5d] sm:$0xff]
    %v4520 = vld [vmem:[#allocation3 + $0x65] sm:$0xff]
    %v4521 = vld [vmem:[#allocation3 + $0x6d] sm:$0xff]
    %v4522 = vld [vmem:[#allocation3 + $0x75] sm:$0xff]
    %s4523 = scalar_lea.vmem [#allocation10], 512
    %v4524 = vld [vmem:[%s4523] sm:$0xff]
    %v4525 = vld [vmem:[%s4523 + $0x8] sm:$0xff]
    %v4526 = vld [vmem:[%s4523 + $0x10] sm:$0xff]
    %v4527 = vld [vmem:[%s4523 + $0x18] sm:$0xff]
    %v4528 = vld [vmem:[%s4523 + $0x20] sm:$0xff]
    %v4529 = vld [vmem:[%s4523 + $0x28] sm:$0xff]
    %v4530 = vld [vmem:[%s4523 + $0x30] sm:$0xff]
    %v4531 = vld [vmem:[%s4523 + $0x38] sm:$0xff]
    %v4532 = vld [vmem:[%s4523 + $0x40] sm:$0xff]
    %v4533 = vld [vmem:[%s4523 + $0x48] sm:$0xff]
    %v4534 = vld [vmem:[%s4523 + $0x50] sm:$0xff]
    %v4535 = vld [vmem:[%s4523 + $0x58] sm:$0xff]
    %v4536 = vld [vmem:[%s4523 + $0x60] sm:$0xff]
    %v4537 = vld [vmem:[%s4523 + $0x68] sm:$0xff]
    %v4538 = vld [vmem:[%s4523 + $0x70] sm:$0xff]
    %v4539 = vld [vmem:[%s4523 + $0x78] sm:$0xff]
    %4540 = vmatprep.subr.mxu0 0.0
    %4541 = vmatpush1.msra.mxu0 %v4539
    %4542 = vmatprep.subr.mxu0 0.0
    %4543 = vmatpush1.msra.mxu0 %v4538
    %4544 = vmatprep.subr.mxu0 0.0
    %4545 = vmatpush1.msra.mxu0 %v4537
    %4546 = vmatprep.subr.mxu0 0.0
    %4547 = vmatpush1.msra.mxu0 %v4536
    %4548 = vmatprep.subr.mxu0 0.0
    %4549 = vmatpush1.msra.mxu0 %v4535
    %4550 = vmatprep.subr.mxu0 0.0
    %4551 = vmatpush1.msra.mxu0 %v4534
    %4552 = vmatprep.subr.mxu0 0.0
    %4553 = vmatpush1.msra.mxu0 %v4533
    %4554 = vmatprep.subr.mxu0 0.0
    %4555 = vmatpush1.msra.mxu0 %v4532
    %4556 = vmatprep.subr.mxu0 0.0
    %4557 = vmatpush1.msra.mxu0 %v4531
    %4558 = vmatprep.subr.mxu0 0.0
    %4559 = vmatpush1.msra.mxu0 %v4530
    %4560 = vmatprep.subr.mxu0 0.0
    %4561 = vmatpush1.msra.mxu0 %v4529
    %4562 = vmatprep.subr.mxu0 0.0
    %4563 = vmatpush1.msra.mxu0 %v4528
    %4564 = vmatprep.subr.mxu0 0.0
    %4565 = vmatpush1.msra.mxu0 %v4527
    %4566 = vmatprep.subr.mxu0 0.0
    %4567 = vmatpush1.msra.mxu0 %v4526
    %4568 = vmatprep.subr.mxu0 0.0
    %4569 = vmatpush1.msra.mxu0 %v4525
    %4570 = vmatprep.subr.mxu0 0.0
    %4571 = vmatpush1.msra.mxu0 %v4524
    %4572 = vmatprep.subr.mxu0 0.0
    %4573 = vmatpush2.msra.mxu0 0.0
    %4574 = vmatprep.subr.mxu0 0.0
    %4575 = vmatpush2.msra.mxu0 0.0
    %4576 = vmatprep.subr.mxu0 0.0
    %4577 = vmatpush2.msra.mxu0 0.0
    %4578 = vmatprep.subr.mxu0 0.0
    %4579 = vmatpush2.msra.mxu0 0.0
    %4580 = vmatprep.subr.mxu0 0.0
    %4581 = vmatpush2.msra.mxu0 0.0
    %4582 = vmatprep.subr.mxu0 0.0
    %4583 = vmatpush2.msra.mxu0 0.0
    %4584 = vmatprep.subr.mxu0 0.0
    %4585 = vmatpush2.msra.mxu0 0.0
    %4586 = vmatprep.subr.mxu0 0.0
    %4587 = vmatpush2.msra.mxu0 0.0
    %4588 = vmatprep.subr.mxu0 0.0
    %4589 = vmatpush2.msra.mxu0 0.0
    %4590 = vmatprep.subr.mxu0 0.0
    %4591 = vmatpush2.msra.mxu0 0.0
    %4592 = vmatprep.subr.mxu0 0.0
    %4593 = vmatpush2.msra.mxu0 0.0
    %4594 = vmatprep.subr.mxu0 0.0
    %4595 = vmatpush2.msra.mxu0 0.0
    %4596 = vmatprep.subr.mxu0 0.0
    %4597 = vmatpush2.msra.mxu0 0.0
    %4598 = vmatprep.subr.mxu0 0.0
    %4599 = vmatpush2.msra.mxu0 0.0
    %4600 = vmatprep.subr.mxu0 0.0
    %4601 = vmatpush2.msra.mxu0 0.0
    %4602 = vmatprep.subr.mxu0 0.0
    %4603 = vmatpush2.msra.mxu0 0.0
    %4604 = vmatprep.mubr.f32.mxu0 0.0
    %4605 = vmatmul.mubr.f32.gmra.mxu0 %v4510
    %v4606 = vpop.f32.mrf.mxu0
    %v4607 = vadd.f32 0.0, %v4606
    %v4608 = vpop.f32.mrf.mxu0
    %4609 = vmatprep.mubr.f32.mxu0 0.0
    %4610 = vmatmul.mubr.f32.gmra.mxu0 %v4511
    %v4611 = vpop.f32.mrf.mxu0
    %v4612 = vadd.f32 0.0, %v4611
    %v4613 = vpop.f32.mrf.mxu0
    %4614 = vmatprep.mubr.f32.mxu0 0.0
    %4615 = vmatmul.mubr.f32.gmra.mxu0 %v4512
    %v4616 = vpop.f32.mrf.mxu0
    %v4617 = vadd.f32 0.0, %v4616
    %v4618 = vpop.f32.mrf.mxu0
    %4619 = vmatprep.mubr.f32.mxu0 0.0
    %4620 = vmatmul.mubr.f32.gmra.mxu0 %v4513
    %v4621 = vpop.f32.mrf.mxu0
    %v4622 = vadd.f32 0.0, %v4621
    %v4623 = vpop.f32.mrf.mxu0
    %4624 = vmatprep.mubr.f32.mxu0 0.0
    %4625 = vmatmul.mubr.f32.gmra.mxu0 %v4514
    %v4626 = vpop.f32.mrf.mxu0
    %v4627 = vadd.f32 0.0, %v4626
    %v4628 = vpop.f32.mrf.mxu0
    %4629 = vmatprep.mubr.f32.mxu0 0.0
    %4630 = vmatmul.mubr.f32.gmra.mxu0 %v4515
    %v4631 = vpop.f32.mrf.mxu0
    %v4632 = vadd.f32 0.0, %v4631
    %v4633 = vpop.f32.mrf.mxu0
    %4634 = vmatprep.mubr.f32.mxu0 0.0
    %4635 = vmatmul.mubr.f32.gmra.mxu0 %v4516
    %v4636 = vpop.f32.mrf.mxu0
    %v4637 = vadd.f32 0.0, %v4636
    %v4638 = vpop.f32.mrf.mxu0
    %4639 = vmatprep.mubr.f32.mxu0 0.0
    %4640 = vmatmul.mubr.f32.gmra.mxu0 %v4517
    %v4641 = vpop.f32.mrf.mxu0
    %v4642 = vadd.f32 0.0, %v4641
    %v4643 = vpop.f32.mrf.mxu0
    %4644 = vmatprep.mubr.f32.mxu0 0.0
    %4645 = vmatmul.mubr.f32.gmra.mxu0 %v4518
    %v4646 = vpop.f32.mrf.mxu0
    %v4647 = vadd.f32 0.0, %v4646
    %v4648 = vpop.f32.mrf.mxu0
    %4649 = vmatprep.mubr.f32.mxu0 0.0
    %4650 = vmatmul.mubr.f32.gmra.mxu0 %v4519
    %v4651 = vpop.f32.mrf.mxu0
    %v4652 = vadd.f32 0.0, %v4651
    %v4653 = vpop.f32.mrf.mxu0
    %4654 = vmatprep.mubr.f32.mxu0 0.0
    %4655 = vmatmul.mubr.f32.gmra.mxu0 %v4520
    %v4656 = vpop.f32.mrf.mxu0
    %v4657 = vadd.f32 0.0, %v4656
    %v4658 = vpop.f32.mrf.mxu0
    %4659 = vmatprep.mubr.f32.mxu0 0.0
    %4660 = vmatmul.mubr.f32.gmra.mxu0 %v4521
    %v4661 = vpop.f32.mrf.mxu0
    %v4662 = vadd.f32 0.0, %v4661
    %v4663 = vpop.f32.mrf.mxu0
    %4664 = vmatprep.mubr.f32.mxu0 0.0
    %4665 = vmatmul.mubr.f32.gmra.mxu0 %v4522
    %v4666 = vpop.f32.mrf.mxu0
    %v4667 = vadd.f32 0.0, %v4666
    %v4668 = vpop.f32.mrf.mxu0
    %4669 = vdwg.mxu0
    %v4670 = vadd.f32 %v4497, %v4607
    %v4671 = vadd.f32 %v4498, %v4612
    %v4672 = vadd.f32 %v4499, %v4617
    %v4673 = vadd.f32 %v4500, %v4622
    %v4674 = vadd.f32 %v4501, %v4627
    %v4675 = vadd.f32 %v4502, %v4632
    %v4676 = vadd.f32 %v4503, %v4637
    %v4677 = vadd.f32 %v4504, %v4642
    %v4678 = vadd.f32 %v4505, %v4647
    %v4679 = vadd.f32 %v4506, %v4652
    %v4680 = vadd.f32 %v4507, %v4657
    %v4681 = vadd.f32 %v4508, %v4662
    %v4682 = vadd.f32 %v4509, %v4667
    %v4683 = vld [vmem:[#allocation3 + $0x1a] sm:$0xff]
    %v4684 = vld [vmem:[#allocation3 + $0x22] sm:$0xff]
    %v4685 = vld [vmem:[#allocation3 + $0x2a] sm:$0xff]
    %v4686 = vld [vmem:[#allocation3 + $0x32] sm:$0xff]
    %v4687 = vld [vmem:[#allocation3 + $0x3a] sm:$0xff]
    %v4688 = vld [vmem:[#allocation3 + $0x42] sm:$0xff]
    %v4689 = vld [vmem:[#allocation3 + $0x4a] sm:$0xff]
    %v4690 = vld [vmem:[#allocation3 + $0x52] sm:$0xff]
    %v4691 = vld [vmem:[#allocation3 + $0x5a] sm:$0xff]
    %v4692 = vld [vmem:[#allocation3 + $0x62] sm:$0xff]
    %v4693 = vld [vmem:[#allocation3 + $0x6a] sm:$0xff]
    %v4694 = vld [vmem:[#allocation3 + $0x72] sm:$0xff]
    %v4695 = vld [vmem:[#allocation3 + $0x7a] sm:$0xff]
    %s4696 = scalar_lea.vmem [#allocation10], 640
    %v4697 = vld [vmem:[%s4696] sm:$0xff]
    %v4698 = vld [vmem:[%s4696 + $0x8] sm:$0xff]
    %v4699 = vld [vmem:[%s4696 + $0x10] sm:$0xff]
    %v4700 = vld [vmem:[%s4696 + $0x18] sm:$0xff]
    %v4701 = vld [vmem:[%s4696 + $0x20] sm:$0xff]
    %v4702 = vld [vmem:[%s4696 + $0x28] sm:$0xff]
    %v4703 = vld [vmem:[%s4696 + $0x30] sm:$0xff]
    %v4704 = vld [vmem:[%s4696 + $0x38] sm:$0xff]
    %v4705 = vld [vmem:[%s4696 + $0x40] sm:$0xff]
    %v4706 = vld [vmem:[%s4696 + $0x48] sm:$0xff]
    %v4707 = vld [vmem:[%s4696 + $0x50] sm:$0xff]
    %v4708 = vld [vmem:[%s4696 + $0x58] sm:$0xff]
    %v4709 = vld [vmem:[%s4696 + $0x60] sm:$0xff]
    %v4710 = vld [vmem:[%s4696 + $0x68] sm:$0xff]
    %v4711 = vld [vmem:[%s4696 + $0x70] sm:$0xff]
    %v4712 = vld [vmem:[%s4696 + $0x78] sm:$0xff]
    %4713 = vmatprep.subr.mxu0 0.0
    %4714 = vmatpush1.msra.mxu0 %v4712
    %4715 = vmatprep.subr.mxu0 0.0
    %4716 = vmatpush1.msra.mxu0 %v4711
    %4717 = vmatprep.subr.mxu0 0.0
    %4718 = vmatpush1.msra.mxu0 %v4710
    %4719 = vmatprep.subr.mxu0 0.0
    %4720 = vmatpush1.msra.mxu0 %v4709
    %4721 = vmatprep.subr.mxu0 0.0
    %4722 = vmatpush1.msra.mxu0 %v4708
    %4723 = vmatprep.subr.mxu0 0.0
    %4724 = vmatpush1.msra.mxu0 %v4707
    %4725 = vmatprep.subr.mxu0 0.0
    %4726 = vmatpush1.msra.mxu0 %v4706
    %4727 = vmatprep.subr.mxu0 0.0
    %4728 = vmatpush1.msra.mxu0 %v4705
    %4729 = vmatprep.subr.mxu0 0.0
    %4730 = vmatpush1.msra.mxu0 %v4704
    %4731 = vmatprep.subr.mxu0 0.0
    %4732 = vmatpush1.msra.mxu0 %v4703
    %4733 = vmatprep.subr.mxu0 0.0
    %4734 = vmatpush1.msra.mxu0 %v4702
    %4735 = vmatprep.subr.mxu0 0.0
    %4736 = vmatpush1.msra.mxu0 %v4701
    %4737 = vmatprep.subr.mxu0 0.0
    %4738 = vmatpush1.msra.mxu0 %v4700
    %4739 = vmatprep.subr.mxu0 0.0
    %4740 = vmatpush1.msra.mxu0 %v4699
    %4741 = vmatprep.subr.mxu0 0.0
    %4742 = vmatpush1.msra.mxu0 %v4698
    %4743 = vmatprep.subr.mxu0 0.0
    %4744 = vmatpush1.msra.mxu0 %v4697
    %4745 = vmatprep.subr.mxu0 0.0
    %4746 = vmatpush2.msra.mxu0 0.0
    %4747 = vmatprep.subr.mxu0 0.0
    %4748 = vmatpush2.msra.mxu0 0.0
    %4749 = vmatprep.subr.mxu0 0.0
    %4750 = vmatpush2.msra.mxu0 0.0
    %4751 = vmatprep.subr.mxu0 0.0
    %4752 = vmatpush2.msra.mxu0 0.0
    %4753 = vmatprep.subr.mxu0 0.0
    %4754 = vmatpush2.msra.mxu0 0.0
    %4755 = vmatprep.subr.mxu0 0.0
    %4756 = vmatpush2.msra.mxu0 0.0
    %4757 = vmatprep.subr.mxu0 0.0
    %4758 = vmatpush2.msra.mxu0 0.0
    %4759 = vmatprep.subr.mxu0 0.0
    %4760 = vmatpush2.msra.mxu0 0.0
    %4761 = vmatprep.subr.mxu0 0.0
    %4762 = vmatpush2.msra.mxu0 0.0
    %4763 = vmatprep.subr.mxu0 0.0
    %4764 = vmatpush2.msra.mxu0 0.0
    %4765 = vmatprep.subr.mxu0 0.0
    %4766 = vmatpush2.msra.mxu0 0.0
    %4767 = vmatprep.subr.mxu0 0.0
    %4768 = vmatpush2.msra.mxu0 0.0
    %4769 = vmatprep.subr.mxu0 0.0
    %4770 = vmatpush2.msra.mxu0 0.0
    %4771 = vmatprep.subr.mxu0 0.0
    %4772 = vmatpush2.msra.mxu0 0.0
    %4773 = vmatprep.subr.mxu0 0.0
    %4774 = vmatpush2.msra.mxu0 0.0
    %4775 = vmatprep.subr.mxu0 0.0
    %4776 = vmatpush2.msra.mxu0 0.0
    %4777 = vmatprep.mubr.f32.mxu0 0.0
    %4778 = vmatmul.mubr.f32.gmra.mxu0 %v4683
    %v4779 = vpop.f32.mrf.mxu0
    %v4780 = vadd.f32 0.0, %v4779
    %v4781 = vpop.f32.mrf.mxu0
    %4782 = vmatprep.mubr.f32.mxu0 0.0
    %4783 = vmatmul.mubr.f32.gmra.mxu0 %v4684
    %v4784 = vpop.f32.mrf.mxu0
    %v4785 = vadd.f32 0.0, %v4784
    %v4786 = vpop.f32.mrf.mxu0
    %4787 = vmatprep.mubr.f32.mxu0 0.0
    %4788 = vmatmul.mubr.f32.gmra.mxu0 %v4685
    %v4789 = vpop.f32.mrf.mxu0
    %v4790 = vadd.f32 0.0, %v4789
    %v4791 = vpop.f32.mrf.mxu0
    %4792 = vmatprep.mubr.f32.mxu0 0.0
    %4793 = vmatmul.mubr.f32.gmra.mxu0 %v4686
    %v4794 = vpop.f32.mrf.mxu0
    %v4795 = vadd.f32 0.0, %v4794
    %v4796 = vpop.f32.mrf.mxu0
    %4797 = vmatprep.mubr.f32.mxu0 0.0
    %4798 = vmatmul.mubr.f32.gmra.mxu0 %v4687
    %v4799 = vpop.f32.mrf.mxu0
    %v4800 = vadd.f32 0.0, %v4799
    %v4801 = vpop.f32.mrf.mxu0
    %4802 = vmatprep.mubr.f32.mxu0 0.0
    %4803 = vmatmul.mubr.f32.gmra.mxu0 %v4688
    %v4804 = vpop.f32.mrf.mxu0
    %v4805 = vadd.f32 0.0, %v4804
    %v4806 = vpop.f32.mrf.mxu0
    %4807 = vmatprep.mubr.f32.mxu0 0.0
    %4808 = vmatmul.mubr.f32.gmra.mxu0 %v4689
    %v4809 = vpop.f32.mrf.mxu0
    %v4810 = vadd.f32 0.0, %v4809
    %v4811 = vpop.f32.mrf.mxu0
    %4812 = vmatprep.mubr.f32.mxu0 0.0
    %4813 = vmatmul.mubr.f32.gmra.mxu0 %v4690
    %v4814 = vpop.f32.mrf.mxu0
    %v4815 = vadd.f32 0.0, %v4814
    %v4816 = vpop.f32.mrf.mxu0
    %4817 = vmatprep.mubr.f32.mxu0 0.0
    %4818 = vmatmul.mubr.f32.gmra.mxu0 %v4691
    %v4819 = vpop.f32.mrf.mxu0
    %v4820 = vadd.f32 0.0, %v4819
    %v4821 = vpop.f32.mrf.mxu0
    %4822 = vmatprep.mubr.f32.mxu0 0.0
    %4823 = vmatmul.mubr.f32.gmra.mxu0 %v4692
    %v4824 = vpop.f32.mrf.mxu0
    %v4825 = vadd.f32 0.0, %v4824
    %v4826 = vpop.f32.mrf.mxu0
    %4827 = vmatprep.mubr.f32.mxu0 0.0
    %4828 = vmatmul.mubr.f32.gmra.mxu0 %v4693
    %v4829 = vpop.f32.mrf.mxu0
    %v4830 = vadd.f32 0.0, %v4829
    %v4831 = vpop.f32.mrf.mxu0
    %4832 = vmatprep.mubr.f32.mxu0 0.0
    %4833 = vmatmul.mubr.f32.gmra.mxu0 %v4694
    %v4834 = vpop.f32.mrf.mxu0
    %v4835 = vadd.f32 0.0, %v4834
    %v4836 = vpop.f32.mrf.mxu0
    %4837 = vmatprep.mubr.f32.mxu0 0.0
    %4838 = vmatmul.mubr.f32.gmra.mxu0 %v4695
    %v4839 = vpop.f32.mrf.mxu0
    %v4840 = vadd.f32 0.0, %v4839
    %v4841 = vpop.f32.mrf.mxu0
    %4842 = vdwg.mxu0
    %v4843 = vadd.f32 %v4670, %v4780
    %v4844 = vadd.f32 %v4671, %v4785
    %v4845 = vadd.f32 %v4672, %v4790
    %v4846 = vadd.f32 %v4673, %v4795
    %v4847 = vadd.f32 %v4674, %v4800
    %v4848 = vadd.f32 %v4675, %v4805
    %v4849 = vadd.f32 %v4676, %v4810
    %v4850 = vadd.f32 %v4677, %v4815
    %v4851 = vadd.f32 %v4678, %v4820
    %v4852 = vadd.f32 %v4679, %v4825
    %v4853 = vadd.f32 %v4680, %v4830
    %v4854 = vadd.f32 %v4681, %v4835
    %v4855 = vadd.f32 %v4682, %v4840
    %v4856 = vld [vmem:[#allocation3 + $0x1f] sm:$0xff]
    %v4857 = vld [vmem:[#allocation3 + $0x27] sm:$0xff]
    %v4858 = vld [vmem:[#allocation3 + $0x2f] sm:$0xff]
    %v4859 = vld [vmem:[#allocation3 + $0x37] sm:$0xff]
    %v4860 = vld [vmem:[#allocation3 + $0x3f] sm:$0xff]
    %v4861 = vld [vmem:[#allocation3 + $0x47] sm:$0xff]
    %v4862 = vld [vmem:[#allocation3 + $0x4f] sm:$0xff]
    %v4863 = vld [vmem:[#allocation3 + $0x57] sm:$0xff]
    %v4864 = vld [vmem:[#allocation3 + $0x5f] sm:$0xff]
    %v4865 = vld [vmem:[#allocation3 + $0x67] sm:$0xff]
    %v4866 = vld [vmem:[#allocation3 + $0x6f] sm:$0xff]
    %v4867 = vld [vmem:[#allocation3 + $0x77] sm:$0xff]
    %v4868 = vld [vmem:[#allocation3 + $0x7f] sm:$0xff]
    %s4869 = scalar_lea.vmem [#allocation10], 768
    %v4870 = vld [vmem:[%s4869] sm:$0xff]
    %v4871 = vld [vmem:[%s4869 + $0x8] sm:$0xff]
    %v4872 = vld [vmem:[%s4869 + $0x10] sm:$0xff]
    %v4873 = vld [vmem:[%s4869 + $0x18] sm:$0xff]
    %v4874 = vld [vmem:[%s4869 + $0x20] sm:$0xff]
    %v4875 = vld [vmem:[%s4869 + $0x28] sm:$0xff]
    %v4876 = vld [vmem:[%s4869 + $0x30] sm:$0xff]
    %v4877 = vld [vmem:[%s4869 + $0x38] sm:$0xff]
    %v4878 = vld [vmem:[%s4869 + $0x40] sm:$0xff]
    %v4879 = vld [vmem:[%s4869 + $0x48] sm:$0xff]
    %v4880 = vld [vmem:[%s4869 + $0x50] sm:$0xff]
    %v4881 = vld [vmem:[%s4869 + $0x58] sm:$0xff]
    %v4882 = vld [vmem:[%s4869 + $0x60] sm:$0xff]
    %v4883 = vld [vmem:[%s4869 + $0x68] sm:$0xff]
    %v4884 = vld [vmem:[%s4869 + $0x70] sm:$0xff]
    %v4885 = vld [vmem:[%s4869 + $0x78] sm:$0xff]
    %4886 = vmatprep.subr.mxu0 0.0
    %4887 = vmatpush1.msra.mxu0 %v4885
    %4888 = vmatprep.subr.mxu0 0.0
    %4889 = vmatpush1.msra.mxu0 %v4884
    %4890 = vmatprep.subr.mxu0 0.0
    %4891 = vmatpush1.msra.mxu0 %v4883
    %4892 = vmatprep.subr.mxu0 0.0
    %4893 = vmatpush1.msra.mxu0 %v4882
    %4894 = vmatprep.subr.mxu0 0.0
    %4895 = vmatpush1.msra.mxu0 %v4881
    %4896 = vmatprep.subr.mxu0 0.0
    %4897 = vmatpush1.msra.mxu0 %v4880
    %4898 = vmatprep.subr.mxu0 0.0
    %4899 = vmatpush1.msra.mxu0 %v4879
    %4900 = vmatprep.subr.mxu0 0.0
    %4901 = vmatpush1.msra.mxu0 %v4878
    %4902 = vmatprep.subr.mxu0 0.0
    %4903 = vmatpush1.msra.mxu0 %v4877
    %4904 = vmatprep.subr.mxu0 0.0
    %4905 = vmatpush1.msra.mxu0 %v4876
    %4906 = vmatprep.subr.mxu0 0.0
    %4907 = vmatpush1.msra.mxu0 %v4875
    %4908 = vmatprep.subr.mxu0 0.0
    %4909 = vmatpush1.msra.mxu0 %v4874
    %4910 = vmatprep.subr.mxu0 0.0
    %4911 = vmatpush1.msra.mxu0 %v4873
    %4912 = vmatprep.subr.mxu0 0.0
    %4913 = vmatpush1.msra.mxu0 %v4872
    %4914 = vmatprep.subr.mxu0 0.0
    %4915 = vmatpush1.msra.mxu0 %v4871
    %4916 = vmatprep.subr.mxu0 0.0
    %4917 = vmatpush1.msra.mxu0 %v4870
    %4918 = vmatprep.subr.mxu0 0.0
    %4919 = vmatpush2.msra.mxu0 0.0
    %4920 = vmatprep.subr.mxu0 0.0
    %4921 = vmatpush2.msra.mxu0 0.0
    %4922 = vmatprep.subr.mxu0 0.0
    %4923 = vmatpush2.msra.mxu0 0.0
    %4924 = vmatprep.subr.mxu0 0.0
    %4925 = vmatpush2.msra.mxu0 0.0
    %4926 = vmatprep.subr.mxu0 0.0
    %4927 = vmatpush2.msra.mxu0 0.0
    %4928 = vmatprep.subr.mxu0 0.0
    %4929 = vmatpush2.msra.mxu0 0.0
    %4930 = vmatprep.subr.mxu0 0.0
    %4931 = vmatpush2.msra.mxu0 0.0
    %4932 = vmatprep.subr.mxu0 0.0
    %4933 = vmatpush2.msra.mxu0 0.0
    %4934 = vmatprep.subr.mxu0 0.0
    %4935 = vmatpush2.msra.mxu0 0.0
    %4936 = vmatprep.subr.mxu0 0.0
    %4937 = vmatpush2.msra.mxu0 0.0
    %4938 = vmatprep.subr.mxu0 0.0
    %4939 = vmatpush2.msra.mxu0 0.0
    %4940 = vmatprep.subr.mxu0 0.0
    %4941 = vmatpush2.msra.mxu0 0.0
    %4942 = vmatprep.subr.mxu0 0.0
    %4943 = vmatpush2.msra.mxu0 0.0
    %4944 = vmatprep.subr.mxu0 0.0
    %4945 = vmatpush2.msra.mxu0 0.0
    %4946 = vmatprep.subr.mxu0 0.0
    %4947 = vmatpush2.msra.mxu0 0.0
    %4948 = vmatprep.subr.mxu0 0.0
    %4949 = vmatpush2.msra.mxu0 0.0
    %4950 = vmatprep.mubr.f32.mxu0 0.0
    %4951 = vmatmul.mubr.f32.gmra.mxu0 %v4856
    %v4952 = vpop.f32.mrf.mxu0
    %v4953 = vadd.f32 0.0, %v4952
    %v4954 = vpop.f32.mrf.mxu0
    %4955 = vmatprep.mubr.f32.mxu0 0.0
    %4956 = vmatmul.mubr.f32.gmra.mxu0 %v4857
    %v4957 = vpop.f32.mrf.mxu0
    %v4958 = vadd.f32 0.0, %v4957
    %v4959 = vpop.f32.mrf.mxu0
    %4960 = vmatprep.mubr.f32.mxu0 0.0
    %4961 = vmatmul.mubr.f32.gmra.mxu0 %v4858
    %v4962 = vpop.f32.mrf.mxu0
    %v4963 = vadd.f32 0.0, %v4962
    %v4964 = vpop.f32.mrf.mxu0
    %4965 = vmatprep.mubr.f32.mxu0 0.0
    %4966 = vmatmul.mubr.f32.gmra.mxu0 %v4859
    %v4967 = vpop.f32.mrf.mxu0
    %v4968 = vadd.f32 0.0, %v4967
    %v4969 = vpop.f32.mrf.mxu0
    %4970 = vmatprep.mubr.f32.mxu0 0.0
    %4971 = vmatmul.mubr.f32.gmra.mxu0 %v4860
    %v4972 = vpop.f32.mrf.mxu0
    %v4973 = vadd.f32 0.0, %v4972
    %v4974 = vpop.f32.mrf.mxu0
    %4975 = vmatprep.mubr.f32.mxu0 0.0
    %4976 = vmatmul.mubr.f32.gmra.mxu0 %v4861
    %v4977 = vpop.f32.mrf.mxu0
    %v4978 = vadd.f32 0.0, %v4977
    %v4979 = vpop.f32.mrf.mxu0
    %4980 = vmatprep.mubr.f32.mxu0 0.0
    %4981 = vmatmul.mubr.f32.gmra.mxu0 %v4862
    %v4982 = vpop.f32.mrf.mxu0
    %v4983 = vadd.f32 0.0, %v4982
    %v4984 = vpop.f32.mrf.mxu0
    %4985 = vmatprep.mubr.f32.mxu0 0.0
    %4986 = vmatmul.mubr.f32.gmra.mxu0 %v4863
    %v4987 = vpop.f32.mrf.mxu0
    %v4988 = vadd.f32 0.0, %v4987
    %v4989 = vpop.f32.mrf.mxu0
    %4990 = vmatprep.mubr.f32.mxu0 0.0
    %4991 = vmatmul.mubr.f32.gmra.mxu0 %v4864
    %v4992 = vpop.f32.mrf.mxu0
    %v4993 = vadd.f32 0.0, %v4992
    %v4994 = vpop.f32.mrf.mxu0
    %4995 = vmatprep.mubr.f32.mxu0 0.0
    %4996 = vmatmul.mubr.f32.gmra.mxu0 %v4865
    %v4997 = vpop.f32.mrf.mxu0
    %v4998 = vadd.f32 0.0, %v4997
    %v4999 = vpop.f32.mrf.mxu0
    %5000 = vmatprep.mubr.f32.mxu0 0.0
    %5001 = vmatmul.mubr.f32.gmra.mxu0 %v4866
    %v5002 = vpop.f32.mrf.mxu0
    %v5003 = vadd.f32 0.0, %v5002
    %v5004 = vpop.f32.mrf.mxu0
    %5005 = vmatprep.mubr.f32.mxu0 0.0
    %5006 = vmatmul.mubr.f32.gmra.mxu0 %v4867
    %v5007 = vpop.f32.mrf.mxu0
    %v5008 = vadd.f32 0.0, %v5007
    %v5009 = vpop.f32.mrf.mxu0
    %5010 = vmatprep.mubr.f32.mxu0 0.0
    %5011 = vmatmul.mubr.f32.gmra.mxu0 %v4868
    %v5012 = vpop.f32.mrf.mxu0
    %v5013 = vadd.f32 0.0, %v5012
    %v5014 = vpop.f32.mrf.mxu0
    %5015 = vdwg.mxu0
    %v5016 = vadd.f32 %v4843, %v4953
    %v5017 = vadd.f32 %v4844, %v4958
    %v5018 = vadd.f32 %v4845, %v4963
    %v5019 = vadd.f32 %v4846, %v4968
    %v5020 = vadd.f32 %v4847, %v4973
    %v5021 = vadd.f32 %v4848, %v4978
    %v5022 = vadd.f32 %v4849, %v4983
    %v5023 = vadd.f32 %v4850, %v4988
    %v5024 = vadd.f32 %v4851, %v4993
    %v5025 = vadd.f32 %v4852, %v4998
    %v5026 = vadd.f32 %v4853, %v5003
    %v5027 = vadd.f32 %v4854, %v5008
    %v5028 = vadd.f32 %v4855, %v5013
    %v5029 = vld [vmem:[%s10] sm:$0x1]
    %v5031 = vlaneseq
    %v5032 = vshrl.u32 %v5031, 7
    %v5033 = vsub.s32 0, %v5032
    %v5034 = vrot.slane %v5029, %v5033
    %v5036 = vadd.f32 %v5016, %v5034
    %v5037 = vadd.f32 %v5017, %v5034
    %v5038 = vadd.f32 %v5018, %v5034
    %v5039 = vadd.f32 %v5019, %v5034
    %v5040 = vadd.f32 %v5020, %v5034
    %v5041 = vadd.f32 %v5021, %v5034
    %v5042 = vadd.f32 %v5022, %v5034
    %v5043 = vadd.f32 %v5023, %v5034
    %v5044 = vadd.f32 %v5024, %v5034
    %v5045 = vadd.f32 %v5025, %v5034
    %v5046 = vadd.f32 %v5026, %v5034
    %v5047 = vadd.f32 %v5027, %v5034
    %v5048 = vadd.f32 %v5028, %v5034
    %5049 = vst [vmem:[#allocation2 + $0x10] sm:$0xff] %v5036
    %5050 = vst [vmem:[#allocation2 + $0x18] sm:$0xff] %v5037
    %5051 = vst [vmem:[#allocation2 + $0x20] sm:$0xff] %v5038
    %5052 = vst [vmem:[#allocation2 + $0x28] sm:$0xff] %v5039
    %5053 = vst [vmem:[#allocation2 + $0x30] sm:$0xff] %v5040
    %5054 = vst [vmem:[#allocation2 + $0x38] sm:$0xff] %v5041
    %5055 = vst [vmem:[#allocation2 + $0x40] sm:$0xff] %v5042
    %5056 = vst [vmem:[#allocation2 + $0x48] sm:$0xff] %v5043
    %5057 = vst [vmem:[#allocation2 + $0x50] sm:$0xff] %v5044
    %5058 = vst [vmem:[#allocation2 + $0x58] sm:$0xff] %v5045
    %5059 = vst [vmem:[#allocation2 + $0x60] sm:$0xff] %v5046
    %5060 = vst [vmem:[#allocation2 + $0x68] sm:$0xff] %v5047
    %5061 = vst [vmem:[#allocation2 + $0x70] sm:$0xff] %v5048
    %5062 = vst [vmem:[#allocation2 + $0xe] sm:$0x3] 0.0
    %5063 = vst [vmem:[#allocation2 + $0x74] sm:$0x3] 0.0
    %v5064 = vld [vmem:[#allocation2 + $0xe] sm:$0xff]
    %v5065 = vld [vmem:[#allocation2 + $0x16] sm:$0xff]
    %v5066 = vld [vmem:[#allocation2 + $0x1e] sm:$0xff]
    %v5067 = vld [vmem:[#allocation2 + $0x26] sm:$0xff]
    %v5068 = vld [vmem:[#allocation2 + $0x2e] sm:$0xff]
    %v5069 = vld [vmem:[#allocation2 + $0x36] sm:$0xff]
    %v5070 = vld [vmem:[#allocation2 + $0x3e] sm:$0xff]
    %v5071 = vld [vmem:[#allocation2 + $0x46] sm:$0xff]
    %v5072 = vld [vmem:[#allocation2 + $0x4e] sm:$0xff]
    %v5073 = vld [vmem:[#allocation2 + $0x56] sm:$0xff]
    %v5074 = vld [vmem:[#allocation2 + $0x5e] sm:$0xff]
    %v5075 = vld [vmem:[#allocation2 + $0x66] sm:$0xff]
    %v5076 = vld [vmem:[#allocation2 + $0x6e] sm:$0xff]
    %v5077 = vld [vmem:[#allocation2 + $0xf] sm:$0xff]
    %v5078 = vld [vmem:[#allocation2 + $0x17] sm:$0xff]
    %v5079 = vld [vmem:[#allocation2 + $0x1f] sm:$0xff]
    %v5080 = vld [vmem:[#allocation2 + $0x27] sm:$0xff]
    %v5081 = vld [vmem:[#allocation2 + $0x2f] sm:$0xff]
    %v5082 = vld [vmem:[#allocation2 + $0x37] sm:$0xff]
    %v5083 = vld [vmem:[#allocation2 + $0x3f] sm:$0xff]
    %v5084 = vld [vmem:[#allocation2 + $0x47] sm:$0xff]
    %v5085 = vld [vmem:[#allocation2 + $0x4f] sm:$0xff]
    %v5086 = vld [vmem:[#allocation2 + $0x57] sm:$0xff]
    %v5087 = vld [vmem:[#allocation2 + $0x5f] sm:$0xff]
    %v5088 = vld [vmem:[#allocation2 + $0x67] sm:$0xff]
    %v5089 = vld [vmem:[#allocation2 + $0x6f] sm:$0xff]
    %v5090 = vadd.f32 %v5064, %v5077
    %v5091 = vadd.f32 %v5065, %v5078
    %v5092 = vadd.f32 %v5066, %v5079
    %v5093 = vadd.f32 %v5067, %v5080
    %v5094 = vadd.f32 %v5068, %v5081
    %v5095 = vadd.f32 %v5069, %v5082
    %v5096 = vadd.f32 %v5070, %v5083
    %v5097 = vadd.f32 %v5071, %v5084
    %v5098 = vadd.f32 %v5072, %v5085
    %v5099 = vadd.f32 %v5073, %v5086
    %v5100 = vadd.f32 %v5074, %v5087
    %v5101 = vadd.f32 %v5075, %v5088
    %v5102 = vadd.f32 %v5076, %v5089
    %v5103 = vld [vmem:[#allocation2 + $0x10] sm:$0xff]
    %v5104 = vld [vmem:[#allocation2 + $0x18] sm:$0xff]
    %v5105 = vld [vmem:[#allocation2 + $0x20] sm:$0xff]
    %v5106 = vld [vmem:[#allocation2 + $0x28] sm:$0xff]
    %v5107 = vld [vmem:[#allocation2 + $0x30] sm:$0xff]
    %v5108 = vld [vmem:[#allocation2 + $0x38] sm:$0xff]
    %v5109 = vld [vmem:[#allocation2 + $0x40] sm:$0xff]
    %v5110 = vld [vmem:[#allocation2 + $0x48] sm:$0xff]
    %v5111 = vld [vmem:[#allocation2 + $0x50] sm:$0xff]
    %v5112 = vld [vmem:[#allocation2 + $0x58] sm:$0xff]
    %v5113 = vld [vmem:[#allocation2 + $0x60] sm:$0xff]
    %v5114 = vld [vmem:[#allocation2 + $0x68] sm:$0xff]
    %v5115 = vld [vmem:[#allocation2 + $0x70] sm:$0xff]
    %v5116 = vadd.f32 %v5090, %v5103
    %v5117 = vadd.f32 %v5091, %v5104
    %v5118 = vadd.f32 %v5092, %v5105
    %v5119 = vadd.f32 %v5093, %v5106
    %v5120 = vadd.f32 %v5094, %v5107
    %v5121 = vadd.f32 %v5095, %v5108
    %v5122 = vadd.f32 %v5096, %v5109
    %v5123 = vadd.f32 %v5097, %v5110
    %v5124 = vadd.f32 %v5098, %v5111
    %v5125 = vadd.f32 %v5099, %v5112
    %v5126 = vadd.f32 %v5100, %v5113
    %v5127 = vadd.f32 %v5101, %v5114
    %v5128 = vadd.f32 %v5102, %v5115
    %v5129 = vld [vmem:[#allocation2 + $0x11] sm:$0xff]
    %v5130 = vld [vmem:[#allocation2 + $0x19] sm:$0xff]
    %v5131 = vld [vmem:[#allocation2 + $0x21] sm:$0xff]
    %v5132 = vld [vmem:[#allocation2 + $0x29] sm:$0xff]
    %v5133 = vld [vmem:[#allocation2 + $0x31] sm:$0xff]
    %v5134 = vld [vmem:[#allocation2 + $0x39] sm:$0xff]
    %v5135 = vld [vmem:[#allocation2 + $0x41] sm:$0xff]
    %v5136 = vld [vmem:[#allocation2 + $0x49] sm:$0xff]
    %v5137 = vld [vmem:[#allocation2 + $0x51] sm:$0xff]
    %v5138 = vld [vmem:[#allocation2 + $0x59] sm:$0xff]
    %v5139 = vld [vmem:[#allocation2 + $0x61] sm:$0xff]
    %v5140 = vld [vmem:[#allocation2 + $0x69] sm:$0xff]
    %v5141 = vld [vmem:[#allocation2 + $0x71] sm:$0xff]
    %v5142 = vadd.f32 %v5116, %v5129
    %v5143 = vadd.f32 %v5117, %v5130
    %v5144 = vadd.f32 %v5118, %v5131
    %v5145 = vadd.f32 %v5119, %v5132
    %v5146 = vadd.f32 %v5120, %v5133
    %v5147 = vadd.f32 %v5121, %v5134
    %v5148 = vadd.f32 %v5122, %v5135
    %v5149 = vadd.f32 %v5123, %v5136
    %v5150 = vadd.f32 %v5124, %v5137
    %v5151 = vadd.f32 %v5125, %v5138
    %v5152 = vadd.f32 %v5126, %v5139
    %v5153 = vadd.f32 %v5127, %v5140
    %v5154 = vadd.f32 %v5128, %v5141
    %v5155 = vld [vmem:[#allocation2 + $0x12] sm:$0xff]
    %v5156 = vld [vmem:[#allocation2 + $0x1a] sm:$0xff]
    %v5157 = vld [vmem:[#allocation2 + $0x22] sm:$0xff]
    %v5158 = vld [vmem:[#allocation2 + $0x2a] sm:$0xff]
    %v5159 = vld [vmem:[#allocation2 + $0x32] sm:$0xff]
    %v5160 = vld [vmem:[#allocation2 + $0x3a] sm:$0xff]
    %v5161 = vld [vmem:[#allocation2 + $0x42] sm:$0xff]
    %v5162 = vld [vmem:[#allocation2 + $0x4a] sm:$0xff]
    %v5163 = vld [vmem:[#allocation2 + $0x52] sm:$0xff]
    %v5164 = vld [vmem:[#allocation2 + $0x5a] sm:$0xff]
    %v5165 = vld [vmem:[#allocation2 + $0x62] sm:$0xff]
    %v5166 = vld [vmem:[#allocation2 + $0x6a] sm:$0xff]
    %v5167 = vld [vmem:[#allocation2 + $0x72] sm:$0xff]
    %v5168 = vadd.f32 %v5142, %v5155
    %v5169 = vadd.f32 %v5143, %v5156
    %v5170 = vadd.f32 %v5144, %v5157
    %v5171 = vadd.f32 %v5145, %v5158
    %v5172 = vadd.f32 %v5146, %v5159
    %v5173 = vadd.f32 %v5147, %v5160
    %v5174 = vadd.f32 %v5148, %v5161
    %v5175 = vadd.f32 %v5149, %v5162
    %v5176 = vadd.f32 %v5150, %v5163
    %v5177 = vadd.f32 %v5151, %v5164
    %v5178 = vadd.f32 %v5152, %v5165
    %v5179 = vadd.f32 %v5153, %v5166
    %v5180 = vadd.f32 %v5154, %v5167
    %v5181 = vmul.f32 %v5168, %v174
    %v5182 = vmul.f32 %v5169, %v175
    %v5183 = vmul.f32 %v5170, %v176
    %v5184 = vmul.f32 %v5171, %v177
    %v5185 = vmul.f32 %v5172, %v178
    %v5186 = vmul.f32 %v5173, %v179
    %v5187 = vmul.f32 %v5174, %v180
    %v5188 = vmul.f32 %v5175, %v181
    %v5189 = vmul.f32 %v5176, %v182
    %v5190 = vmul.f32 %v5177, %v183
    %v5191 = vmul.f32 %v5178, %v184
    %v5192 = vmul.f32 %v5179, %v185
    %v5193 = vmul.f32 %v5180, %v186
    %v5194 = vmax.f32 %v5181, 0.0
    %v5195 = vmax.f32 %v5182, 0.0
    %v5196 = vmax.f32 %v5183, 0.0
    %v5197 = vmax.f32 %v5184, 0.0
    %v5198 = vmax.f32 %v5185, 0.0
    %v5199 = vmax.f32 %v5186, 0.0
    %v5200 = vmax.f32 %v5187, 0.0
    %v5201 = vmax.f32 %v5188, 0.0
    %v5202 = vmax.f32 %v5189, 0.0
    %v5203 = vmax.f32 %v5190, 0.0
    %v5204 = vmax.f32 %v5191, 0.0
    %v5205 = vmax.f32 %v5192, 0.0
    %v5206 = vmax.f32 %v5193, 0.0
    %5207 = vst [vmem:[#allocation3 + $0x10] sm:$0xff] %v5194
    %5208 = vst [vmem:[#allocation3 + $0x18] sm:$0xff] %v5195
    %5209 = vst [vmem:[#allocation3 + $0x20] sm:$0xff] %v5196
    %5210 = vst [vmem:[#allocation3 + $0x28] sm:$0xff] %v5197
    %5211 = vst [vmem:[#allocation3 + $0x30] sm:$0xff] %v5198
    %5212 = vst [vmem:[#allocation3 + $0x38] sm:$0xff] %v5199
    %5213 = vst [vmem:[#allocation3 + $0x40] sm:$0xff] %v5200
    %5214 = vst [vmem:[#allocation3 + $0x48] sm:$0xff] %v5201
    %5215 = vst [vmem:[#allocation3 + $0x50] sm:$0xff] %v5202
    %5216 = vst [vmem:[#allocation3 + $0x58] sm:$0xff] %v5203
    %5217 = vst [vmem:[#allocation3 + $0x60] sm:$0xff] %v5204
    %5218 = vst [vmem:[#allocation3 + $0x68] sm:$0xff] %v5205
    %5219 = vst [vmem:[#allocation3 + $0x70] sm:$0xff] %v5206
    %v5220 = vld [vmem:[#allocation3 + $0x11] sm:$0xff]
    %v5221 = vld [vmem:[#allocation3 + $0x19] sm:$0xff]
    %5222 = vmatprep.subr.mxu0 0.0
    %5223 = vmatpush1.msra.mxu0 0.0
    %5224 = vmatprep.subr.mxu0 0.0
    %5225 = vmatpush1.msra.mxu0 0.0
    %5226 = vmatprep.subr.mxu0 0.0
    %5227 = vmatpush1.msra.mxu0 0.0
    %5228 = vmatprep.subr.mxu0 0.0
    %5229 = vmatpush1.msra.mxu0 0.0
    %5230 = vmatprep.subr.mxu0 0.0
    %5231 = vmatpush1.msra.mxu0 0.0
    %5232 = vmatprep.subr.mxu0 0.0
    %5233 = vmatpush1.msra.mxu0 0.0
    %5234 = vmatprep.subr.mxu0 0.0
    %5235 = vmatpush1.msra.mxu0 0.0
    %5236 = vmatprep.subr.mxu0 0.0
    %5237 = vmatpush1.msra.mxu0 0.0
    %5238 = vmatprep.subr.mxu0 0.0
    %5239 = vmatpush1.msra.mxu0 0.0
    %5240 = vmatprep.subr.mxu0 0.0
    %5241 = vmatpush1.msra.mxu0 0.0
    %5242 = vmatprep.subr.mxu0 0.0
    %5243 = vmatpush1.msra.mxu0 0.0
    %5244 = vmatprep.subr.mxu0 0.0
    %5245 = vmatpush1.msra.mxu0 0.0
    %5246 = vmatprep.subr.mxu0 0.0
    %5247 = vmatpush1.msra.mxu0 0.0
    %5248 = vmatprep.subr.mxu0 0.0
    %5249 = vmatpush1.msra.mxu0 0.0
    %5250 = vmatprep.subr.mxu0 0.0
    %5251 = vmatpush1.msra.mxu0 %v5221
    %5252 = vmatprep.subr.mxu0 0.0
    %5253 = vmatpush1.msra.mxu0 %v5220
    %5254 = vmatprep.subr.mxu0 0.0
    %5255 = vmatpush2.msra.mxu0 0.0
    %5256 = vmatprep.subr.mxu0 0.0
    %5257 = vmatpush2.msra.mxu0 0.0
    %5258 = vmatprep.subr.mxu0 0.0
    %5259 = vmatpush2.msra.mxu0 0.0
    %5260 = vmatprep.subr.mxu0 0.0
    %5261 = vmatpush2.msra.mxu0 0.0
    %5262 = vmatprep.subr.mxu0 0.0
    %5263 = vmatpush2.msra.mxu0 0.0
    %5264 = vmatprep.subr.mxu0 0.0
    %5265 = vmatpush2.msra.mxu0 0.0
    %5266 = vmatprep.subr.mxu0 0.0
    %5267 = vmatpush2.msra.mxu0 0.0
    %5268 = vmatprep.subr.mxu0 0.0
    %5269 = vmatpush2.msra.mxu0 0.0
    %5270 = vmatprep.subr.mxu0 0.0
    %5271 = vmatpush2.msra.mxu0 0.0
    %5272 = vmatprep.subr.mxu0 0.0
    %5273 = vmatpush2.msra.mxu0 0.0
    %5274 = vmatprep.subr.mxu0 0.0
    %5275 = vmatpush2.msra.mxu0 0.0
    %5276 = vmatprep.subr.mxu0 0.0
    %5277 = vmatpush2.msra.mxu0 0.0
    %5278 = vmatprep.subr.mxu0 0.0
    %5279 = vmatpush2.msra.mxu0 0.0
    %5280 = vmatprep.subr.mxu0 0.0
    %5281 = vmatpush2.msra.mxu0 0.0
    %5282 = vmatprep.subr.mxu0 0.0
    %5283 = vmatpush2.msra.mxu0 0.0
    %5284 = vmatprep.subr.mxu0 0.0
    %5285 = vmatpush2.msra.mxu0 0.0
    %5286 = vmatprep.mubr.f32.mxu0 0.0
    %5287 = vmatmul.mubr.f32.gmra.mxu0 %v426
    %v5288 = vpop.f32.mrf.mxu0
    %v5289 = vadd.f32 0.0, %v5288
    %v5290 = vpop.f32.mrf.mxu0
    %5291 = vmatprep.mubr.f32.mxu0 0.0
    %5292 = vmatmul.mubr.f32.gmra.mxu0 %v429
    %v5293 = vpop.f32.mrf.mxu0
    %v5294 = vadd.f32 0.0, %v5293
    %v5295 = vpop.f32.mrf.mxu0
    %5296 = vdwg.mxu0
    %5297 = vst [vmem:[#allocation3] sm:$0xff] %v5289
    %5298 = vst [vmem:[#allocation3 + $0x8] sm:$0xff] %v5294
    %v5299 = vld [vmem:[#allocation3 + $0x63] sm:$0xff]
    %v5300 = vld [vmem:[#allocation3 + $0x6b] sm:$0xff]
    %5301 = vmatprep.subr.mxu0 0.0
    %5302 = vmatpush1.msra.mxu0 0.0
    %5303 = vmatprep.subr.mxu0 0.0
    %5304 = vmatpush1.msra.mxu0 0.0
    %5305 = vmatprep.subr.mxu0 0.0
    %5306 = vmatpush1.msra.mxu0 0.0
    %5307 = vmatprep.subr.mxu0 0.0
    %5308 = vmatpush1.msra.mxu0 0.0
    %5309 = vmatprep.subr.mxu0 0.0
    %5310 = vmatpush1.msra.mxu0 0.0
    %5311 = vmatprep.subr.mxu0 0.0
    %5312 = vmatpush1.msra.mxu0 0.0
    %5313 = vmatprep.subr.mxu0 0.0
    %5314 = vmatpush1.msra.mxu0 0.0
    %5315 = vmatprep.subr.mxu0 0.0
    %5316 = vmatpush1.msra.mxu0 0.0
    %5317 = vmatprep.subr.mxu0 0.0
    %5318 = vmatpush1.msra.mxu0 0.0
    %5319 = vmatprep.subr.mxu0 0.0
    %5320 = vmatpush1.msra.mxu0 0.0
    %5321 = vmatprep.subr.mxu0 0.0
    %5322 = vmatpush1.msra.mxu0 0.0
    %5323 = vmatprep.subr.mxu0 0.0
    %5324 = vmatpush1.msra.mxu0 0.0
    %5325 = vmatprep.subr.mxu0 0.0
    %5326 = vmatpush1.msra.mxu0 0.0
    %5327 = vmatprep.subr.mxu0 0.0
    %5328 = vmatpush1.msra.mxu0 0.0
    %5329 = vmatprep.subr.mxu0 0.0
    %5330 = vmatpush1.msra.mxu0 %v5300
    %5331 = vmatprep.subr.mxu0 0.0
    %5332 = vmatpush1.msra.mxu0 %v5299
    %5333 = vmatprep.subr.mxu0 0.0
    %5334 = vmatpush2.msra.mxu0 0.0
    %5335 = vmatprep.subr.mxu0 0.0
    %5336 = vmatpush2.msra.mxu0 0.0
    %5337 = vmatprep.subr.mxu0 0.0
    %5338 = vmatpush2.msra.mxu0 0.0
    %5339 = vmatprep.subr.mxu0 0.0
    %5340 = vmatpush2.msra.mxu0 0.0
    %5341 = vmatprep.subr.mxu0 0.0
    %5342 = vmatpush2.msra.mxu0 0.0
    %5343 = vmatprep.subr.mxu0 0.0
    %5344 = vmatpush2.msra.mxu0 0.0
    %5345 = vmatprep.subr.mxu0 0.0
    %5346 = vmatpush2.msra.mxu0 0.0
    %5347 = vmatprep.subr.mxu0 0.0
    %5348 = vmatpush2.msra.mxu0 0.0
    %5349 = vmatprep.subr.mxu0 0.0
    %5350 = vmatpush2.msra.mxu0 0.0
    %5351 = vmatprep.subr.mxu0 0.0
    %5352 = vmatpush2.msra.mxu0 0.0
    %5353 = vmatprep.subr.mxu0 0.0
    %5354 = vmatpush2.msra.mxu0 0.0
    %5355 = vmatprep.subr.mxu0 0.0
    %5356 = vmatpush2.msra.mxu0 0.0
    %5357 = vmatprep.subr.mxu0 0.0
    %5358 = vmatpush2.msra.mxu0 0.0
    %5359 = vmatprep.subr.mxu0 0.0
    %5360 = vmatpush2.msra.mxu0 0.0
    %5361 = vmatprep.subr.mxu0 0.0
    %5362 = vmatpush2.msra.mxu0 0.0
    %5363 = vmatprep.subr.mxu0 0.0
    %5364 = vmatpush2.msra.mxu0 0.0
    %5365 = vmatprep.mubr.f32.mxu0 0.0
    %5366 = vmatmul.mubr.f32.gmra.mxu0 %v426
    %v5367 = vpop.f32.mrf.mxu0
    %v5368 = vadd.f32 0.0, %v5367
    %v5369 = vpop.f32.mrf.mxu0
    %5370 = vmatprep.mubr.f32.mxu0 0.0
    %5371 = vmatmul.mubr.f32.gmra.mxu0 %v429
    %v5372 = vpop.f32.mrf.mxu0
    %v5373 = vadd.f32 0.0, %v5372
    %v5374 = vpop.f32.mrf.mxu0
    %5375 = vdwg.mxu0
    %5376 = vst [vmem:[#allocation3 + $0x74] sm:$0xff] %v5368
    %5377 = vst [vmem:[#allocation3 + $0x7c] sm:$0xff] %v5373
    %v5378 = vld [vmem:[#allocation3 + $0x1] sm:$0xff]
    %v5379 = vld [vmem:[#allocation3 + $0x9] sm:$0xff]
    %v5380 = vld [vmem:[#allocation3 + $0x11] sm:$0xff]
    %v5381 = vld [vmem:[#allocation3 + $0x19] sm:$0xff]
    %v5382 = vld [vmem:[#allocation3 + $0x21] sm:$0xff]
    %v5383 = vld [vmem:[#allocation3 + $0x29] sm:$0xff]
    %v5384 = vld [vmem:[#allocation3 + $0x31] sm:$0xff]
    %v5385 = vld [vmem:[#allocation3 + $0x39] sm:$0xff]
    %v5386 = vld [vmem:[#allocation3 + $0x41] sm:$0xff]
    %v5387 = vld [vmem:[#allocation3 + $0x49] sm:$0xff]
    %v5388 = vld [vmem:[#allocation3 + $0x51] sm:$0xff]
    %v5389 = vld [vmem:[#allocation3 + $0x59] sm:$0xff]
    %v5390 = vld [vmem:[#allocation3 + $0x61] sm:$0xff]
    %v5391 = vld [vmem:[#allocation12] sm:$0xff]
    %v5392 = vld [vmem:[#allocation12 + $0x8] sm:$0xff]
    %v5393 = vld [vmem:[#allocation12 + $0x10] sm:$0xff]
    %v5394 = vld [vmem:[#allocation12 + $0x18] sm:$0xff]
    %v5395 = vld [vmem:[#allocation12 + $0x20] sm:$0xff]
    %v5396 = vld [vmem:[#allocation12 + $0x28] sm:$0xff]
    %v5397 = vld [vmem:[#allocation12 + $0x30] sm:$0xff]
    %v5398 = vld [vmem:[#allocation12 + $0x38] sm:$0xff]
    %v5399 = vld [vmem:[#allocation12 + $0x40] sm:$0xff]
    %v5400 = vld [vmem:[#allocation12 + $0x48] sm:$0xff]
    %v5401 = vld [vmem:[#allocation12 + $0x50] sm:$0xff]
    %v5402 = vld [vmem:[#allocation12 + $0x58] sm:$0xff]
    %v5403 = vld [vmem:[#allocation12 + $0x60] sm:$0xff]
    %v5404 = vld [vmem:[#allocation12 + $0x68] sm:$0xff]
    %v5405 = vld [vmem:[#allocation12 + $0x70] sm:$0xff]
    %v5406 = vld [vmem:[#allocation12 + $0x78] sm:$0xff]
    %v5407 = vld [vmem:[#allocation3 + $0x6] sm:$0xff]
    %v5408 = vld [vmem:[#allocation3 + $0xe] sm:$0xff]
    %v5409 = vld [vmem:[#allocation3 + $0x16] sm:$0xff]
    %v5410 = vld [vmem:[#allocation3 + $0x1e] sm:$0xff]
    %v5411 = vld [vmem:[#allocation3 + $0x26] sm:$0xff]
    %v5412 = vld [vmem:[#allocation3 + $0x2e] sm:$0xff]
    %v5413 = vld [vmem:[#allocation3 + $0x36] sm:$0xff]
    %v5414 = vld [vmem:[#allocation3 + $0x3e] sm:$0xff]
    %v5415 = vld [vmem:[#allocation3 + $0x46] sm:$0xff]
    %v5416 = vld [vmem:[#allocation3 + $0x4e] sm:$0xff]
    %v5417 = vld [vmem:[#allocation3 + $0x56] sm:$0xff]
    %v5418 = vld [vmem:[#allocation3 + $0x5e] sm:$0xff]
    %v5419 = vld [vmem:[#allocation3 + $0x66] sm:$0xff]
    %s5420 = scalar_lea.vmem [#allocation12], 128
    %v5421 = vld [vmem:[%s5420] sm:$0xff]
    %v5422 = vld [vmem:[%s5420 + $0x8] sm:$0xff]
    %v5423 = vld [vmem:[%s5420 + $0x10] sm:$0xff]
    %v5424 = vld [vmem:[%s5420 + $0x18] sm:$0xff]
    %v5425 = vld [vmem:[%s5420 + $0x20] sm:$0xff]
    %v5426 = vld [vmem:[%s5420 + $0x28] sm:$0xff]
    %v5427 = vld [vmem:[%s5420 + $0x30] sm:$0xff]
    %v5428 = vld [vmem:[%s5420 + $0x38] sm:$0xff]
    %v5429 = vld [vmem:[%s5420 + $0x40] sm:$0xff]
    %v5430 = vld [vmem:[%s5420 + $0x48] sm:$0xff]
    %v5431 = vld [vmem:[%s5420 + $0x50] sm:$0xff]
    %v5432 = vld [vmem:[%s5420 + $0x58] sm:$0xff]
    %v5433 = vld [vmem:[%s5420 + $0x60] sm:$0xff]
    %v5434 = vld [vmem:[%s5420 + $0x68] sm:$0xff]
    %v5435 = vld [vmem:[%s5420 + $0x70] sm:$0xff]
    %v5436 = vld [vmem:[%s5420 + $0x78] sm:$0xff]
    %5437 = vmatprep.subr.mxu0 0.0
    %5438 = vmatpush1.msra.mxu0 %v5436
    %5439 = vmatprep.subr.mxu0 0.0
    %5440 = vmatpush1.msra.mxu0 %v5435
    %5441 = vmatprep.subr.mxu0 0.0
    %5442 = vmatpush1.msra.mxu0 %v5434
    %5443 = vmatprep.subr.mxu0 0.0
    %5444 = vmatpush1.msra.mxu0 %v5433
    %5445 = vmatprep.subr.mxu0 0.0
    %5446 = vmatpush1.msra.mxu0 %v5432
    %5447 = vmatprep.subr.mxu0 0.0
    %5448 = vmatpush1.msra.mxu0 %v5431
    %5449 = vmatprep.subr.mxu0 0.0
    %5450 = vmatpush1.msra.mxu0 %v5430
    %5451 = vmatprep.subr.mxu0 0.0
    %5452 = vmatpush1.msra.mxu0 %v5429
    %5453 = vmatprep.subr.mxu0 0.0
    %5454 = vmatpush1.msra.mxu0 %v5428
    %5455 = vmatprep.subr.mxu0 0.0
    %5456 = vmatpush1.msra.mxu0 %v5427
    %5457 = vmatprep.subr.mxu0 0.0
    %5458 = vmatpush1.msra.mxu0 %v5426
    %5459 = vmatprep.subr.mxu0 0.0
    %5460 = vmatpush1.msra.mxu0 %v5425
    %5461 = vmatprep.subr.mxu0 0.0
    %5462 = vmatpush1.msra.mxu0 %v5424
    %5463 = vmatprep.subr.mxu0 0.0
    %5464 = vmatpush1.msra.mxu0 %v5423
    %5465 = vmatprep.subr.mxu0 0.0
    %5466 = vmatpush1.msra.mxu0 %v5422
    %5467 = vmatprep.subr.mxu0 0.0
    %5468 = vmatpush1.msra.mxu0 %v5421
    %5469 = vmatprep.subr.mxu0 0.0
    %5470 = vmatpush2.msra.mxu0 0.0
    %5471 = vmatprep.subr.mxu0 0.0
    %5472 = vmatpush2.msra.mxu0 0.0
    %5473 = vmatprep.subr.mxu0 0.0
    %5474 = vmatpush2.msra.mxu0 0.0
    %5475 = vmatprep.subr.mxu0 0.0
    %5476 = vmatpush2.msra.mxu0 0.0
    %5477 = vmatprep.subr.mxu0 0.0
    %5478 = vmatpush2.msra.mxu0 0.0
    %5479 = vmatprep.subr.mxu0 0.0
    %5480 = vmatpush2.msra.mxu0 0.0
    %5481 = vmatprep.subr.mxu0 0.0
    %5482 = vmatpush2.msra.mxu0 0.0
    %5483 = vmatprep.subr.mxu0 0.0
    %5484 = vmatpush2.msra.mxu0 0.0
    %5485 = vmatprep.subr.mxu0 0.0
    %5486 = vmatpush2.msra.mxu0 0.0
    %5487 = vmatprep.subr.mxu0 0.0
    %5488 = vmatpush2.msra.mxu0 0.0
    %5489 = vmatprep.subr.mxu0 0.0
    %5490 = vmatpush2.msra.mxu0 0.0
    %5491 = vmatprep.subr.mxu0 0.0
    %5492 = vmatpush2.msra.mxu0 0.0
    %5493 = vmatprep.subr.mxu0 0.0
    %5494 = vmatpush2.msra.mxu0 0.0
    %5495 = vmatprep.subr.mxu0 0.0
    %5496 = vmatpush2.msra.mxu0 0.0
    %5497 = vmatprep.subr.mxu0 0.0
    %5498 = vmatpush2.msra.mxu0 0.0
    %5499 = vmatprep.subr.mxu0 0.0
    %5500 = vmatpush2.msra.mxu0 0.0
    %5501 = vmatprep.mubr.f32.mxu0 0.0
    %5502 = vmatmul.mubr.f32.gmra.mxu0 %v5407
    %v5503 = vpop.f32.mrf.mxu0
    %v5504 = vadd.f32 0.0, %v5503
    %v5505 = vpop.f32.mrf.mxu0
    %5506 = vmatprep.mubr.f32.mxu0 0.0
    %5507 = vmatmul.mubr.f32.gmra.mxu0 %v5408
    %v5508 = vpop.f32.mrf.mxu0
    %v5509 = vadd.f32 0.0, %v5508
    %v5510 = vpop.f32.mrf.mxu0
    %5511 = vmatprep.mubr.f32.mxu0 0.0
    %5512 = vmatmul.mubr.f32.gmra.mxu0 %v5409
    %v5513 = vpop.f32.mrf.mxu0
    %v5514 = vadd.f32 0.0, %v5513
    %v5515 = vpop.f32.mrf.mxu0
    %5516 = vmatprep.mubr.f32.mxu0 0.0
    %5517 = vmatmul.mubr.f32.gmra.mxu0 %v5410
    %v5518 = vpop.f32.mrf.mxu0
    %v5519 = vadd.f32 0.0, %v5518
    %v5520 = vpop.f32.mrf.mxu0
    %5521 = vmatprep.mubr.f32.mxu0 0.0
    %5522 = vmatmul.mubr.f32.gmra.mxu0 %v5411
    %v5523 = vpop.f32.mrf.mxu0
    %v5524 = vadd.f32 0.0, %v5523
    %v5525 = vpop.f32.mrf.mxu0
    %5526 = vmatprep.mubr.f32.mxu0 0.0
    %5527 = vmatmul.mubr.f32.gmra.mxu0 %v5412
    %v5528 = vpop.f32.mrf.mxu0
    %v5529 = vadd.f32 0.0, %v5528
    %v5530 = vpop.f32.mrf.mxu0
    %5531 = vmatprep.mubr.f32.mxu0 0.0
    %5532 = vmatmul.mubr.f32.gmra.mxu0 %v5413
    %v5533 = vpop.f32.mrf.mxu0
    %v5534 = vadd.f32 0.0, %v5533
    %v5535 = vpop.f32.mrf.mxu0
    %5536 = vmatprep.mubr.f32.mxu0 0.0
    %5537 = vmatmul.mubr.f32.gmra.mxu0 %v5414
    %v5538 = vpop.f32.mrf.mxu0
    %v5539 = vadd.f32 0.0, %v5538
    %v5540 = vpop.f32.mrf.mxu0
    %5541 = vmatprep.mubr.f32.mxu0 0.0
    %5542 = vmatmul.mubr.f32.gmra.mxu0 %v5415
    %v5543 = vpop.f32.mrf.mxu0
    %v5544 = vadd.f32 0.0, %v5543
    %v5545 = vpop.f32.mrf.mxu0
    %5546 = vmatprep.mubr.f32.mxu0 0.0
    %5547 = vmatmul.mubr.f32.gmra.mxu0 %v5416
    %v5548 = vpop.f32.mrf.mxu0
    %v5549 = vadd.f32 0.0, %v5548
    %v5550 = vpop.f32.mrf.mxu0
    %5551 = vmatprep.mubr.f32.mxu0 0.0
    %5552 = vmatmul.mubr.f32.gmra.mxu0 %v5417
    %v5553 = vpop.f32.mrf.mxu0
    %v5554 = vadd.f32 0.0, %v5553
    %v5555 = vpop.f32.mrf.mxu0
    %5556 = vmatprep.mubr.f32.mxu0 0.0
    %5557 = vmatmul.mubr.f32.gmra.mxu0 %v5418
    %v5558 = vpop.f32.mrf.mxu0
    %v5559 = vadd.f32 0.0, %v5558
    %v5560 = vpop.f32.mrf.mxu0
    %5561 = vmatprep.mubr.f32.mxu0 0.0
    %5562 = vmatmul.mubr.f32.gmra.mxu0 %v5419
    %v5563 = vpop.f32.mrf.mxu0
    %v5564 = vadd.f32 0.0, %v5563
    %v5565 = vpop.f32.mrf.mxu0
    %5566 = vdwg.mxu0
    %5567 = vmatprep.subr.mxu0 0.0
    %5568 = vmatpush1.msra.mxu0 %v5406
    %5569 = vmatprep.subr.mxu0 0.0
    %5570 = vmatpush1.msra.mxu0 %v5405
    %5571 = vmatprep.subr.mxu0 0.0
    %5572 = vmatpush1.msra.mxu0 %v5404
    %5573 = vmatprep.subr.mxu0 0.0
    %5574 = vmatpush1.msra.mxu0 %v5403
    %5575 = vmatprep.subr.mxu0 0.0
    %5576 = vmatpush1.msra.mxu0 %v5402
    %5577 = vmatprep.subr.mxu0 0.0
    %5578 = vmatpush1.msra.mxu0 %v5401
    %5579 = vmatprep.subr.mxu0 0.0
    %5580 = vmatpush1.msra.mxu0 %v5400
    %5581 = vmatprep.subr.mxu0 0.0
    %5582 = vmatpush1.msra.mxu0 %v5399
    %5583 = vmatprep.subr.mxu0 0.0
    %5584 = vmatpush1.msra.mxu0 %v5398
    %5585 = vmatprep.subr.mxu0 0.0
    %5586 = vmatpush1.msra.mxu0 %v5397
    %5587 = vmatprep.subr.mxu0 0.0
    %5588 = vmatpush1.msra.mxu0 %v5396
    %5589 = vmatprep.subr.mxu0 0.0
    %5590 = vmatpush1.msra.mxu0 %v5395
    %5591 = vmatprep.subr.mxu0 0.0
    %5592 = vmatpush1.msra.mxu0 %v5394
    %5593 = vmatprep.subr.mxu0 0.0
    %5594 = vmatpush1.msra.mxu0 %v5393
    %5595 = vmatprep.subr.mxu0 0.0
    %5596 = vmatpush1.msra.mxu0 %v5392
    %5597 = vmatprep.subr.mxu0 0.0
    %5598 = vmatpush1.msra.mxu0 %v5391
    %5599 = vmatprep.subr.mxu0 0.0
    %5600 = vmatpush2.msra.mxu0 0.0
    %5601 = vmatprep.subr.mxu0 0.0
    %5602 = vmatpush2.msra.mxu0 0.0
    %5603 = vmatprep.subr.mxu0 0.0
    %5604 = vmatpush2.msra.mxu0 0.0
    %5605 = vmatprep.subr.mxu0 0.0
    %5606 = vmatpush2.msra.mxu0 0.0
    %5607 = vmatprep.subr.mxu0 0.0
    %5608 = vmatpush2.msra.mxu0 0.0
    %5609 = vmatprep.subr.mxu0 0.0
    %5610 = vmatpush2.msra.mxu0 0.0
    %5611 = vmatprep.subr.mxu0 0.0
    %5612 = vmatpush2.msra.mxu0 0.0
    %5613 = vmatprep.subr.mxu0 0.0
    %5614 = vmatpush2.msra.mxu0 0.0
    %5615 = vmatprep.subr.mxu0 0.0
    %5616 = vmatpush2.msra.mxu0 0.0
    %5617 = vmatprep.subr.mxu0 0.0
    %5618 = vmatpush2.msra.mxu0 0.0
    %5619 = vmatprep.subr.mxu0 0.0
    %5620 = vmatpush2.msra.mxu0 0.0
    %5621 = vmatprep.subr.mxu0 0.0
    %5622 = vmatpush2.msra.mxu0 0.0
    %5623 = vmatprep.subr.mxu0 0.0
    %5624 = vmatpush2.msra.mxu0 0.0
    %5625 = vmatprep.subr.mxu0 0.0
    %5626 = vmatpush2.msra.mxu0 0.0
    %5627 = vmatprep.subr.mxu0 0.0
    %5628 = vmatpush2.msra.mxu0 0.0
    %5629 = vmatprep.subr.mxu0 0.0
    %5630 = vmatpush2.msra.mxu0 0.0
    %5631 = vmatprep.mubr.f32.mxu0 0.0
    %5632 = vmatmul.mubr.f32.gmra.mxu0 %v5378
    %v5633 = vpop.f32.mrf.mxu0
    %v5634 = vadd.f32 %v5504, %v5633
    %v5635 = vpop.f32.mrf.mxu0
    %5636 = vmatprep.mubr.f32.mxu0 0.0
    %5637 = vmatmul.mubr.f32.gmra.mxu0 %v5379
    %v5638 = vpop.f32.mrf.mxu0
    %v5639 = vadd.f32 %v5509, %v5638
    %v5640 = vpop.f32.mrf.mxu0
    %5641 = vmatprep.mubr.f32.mxu0 0.0
    %5642 = vmatmul.mubr.f32.gmra.mxu0 %v5380
    %v5643 = vpop.f32.mrf.mxu0
    %v5644 = vadd.f32 %v5514, %v5643
    %v5645 = vpop.f32.mrf.mxu0
    %5646 = vmatprep.mubr.f32.mxu0 0.0
    %5647 = vmatmul.mubr.f32.gmra.mxu0 %v5381
    %v5648 = vpop.f32.mrf.mxu0
    %v5649 = vadd.f32 %v5519, %v5648
    %v5650 = vpop.f32.mrf.mxu0
    %5651 = vmatprep.mubr.f32.mxu0 0.0
    %5652 = vmatmul.mubr.f32.gmra.mxu0 %v5382
    %v5653 = vpop.f32.mrf.mxu0
    %v5654 = vadd.f32 %v5524, %v5653
    %v5655 = vpop.f32.mrf.mxu0
    %5656 = vmatprep.mubr.f32.mxu0 0.0
    %5657 = vmatmul.mubr.f32.gmra.mxu0 %v5383
    %v5658 = vpop.f32.mrf.mxu0
    %v5659 = vadd.f32 %v5529, %v5658
    %v5660 = vpop.f32.mrf.mxu0
    %5661 = vmatprep.mubr.f32.mxu0 0.0
    %5662 = vmatmul.mubr.f32.gmra.mxu0 %v5384
    %v5663 = vpop.f32.mrf.mxu0
    %v5664 = vadd.f32 %v5534, %v5663
    %v5665 = vpop.f32.mrf.mxu0
    %5666 = vmatprep.mubr.f32.mxu0 0.0
    %5667 = vmatmul.mubr.f32.gmra.mxu0 %v5385
    %v5668 = vpop.f32.mrf.mxu0
    %v5669 = vadd.f32 %v5539, %v5668
    %v5670 = vpop.f32.mrf.mxu0
    %5671 = vmatprep.mubr.f32.mxu0 0.0
    %5672 = vmatmul.mubr.f32.gmra.mxu0 %v5386
    %v5673 = vpop.f32.mrf.mxu0
    %v5674 = vadd.f32 %v5544, %v5673
    %v5675 = vpop.f32.mrf.mxu0
    %5676 = vmatprep.mubr.f32.mxu0 0.0
    %5677 = vmatmul.mubr.f32.gmra.mxu0 %v5387
    %v5678 = vpop.f32.mrf.mxu0
    %v5679 = vadd.f32 %v5549, %v5678
    %v5680 = vpop.f32.mrf.mxu0
    %5681 = vmatprep.mubr.f32.mxu0 0.0
    %5682 = vmatmul.mubr.f32.gmra.mxu0 %v5388
    %v5683 = vpop.f32.mrf.mxu0
    %v5684 = vadd.f32 %v5554, %v5683
    %v5685 = vpop.f32.mrf.mxu0
    %5686 = vmatprep.mubr.f32.mxu0 0.0
    %5687 = vmatmul.mubr.f32.gmra.mxu0 %v5389
    %v5688 = vpop.f32.mrf.mxu0
    %v5689 = vadd.f32 %v5559, %v5688
    %v5690 = vpop.f32.mrf.mxu0
    %5691 = vmatprep.mubr.f32.mxu0 0.0
    %5692 = vmatmul.mubr.f32.gmra.mxu0 %v5390
    %v5693 = vpop.f32.mrf.mxu0
    %v5694 = vadd.f32 %v5564, %v5693
    %v5695 = vpop.f32.mrf.mxu0
    %5696 = vdwg.mxu0
    %v5697 = vld [vmem:[#allocation3 + $0xb] sm:$0xff]
    %v5698 = vld [vmem:[#allocation3 + $0x13] sm:$0xff]
    %v5699 = vld [vmem:[#allocation3 + $0x1b] sm:$0xff]
    %v5700 = vld [vmem:[#allocation3 + $0x23] sm:$0xff]
    %v5701 = vld [vmem:[#allocation3 + $0x2b] sm:$0xff]
    %v5702 = vld [vmem:[#allocation3 + $0x33] sm:$0xff]
    %v5703 = vld [vmem:[#allocation3 + $0x3b] sm:$0xff]
    %v5704 = vld [vmem:[#allocation3 + $0x43] sm:$0xff]
    %v5705 = vld [vmem:[#allocation3 + $0x4b] sm:$0xff]
    %v5706 = vld [vmem:[#allocation3 + $0x53] sm:$0xff]
    %v5707 = vld [vmem:[#allocation3 + $0x5b] sm:$0xff]
    %v5708 = vld [vmem:[#allocation3 + $0x63] sm:$0xff]
    %v5709 = vld [vmem:[#allocation3 + $0x6b] sm:$0xff]
    %s5710 = scalar_lea.vmem [#allocation12], 256
    %v5711 = vld [vmem:[%s5710] sm:$0xff]
    %v5712 = vld [vmem:[%s5710 + $0x8] sm:$0xff]
    %v5713 = vld [vmem:[%s5710 + $0x10] sm:$0xff]
    %v5714 = vld [vmem:[%s5710 + $0x18] sm:$0xff]
    %v5715 = vld [vmem:[%s5710 + $0x20] sm:$0xff]
    %v5716 = vld [vmem:[%s5710 + $0x28] sm:$0xff]
    %v5717 = vld [vmem:[%s5710 + $0x30] sm:$0xff]
    %v5718 = vld [vmem:[%s5710 + $0x38] sm:$0xff]
    %v5719 = vld [vmem:[%s5710 + $0x40] sm:$0xff]
    %v5720 = vld [vmem:[%s5710 + $0x48] sm:$0xff]
    %v5721 = vld [vmem:[%s5710 + $0x50] sm:$0xff]
    %v5722 = vld [vmem:[%s5710 + $0x58] sm:$0xff]
    %v5723 = vld [vmem:[%s5710 + $0x60] sm:$0xff]
    %v5724 = vld [vmem:[%s5710 + $0x68] sm:$0xff]
    %v5725 = vld [vmem:[%s5710 + $0x70] sm:$0xff]
    %v5726 = vld [vmem:[%s5710 + $0x78] sm:$0xff]
    %5727 = vmatprep.subr.mxu0 0.0
    %5728 = vmatpush1.msra.mxu0 %v5726
    %5729 = vmatprep.subr.mxu0 0.0
    %5730 = vmatpush1.msra.mxu0 %v5725
    %5731 = vmatprep.subr.mxu0 0.0
    %5732 = vmatpush1.msra.mxu0 %v5724
    %5733 = vmatprep.subr.mxu0 0.0
    %5734 = vmatpush1.msra.mxu0 %v5723
    %5735 = vmatprep.subr.mxu0 0.0
    %5736 = vmatpush1.msra.mxu0 %v5722
    %5737 = vmatprep.subr.mxu0 0.0
    %5738 = vmatpush1.msra.mxu0 %v5721
    %5739 = vmatprep.subr.mxu0 0.0
    %5740 = vmatpush1.msra.mxu0 %v5720
    %5741 = vmatprep.subr.mxu0 0.0
    %5742 = vmatpush1.msra.mxu0 %v5719
    %5743 = vmatprep.subr.mxu0 0.0
    %5744 = vmatpush1.msra.mxu0 %v5718
    %5745 = vmatprep.subr.mxu0 0.0
    %5746 = vmatpush1.msra.mxu0 %v5717
    %5747 = vmatprep.subr.mxu0 0.0
    %5748 = vmatpush1.msra.mxu0 %v5716
    %5749 = vmatprep.subr.mxu0 0.0
    %5750 = vmatpush1.msra.mxu0 %v5715
    %5751 = vmatprep.subr.mxu0 0.0
    %5752 = vmatpush1.msra.mxu0 %v5714
    %5753 = vmatprep.subr.mxu0 0.0
    %5754 = vmatpush1.msra.mxu0 %v5713
    %5755 = vmatprep.subr.mxu0 0.0
    %5756 = vmatpush1.msra.mxu0 %v5712
    %5757 = vmatprep.subr.mxu0 0.0
    %5758 = vmatpush1.msra.mxu0 %v5711
    %5759 = vmatprep.subr.mxu0 0.0
    %5760 = vmatpush2.msra.mxu0 0.0
    %5761 = vmatprep.subr.mxu0 0.0
    %5762 = vmatpush2.msra.mxu0 0.0
    %5763 = vmatprep.subr.mxu0 0.0
    %5764 = vmatpush2.msra.mxu0 0.0
    %5765 = vmatprep.subr.mxu0 0.0
    %5766 = vmatpush2.msra.mxu0 0.0
    %5767 = vmatprep.subr.mxu0 0.0
    %5768 = vmatpush2.msra.mxu0 0.0
    %5769 = vmatprep.subr.mxu0 0.0
    %5770 = vmatpush2.msra.mxu0 0.0
    %5771 = vmatprep.subr.mxu0 0.0
    %5772 = vmatpush2.msra.mxu0 0.0
    %5773 = vmatprep.subr.mxu0 0.0
    %5774 = vmatpush2.msra.mxu0 0.0
    %5775 = vmatprep.subr.mxu0 0.0
    %5776 = vmatpush2.msra.mxu0 0.0
    %5777 = vmatprep.subr.mxu0 0.0
    %5778 = vmatpush2.msra.mxu0 0.0
    %5779 = vmatprep.subr.mxu0 0.0
    %5780 = vmatpush2.msra.mxu0 0.0
    %5781 = vmatprep.subr.mxu0 0.0
    %5782 = vmatpush2.msra.mxu0 0.0
    %5783 = vmatprep.subr.mxu0 0.0
    %5784 = vmatpush2.msra.mxu0 0.0
    %5785 = vmatprep.subr.mxu0 0.0
    %5786 = vmatpush2.msra.mxu0 0.0
    %5787 = vmatprep.subr.mxu0 0.0
    %5788 = vmatpush2.msra.mxu0 0.0
    %5789 = vmatprep.subr.mxu0 0.0
    %5790 = vmatpush2.msra.mxu0 0.0
    %5791 = vmatprep.mubr.f32.mxu0 0.0
    %5792 = vmatmul.mubr.f32.gmra.mxu0 %v5697
    %v5793 = vpop.f32.mrf.mxu0
    %v5794 = vadd.f32 0.0, %v5793
    %v5795 = vpop.f32.mrf.mxu0
    %5796 = vmatprep.mubr.f32.mxu0 0.0
    %5797 = vmatmul.mubr.f32.gmra.mxu0 %v5698
    %v5798 = vpop.f32.mrf.mxu0
    %v5799 = vadd.f32 0.0, %v5798
    %v5800 = vpop.f32.mrf.mxu0
    %5801 = vmatprep.mubr.f32.mxu0 0.0
    %5802 = vmatmul.mubr.f32.gmra.mxu0 %v5699
    %v5803 = vpop.f32.mrf.mxu0
    %v5804 = vadd.f32 0.0, %v5803
    %v5805 = vpop.f32.mrf.mxu0
    %5806 = vmatprep.mubr.f32.mxu0 0.0
    %5807 = vmatmul.mubr.f32.gmra.mxu0 %v5700
    %v5808 = vpop.f32.mrf.mxu0
    %v5809 = vadd.f32 0.0, %v5808
    %v5810 = vpop.f32.mrf.mxu0
    %5811 = vmatprep.mubr.f32.mxu0 0.0
    %5812 = vmatmul.mubr.f32.gmra.mxu0 %v5701
    %v5813 = vpop.f32.mrf.mxu0
    %v5814 = vadd.f32 0.0, %v5813
    %v5815 = vpop.f32.mrf.mxu0
    %5816 = vmatprep.mubr.f32.mxu0 0.0
    %5817 = vmatmul.mubr.f32.gmra.mxu0 %v5702
    %v5818 = vpop.f32.mrf.mxu0
    %v5819 = vadd.f32 0.0, %v5818
    %v5820 = vpop.f32.mrf.mxu0
    %5821 = vmatprep.mubr.f32.mxu0 0.0
    %5822 = vmatmul.mubr.f32.gmra.mxu0 %v5703
    %v5823 = vpop.f32.mrf.mxu0
    %v5824 = vadd.f32 0.0, %v5823
    %v5825 = vpop.f32.mrf.mxu0
    %5826 = vmatprep.mubr.f32.mxu0 0.0
    %5827 = vmatmul.mubr.f32.gmra.mxu0 %v5704
    %v5828 = vpop.f32.mrf.mxu0
    %v5829 = vadd.f32 0.0, %v5828
    %v5830 = vpop.f32.mrf.mxu0
    %5831 = vmatprep.mubr.f32.mxu0 0.0
    %5832 = vmatmul.mubr.f32.gmra.mxu0 %v5705
    %v5833 = vpop.f32.mrf.mxu0
    %v5834 = vadd.f32 0.0, %v5833
    %v5835 = vpop.f32.mrf.mxu0
    %5836 = vmatprep.mubr.f32.mxu0 0.0
    %5837 = vmatmul.mubr.f32.gmra.mxu0 %v5706
    %v5838 = vpop.f32.mrf.mxu0
    %v5839 = vadd.f32 0.0, %v5838
    %v5840 = vpop.f32.mrf.mxu0
    %5841 = vmatprep.mubr.f32.mxu0 0.0
    %5842 = vmatmul.mubr.f32.gmra.mxu0 %v5707
    %v5843 = vpop.f32.mrf.mxu0
    %v5844 = vadd.f32 0.0, %v5843
    %v5845 = vpop.f32.mrf.mxu0
    %5846 = vmatprep.mubr.f32.mxu0 0.0
    %5847 = vmatmul.mubr.f32.gmra.mxu0 %v5708
    %v5848 = vpop.f32.mrf.mxu0
    %v5849 = vadd.f32 0.0, %v5848
    %v5850 = vpop.f32.mrf.mxu0
    %5851 = vmatprep.mubr.f32.mxu0 0.0
    %5852 = vmatmul.mubr.f32.gmra.mxu0 %v5709
    %v5853 = vpop.f32.mrf.mxu0
    %v5854 = vadd.f32 0.0, %v5853
    %v5855 = vpop.f32.mrf.mxu0
    %5856 = vdwg.mxu0
    %v5857 = vadd.f32 %v5634, %v5794
    %v5858 = vadd.f32 %v5639, %v5799
    %v5859 = vadd.f32 %v5644, %v5804
    %v5860 = vadd.f32 %v5649, %v5809
    %v5861 = vadd.f32 %v5654, %v5814
    %v5862 = vadd.f32 %v5659, %v5819
    %v5863 = vadd.f32 %v5664, %v5824
    %v5864 = vadd.f32 %v5669, %v5829
    %v5865 = vadd.f32 %v5674, %v5834
    %v5866 = vadd.f32 %v5679, %v5839
    %v5867 = vadd.f32 %v5684, %v5844
    %v5868 = vadd.f32 %v5689, %v5849
    %v5869 = vadd.f32 %v5694, %v5854
    %v5870 = vld [vmem:[#allocation3 + $0x10] sm:$0xff]
    %v5871 = vld [vmem:[#allocation3 + $0x18] sm:$0xff]
    %v5872 = vld [vmem:[#allocation3 + $0x20] sm:$0xff]
    %v5873 = vld [vmem:[#allocation3 + $0x28] sm:$0xff]
    %v5874 = vld [vmem:[#allocation3 + $0x30] sm:$0xff]
    %v5875 = vld [vmem:[#allocation3 + $0x38] sm:$0xff]
    %v5876 = vld [vmem:[#allocation3 + $0x40] sm:$0xff]
    %v5877 = vld [vmem:[#allocation3 + $0x48] sm:$0xff]
    %v5878 = vld [vmem:[#allocation3 + $0x50] sm:$0xff]
    %v5879 = vld [vmem:[#allocation3 + $0x58] sm:$0xff]
    %v5880 = vld [vmem:[#allocation3 + $0x60] sm:$0xff]
    %v5881 = vld [vmem:[#allocation3 + $0x68] sm:$0xff]
    %v5882 = vld [vmem:[#allocation3 + $0x70] sm:$0xff]
    %s5883 = scalar_lea.vmem [#allocation12], 384
    %v5884 = vld [vmem:[%s5883] sm:$0xff]
    %v5885 = vld [vmem:[%s5883 + $0x8] sm:$0xff]
    %v5886 = vld [vmem:[%s5883 + $0x10] sm:$0xff]
    %v5887 = vld [vmem:[%s5883 + $0x18] sm:$0xff]
    %v5888 = vld [vmem:[%s5883 + $0x20] sm:$0xff]
    %v5889 = vld [vmem:[%s5883 + $0x28] sm:$0xff]
    %v5890 = vld [vmem:[%s5883 + $0x30] sm:$0xff]
    %v5891 = vld [vmem:[%s5883 + $0x38] sm:$0xff]
    %v5892 = vld [vmem:[%s5883 + $0x40] sm:$0xff]
    %v5893 = vld [vmem:[%s5883 + $0x48] sm:$0xff]
    %v5894 = vld [vmem:[%s5883 + $0x50] sm:$0xff]
    %v5895 = vld [vmem:[%s5883 + $0x58] sm:$0xff]
    %v5896 = vld [vmem:[%s5883 + $0x60] sm:$0xff]
    %v5897 = vld [vmem:[%s5883 + $0x68] sm:$0xff]
    %v5898 = vld [vmem:[%s5883 + $0x70] sm:$0xff]
    %v5899 = vld [vmem:[%s5883 + $0x78] sm:$0xff]
    %5900 = vmatprep.subr.mxu0 0.0
    %5901 = vmatpush1.msra.mxu0 %v5899
    %5902 = vmatprep.subr.mxu0 0.0
    %5903 = vmatpush1.msra.mxu0 %v5898
    %5904 = vmatprep.subr.mxu0 0.0
    %5905 = vmatpush1.msra.mxu0 %v5897
    %5906 = vmatprep.subr.mxu0 0.0
    %5907 = vmatpush1.msra.mxu0 %v5896
    %5908 = vmatprep.subr.mxu0 0.0
    %5909 = vmatpush1.msra.mxu0 %v5895
    %5910 = vmatprep.subr.mxu0 0.0
    %5911 = vmatpush1.msra.mxu0 %v5894
    %5912 = vmatprep.subr.mxu0 0.0
    %5913 = vmatpush1.msra.mxu0 %v5893
    %5914 = vmatprep.subr.mxu0 0.0
    %5915 = vmatpush1.msra.mxu0 %v5892
    %5916 = vmatprep.subr.mxu0 0.0
    %5917 = vmatpush1.msra.mxu0 %v5891
    %5918 = vmatprep.subr.mxu0 0.0
    %5919 = vmatpush1.msra.mxu0 %v5890
    %5920 = vmatprep.subr.mxu0 0.0
    %5921 = vmatpush1.msra.mxu0 %v5889
    %5922 = vmatprep.subr.mxu0 0.0
    %5923 = vmatpush1.msra.mxu0 %v5888
    %5924 = vmatprep.subr.mxu0 0.0
    %5925 = vmatpush1.msra.mxu0 %v5887
    %5926 = vmatprep.subr.mxu0 0.0
    %5927 = vmatpush1.msra.mxu0 %v5886
    %5928 = vmatprep.subr.mxu0 0.0
    %5929 = vmatpush1.msra.mxu0 %v5885
    %5930 = vmatprep.subr.mxu0 0.0
    %5931 = vmatpush1.msra.mxu0 %v5884
    %5932 = vmatprep.subr.mxu0 0.0
    %5933 = vmatpush2.msra.mxu0 0.0
    %5934 = vmatprep.subr.mxu0 0.0
    %5935 = vmatpush2.msra.mxu0 0.0
    %5936 = vmatprep.subr.mxu0 0.0
    %5937 = vmatpush2.msra.mxu0 0.0
    %5938 = vmatprep.subr.mxu0 0.0
    %5939 = vmatpush2.msra.mxu0 0.0
    %5940 = vmatprep.subr.mxu0 0.0
    %5941 = vmatpush2.msra.mxu0 0.0
    %5942 = vmatprep.subr.mxu0 0.0
    %5943 = vmatpush2.msra.mxu0 0.0
    %5944 = vmatprep.subr.mxu0 0.0
    %5945 = vmatpush2.msra.mxu0 0.0
    %5946 = vmatprep.subr.mxu0 0.0
    %5947 = vmatpush2.msra.mxu0 0.0
    %5948 = vmatprep.subr.mxu0 0.0
    %5949 = vmatpush2.msra.mxu0 0.0
    %5950 = vmatprep.subr.mxu0 0.0
    %5951 = vmatpush2.msra.mxu0 0.0
    %5952 = vmatprep.subr.mxu0 0.0
    %5953 = vmatpush2.msra.mxu0 0.0
    %5954 = vmatprep.subr.mxu0 0.0
    %5955 = vmatpush2.msra.mxu0 0.0
    %5956 = vmatprep.subr.mxu0 0.0
    %5957 = vmatpush2.msra.mxu0 0.0
    %5958 = vmatprep.subr.mxu0 0.0
    %5959 = vmatpush2.msra.mxu0 0.0
    %5960 = vmatprep.subr.mxu0 0.0
    %5961 = vmatpush2.msra.mxu0 0.0
    %5962 = vmatprep.subr.mxu0 0.0
    %5963 = vmatpush2.msra.mxu0 0.0
    %5964 = vmatprep.mubr.f32.mxu0 0.0
    %5965 = vmatmul.mubr.f32.gmra.mxu0 %v5870
    %v5966 = vpop.f32.mrf.mxu0
    %v5967 = vadd.f32 0.0, %v5966
    %v5968 = vpop.f32.mrf.mxu0
    %5969 = vmatprep.mubr.f32.mxu0 0.0
    %5970 = vmatmul.mubr.f32.gmra.mxu0 %v5871
    %v5971 = vpop.f32.mrf.mxu0
    %v5972 = vadd.f32 0.0, %v5971
    %v5973 = vpop.f32.mrf.mxu0
    %5974 = vmatprep.mubr.f32.mxu0 0.0
    %5975 = vmatmul.mubr.f32.gmra.mxu0 %v5872
    %v5976 = vpop.f32.mrf.mxu0
    %v5977 = vadd.f32 0.0, %v5976
    %v5978 = vpop.f32.mrf.mxu0
    %5979 = vmatprep.mubr.f32.mxu0 0.0
    %5980 = vmatmul.mubr.f32.gmra.mxu0 %v5873
    %v5981 = vpop.f32.mrf.mxu0
    %v5982 = vadd.f32 0.0, %v5981
    %v5983 = vpop.f32.mrf.mxu0
    %5984 = vmatprep.mubr.f32.mxu0 0.0
    %5985 = vmatmul.mubr.f32.gmra.mxu0 %v5874
    %v5986 = vpop.f32.mrf.mxu0
    %v5987 = vadd.f32 0.0, %v5986
    %v5988 = vpop.f32.mrf.mxu0
    %5989 = vmatprep.mubr.f32.mxu0 0.0
    %5990 = vmatmul.mubr.f32.gmra.mxu0 %v5875
    %v5991 = vpop.f32.mrf.mxu0
    %v5992 = vadd.f32 0.0, %v5991
    %v5993 = vpop.f32.mrf.mxu0
    %5994 = vmatprep.mubr.f32.mxu0 0.0
    %5995 = vmatmul.mubr.f32.gmra.mxu0 %v5876
    %v5996 = vpop.f32.mrf.mxu0
    %v5997 = vadd.f32 0.0, %v5996
    %v5998 = vpop.f32.mrf.mxu0
    %5999 = vmatprep.mubr.f32.mxu0 0.0
    %6000 = vmatmul.mubr.f32.gmra.mxu0 %v5877
    %v6001 = vpop.f32.mrf.mxu0
    %v6002 = vadd.f32 0.0, %v6001
    %v6003 = vpop.f32.mrf.mxu0
    %6004 = vmatprep.mubr.f32.mxu0 0.0
    %6005 = vmatmul.mubr.f32.gmra.mxu0 %v5878
    %v6006 = vpop.f32.mrf.mxu0
    %v6007 = vadd.f32 0.0, %v6006
    %v6008 = vpop.f32.mrf.mxu0
    %6009 = vmatprep.mubr.f32.mxu0 0.0
    %6010 = vmatmul.mubr.f32.gmra.mxu0 %v5879
    %v6011 = vpop.f32.mrf.mxu0
    %v6012 = vadd.f32 0.0, %v6011
    %v6013 = vpop.f32.mrf.mxu0
    %6014 = vmatprep.mubr.f32.mxu0 0.0
    %6015 = vmatmul.mubr.f32.gmra.mxu0 %v5880
    %v6016 = vpop.f32.mrf.mxu0
    %v6017 = vadd.f32 0.0, %v6016
    %v6018 = vpop.f32.mrf.mxu0
    %6019 = vmatprep.mubr.f32.mxu0 0.0
    %6020 = vmatmul.mubr.f32.gmra.mxu0 %v5881
    %v6021 = vpop.f32.mrf.mxu0
    %v6022 = vadd.f32 0.0, %v6021
    %v6023 = vpop.f32.mrf.mxu0
    %6024 = vmatprep.mubr.f32.mxu0 0.0
    %6025 = vmatmul.mubr.f32.gmra.mxu0 %v5882
    %v6026 = vpop.f32.mrf.mxu0
    %v6027 = vadd.f32 0.0, %v6026
    %v6028 = vpop.f32.mrf.mxu0
    %6029 = vdwg.mxu0
    %v6030 = vadd.f32 %v5857, %v5967
    %v6031 = vadd.f32 %v5858, %v5972
    %v6032 = vadd.f32 %v5859, %v5977
    %v6033 = vadd.f32 %v5860, %v5982
    %v6034 = vadd.f32 %v5861, %v5987
    %v6035 = vadd.f32 %v5862, %v5992
    %v6036 = vadd.f32 %v5863, %v5997
    %v6037 = vadd.f32 %v5864, %v6002
    %v6038 = vadd.f32 %v5865, %v6007
    %v6039 = vadd.f32 %v5866, %v6012
    %v6040 = vadd.f32 %v5867, %v6017
    %v6041 = vadd.f32 %v5868, %v6022
    %v6042 = vadd.f32 %v5869, %v6027
    %v6043 = vld [vmem:[#allocation3 + $0x15] sm:$0xff]
    %v6044 = vld [vmem:[#allocation3 + $0x1d] sm:$0xff]
    %v6045 = vld [vmem:[#allocation3 + $0x25] sm:$0xff]
    %v6046 = vld [vmem:[#allocation3 + $0x2d] sm:$0xff]
    %v6047 = vld [vmem:[#allocation3 + $0x35] sm:$0xff]
    %v6048 = vld [vmem:[#allocation3 + $0x3d] sm:$0xff]
    %v6049 = vld [vmem:[#allocation3 + $0x45] sm:$0xff]
    %v6050 = vld [vmem:[#allocation3 + $0x4d] sm:$0xff]
    %v6051 = vld [vmem:[#allocation3 + $0x55] sm:$0xff]
    %v6052 = vld [vmem:[#allocation3 + $0x5d] sm:$0xff]
    %v6053 = vld [vmem:[#allocation3 + $0x65] sm:$0xff]
    %v6054 = vld [vmem:[#allocation3 + $0x6d] sm:$0xff]
    %v6055 = vld [vmem:[#allocation3 + $0x75] sm:$0xff]
    %s6056 = scalar_lea.vmem [#allocation12], 512
    %v6057 = vld [vmem:[%s6056] sm:$0xff]
    %v6058 = vld [vmem:[%s6056 + $0x8] sm:$0xff]
    %v6059 = vld [vmem:[%s6056 + $0x10] sm:$0xff]
    %v6060 = vld [vmem:[%s6056 + $0x18] sm:$0xff]
    %v6061 = vld [vmem:[%s6056 + $0x20] sm:$0xff]
    %v6062 = vld [vmem:[%s6056 + $0x28] sm:$0xff]
    %v6063 = vld [vmem:[%s6056 + $0x30] sm:$0xff]
    %v6064 = vld [vmem:[%s6056 + $0x38] sm:$0xff]
    %v6065 = vld [vmem:[%s6056 + $0x40] sm:$0xff]
    %v6066 = vld [vmem:[%s6056 + $0x48] sm:$0xff]
    %v6067 = vld [vmem:[%s6056 + $0x50] sm:$0xff]
    %v6068 = vld [vmem:[%s6056 + $0x58] sm:$0xff]
    %v6069 = vld [vmem:[%s6056 + $0x60] sm:$0xff]
    %v6070 = vld [vmem:[%s6056 + $0x68] sm:$0xff]
    %v6071 = vld [vmem:[%s6056 + $0x70] sm:$0xff]
    %v6072 = vld [vmem:[%s6056 + $0x78] sm:$0xff]
    %6073 = vmatprep.subr.mxu0 0.0
    %6074 = vmatpush1.msra.mxu0 %v6072
    %6075 = vmatprep.subr.mxu0 0.0
    %6076 = vmatpush1.msra.mxu0 %v6071
    %6077 = vmatprep.subr.mxu0 0.0
    %6078 = vmatpush1.msra.mxu0 %v6070
    %6079 = vmatprep.subr.mxu0 0.0
    %6080 = vmatpush1.msra.mxu0 %v6069
    %6081 = vmatprep.subr.mxu0 0.0
    %6082 = vmatpush1.msra.mxu0 %v6068
    %6083 = vmatprep.subr.mxu0 0.0
    %6084 = vmatpush1.msra.mxu0 %v6067
    %6085 = vmatprep.subr.mxu0 0.0
    %6086 = vmatpush1.msra.mxu0 %v6066
    %6087 = vmatprep.subr.mxu0 0.0
    %6088 = vmatpush1.msra.mxu0 %v6065
    %6089 = vmatprep.subr.mxu0 0.0
    %6090 = vmatpush1.msra.mxu0 %v6064
    %6091 = vmatprep.subr.mxu0 0.0
    %6092 = vmatpush1.msra.mxu0 %v6063
    %6093 = vmatprep.subr.mxu0 0.0
    %6094 = vmatpush1.msra.mxu0 %v6062
    %6095 = vmatprep.subr.mxu0 0.0
    %6096 = vmatpush1.msra.mxu0 %v6061
    %6097 = vmatprep.subr.mxu0 0.0
    %6098 = vmatpush1.msra.mxu0 %v6060
    %6099 = vmatprep.subr.mxu0 0.0
    %6100 = vmatpush1.msra.mxu0 %v6059
    %6101 = vmatprep.subr.mxu0 0.0
    %6102 = vmatpush1.msra.mxu0 %v6058
    %6103 = vmatprep.subr.mxu0 0.0
    %6104 = vmatpush1.msra.mxu0 %v6057
    %6105 = vmatprep.subr.mxu0 0.0
    %6106 = vmatpush2.msra.mxu0 0.0
    %6107 = vmatprep.subr.mxu0 0.0
    %6108 = vmatpush2.msra.mxu0 0.0
    %6109 = vmatprep.subr.mxu0 0.0
    %6110 = vmatpush2.msra.mxu0 0.0
    %6111 = vmatprep.subr.mxu0 0.0
    %6112 = vmatpush2.msra.mxu0 0.0
    %6113 = vmatprep.subr.mxu0 0.0
    %6114 = vmatpush2.msra.mxu0 0.0
    %6115 = vmatprep.subr.mxu0 0.0
    %6116 = vmatpush2.msra.mxu0 0.0
    %6117 = vmatprep.subr.mxu0 0.0
    %6118 = vmatpush2.msra.mxu0 0.0
    %6119 = vmatprep.subr.mxu0 0.0
    %6120 = vmatpush2.msra.mxu0 0.0
    %6121 = vmatprep.subr.mxu0 0.0
    %6122 = vmatpush2.msra.mxu0 0.0
    %6123 = vmatprep.subr.mxu0 0.0
    %6124 = vmatpush2.msra.mxu0 0.0
    %6125 = vmatprep.subr.mxu0 0.0
    %6126 = vmatpush2.msra.mxu0 0.0
    %6127 = vmatprep.subr.mxu0 0.0
    %6128 = vmatpush2.msra.mxu0 0.0
    %6129 = vmatprep.subr.mxu0 0.0
    %6130 = vmatpush2.msra.mxu0 0.0
    %6131 = vmatprep.subr.mxu0 0.0
    %6132 = vmatpush2.msra.mxu0 0.0
    %6133 = vmatprep.subr.mxu0 0.0
    %6134 = vmatpush2.msra.mxu0 0.0
    %6135 = vmatprep.subr.mxu0 0.0
    %6136 = vmatpush2.msra.mxu0 0.0
    %6137 = vmatprep.mubr.f32.mxu0 0.0
    %6138 = vmatmul.mubr.f32.gmra.mxu0 %v6043
    %v6139 = vpop.f32.mrf.mxu0
    %v6140 = vadd.f32 0.0, %v6139
    %v6141 = vpop.f32.mrf.mxu0
    %6142 = vmatprep.mubr.f32.mxu0 0.0
    %6143 = vmatmul.mubr.f32.gmra.mxu0 %v6044
    %v6144 = vpop.f32.mrf.mxu0
    %v6145 = vadd.f32 0.0, %v6144
    %v6146 = vpop.f32.mrf.mxu0
    %6147 = vmatprep.mubr.f32.mxu0 0.0
    %6148 = vmatmul.mubr.f32.gmra.mxu0 %v6045
    %v6149 = vpop.f32.mrf.mxu0
    %v6150 = vadd.f32 0.0, %v6149
    %v6151 = vpop.f32.mrf.mxu0
    %6152 = vmatprep.mubr.f32.mxu0 0.0
    %6153 = vmatmul.mubr.f32.gmra.mxu0 %v6046
    %v6154 = vpop.f32.mrf.mxu0
    %v6155 = vadd.f32 0.0, %v6154
    %v6156 = vpop.f32.mrf.mxu0
    %6157 = vmatprep.mubr.f32.mxu0 0.0
    %6158 = vmatmul.mubr.f32.gmra.mxu0 %v6047
    %v6159 = vpop.f32.mrf.mxu0
    %v6160 = vadd.f32 0.0, %v6159
    %v6161 = vpop.f32.mrf.mxu0
    %6162 = vmatprep.mubr.f32.mxu0 0.0
    %6163 = vmatmul.mubr.f32.gmra.mxu0 %v6048
    %v6164 = vpop.f32.mrf.mxu0
    %v6165 = vadd.f32 0.0, %v6164
    %v6166 = vpop.f32.mrf.mxu0
    %6167 = vmatprep.mubr.f32.mxu0 0.0
    %6168 = vmatmul.mubr.f32.gmra.mxu0 %v6049
    %v6169 = vpop.f32.mrf.mxu0
    %v6170 = vadd.f32 0.0, %v6169
    %v6171 = vpop.f32.mrf.mxu0
    %6172 = vmatprep.mubr.f32.mxu0 0.0
    %6173 = vmatmul.mubr.f32.gmra.mxu0 %v6050
    %v6174 = vpop.f32.mrf.mxu0
    %v6175 = vadd.f32 0.0, %v6174
    %v6176 = vpop.f32.mrf.mxu0
    %6177 = vmatprep.mubr.f32.mxu0 0.0
    %6178 = vmatmul.mubr.f32.gmra.mxu0 %v6051
    %v6179 = vpop.f32.mrf.mxu0
    %v6180 = vadd.f32 0.0, %v6179
    %v6181 = vpop.f32.mrf.mxu0
    %6182 = vmatprep.mubr.f32.mxu0 0.0
    %6183 = vmatmul.mubr.f32.gmra.mxu0 %v6052
    %v6184 = vpop.f32.mrf.mxu0
    %v6185 = vadd.f32 0.0, %v6184
    %v6186 = vpop.f32.mrf.mxu0
    %6187 = vmatprep.mubr.f32.mxu0 0.0
    %6188 = vmatmul.mubr.f32.gmra.mxu0 %v6053
    %v6189 = vpop.f32.mrf.mxu0
    %v6190 = vadd.f32 0.0, %v6189
    %v6191 = vpop.f32.mrf.mxu0
    %6192 = vmatprep.mubr.f32.mxu0 0.0
    %6193 = vmatmul.mubr.f32.gmra.mxu0 %v6054
    %v6194 = vpop.f32.mrf.mxu0
    %v6195 = vadd.f32 0.0, %v6194
    %v6196 = vpop.f32.mrf.mxu0
    %6197 = vmatprep.mubr.f32.mxu0 0.0
    %6198 = vmatmul.mubr.f32.gmra.mxu0 %v6055
    %v6199 = vpop.f32.mrf.mxu0
    %v6200 = vadd.f32 0.0, %v6199
    %v6201 = vpop.f32.mrf.mxu0
    %6202 = vdwg.mxu0
    %v6203 = vadd.f32 %v6030, %v6140
    %v6204 = vadd.f32 %v6031, %v6145
    %v6205 = vadd.f32 %v6032, %v6150
    %v6206 = vadd.f32 %v6033, %v6155
    %v6207 = vadd.f32 %v6034, %v6160
    %v6208 = vadd.f32 %v6035, %v6165
    %v6209 = vadd.f32 %v6036, %v6170
    %v6210 = vadd.f32 %v6037, %v6175
    %v6211 = vadd.f32 %v6038, %v6180
    %v6212 = vadd.f32 %v6039, %v6185
    %v6213 = vadd.f32 %v6040, %v6190
    %v6214 = vadd.f32 %v6041, %v6195
    %v6215 = vadd.f32 %v6042, %v6200
    %v6216 = vld [vmem:[#allocation3 + $0x1a] sm:$0xff]
    %v6217 = vld [vmem:[#allocation3 + $0x22] sm:$0xff]
    %v6218 = vld [vmem:[#allocation3 + $0x2a] sm:$0xff]
    %v6219 = vld [vmem:[#allocation3 + $0x32] sm:$0xff]
    %v6220 = vld [vmem:[#allocation3 + $0x3a] sm:$0xff]
    %v6221 = vld [vmem:[#allocation3 + $0x42] sm:$0xff]
    %v6222 = vld [vmem:[#allocation3 + $0x4a] sm:$0xff]
    %v6223 = vld [vmem:[#allocation3 + $0x52] sm:$0xff]
    %v6224 = vld [vmem:[#allocation3 + $0x5a] sm:$0xff]
    %v6225 = vld [vmem:[#allocation3 + $0x62] sm:$0xff]
    %v6226 = vld [vmem:[#allocation3 + $0x6a] sm:$0xff]
    %v6227 = vld [vmem:[#allocation3 + $0x72] sm:$0xff]
    %v6228 = vld [vmem:[#allocation3 + $0x7a] sm:$0xff]
    %s6229 = scalar_lea.vmem [#allocation12], 640
    %v6230 = vld [vmem:[%s6229] sm:$0xff]
    %v6231 = vld [vmem:[%s6229 + $0x8] sm:$0xff]
    %v6232 = vld [vmem:[%s6229 + $0x10] sm:$0xff]
    %v6233 = vld [vmem:[%s6229 + $0x18] sm:$0xff]
    %v6234 = vld [vmem:[%s6229 + $0x20] sm:$0xff]
    %v6235 = vld [vmem:[%s6229 + $0x28] sm:$0xff]
    %v6236 = vld [vmem:[%s6229 + $0x30] sm:$0xff]
    %v6237 = vld [vmem:[%s6229 + $0x38] sm:$0xff]
    %v6238 = vld [vmem:[%s6229 + $0x40] sm:$0xff]
    %v6239 = vld [vmem:[%s6229 + $0x48] sm:$0xff]
    %v6240 = vld [vmem:[%s6229 + $0x50] sm:$0xff]
    %v6241 = vld [vmem:[%s6229 + $0x58] sm:$0xff]
    %v6242 = vld [vmem:[%s6229 + $0x60] sm:$0xff]
    %v6243 = vld [vmem:[%s6229 + $0x68] sm:$0xff]
    %v6244 = vld [vmem:[%s6229 + $0x70] sm:$0xff]
    %v6245 = vld [vmem:[%s6229 + $0x78] sm:$0xff]
    %6246 = vmatprep.subr.mxu0 0.0
    %6247 = vmatpush1.msra.mxu0 %v6245
    %6248 = vmatprep.subr.mxu0 0.0
    %6249 = vmatpush1.msra.mxu0 %v6244
    %6250 = vmatprep.subr.mxu0 0.0
    %6251 = vmatpush1.msra.mxu0 %v6243
    %6252 = vmatprep.subr.mxu0 0.0
    %6253 = vmatpush1.msra.mxu0 %v6242
    %6254 = vmatprep.subr.mxu0 0.0
    %6255 = vmatpush1.msra.mxu0 %v6241
    %6256 = vmatprep.subr.mxu0 0.0
    %6257 = vmatpush1.msra.mxu0 %v6240
    %6258 = vmatprep.subr.mxu0 0.0
    %6259 = vmatpush1.msra.mxu0 %v6239
    %6260 = vmatprep.subr.mxu0 0.0
    %6261 = vmatpush1.msra.mxu0 %v6238
    %6262 = vmatprep.subr.mxu0 0.0
    %6263 = vmatpush1.msra.mxu0 %v6237
    %6264 = vmatprep.subr.mxu0 0.0
    %6265 = vmatpush1.msra.mxu0 %v6236
    %6266 = vmatprep.subr.mxu0 0.0
    %6267 = vmatpush1.msra.mxu0 %v6235
    %6268 = vmatprep.subr.mxu0 0.0
    %6269 = vmatpush1.msra.mxu0 %v6234
    %6270 = vmatprep.subr.mxu0 0.0
    %6271 = vmatpush1.msra.mxu0 %v6233
    %6272 = vmatprep.subr.mxu0 0.0
    %6273 = vmatpush1.msra.mxu0 %v6232
    %6274 = vmatprep.subr.mxu0 0.0
    %6275 = vmatpush1.msra.mxu0 %v6231
    %6276 = vmatprep.subr.mxu0 0.0
    %6277 = vmatpush1.msra.mxu0 %v6230
    %6278 = vmatprep.subr.mxu0 0.0
    %6279 = vmatpush2.msra.mxu0 0.0
    %6280 = vmatprep.subr.mxu0 0.0
    %6281 = vmatpush2.msra.mxu0 0.0
    %6282 = vmatprep.subr.mxu0 0.0
    %6283 = vmatpush2.msra.mxu0 0.0
    %6284 = vmatprep.subr.mxu0 0.0
    %6285 = vmatpush2.msra.mxu0 0.0
    %6286 = vmatprep.subr.mxu0 0.0
    %6287 = vmatpush2.msra.mxu0 0.0
    %6288 = vmatprep.subr.mxu0 0.0
    %6289 = vmatpush2.msra.mxu0 0.0
    %6290 = vmatprep.subr.mxu0 0.0
    %6291 = vmatpush2.msra.mxu0 0.0
    %6292 = vmatprep.subr.mxu0 0.0
    %6293 = vmatpush2.msra.mxu0 0.0
    %6294 = vmatprep.subr.mxu0 0.0
    %6295 = vmatpush2.msra.mxu0 0.0
    %6296 = vmatprep.subr.mxu0 0.0
    %6297 = vmatpush2.msra.mxu0 0.0
    %6298 = vmatprep.subr.mxu0 0.0
    %6299 = vmatpush2.msra.mxu0 0.0
    %6300 = vmatprep.subr.mxu0 0.0
    %6301 = vmatpush2.msra.mxu0 0.0
    %6302 = vmatprep.subr.mxu0 0.0
    %6303 = vmatpush2.msra.mxu0 0.0
    %6304 = vmatprep.subr.mxu0 0.0
    %6305 = vmatpush2.msra.mxu0 0.0
    %6306 = vmatprep.subr.mxu0 0.0
    %6307 = vmatpush2.msra.mxu0 0.0
    %6308 = vmatprep.subr.mxu0 0.0
    %6309 = vmatpush2.msra.mxu0 0.0
    %6310 = vmatprep.mubr.f32.mxu0 0.0
    %6311 = vmatmul.mubr.f32.gmra.mxu0 %v6216
    %v6312 = vpop.f32.mrf.mxu0
    %v6313 = vadd.f32 0.0, %v6312
    %v6314 = vpop.f32.mrf.mxu0
    %6315 = vmatprep.mubr.f32.mxu0 0.0
    %6316 = vmatmul.mubr.f32.gmra.mxu0 %v6217
    %v6317 = vpop.f32.mrf.mxu0
    %v6318 = vadd.f32 0.0, %v6317
    %v6319 = vpop.f32.mrf.mxu0
    %6320 = vmatprep.mubr.f32.mxu0 0.0
    %6321 = vmatmul.mubr.f32.gmra.mxu0 %v6218
    %v6322 = vpop.f32.mrf.mxu0
    %v6323 = vadd.f32 0.0, %v6322
    %v6324 = vpop.f32.mrf.mxu0
    %6325 = vmatprep.mubr.f32.mxu0 0.0
    %6326 = vmatmul.mubr.f32.gmra.mxu0 %v6219
    %v6327 = vpop.f32.mrf.mxu0
    %v6328 = vadd.f32 0.0, %v6327
    %v6329 = vpop.f32.mrf.mxu0
    %6330 = vmatprep.mubr.f32.mxu0 0.0
    %6331 = vmatmul.mubr.f32.gmra.mxu0 %v6220
    %v6332 = vpop.f32.mrf.mxu0
    %v6333 = vadd.f32 0.0, %v6332
    %v6334 = vpop.f32.mrf.mxu0
    %6335 = vmatprep.mubr.f32.mxu0 0.0
    %6336 = vmatmul.mubr.f32.gmra.mxu0 %v6221
    %v6337 = vpop.f32.mrf.mxu0
    %v6338 = vadd.f32 0.0, %v6337
    %v6339 = vpop.f32.mrf.mxu0
    %6340 = vmatprep.mubr.f32.mxu0 0.0
    %6341 = vmatmul.mubr.f32.gmra.mxu0 %v6222
    %v6342 = vpop.f32.mrf.mxu0
    %v6343 = vadd.f32 0.0, %v6342
    %v6344 = vpop.f32.mrf.mxu0
    %6345 = vmatprep.mubr.f32.mxu0 0.0
    %6346 = vmatmul.mubr.f32.gmra.mxu0 %v6223
    %v6347 = vpop.f32.mrf.mxu0
    %v6348 = vadd.f32 0.0, %v6347
    %v6349 = vpop.f32.mrf.mxu0
    %6350 = vmatprep.mubr.f32.mxu0 0.0
    %6351 = vmatmul.mubr.f32.gmra.mxu0 %v6224
    %v6352 = vpop.f32.mrf.mxu0
    %v6353 = vadd.f32 0.0, %v6352
    %v6354 = vpop.f32.mrf.mxu0
    %6355 = vmatprep.mubr.f32.mxu0 0.0
    %6356 = vmatmul.mubr.f32.gmra.mxu0 %v6225
    %v6357 = vpop.f32.mrf.mxu0
    %v6358 = vadd.f32 0.0, %v6357
    %v6359 = vpop.f32.mrf.mxu0
    %6360 = vmatprep.mubr.f32.mxu0 0.0
    %6361 = vmatmul.mubr.f32.gmra.mxu0 %v6226
    %v6362 = vpop.f32.mrf.mxu0
    %v6363 = vadd.f32 0.0, %v6362
    %v6364 = vpop.f32.mrf.mxu0
    %6365 = vmatprep.mubr.f32.mxu0 0.0
    %6366 = vmatmul.mubr.f32.gmra.mxu0 %v6227
    %v6367 = vpop.f32.mrf.mxu0
    %v6368 = vadd.f32 0.0, %v6367
    %v6369 = vpop.f32.mrf.mxu0
    %6370 = vmatprep.mubr.f32.mxu0 0.0
    %6371 = vmatmul.mubr.f32.gmra.mxu0 %v6228
    %v6372 = vpop.f32.mrf.mxu0
    %v6373 = vadd.f32 0.0, %v6372
    %v6374 = vpop.f32.mrf.mxu0
    %6375 = vdwg.mxu0
    %v6376 = vadd.f32 %v6203, %v6313
    %v6377 = vadd.f32 %v6204, %v6318
    %v6378 = vadd.f32 %v6205, %v6323
    %v6379 = vadd.f32 %v6206, %v6328
    %v6380 = vadd.f32 %v6207, %v6333
    %v6381 = vadd.f32 %v6208, %v6338
    %v6382 = vadd.f32 %v6209, %v6343
    %v6383 = vadd.f32 %v6210, %v6348
    %v6384 = vadd.f32 %v6211, %v6353
    %v6385 = vadd.f32 %v6212, %v6358
    %v6386 = vadd.f32 %v6213, %v6363
    %v6387 = vadd.f32 %v6214, %v6368
    %v6388 = vadd.f32 %v6215, %v6373
    %v6389 = vld [vmem:[#allocation3 + $0x1f] sm:$0xff]
    %v6390 = vld [vmem:[#allocation3 + $0x27] sm:$0xff]
    %v6391 = vld [vmem:[#allocation3 + $0x2f] sm:$0xff]
    %v6392 = vld [vmem:[#allocation3 + $0x37] sm:$0xff]
    %v6393 = vld [vmem:[#allocation3 + $0x3f] sm:$0xff]
    %v6394 = vld [vmem:[#allocation3 + $0x47] sm:$0xff]
    %v6395 = vld [vmem:[#allocation3 + $0x4f] sm:$0xff]
    %v6396 = vld [vmem:[#allocation3 + $0x57] sm:$0xff]
    %v6397 = vld [vmem:[#allocation3 + $0x5f] sm:$0xff]
    %v6398 = vld [vmem:[#allocation3 + $0x67] sm:$0xff]
    %v6399 = vld [vmem:[#allocation3 + $0x6f] sm:$0xff]
    %v6400 = vld [vmem:[#allocation3 + $0x77] sm:$0xff]
    %v6401 = vld [vmem:[#allocation3 + $0x7f] sm:$0xff]
    %s6402 = scalar_lea.vmem [#allocation12], 768
    %v6403 = vld [vmem:[%s6402] sm:$0xff]
    %v6404 = vld [vmem:[%s6402 + $0x8] sm:$0xff]
    %v6405 = vld [vmem:[%s6402 + $0x10] sm:$0xff]
    %v6406 = vld [vmem:[%s6402 + $0x18] sm:$0xff]
    %v6407 = vld [vmem:[%s6402 + $0x20] sm:$0xff]
    %v6408 = vld [vmem:[%s6402 + $0x28] sm:$0xff]
    %v6409 = vld [vmem:[%s6402 + $0x30] sm:$0xff]
    %v6410 = vld [vmem:[%s6402 + $0x38] sm:$0xff]
    %v6411 = vld [vmem:[%s6402 + $0x40] sm:$0xff]
    %v6412 = vld [vmem:[%s6402 + $0x48] sm:$0xff]
    %v6413 = vld [vmem:[%s6402 + $0x50] sm:$0xff]
    %v6414 = vld [vmem:[%s6402 + $0x58] sm:$0xff]
    %v6415 = vld [vmem:[%s6402 + $0x60] sm:$0xff]
    %v6416 = vld [vmem:[%s6402 + $0x68] sm:$0xff]
    %v6417 = vld [vmem:[%s6402 + $0x70] sm:$0xff]
    %v6418 = vld [vmem:[%s6402 + $0x78] sm:$0xff]
    %6419 = vmatprep.subr.mxu0 0.0
    %6420 = vmatpush1.msra.mxu0 %v6418
    %6421 = vmatprep.subr.mxu0 0.0
    %6422 = vmatpush1.msra.mxu0 %v6417
    %6423 = vmatprep.subr.mxu0 0.0
    %6424 = vmatpush1.msra.mxu0 %v6416
    %6425 = vmatprep.subr.mxu0 0.0
    %6426 = vmatpush1.msra.mxu0 %v6415
    %6427 = vmatprep.subr.mxu0 0.0
    %6428 = vmatpush1.msra.mxu0 %v6414
    %6429 = vmatprep.subr.mxu0 0.0
    %6430 = vmatpush1.msra.mxu0 %v6413
    %6431 = vmatprep.subr.mxu0 0.0
    %6432 = vmatpush1.msra.mxu0 %v6412
    %6433 = vmatprep.subr.mxu0 0.0
    %6434 = vmatpush1.msra.mxu0 %v6411
    %6435 = vmatprep.subr.mxu0 0.0
    %6436 = vmatpush1.msra.mxu0 %v6410
    %6437 = vmatprep.subr.mxu0 0.0
    %6438 = vmatpush1.msra.mxu0 %v6409
    %6439 = vmatprep.subr.mxu0 0.0
    %6440 = vmatpush1.msra.mxu0 %v6408
    %6441 = vmatprep.subr.mxu0 0.0
    %6442 = vmatpush1.msra.mxu0 %v6407
    %6443 = vmatprep.subr.mxu0 0.0
    %6444 = vmatpush1.msra.mxu0 %v6406
    %6445 = vmatprep.subr.mxu0 0.0
    %6446 = vmatpush1.msra.mxu0 %v6405
    %6447 = vmatprep.subr.mxu0 0.0
    %6448 = vmatpush1.msra.mxu0 %v6404
    %6449 = vmatprep.subr.mxu0 0.0
    %6450 = vmatpush1.msra.mxu0 %v6403
    %6451 = vmatprep.subr.mxu0 0.0
    %6452 = vmatpush2.msra.mxu0 0.0
    %6453 = vmatprep.subr.mxu0 0.0
    %6454 = vmatpush2.msra.mxu0 0.0
    %6455 = vmatprep.subr.mxu0 0.0
    %6456 = vmatpush2.msra.mxu0 0.0
    %6457 = vmatprep.subr.mxu0 0.0
    %6458 = vmatpush2.msra.mxu0 0.0
    %6459 = vmatprep.subr.mxu0 0.0
    %6460 = vmatpush2.msra.mxu0 0.0
    %6461 = vmatprep.subr.mxu0 0.0
    %6462 = vmatpush2.msra.mxu0 0.0
    %6463 = vmatprep.subr.mxu0 0.0
    %6464 = vmatpush2.msra.mxu0 0.0
    %6465 = vmatprep.subr.mxu0 0.0
    %6466 = vmatpush2.msra.mxu0 0.0
    %6467 = vmatprep.subr.mxu0 0.0
    %6468 = vmatpush2.msra.mxu0 0.0
    %6469 = vmatprep.subr.mxu0 0.0
    %6470 = vmatpush2.msra.mxu0 0.0
    %6471 = vmatprep.subr.mxu0 0.0
    %6472 = vmatpush2.msra.mxu0 0.0
    %6473 = vmatprep.subr.mxu0 0.0
    %6474 = vmatpush2.msra.mxu0 0.0
    %6475 = vmatprep.subr.mxu0 0.0
    %6476 = vmatpush2.msra.mxu0 0.0
    %6477 = vmatprep.subr.mxu0 0.0
    %6478 = vmatpush2.msra.mxu0 0.0
    %6479 = vmatprep.subr.mxu0 0.0
    %6480 = vmatpush2.msra.mxu0 0.0
    %6481 = vmatprep.subr.mxu0 0.0
    %6482 = vmatpush2.msra.mxu0 0.0
    %6483 = vmatprep.mubr.f32.mxu0 0.0
    %6484 = vmatmul.mubr.f32.gmra.mxu0 %v6389
    %v6485 = vpop.f32.mrf.mxu0
    %v6486 = vadd.f32 0.0, %v6485
    %v6487 = vpop.f32.mrf.mxu0
    %6488 = vmatprep.mubr.f32.mxu0 0.0
    %6489 = vmatmul.mubr.f32.gmra.mxu0 %v6390
    %v6490 = vpop.f32.mrf.mxu0
    %v6491 = vadd.f32 0.0, %v6490
    %v6492 = vpop.f32.mrf.mxu0
    %6493 = vmatprep.mubr.f32.mxu0 0.0
    %6494 = vmatmul.mubr.f32.gmra.mxu0 %v6391
    %v6495 = vpop.f32.mrf.mxu0
    %v6496 = vadd.f32 0.0, %v6495
    %v6497 = vpop.f32.mrf.mxu0
    %6498 = vmatprep.mubr.f32.mxu0 0.0
    %6499 = vmatmul.mubr.f32.gmra.mxu0 %v6392
    %v6500 = vpop.f32.mrf.mxu0
    %v6501 = vadd.f32 0.0, %v6500
    %v6502 = vpop.f32.mrf.mxu0
    %6503 = vmatprep.mubr.f32.mxu0 0.0
    %6504 = vmatmul.mubr.f32.gmra.mxu0 %v6393
    %v6505 = vpop.f32.mrf.mxu0
    %v6506 = vadd.f32 0.0, %v6505
    %v6507 = vpop.f32.mrf.mxu0
    %6508 = vmatprep.mubr.f32.mxu0 0.0
    %6509 = vmatmul.mubr.f32.gmra.mxu0 %v6394
    %v6510 = vpop.f32.mrf.mxu0
    %v6511 = vadd.f32 0.0, %v6510
    %v6512 = vpop.f32.mrf.mxu0
    %6513 = vmatprep.mubr.f32.mxu0 0.0
    %6514 = vmatmul.mubr.f32.gmra.mxu0 %v6395
    %v6515 = vpop.f32.mrf.mxu0
    %v6516 = vadd.f32 0.0, %v6515
    %v6517 = vpop.f32.mrf.mxu0
    %6518 = vmatprep.mubr.f32.mxu0 0.0
    %6519 = vmatmul.mubr.f32.gmra.mxu0 %v6396
    %v6520 = vpop.f32.mrf.mxu0
    %v6521 = vadd.f32 0.0, %v6520
    %v6522 = vpop.f32.mrf.mxu0
    %6523 = vmatprep.mubr.f32.mxu0 0.0
    %6524 = vmatmul.mubr.f32.gmra.mxu0 %v6397
    %v6525 = vpop.f32.mrf.mxu0
    %v6526 = vadd.f32 0.0, %v6525
    %v6527 = vpop.f32.mrf.mxu0
    %6528 = vmatprep.mubr.f32.mxu0 0.0
    %6529 = vmatmul.mubr.f32.gmra.mxu0 %v6398
    %v6530 = vpop.f32.mrf.mxu0
    %v6531 = vadd.f32 0.0, %v6530
    %v6532 = vpop.f32.mrf.mxu0
    %6533 = vmatprep.mubr.f32.mxu0 0.0
    %6534 = vmatmul.mubr.f32.gmra.mxu0 %v6399
    %v6535 = vpop.f32.mrf.mxu0
    %v6536 = vadd.f32 0.0, %v6535
    %v6537 = vpop.f32.mrf.mxu0
    %6538 = vmatprep.mubr.f32.mxu0 0.0
    %6539 = vmatmul.mubr.f32.gmra.mxu0 %v6400
    %v6540 = vpop.f32.mrf.mxu0
    %v6541 = vadd.f32 0.0, %v6540
    %v6542 = vpop.f32.mrf.mxu0
    %6543 = vmatprep.mubr.f32.mxu0 0.0
    %6544 = vmatmul.mubr.f32.gmra.mxu0 %v6401
    %v6545 = vpop.f32.mrf.mxu0
    %v6546 = vadd.f32 0.0, %v6545
    %v6547 = vpop.f32.mrf.mxu0
    %6548 = vdwg.mxu0
    %v6549 = vadd.f32 %v6376, %v6486
    %v6550 = vadd.f32 %v6377, %v6491
    %v6551 = vadd.f32 %v6378, %v6496
    %v6552 = vadd.f32 %v6379, %v6501
    %v6553 = vadd.f32 %v6380, %v6506
    %v6554 = vadd.f32 %v6381, %v6511
    %v6555 = vadd.f32 %v6382, %v6516
    %v6556 = vadd.f32 %v6383, %v6521
    %v6557 = vadd.f32 %v6384, %v6526
    %v6558 = vadd.f32 %v6385, %v6531
    %v6559 = vadd.f32 %v6386, %v6536
    %v6560 = vadd.f32 %v6387, %v6541
    %v6561 = vadd.f32 %v6388, %v6546
    %v6562 = vld [vmem:[%s12] sm:$0x1]
    %v6564 = vlaneseq
    %v6565 = vshrl.u32 %v6564, 7
    %v6566 = vsub.s32 0, %v6565
    %v6567 = vrot.slane %v6562, %v6566
    %v6569 = vadd.f32 %v6549, %v6567
    %v6570 = vadd.f32 %v6550, %v6567
    %v6571 = vadd.f32 %v6551, %v6567
    %v6572 = vadd.f32 %v6552, %v6567
    %v6573 = vadd.f32 %v6553, %v6567
    %v6574 = vadd.f32 %v6554, %v6567
    %v6575 = vadd.f32 %v6555, %v6567
    %v6576 = vadd.f32 %v6556, %v6567
    %v6577 = vadd.f32 %v6557, %v6567
    %v6578 = vadd.f32 %v6558, %v6567
    %v6579 = vadd.f32 %v6559, %v6567
    %v6580 = vadd.f32 %v6560, %v6567
    %v6581 = vadd.f32 %v6561, %v6567
    %6582 = vst [vmem:[#allocation2 + $0x10] sm:$0xff] %v6569
    %6583 = vst [vmem:[#allocation2 + $0x18] sm:$0xff] %v6570
    %6584 = vst [vmem:[#allocation2 + $0x20] sm:$0xff] %v6571
    %6585 = vst [vmem:[#allocation2 + $0x28] sm:$0xff] %v6572
    %6586 = vst [vmem:[#allocation2 + $0x30] sm:$0xff] %v6573
    %6587 = vst [vmem:[#allocation2 + $0x38] sm:$0xff] %v6574
    %6588 = vst [vmem:[#allocation2 + $0x40] sm:$0xff] %v6575
    %6589 = vst [vmem:[#allocation2 + $0x48] sm:$0xff] %v6576
    %6590 = vst [vmem:[#allocation2 + $0x50] sm:$0xff] %v6577
    %6591 = vst [vmem:[#allocation2 + $0x58] sm:$0xff] %v6578
    %6592 = vst [vmem:[#allocation2 + $0x60] sm:$0xff] %v6579
    %6593 = vst [vmem:[#allocation2 + $0x68] sm:$0xff] %v6580
    %6594 = vst [vmem:[#allocation2 + $0x70] sm:$0xff] %v6581
    %6595 = vst [vmem:[#allocation2 + $0xe] sm:$0x3] 0.0
    %6596 = vst [vmem:[#allocation2 + $0x74] sm:$0x3] 0.0
    %v6597 = vld [vmem:[#allocation2 + $0xe] sm:$0xff]
    %v6598 = vld [vmem:[#allocation2 + $0x16] sm:$0xff]
    %v6599 = vld [vmem:[#allocation2 + $0x1e] sm:$0xff]
    %v6600 = vld [vmem:[#allocation2 + $0x26] sm:$0xff]
    %v6601 = vld [vmem:[#allocation2 + $0x2e] sm:$0xff]
    %v6602 = vld [vmem:[#allocation2 + $0x36] sm:$0xff]
    %v6603 = vld [vmem:[#allocation2 + $0x3e] sm:$0xff]
    %v6604 = vld [vmem:[#allocation2 + $0x46] sm:$0xff]
    %v6605 = vld [vmem:[#allocation2 + $0x4e] sm:$0xff]
    %v6606 = vld [vmem:[#allocation2 + $0x56] sm:$0xff]
    %v6607 = vld [vmem:[#allocation2 + $0x5e] sm:$0xff]
    %v6608 = vld [vmem:[#allocation2 + $0x66] sm:$0xff]
    %v6609 = vld [vmem:[#allocation2 + $0x6e] sm:$0xff]
    %v6610 = vld [vmem:[#allocation2 + $0xf] sm:$0xff]
    %v6611 = vld [vmem:[#allocation2 + $0x17] sm:$0xff]
    %v6612 = vld [vmem:[#allocation2 + $0x1f] sm:$0xff]
    %v6613 = vld [vmem:[#allocation2 + $0x27] sm:$0xff]
    %v6614 = vld [vmem:[#allocation2 + $0x2f] sm:$0xff]
    %v6615 = vld [vmem:[#allocation2 + $0x37] sm:$0xff]
    %v6616 = vld [vmem:[#allocation2 + $0x3f] sm:$0xff]
    %v6617 = vld [vmem:[#allocation2 + $0x47] sm:$0xff]
    %v6618 = vld [vmem:[#allocation2 + $0x4f] sm:$0xff]
    %v6619 = vld [vmem:[#allocation2 + $0x57] sm:$0xff]
    %v6620 = vld [vmem:[#allocation2 + $0x5f] sm:$0xff]
    %v6621 = vld [vmem:[#allocation2 + $0x67] sm:$0xff]
    %v6622 = vld [vmem:[#allocation2 + $0x6f] sm:$0xff]
    %v6623 = vadd.f32 %v6597, %v6610
    %v6624 = vadd.f32 %v6598, %v6611
    %v6625 = vadd.f32 %v6599, %v6612
    %v6626 = vadd.f32 %v6600, %v6613
    %v6627 = vadd.f32 %v6601, %v6614
    %v6628 = vadd.f32 %v6602, %v6615
    %v6629 = vadd.f32 %v6603, %v6616
    %v6630 = vadd.f32 %v6604, %v6617
    %v6631 = vadd.f32 %v6605, %v6618
    %v6632 = vadd.f32 %v6606, %v6619
    %v6633 = vadd.f32 %v6607, %v6620
    %v6634 = vadd.f32 %v6608, %v6621
    %v6635 = vadd.f32 %v6609, %v6622
    %v6636 = vld [vmem:[#allocation2 + $0x10] sm:$0xff]
    %v6637 = vld [vmem:[#allocation2 + $0x18] sm:$0xff]
    %v6638 = vld [vmem:[#allocation2 + $0x20] sm:$0xff]
    %v6639 = vld [vmem:[#allocation2 + $0x28] sm:$0xff]
    %v6640 = vld [vmem:[#allocation2 + $0x30] sm:$0xff]
    %v6641 = vld [vmem:[#allocation2 + $0x38] sm:$0xff]
    %v6642 = vld [vmem:[#allocation2 + $0x40] sm:$0xff]
    %v6643 = vld [vmem:[#allocation2 + $0x48] sm:$0xff]
    %v6644 = vld [vmem:[#allocation2 + $0x50] sm:$0xff]
    %v6645 = vld [vmem:[#allocation2 + $0x58] sm:$0xff]
    %v6646 = vld [vmem:[#allocation2 + $0x60] sm:$0xff]
    %v6647 = vld [vmem:[#allocation2 + $0x68] sm:$0xff]
    %v6648 = vld [vmem:[#allocation2 + $0x70] sm:$0xff]
    %v6649 = vadd.f32 %v6623, %v6636
    %v6650 = vadd.f32 %v6624, %v6637
    %v6651 = vadd.f32 %v6625, %v6638
    %v6652 = vadd.f32 %v6626, %v6639
    %v6653 = vadd.f32 %v6627, %v6640
    %v6654 = vadd.f32 %v6628, %v6641
    %v6655 = vadd.f32 %v6629, %v6642
    %v6656 = vadd.f32 %v6630, %v6643
    %v6657 = vadd.f32 %v6631, %v6644
    %v6658 = vadd.f32 %v6632, %v6645
    %v6659 = vadd.f32 %v6633, %v6646
    %v6660 = vadd.f32 %v6634, %v6647
    %v6661 = vadd.f32 %v6635, %v6648
    %v6662 = vld [vmem:[#allocation2 + $0x11] sm:$0xff]
    %v6663 = vld [vmem:[#allocation2 + $0x19] sm:$0xff]
    %v6664 = vld [vmem:[#allocation2 + $0x21] sm:$0xff]
    %v6665 = vld [vmem:[#allocation2 + $0x29] sm:$0xff]
    %v6666 = vld [vmem:[#allocation2 + $0x31] sm:$0xff]
    %v6667 = vld [vmem:[#allocation2 + $0x39] sm:$0xff]
    %v6668 = vld [vmem:[#allocation2 + $0x41] sm:$0xff]
    %v6669 = vld [vmem:[#allocation2 + $0x49] sm:$0xff]
    %v6670 = vld [vmem:[#allocation2 + $0x51] sm:$0xff]
    %v6671 = vld [vmem:[#allocation2 + $0x59] sm:$0xff]
    %v6672 = vld [vmem:[#allocation2 + $0x61] sm:$0xff]
    %v6673 = vld [vmem:[#allocation2 + $0x69] sm:$0xff]
    %v6674 = vld [vmem:[#allocation2 + $0x71] sm:$0xff]
    %v6675 = vadd.f32 %v6649, %v6662
    %v6676 = vadd.f32 %v6650, %v6663
    %v6677 = vadd.f32 %v6651, %v6664
    %v6678 = vadd.f32 %v6652, %v6665
    %v6679 = vadd.f32 %v6653, %v6666
    %v6680 = vadd.f32 %v6654, %v6667
    %v6681 = vadd.f32 %v6655, %v6668
    %v6682 = vadd.f32 %v6656, %v6669
    %v6683 = vadd.f32 %v6657, %v6670
    %v6684 = vadd.f32 %v6658, %v6671
    %v6685 = vadd.f32 %v6659, %v6672
    %v6686 = vadd.f32 %v6660, %v6673
    %v6687 = vadd.f32 %v6661, %v6674
    %v6688 = vld [vmem:[#allocation2 + $0x12] sm:$0xff]
    %v6689 = vld [vmem:[#allocation2 + $0x1a] sm:$0xff]
    %v6690 = vld [vmem:[#allocation2 + $0x22] sm:$0xff]
    %v6691 = vld [vmem:[#allocation2 + $0x2a] sm:$0xff]
    %v6692 = vld [vmem:[#allocation2 + $0x32] sm:$0xff]
    %v6693 = vld [vmem:[#allocation2 + $0x3a] sm:$0xff]
    %v6694 = vld [vmem:[#allocation2 + $0x42] sm:$0xff]
    %v6695 = vld [vmem:[#allocation2 + $0x4a] sm:$0xff]
    %v6696 = vld [vmem:[#allocation2 + $0x52] sm:$0xff]
    %v6697 = vld [vmem:[#allocation2 + $0x5a] sm:$0xff]
    %v6698 = vld [vmem:[#allocation2 + $0x62] sm:$0xff]
    %v6699 = vld [vmem:[#allocation2 + $0x6a] sm:$0xff]
    %v6700 = vld [vmem:[#allocation2 + $0x72] sm:$0xff]
    %v6701 = vadd.f32 %v6675, %v6688
    %v6702 = vadd.f32 %v6676, %v6689
    %v6703 = vadd.f32 %v6677, %v6690
    %v6704 = vadd.f32 %v6678, %v6691
    %v6705 = vadd.f32 %v6679, %v6692
    %v6706 = vadd.f32 %v6680, %v6693
    %v6707 = vadd.f32 %v6681, %v6694
    %v6708 = vadd.f32 %v6682, %v6695
    %v6709 = vadd.f32 %v6683, %v6696
    %v6710 = vadd.f32 %v6684, %v6697
    %v6711 = vadd.f32 %v6685, %v6698
    %v6712 = vadd.f32 %v6686, %v6699
    %v6713 = vadd.f32 %v6687, %v6700
    %v6714 = vmul.f32 %v6701, %v174
    %v6715 = vmul.f32 %v6702, %v175
    %v6716 = vmul.f32 %v6703, %v176
    %v6717 = vmul.f32 %v6704, %v177
    %v6718 = vmul.f32 %v6705, %v178
    %v6719 = vmul.f32 %v6706, %v179
    %v6720 = vmul.f32 %v6707, %v180
    %v6721 = vmul.f32 %v6708, %v181
    %v6722 = vmul.f32 %v6709, %v182
    %v6723 = vmul.f32 %v6710, %v183
    %v6724 = vmul.f32 %v6711, %v184
    %v6725 = vmul.f32 %v6712, %v185
    %v6726 = vmul.f32 %v6713, %v186
    %v6727 = vmax.f32 %v6714, 0.0
    %v6728 = vmax.f32 %v6715, 0.0
    %v6729 = vmax.f32 %v6716, 0.0
    %v6730 = vmax.f32 %v6717, 0.0
    %v6731 = vmax.f32 %v6718, 0.0
    %v6732 = vmax.f32 %v6719, 0.0
    %v6733 = vmax.f32 %v6720, 0.0
    %v6734 = vmax.f32 %v6721, 0.0
    %v6735 = vmax.f32 %v6722, 0.0
    %v6736 = vmax.f32 %v6723, 0.0
    %v6737 = vmax.f32 %v6724, 0.0
    %v6738 = vmax.f32 %v6725, 0.0
    %v6739 = vmax.f32 %v6726, 0.0
    %6740 = vst [vmem:[#allocation3 + $0x10] sm:$0xff] %v6727
    %6741 = vst [vmem:[#allocation3 + $0x18] sm:$0xff] %v6728
    %6742 = vst [vmem:[#allocation3 + $0x20] sm:$0xff] %v6729
    %6743 = vst [vmem:[#allocation3 + $0x28] sm:$0xff] %v6730
    %6744 = vst [vmem:[#allocation3 + $0x30] sm:$0xff] %v6731
    %6745 = vst [vmem:[#allocation3 + $0x38] sm:$0xff] %v6732
    %6746 = vst [vmem:[#allocation3 + $0x40] sm:$0xff] %v6733
    %6747 = vst [vmem:[#allocation3 + $0x48] sm:$0xff] %v6734
    %6748 = vst [vmem:[#allocation3 + $0x50] sm:$0xff] %v6735
    %6749 = vst [vmem:[#allocation3 + $0x58] sm:$0xff] %v6736
    %6750 = vst [vmem:[#allocation3 + $0x60] sm:$0xff] %v6737
    %6751 = vst [vmem:[#allocation3 + $0x68] sm:$0xff] %v6738
    %6752 = vst [vmem:[#allocation3 + $0x70] sm:$0xff] %v6739
    %v6753 = vld [vmem:[#allocation3 + $0x11] sm:$0xff]
    %v6754 = vld [vmem:[#allocation3 + $0x19] sm:$0xff]
    %6755 = vmatprep.subr.mxu0 0.0
    %6756 = vmatpush1.msra.mxu0 0.0
    %6757 = vmatprep.subr.mxu0 0.0
    %6758 = vmatpush1.msra.mxu0 0.0
    %6759 = vmatprep.subr.mxu0 0.0
    %6760 = vmatpush1.msra.mxu0 0.0
    %6761 = vmatprep.subr.mxu0 0.0
    %6762 = vmatpush1.msra.mxu0 0.0
    %6763 = vmatprep.subr.mxu0 0.0
    %6764 = vmatpush1.msra.mxu0 0.0
    %6765 = vmatprep.subr.mxu0 0.0
    %6766 = vmatpush1.msra.mxu0 0.0
    %6767 = vmatprep.subr.mxu0 0.0
    %6768 = vmatpush1.msra.mxu0 0.0
    %6769 = vmatprep.subr.mxu0 0.0
    %6770 = vmatpush1.msra.mxu0 0.0
    %6771 = vmatprep.subr.mxu0 0.0
    %6772 = vmatpush1.msra.mxu0 0.0
    %6773 = vmatprep.subr.mxu0 0.0
    %6774 = vmatpush1.msra.mxu0 0.0
    %6775 = vmatprep.subr.mxu0 0.0
    %6776 = vmatpush1.msra.mxu0 0.0
    %6777 = vmatprep.subr.mxu0 0.0
    %6778 = vmatpush1.msra.mxu0 0.0
    %6779 = vmatprep.subr.mxu0 0.0
    %6780 = vmatpush1.msra.mxu0 0.0
    %6781 = vmatprep.subr.mxu0 0.0
    %6782 = vmatpush1.msra.mxu0 0.0
    %6783 = vmatprep.subr.mxu0 0.0
    %6784 = vmatpush1.msra.mxu0 %v6754
    %6785 = vmatprep.subr.mxu0 0.0
    %6786 = vmatpush1.msra.mxu0 %v6753
    %6787 = vmatprep.subr.mxu0 0.0
    %6788 = vmatpush2.msra.mxu0 0.0
    %6789 = vmatprep.subr.mxu0 0.0
    %6790 = vmatpush2.msra.mxu0 0.0
    %6791 = vmatprep.subr.mxu0 0.0
    %6792 = vmatpush2.msra.mxu0 0.0
    %6793 = vmatprep.subr.mxu0 0.0
    %6794 = vmatpush2.msra.mxu0 0.0
    %6795 = vmatprep.subr.mxu0 0.0
    %6796 = vmatpush2.msra.mxu0 0.0
    %6797 = vmatprep.subr.mxu0 0.0
    %6798 = vmatpush2.msra.mxu0 0.0
    %6799 = vmatprep.subr.mxu0 0.0
    %6800 = vmatpush2.msra.mxu0 0.0
    %6801 = vmatprep.subr.mxu0 0.0
    %6802 = vmatpush2.msra.mxu0 0.0
    %6803 = vmatprep.subr.mxu0 0.0
    %6804 = vmatpush2.msra.mxu0 0.0
    %6805 = vmatprep.subr.mxu0 0.0
    %6806 = vmatpush2.msra.mxu0 0.0
    %6807 = vmatprep.subr.mxu0 0.0
    %6808 = vmatpush2.msra.mxu0 0.0
    %6809 = vmatprep.subr.mxu0 0.0
    %6810 = vmatpush2.msra.mxu0 0.0
    %6811 = vmatprep.subr.mxu0 0.0
    %6812 = vmatpush2.msra.mxu0 0.0
    %6813 = vmatprep.subr.mxu0 0.0
    %6814 = vmatpush2.msra.mxu0 0.0
    %6815 = vmatprep.subr.mxu0 0.0
    %6816 = vmatpush2.msra.mxu0 0.0
    %6817 = vmatprep.subr.mxu0 0.0
    %6818 = vmatpush2.msra.mxu0 0.0
    %6819 = vmatprep.mubr.f32.mxu0 0.0
    %6820 = vmatmul.mubr.f32.gmra.mxu0 %v426
    %v6821 = vpop.f32.mrf.mxu0
    %v6822 = vadd.f32 0.0, %v6821
    %v6823 = vpop.f32.mrf.mxu0
    %6824 = vmatprep.mubr.f32.mxu0 0.0
    %6825 = vmatmul.mubr.f32.gmra.mxu0 %v429
    %v6826 = vpop.f32.mrf.mxu0
    %v6827 = vadd.f32 0.0, %v6826
    %v6828 = vpop.f32.mrf.mxu0
    %6829 = vdwg.mxu0
    %6830 = vst [vmem:[#allocation3] sm:$0xff] %v6822
    %6831 = vst [vmem:[#allocation3 + $0x8] sm:$0xff] %v6827
    %v6832 = vld [vmem:[#allocation3 + $0x63] sm:$0xff]
    %v6833 = vld [vmem:[#allocation3 + $0x6b] sm:$0xff]
    %6834 = vmatprep.subr.mxu0 0.0
    %6835 = vmatpush1.msra.mxu0 0.0
    %6836 = vmatprep.subr.mxu0 0.0
    %6837 = vmatpush1.msra.mxu0 0.0
    %6838 = vmatprep.subr.mxu0 0.0
    %6839 = vmatpush1.msra.mxu0 0.0
    %6840 = vmatprep.subr.mxu0 0.0
    %6841 = vmatpush1.msra.mxu0 0.0
    %6842 = vmatprep.subr.mxu0 0.0
    %6843 = vmatpush1.msra.mxu0 0.0
    %6844 = vmatprep.subr.mxu0 0.0
    %6845 = vmatpush1.msra.mxu0 0.0
    %6846 = vmatprep.subr.mxu0 0.0
    %6847 = vmatpush1.msra.mxu0 0.0
    %6848 = vmatprep.subr.mxu0 0.0
    %6849 = vmatpush1.msra.mxu0 0.0
    %6850 = vmatprep.subr.mxu0 0.0
    %6851 = vmatpush1.msra.mxu0 0.0
    %6852 = vmatprep.subr.mxu0 0.0
    %6853 = vmatpush1.msra.mxu0 0.0
    %6854 = vmatprep.subr.mxu0 0.0
    %6855 = vmatpush1.msra.mxu0 0.0
    %6856 = vmatprep.subr.mxu0 0.0
    %6857 = vmatpush1.msra.mxu0 0.0
    %6858 = vmatprep.subr.mxu0 0.0
    %6859 = vmatpush1.msra.mxu0 0.0
    %6860 = vmatprep.subr.mxu0 0.0
    %6861 = vmatpush1.msra.mxu0 0.0
    %6862 = vmatprep.subr.mxu0 0.0
    %6863 = vmatpush1.msra.mxu0 %v6833
    %6864 = vmatprep.subr.mxu0 0.0
    %6865 = vmatpush1.msra.mxu0 %v6832
    %6866 = vmatprep.subr.mxu0 0.0
    %6867 = vmatpush2.msra.mxu0 0.0
    %6868 = vmatprep.subr.mxu0 0.0
    %6869 = vmatpush2.msra.mxu0 0.0
    %6870 = vmatprep.subr.mxu0 0.0
    %6871 = vmatpush2.msra.mxu0 0.0
    %6872 = vmatprep.subr.mxu0 0.0
    %6873 = vmatpush2.msra.mxu0 0.0
    %6874 = vmatprep.subr.mxu0 0.0
    %6875 = vmatpush2.msra.mxu0 0.0
    %6876 = vmatprep.subr.mxu0 0.0
    %6877 = vmatpush2.msra.mxu0 0.0
    %6878 = vmatprep.subr.mxu0 0.0
    %6879 = vmatpush2.msra.mxu0 0.0
    %6880 = vmatprep.subr.mxu0 0.0
    %6881 = vmatpush2.msra.mxu0 0.0
    %6882 = vmatprep.subr.mxu0 0.0
    %6883 = vmatpush2.msra.mxu0 0.0
    %6884 = vmatprep.subr.mxu0 0.0
    %6885 = vmatpush2.msra.mxu0 0.0
    %6886 = vmatprep.subr.mxu0 0.0
    %6887 = vmatpush2.msra.mxu0 0.0
    %6888 = vmatprep.subr.mxu0 0.0
    %6889 = vmatpush2.msra.mxu0 0.0
    %6890 = vmatprep.subr.mxu0 0.0
    %6891 = vmatpush2.msra.mxu0 0.0
    %6892 = vmatprep.subr.mxu0 0.0
    %6893 = vmatpush2.msra.mxu0 0.0
    %6894 = vmatprep.subr.mxu0 0.0
    %6895 = vmatpush2.msra.mxu0 0.0
    %6896 = vmatprep.subr.mxu0 0.0
    %6897 = vmatpush2.msra.mxu0 0.0
    %6898 = vmatprep.mubr.f32.mxu0 0.0
    %6899 = vmatmul.mubr.f32.gmra.mxu0 %v426
    %v6900 = vpop.f32.mrf.mxu0
    %v6901 = vadd.f32 0.0, %v6900
    %v6902 = vpop.f32.mrf.mxu0
    %6903 = vmatprep.mubr.f32.mxu0 0.0
    %6904 = vmatmul.mubr.f32.gmra.mxu0 %v429
    %v6905 = vpop.f32.mrf.mxu0
    %v6906 = vadd.f32 0.0, %v6905
    %v6907 = vpop.f32.mrf.mxu0
    %6908 = vdwg.mxu0
    %6909 = vst [vmem:[#allocation3 + $0x74] sm:$0xff] %v6901
    %6910 = vst [vmem:[#allocation3 + $0x7c] sm:$0xff] %v6906
    %v6911 = vld [vmem:[#allocation3 + $0x1] sm:$0xff]
    %v6912 = vld [vmem:[#allocation3 + $0x9] sm:$0xff]
    %v6913 = vld [vmem:[#allocation3 + $0x11] sm:$0xff]
    %v6914 = vld [vmem:[#allocation3 + $0x19] sm:$0xff]
    %v6915 = vld [vmem:[#allocation3 + $0x21] sm:$0xff]
    %v6916 = vld [vmem:[#allocation3 + $0x29] sm:$0xff]
    %v6917 = vld [vmem:[#allocation3 + $0x31] sm:$0xff]
    %v6918 = vld [vmem:[#allocation3 + $0x39] sm:$0xff]
    %v6919 = vld [vmem:[#allocation3 + $0x41] sm:$0xff]
    %v6920 = vld [vmem:[#allocation3 + $0x49] sm:$0xff]
    %v6921 = vld [vmem:[#allocation3 + $0x51] sm:$0xff]
    %v6922 = vld [vmem:[#allocation3 + $0x59] sm:$0xff]
    %v6923 = vld [vmem:[#allocation3 + $0x61] sm:$0xff]
    %v6924 = vld [vmem:[#allocation13] sm:$0xff]
    %v6925 = vld [vmem:[#allocation13 + $0x8] sm:$0xff]
    %v6926 = vld [vmem:[#allocation13 + $0x10] sm:$0xff]
    %v6927 = vld [vmem:[#allocation13 + $0x18] sm:$0xff]
    %v6928 = vld [vmem:[#allocation13 + $0x20] sm:$0xff]
    %v6929 = vld [vmem:[#allocation13 + $0x28] sm:$0xff]
    %v6930 = vld [vmem:[#allocation13 + $0x30] sm:$0xff]
    %v6931 = vld [vmem:[#allocation13 + $0x38] sm:$0xff]
    %v6932 = vld [vmem:[#allocation13 + $0x40] sm:$0xff]
    %v6933 = vld [vmem:[#allocation13 + $0x48] sm:$0xff]
    %v6934 = vld [vmem:[#allocation13 + $0x50] sm:$0xff]
    %v6935 = vld [vmem:[#allocation13 + $0x58] sm:$0xff]
    %v6936 = vld [vmem:[#allocation13 + $0x60] sm:$0xff]
    %v6937 = vld [vmem:[#allocation13 + $0x68] sm:$0xff]
    %v6938 = vld [vmem:[#allocation13 + $0x70] sm:$0xff]
    %v6939 = vld [vmem:[#allocation13 + $0x78] sm:$0xff]
    %v6940 = vld [vmem:[#allocation3 + $0x6] sm:$0xff]
    %v6941 = vld [vmem:[#allocation3 + $0xe] sm:$0xff]
    %v6942 = vld [vmem:[#allocation3 + $0x16] sm:$0xff]
    %v6943 = vld [vmem:[#allocation3 + $0x1e] sm:$0xff]
    %v6944 = vld [vmem:[#allocation3 + $0x26] sm:$0xff]
    %v6945 = vld [vmem:[#allocation3 + $0x2e] sm:$0xff]
    %v6946 = vld [vmem:[#allocation3 + $0x36] sm:$0xff]
    %v6947 = vld [vmem:[#allocation3 + $0x3e] sm:$0xff]
    %v6948 = vld [vmem:[#allocation3 + $0x46] sm:$0xff]
    %v6949 = vld [vmem:[#allocation3 + $0x4e] sm:$0xff]
    %v6950 = vld [vmem:[#allocation3 + $0x56] sm:$0xff]
    %v6951 = vld [vmem:[#allocation3 + $0x5e] sm:$0xff]
    %v6952 = vld [vmem:[#allocation3 + $0x66] sm:$0xff]
    %s6953 = scalar_lea.vmem [#allocation13], 128
    %v6954 = vld [vmem:[%s6953] sm:$0xff]
    %v6955 = vld [vmem:[%s6953 + $0x8] sm:$0xff]
    %v6956 = vld [vmem:[%s6953 + $0x10] sm:$0xff]
    %v6957 = vld [vmem:[%s6953 + $0x18] sm:$0xff]
    %v6958 = vld [vmem:[%s6953 + $0x20] sm:$0xff]
    %v6959 = vld [vmem:[%s6953 + $0x28] sm:$0xff]
    %v6960 = vld [vmem:[%s6953 + $0x30] sm:$0xff]
    %v6961 = vld [vmem:[%s6953 + $0x38] sm:$0xff]
    %v6962 = vld [vmem:[%s6953 + $0x40] sm:$0xff]
    %v6963 = vld [vmem:[%s6953 + $0x48] sm:$0xff]
    %v6964 = vld [vmem:[%s6953 + $0x50] sm:$0xff]
    %v6965 = vld [vmem:[%s6953 + $0x58] sm:$0xff]
    %v6966 = vld [vmem:[%s6953 + $0x60] sm:$0xff]
    %v6967 = vld [vmem:[%s6953 + $0x68] sm:$0xff]
    %v6968 = vld [vmem:[%s6953 + $0x70] sm:$0xff]
    %v6969 = vld [vmem:[%s6953 + $0x78] sm:$0xff]
    %6970 = vmatprep.subr.mxu0 0.0
    %6971 = vmatpush1.msra.mxu0 %v6969
    %6972 = vmatprep.subr.mxu0 0.0
    %6973 = vmatpush1.msra.mxu0 %v6968
    %6974 = vmatprep.subr.mxu0 0.0
    %6975 = vmatpush1.msra.mxu0 %v6967
    %6976 = vmatprep.subr.mxu0 0.0
    %6977 = vmatpush1.msra.mxu0 %v6966
    %6978 = vmatprep.subr.mxu0 0.0
    %6979 = vmatpush1.msra.mxu0 %v6965
    %6980 = vmatprep.subr.mxu0 0.0
    %6981 = vmatpush1.msra.mxu0 %v6964
    %6982 = vmatprep.subr.mxu0 0.0
    %6983 = vmatpush1.msra.mxu0 %v6963
    %6984 = vmatprep.subr.mxu0 0.0
    %6985 = vmatpush1.msra.mxu0 %v6962
    %6986 = vmatprep.subr.mxu0 0.0
    %6987 = vmatpush1.msra.mxu0 %v6961
    %6988 = vmatprep.subr.mxu0 0.0
    %6989 = vmatpush1.msra.mxu0 %v6960
    %6990 = vmatprep.subr.mxu0 0.0
    %6991 = vmatpush1.msra.mxu0 %v6959
    %6992 = vmatprep.subr.mxu0 0.0
    %6993 = vmatpush1.msra.mxu0 %v6958
    %6994 = vmatprep.subr.mxu0 0.0
    %6995 = vmatpush1.msra.mxu0 %v6957
    %6996 = vmatprep.subr.mxu0 0.0
    %6997 = vmatpush1.msra.mxu0 %v6956
    %6998 = vmatprep.subr.mxu0 0.0
    %6999 = vmatpush1.msra.mxu0 %v6955
    %7000 = vmatprep.subr.mxu0 0.0
    %7001 = vmatpush1.msra.mxu0 %v6954
    %7002 = vmatprep.subr.mxu0 0.0
    %7003 = vmatpush2.msra.mxu0 0.0
    %7004 = vmatprep.subr.mxu0 0.0
    %7005 = vmatpush2.msra.mxu0 0.0
    %7006 = vmatprep.subr.mxu0 0.0
    %7007 = vmatpush2.msra.mxu0 0.0
    %7008 = vmatprep.subr.mxu0 0.0
    %7009 = vmatpush2.msra.mxu0 0.0
    %7010 = vmatprep.subr.mxu0 0.0
    %7011 = vmatpush2.msra.mxu0 0.0
    %7012 = vmatprep.subr.mxu0 0.0
    %7013 = vmatpush2.msra.mxu0 0.0
    %7014 = vmatprep.subr.mxu0 0.0
    %7015 = vmatpush2.msra.mxu0 0.0
    %7016 = vmatprep.subr.mxu0 0.0
    %7017 = vmatpush2.msra.mxu0 0.0
    %7018 = vmatprep.subr.mxu0 0.0
    %7019 = vmatpush2.msra.mxu0 0.0
    %7020 = vmatprep.subr.mxu0 0.0
    %7021 = vmatpush2.msra.mxu0 0.0
    %7022 = vmatprep.subr.mxu0 0.0
    %7023 = vmatpush2.msra.mxu0 0.0
    %7024 = vmatprep.subr.mxu0 0.0
    %7025 = vmatpush2.msra.mxu0 0.0
    %7026 = vmatprep.subr.mxu0 0.0
    %7027 = vmatpush2.msra.mxu0 0.0
    %7028 = vmatprep.subr.mxu0 0.0
    %7029 = vmatpush2.msra.mxu0 0.0
    %7030 = vmatprep.subr.mxu0 0.0
    %7031 = vmatpush2.msra.mxu0 0.0
    %7032 = vmatprep.subr.mxu0 0.0
    %7033 = vmatpush2.msra.mxu0 0.0
    %7034 = vmatprep.mubr.f32.mxu0 0.0
    %7035 = vmatmul.mubr.f32.gmra.mxu0 %v6940
    %v7036 = vpop.f32.mrf.mxu0
    %v7037 = vadd.f32 0.0, %v7036
    %v7038 = vpop.f32.mrf.mxu0
    %7039 = vmatprep.mubr.f32.mxu0 0.0
    %7040 = vmatmul.mubr.f32.gmra.mxu0 %v6941
    %v7041 = vpop.f32.mrf.mxu0
    %v7042 = vadd.f32 0.0, %v7041
    %v7043 = vpop.f32.mrf.mxu0
    %7044 = vmatprep.mubr.f32.mxu0 0.0
    %7045 = vmatmul.mubr.f32.gmra.mxu0 %v6942
    %v7046 = vpop.f32.mrf.mxu0
    %v7047 = vadd.f32 0.0, %v7046
    %v7048 = vpop.f32.mrf.mxu0
    %7049 = vmatprep.mubr.f32.mxu0 0.0
    %7050 = vmatmul.mubr.f32.gmra.mxu0 %v6943
    %v7051 = vpop.f32.mrf.mxu0
    %v7052 = vadd.f32 0.0, %v7051
    %v7053 = vpop.f32.mrf.mxu0
    %7054 = vmatprep.mubr.f32.mxu0 0.0
    %7055 = vmatmul.mubr.f32.gmra.mxu0 %v6944
    %v7056 = vpop.f32.mrf.mxu0
    %v7057 = vadd.f32 0.0, %v7056
    %v7058 = vpop.f32.mrf.mxu0
    %7059 = vmatprep.mubr.f32.mxu0 0.0
    %7060 = vmatmul.mubr.f32.gmra.mxu0 %v6945
    %v7061 = vpop.f32.mrf.mxu0
    %v7062 = vadd.f32 0.0, %v7061
    %v7063 = vpop.f32.mrf.mxu0
    %7064 = vmatprep.mubr.f32.mxu0 0.0
    %7065 = vmatmul.mubr.f32.gmra.mxu0 %v6946
    %v7066 = vpop.f32.mrf.mxu0
    %v7067 = vadd.f32 0.0, %v7066
    %v7068 = vpop.f32.mrf.mxu0
    %7069 = vmatprep.mubr.f32.mxu0 0.0
    %7070 = vmatmul.mubr.f32.gmra.mxu0 %v6947
    %v7071 = vpop.f32.mrf.mxu0
    %v7072 = vadd.f32 0.0, %v7071
    %v7073 = vpop.f32.mrf.mxu0
    %7074 = vmatprep.mubr.f32.mxu0 0.0
    %7075 = vmatmul.mubr.f32.gmra.mxu0 %v6948
    %v7076 = vpop.f32.mrf.mxu0
    %v7077 = vadd.f32 0.0, %v7076
    %v7078 = vpop.f32.mrf.mxu0
    %7079 = vmatprep.mubr.f32.mxu0 0.0
    %7080 = vmatmul.mubr.f32.gmra.mxu0 %v6949
    %v7081 = vpop.f32.mrf.mxu0
    %v7082 = vadd.f32 0.0, %v7081
    %v7083 = vpop.f32.mrf.mxu0
    %7084 = vmatprep.mubr.f32.mxu0 0.0
    %7085 = vmatmul.mubr.f32.gmra.mxu0 %v6950
    %v7086 = vpop.f32.mrf.mxu0
    %v7087 = vadd.f32 0.0, %v7086
    %v7088 = vpop.f32.mrf.mxu0
    %7089 = vmatprep.mubr.f32.mxu0 0.0
    %7090 = vmatmul.mubr.f32.gmra.mxu0 %v6951
    %v7091 = vpop.f32.mrf.mxu0
    %v7092 = vadd.f32 0.0, %v7091
    %v7093 = vpop.f32.mrf.mxu0
    %7094 = vmatprep.mubr.f32.mxu0 0.0
    %7095 = vmatmul.mubr.f32.gmra.mxu0 %v6952
    %v7096 = vpop.f32.mrf.mxu0
    %v7097 = vadd.f32 0.0, %v7096
    %v7098 = vpop.f32.mrf.mxu0
    %7099 = vdwg.mxu0
    %7100 = vmatprep.subr.mxu0 0.0
    %7101 = vmatpush1.msra.mxu0 %v6939
    %7102 = vmatprep.subr.mxu0 0.0
    %7103 = vmatpush1.msra.mxu0 %v6938
    %7104 = vmatprep.subr.mxu0 0.0
    %7105 = vmatpush1.msra.mxu0 %v6937
    %7106 = vmatprep.subr.mxu0 0.0
    %7107 = vmatpush1.msra.mxu0 %v6936
    %7108 = vmatprep.subr.mxu0 0.0
    %7109 = vmatpush1.msra.mxu0 %v6935
    %7110 = vmatprep.subr.mxu0 0.0
    %7111 = vmatpush1.msra.mxu0 %v6934
    %7112 = vmatprep.subr.mxu0 0.0
    %7113 = vmatpush1.msra.mxu0 %v6933
    %7114 = vmatprep.subr.mxu0 0.0
    %7115 = vmatpush1.msra.mxu0 %v6932
    %7116 = vmatprep.subr.mxu0 0.0
    %7117 = vmatpush1.msra.mxu0 %v6931
    %7118 = vmatprep.subr.mxu0 0.0
    %7119 = vmatpush1.msra.mxu0 %v6930
    %7120 = vmatprep.subr.mxu0 0.0
    %7121 = vmatpush1.msra.mxu0 %v6929
    %7122 = vmatprep.subr.mxu0 0.0
    %7123 = vmatpush1.msra.mxu0 %v6928
    %7124 = vmatprep.subr.mxu0 0.0
    %7125 = vmatpush1.msra.mxu0 %v6927
    %7126 = vmatprep.subr.mxu0 0.0
    %7127 = vmatpush1.msra.mxu0 %v6926
    %7128 = vmatprep.subr.mxu0 0.0
    %7129 = vmatpush1.msra.mxu0 %v6925
    %7130 = vmatprep.subr.mxu0 0.0
    %7131 = vmatpush1.msra.mxu0 %v6924
    %7132 = vmatprep.subr.mxu0 0.0
    %7133 = vmatpush2.msra.mxu0 0.0
    %7134 = vmatprep.subr.mxu0 0.0
    %7135 = vmatpush2.msra.mxu0 0.0
    %7136 = vmatprep.subr.mxu0 0.0
    %7137 = vmatpush2.msra.mxu0 0.0
    %7138 = vmatprep.subr.mxu0 0.0
    %7139 = vmatpush2.msra.mxu0 0.0
    %7140 = vmatprep.subr.mxu0 0.0
    %7141 = vmatpush2.msra.mxu0 0.0
    %7142 = vmatprep.subr.mxu0 0.0
    %7143 = vmatpush2.msra.mxu0 0.0
    %7144 = vmatprep.subr.mxu0 0.0
    %7145 = vmatpush2.msra.mxu0 0.0
    %7146 = vmatprep.subr.mxu0 0.0
    %7147 = vmatpush2.msra.mxu0 0.0
    %7148 = vmatprep.subr.mxu0 0.0
    %7149 = vmatpush2.msra.mxu0 0.0
    %7150 = vmatprep.subr.mxu0 0.0
    %7151 = vmatpush2.msra.mxu0 0.0
    %7152 = vmatprep.subr.mxu0 0.0
    %7153 = vmatpush2.msra.mxu0 0.0
    %7154 = vmatprep.subr.mxu0 0.0
    %7155 = vmatpush2.msra.mxu0 0.0
    %7156 = vmatprep.subr.mxu0 0.0
    %7157 = vmatpush2.msra.mxu0 0.0
    %7158 = vmatprep.subr.mxu0 0.0
    %7159 = vmatpush2.msra.mxu0 0.0
    %7160 = vmatprep.subr.mxu0 0.0
    %7161 = vmatpush2.msra.mxu0 0.0
    %7162 = vmatprep.subr.mxu0 0.0
    %7163 = vmatpush2.msra.mxu0 0.0
    %7164 = vmatprep.mubr.f32.mxu0 0.0
    %7165 = vmatmul.mubr.f32.gmra.mxu0 %v6911
    %v7166 = vpop.f32.mrf.mxu0
    %v7167 = vadd.f32 %v7037, %v7166
    %v7168 = vpop.f32.mrf.mxu0
    %7169 = vmatprep.mubr.f32.mxu0 0.0
    %7170 = vmatmul.mubr.f32.gmra.mxu0 %v6912
    %v7171 = vpop.f32.mrf.mxu0
    %v7172 = vadd.f32 %v7042, %v7171
    %v7173 = vpop.f32.mrf.mxu0
    %7174 = vmatprep.mubr.f32.mxu0 0.0
    %7175 = vmatmul.mubr.f32.gmra.mxu0 %v6913
    %v7176 = vpop.f32.mrf.mxu0
    %v7177 = vadd.f32 %v7047, %v7176
    %v7178 = vpop.f32.mrf.mxu0
    %7179 = vmatprep.mubr.f32.mxu0 0.0
    %7180 = vmatmul.mubr.f32.gmra.mxu0 %v6914
    %v7181 = vpop.f32.mrf.mxu0
    %v7182 = vadd.f32 %v7052, %v7181
    %v7183 = vpop.f32.mrf.mxu0
    %7184 = vmatprep.mubr.f32.mxu0 0.0
    %7185 = vmatmul.mubr.f32.gmra.mxu0 %v6915
    %v7186 = vpop.f32.mrf.mxu0
    %v7187 = vadd.f32 %v7057, %v7186
    %v7188 = vpop.f32.mrf.mxu0
    %7189 = vmatprep.mubr.f32.mxu0 0.0
    %7190 = vmatmul.mubr.f32.gmra.mxu0 %v6916
    %v7191 = vpop.f32.mrf.mxu0
    %v7192 = vadd.f32 %v7062, %v7191
    %v7193 = vpop.f32.mrf.mxu0
    %7194 = vmatprep.mubr.f32.mxu0 0.0
    %7195 = vmatmul.mubr.f32.gmra.mxu0 %v6917
    %v7196 = vpop.f32.mrf.mxu0
    %v7197 = vadd.f32 %v7067, %v7196
    %v7198 = vpop.f32.mrf.mxu0
    %7199 = vmatprep.mubr.f32.mxu0 0.0
    %7200 = vmatmul.mubr.f32.gmra.mxu0 %v6918
    %v7201 = vpop.f32.mrf.mxu0
    %v7202 = vadd.f32 %v7072, %v7201
    %v7203 = vpop.f32.mrf.mxu0
    %7204 = vmatprep.mubr.f32.mxu0 0.0
    %7205 = vmatmul.mubr.f32.gmra.mxu0 %v6919
    %v7206 = vpop.f32.mrf.mxu0
    %v7207 = vadd.f32 %v7077, %v7206
    %v7208 = vpop.f32.mrf.mxu0
    %7209 = vmatprep.mubr.f32.mxu0 0.0
    %7210 = vmatmul.mubr.f32.gmra.mxu0 %v6920
    %v7211 = vpop.f32.mrf.mxu0
    %v7212 = vadd.f32 %v7082, %v7211
    %v7213 = vpop.f32.mrf.mxu0
    %7214 = vmatprep.mubr.f32.mxu0 0.0
    %7215 = vmatmul.mubr.f32.gmra.mxu0 %v6921
    %v7216 = vpop.f32.mrf.mxu0
    %v7217 = vadd.f32 %v7087, %v7216
    %v7218 = vpop.f32.mrf.mxu0
    %7219 = vmatprep.mubr.f32.mxu0 0.0
    %7220 = vmatmul.mubr.f32.gmra.mxu0 %v6922
    %v7221 = vpop.f32.mrf.mxu0
    %v7222 = vadd.f32 %v7092, %v7221
    %v7223 = vpop.f32.mrf.mxu0
    %7224 = vmatprep.mubr.f32.mxu0 0.0
    %7225 = vmatmul.mubr.f32.gmra.mxu0 %v6923
    %v7226 = vpop.f32.mrf.mxu0
    %v7227 = vadd.f32 %v7097, %v7226
    %v7228 = vpop.f32.mrf.mxu0
    %7229 = vdwg.mxu0
    %v7230 = vld [vmem:[#allocation3 + $0xb] sm:$0xff]
    %v7231 = vld [vmem:[#allocation3 + $0x13] sm:$0xff]
    %v7232 = vld [vmem:[#allocation3 + $0x1b] sm:$0xff]
    %v7233 = vld [vmem:[#allocation3 + $0x23] sm:$0xff]
    %v7234 = vld [vmem:[#allocation3 + $0x2b] sm:$0xff]
    %v7235 = vld [vmem:[#allocation3 + $0x33] sm:$0xff]
    %v7236 = vld [vmem:[#allocation3 + $0x3b] sm:$0xff]
    %v7237 = vld [vmem:[#allocation3 + $0x43] sm:$0xff]
    %v7238 = vld [vmem:[#allocation3 + $0x4b] sm:$0xff]
    %v7239 = vld [vmem:[#allocation3 + $0x53] sm:$0xff]
    %v7240 = vld [vmem:[#allocation3 + $0x5b] sm:$0xff]
    %v7241 = vld [vmem:[#allocation3 + $0x63] sm:$0xff]
    %v7242 = vld [vmem:[#allocation3 + $0x6b] sm:$0xff]
    %s7243 = scalar_lea.vmem [#allocation13], 256
    %v7244 = vld [vmem:[%s7243] sm:$0xff]
    %v7245 = vld [vmem:[%s7243 + $0x8] sm:$0xff]
    %v7246 = vld [vmem:[%s7243 + $0x10] sm:$0xff]
    %v7247 = vld [vmem:[%s7243 + $0x18] sm:$0xff]
    %v7248 = vld [vmem:[%s7243 + $0x20] sm:$0xff]
    %v7249 = vld [vmem:[%s7243 + $0x28] sm:$0xff]
    %v7250 = vld [vmem:[%s7243 + $0x30] sm:$0xff]
    %v7251 = vld [vmem:[%s7243 + $0x38] sm:$0xff]
    %v7252 = vld [vmem:[%s7243 + $0x40] sm:$0xff]
    %v7253 = vld [vmem:[%s7243 + $0x48] sm:$0xff]
    %v7254 = vld [vmem:[%s7243 + $0x50] sm:$0xff]
    %v7255 = vld [vmem:[%s7243 + $0x58] sm:$0xff]
    %v7256 = vld [vmem:[%s7243 + $0x60] sm:$0xff]
    %v7257 = vld [vmem:[%s7243 + $0x68] sm:$0xff]
    %v7258 = vld [vmem:[%s7243 + $0x70] sm:$0xff]
    %v7259 = vld [vmem:[%s7243 + $0x78] sm:$0xff]
    %7260 = vmatprep.subr.mxu0 0.0
    %7261 = vmatpush1.msra.mxu0 %v7259
    %7262 = vmatprep.subr.mxu0 0.0
    %7263 = vmatpush1.msra.mxu0 %v7258
    %7264 = vmatprep.subr.mxu0 0.0
    %7265 = vmatpush1.msra.mxu0 %v7257
    %7266 = vmatprep.subr.mxu0 0.0
    %7267 = vmatpush1.msra.mxu0 %v7256
    %7268 = vmatprep.subr.mxu0 0.0
    %7269 = vmatpush1.msra.mxu0 %v7255
    %7270 = vmatprep.subr.mxu0 0.0
    %7271 = vmatpush1.msra.mxu0 %v7254
    %7272 = vmatprep.subr.mxu0 0.0
    %7273 = vmatpush1.msra.mxu0 %v7253
    %7274 = vmatprep.subr.mxu0 0.0
    %7275 = vmatpush1.msra.mxu0 %v7252
    %7276 = vmatprep.subr.mxu0 0.0
    %7277 = vmatpush1.msra.mxu0 %v7251
    %7278 = vmatprep.subr.mxu0 0.0
    %7279 = vmatpush1.msra.mxu0 %v7250
    %7280 = vmatprep.subr.mxu0 0.0
    %7281 = vmatpush1.msra.mxu0 %v7249
    %7282 = vmatprep.subr.mxu0 0.0
    %7283 = vmatpush1.msra.mxu0 %v7248
    %7284 = vmatprep.subr.mxu0 0.0
    %7285 = vmatpush1.msra.mxu0 %v7247
    %7286 = vmatprep.subr.mxu0 0.0
    %7287 = vmatpush1.msra.mxu0 %v7246
    %7288 = vmatprep.subr.mxu0 0.0
    %7289 = vmatpush1.msra.mxu0 %v7245
    %7290 = vmatprep.subr.mxu0 0.0
    %7291 = vmatpush1.msra.mxu0 %v7244
    %7292 = vmatprep.subr.mxu0 0.0
    %7293 = vmatpush2.msra.mxu0 0.0
    %7294 = vmatprep.subr.mxu0 0.0
    %7295 = vmatpush2.msra.mxu0 0.0
    %7296 = vmatprep.subr.mxu0 0.0
    %7297 = vmatpush2.msra.mxu0 0.0
    %7298 = vmatprep.subr.mxu0 0.0
    %7299 = vmatpush2.msra.mxu0 0.0
    %7300 = vmatprep.subr.mxu0 0.0
    %7301 = vmatpush2.msra.mxu0 0.0
    %7302 = vmatprep.subr.mxu0 0.0
    %7303 = vmatpush2.msra.mxu0 0.0
    %7304 = vmatprep.subr.mxu0 0.0
    %7305 = vmatpush2.msra.mxu0 0.0
    %7306 = vmatprep.subr.mxu0 0.0
    %7307 = vmatpush2.msra.mxu0 0.0
    %7308 = vmatprep.subr.mxu0 0.0
    %7309 = vmatpush2.msra.mxu0 0.0
    %7310 = vmatprep.subr.mxu0 0.0
    %7311 = vmatpush2.msra.mxu0 0.0
    %7312 = vmatprep.subr.mxu0 0.0
    %7313 = vmatpush2.msra.mxu0 0.0
    %7314 = vmatprep.subr.mxu0 0.0
    %7315 = vmatpush2.msra.mxu0 0.0
    %7316 = vmatprep.subr.mxu0 0.0
    %7317 = vmatpush2.msra.mxu0 0.0
    %7318 = vmatprep.subr.mxu0 0.0
    %7319 = vmatpush2.msra.mxu0 0.0
    %7320 = vmatprep.subr.mxu0 0.0
    %7321 = vmatpush2.msra.mxu0 0.0
    %7322 = vmatprep.subr.mxu0 0.0
    %7323 = vmatpush2.msra.mxu0 0.0
    %7324 = vmatprep.mubr.f32.mxu0 0.0
    %7325 = vmatmul.mubr.f32.gmra.mxu0 %v7230
    %v7326 = vpop.f32.mrf.mxu0
    %v7327 = vadd.f32 0.0, %v7326
    %v7328 = vpop.f32.mrf.mxu0
    %7329 = vmatprep.mubr.f32.mxu0 0.0
    %7330 = vmatmul.mubr.f32.gmra.mxu0 %v7231
    %v7331 = vpop.f32.mrf.mxu0
    %v7332 = vadd.f32 0.0, %v7331
    %v7333 = vpop.f32.mrf.mxu0
    %7334 = vmatprep.mubr.f32.mxu0 0.0
    %7335 = vmatmul.mubr.f32.gmra.mxu0 %v7232
    %v7336 = vpop.f32.mrf.mxu0
    %v7337 = vadd.f32 0.0, %v7336
    %v7338 = vpop.f32.mrf.mxu0
    %7339 = vmatprep.mubr.f32.mxu0 0.0
    %7340 = vmatmul.mubr.f32.gmra.mxu0 %v7233
    %v7341 = vpop.f32.mrf.mxu0
    %v7342 = vadd.f32 0.0, %v7341
    %v7343 = vpop.f32.mrf.mxu0
    %7344 = vmatprep.mubr.f32.mxu0 0.0
    %7345 = vmatmul.mubr.f32.gmra.mxu0 %v7234
    %v7346 = vpop.f32.mrf.mxu0
    %v7347 = vadd.f32 0.0, %v7346
    %v7348 = vpop.f32.mrf.mxu0
    %7349 = vmatprep.mubr.f32.mxu0 0.0
    %7350 = vmatmul.mubr.f32.gmra.mxu0 %v7235
    %v7351 = vpop.f32.mrf.mxu0
    %v7352 = vadd.f32 0.0, %v7351
    %v7353 = vpop.f32.mrf.mxu0
    %7354 = vmatprep.mubr.f32.mxu0 0.0
    %7355 = vmatmul.mubr.f32.gmra.mxu0 %v7236
    %v7356 = vpop.f32.mrf.mxu0
    %v7357 = vadd.f32 0.0, %v7356
    %v7358 = vpop.f32.mrf.mxu0
    %7359 = vmatprep.mubr.f32.mxu0 0.0
    %7360 = vmatmul.mubr.f32.gmra.mxu0 %v7237
    %v7361 = vpop.f32.mrf.mxu0
    %v7362 = vadd.f32 0.0, %v7361
    %v7363 = vpop.f32.mrf.mxu0
    %7364 = vmatprep.mubr.f32.mxu0 0.0
    %7365 = vmatmul.mubr.f32.gmra.mxu0 %v7238
    %v7366 = vpop.f32.mrf.mxu0
    %v7367 = vadd.f32 0.0, %v7366
    %v7368 = vpop.f32.mrf.mxu0
    %7369 = vmatprep.mubr.f32.mxu0 0.0
    %7370 = vmatmul.mubr.f32.gmra.mxu0 %v7239
    %v7371 = vpop.f32.mrf.mxu0
    %v7372 = vadd.f32 0.0, %v7371
    %v7373 = vpop.f32.mrf.mxu0
    %7374 = vmatprep.mubr.f32.mxu0 0.0
    %7375 = vmatmul.mubr.f32.gmra.mxu0 %v7240
    %v7376 = vpop.f32.mrf.mxu0
    %v7377 = vadd.f32 0.0, %v7376
    %v7378 = vpop.f32.mrf.mxu0
    %7379 = vmatprep.mubr.f32.mxu0 0.0
    %7380 = vmatmul.mubr.f32.gmra.mxu0 %v7241
    %v7381 = vpop.f32.mrf.mxu0
    %v7382 = vadd.f32 0.0, %v7381
    %v7383 = vpop.f32.mrf.mxu0
    %7384 = vmatprep.mubr.f32.mxu0 0.0
    %7385 = vmatmul.mubr.f32.gmra.mxu0 %v7242
    %v7386 = vpop.f32.mrf.mxu0
    %v7387 = vadd.f32 0.0, %v7386
    %v7388 = vpop.f32.mrf.mxu0
    %7389 = vdwg.mxu0
    %v7390 = vadd.f32 %v7167, %v7327
    %v7391 = vadd.f32 %v7172, %v7332
    %v7392 = vadd.f32 %v7177, %v7337
    %v7393 = vadd.f32 %v7182, %v7342
    %v7394 = vadd.f32 %v7187, %v7347
    %v7395 = vadd.f32 %v7192, %v7352
    %v7396 = vadd.f32 %v7197, %v7357
    %v7397 = vadd.f32 %v7202, %v7362
    %v7398 = vadd.f32 %v7207, %v7367
    %v7399 = vadd.f32 %v7212, %v7372
    %v7400 = vadd.f32 %v7217, %v7377
    %v7401 = vadd.f32 %v7222, %v7382
    %v7402 = vadd.f32 %v7227, %v7387
    %v7403 = vld [vmem:[#allocation3 + $0x10] sm:$0xff]
    %v7404 = vld [vmem:[#allocation3 + $0x18] sm:$0xff]
    %v7405 = vld [vmem:[#allocation3 + $0x20] sm:$0xff]
    %v7406 = vld [vmem:[#allocation3 + $0x28] sm:$0xff]
    %v7407 = vld [vmem:[#allocation3 + $0x30] sm:$0xff]
    %v7408 = vld [vmem:[#allocation3 + $0x38] sm:$0xff]
    %v7409 = vld [vmem:[#allocation3 + $0x40] sm:$0xff]
    %v7410 = vld [vmem:[#allocation3 + $0x48] sm:$0xff]
    %v7411 = vld [vmem:[#allocation3 + $0x50] sm:$0xff]
    %v7412 = vld [vmem:[#allocation3 + $0x58] sm:$0xff]
    %v7413 = vld [vmem:[#allocation3 + $0x60] sm:$0xff]
    %v7414 = vld [vmem:[#allocation3 + $0x68] sm:$0xff]
    %v7415 = vld [vmem:[#allocation3 + $0x70] sm:$0xff]
    %s7416 = scalar_lea.vmem [#allocation13], 384
    %v7417 = vld [vmem:[%s7416] sm:$0xff]
    %v7418 = vld [vmem:[%s7416 + $0x8] sm:$0xff]
    %v7419 = vld [vmem:[%s7416 + $0x10] sm:$0xff]
    %v7420 = vld [vmem:[%s7416 + $0x18] sm:$0xff]
    %v7421 = vld [vmem:[%s7416 + $0x20] sm:$0xff]
    %v7422 = vld [vmem:[%s7416 + $0x28] sm:$0xff]
    %v7423 = vld [vmem:[%s7416 + $0x30] sm:$0xff]
    %v7424 = vld [vmem:[%s7416 + $0x38] sm:$0xff]
    %v7425 = vld [vmem:[%s7416 + $0x40] sm:$0xff]
    %v7426 = vld [vmem:[%s7416 + $0x48] sm:$0xff]
    %v7427 = vld [vmem:[%s7416 + $0x50] sm:$0xff]
    %v7428 = vld [vmem:[%s7416 + $0x58] sm:$0xff]
    %v7429 = vld [vmem:[%s7416 + $0x60] sm:$0xff]
    %v7430 = vld [vmem:[%s7416 + $0x68] sm:$0xff]
    %v7431 = vld [vmem:[%s7416 + $0x70] sm:$0xff]
    %v7432 = vld [vmem:[%s7416 + $0x78] sm:$0xff]
    %7433 = vmatprep.subr.mxu0 0.0
    %7434 = vmatpush1.msra.mxu0 %v7432
    %7435 = vmatprep.subr.mxu0 0.0
    %7436 = vmatpush1.msra.mxu0 %v7431
    %7437 = vmatprep.subr.mxu0 0.0
    %7438 = vmatpush1.msra.mxu0 %v7430
    %7439 = vmatprep.subr.mxu0 0.0
    %7440 = vmatpush1.msra.mxu0 %v7429
    %7441 = vmatprep.subr.mxu0 0.0
    %7442 = vmatpush1.msra.mxu0 %v7428
    %7443 = vmatprep.subr.mxu0 0.0
    %7444 = vmatpush1.msra.mxu0 %v7427
    %7445 = vmatprep.subr.mxu0 0.0
    %7446 = vmatpush1.msra.mxu0 %v7426
    %7447 = vmatprep.subr.mxu0 0.0
    %7448 = vmatpush1.msra.mxu0 %v7425
    %7449 = vmatprep.subr.mxu0 0.0
    %7450 = vmatpush1.msra.mxu0 %v7424
    %7451 = vmatprep.subr.mxu0 0.0
    %7452 = vmatpush1.msra.mxu0 %v7423
    %7453 = vmatprep.subr.mxu0 0.0
    %7454 = vmatpush1.msra.mxu0 %v7422
    %7455 = vmatprep.subr.mxu0 0.0
    %7456 = vmatpush1.msra.mxu0 %v7421
    %7457 = vmatprep.subr.mxu0 0.0
    %7458 = vmatpush1.msra.mxu0 %v7420
    %7459 = vmatprep.subr.mxu0 0.0
    %7460 = vmatpush1.msra.mxu0 %v7419
    %7461 = vmatprep.subr.mxu0 0.0
    %7462 = vmatpush1.msra.mxu0 %v7418
    %7463 = vmatprep.subr.mxu0 0.0
    %7464 = vmatpush1.msra.mxu0 %v7417
    %7465 = vmatprep.subr.mxu0 0.0
    %7466 = vmatpush2.msra.mxu0 0.0
    %7467 = vmatprep.subr.mxu0 0.0
    %7468 = vmatpush2.msra.mxu0 0.0
    %7469 = vmatprep.subr.mxu0 0.0
    %7470 = vmatpush2.msra.mxu0 0.0
    %7471 = vmatprep.subr.mxu0 0.0
    %7472 = vmatpush2.msra.mxu0 0.0
    %7473 = vmatprep.subr.mxu0 0.0
    %7474 = vmatpush2.msra.mxu0 0.0
    %7475 = vmatprep.subr.mxu0 0.0
    %7476 = vmatpush2.msra.mxu0 0.0
    %7477 = vmatprep.subr.mxu0 0.0
    %7478 = vmatpush2.msra.mxu0 0.0
    %7479 = vmatprep.subr.mxu0 0.0
    %7480 = vmatpush2.msra.mxu0 0.0
    %7481 = vmatprep.subr.mxu0 0.0
    %7482 = vmatpush2.msra.mxu0 0.0
    %7483 = vmatprep.subr.mxu0 0.0
    %7484 = vmatpush2.msra.mxu0 0.0
    %7485 = vmatprep.subr.mxu0 0.0
    %7486 = vmatpush2.msra.mxu0 0.0
    %7487 = vmatprep.subr.mxu0 0.0
    %7488 = vmatpush2.msra.mxu0 0.0
    %7489 = vmatprep.subr.mxu0 0.0
    %7490 = vmatpush2.msra.mxu0 0.0
    %7491 = vmatprep.subr.mxu0 0.0
    %7492 = vmatpush2.msra.mxu0 0.0
    %7493 = vmatprep.subr.mxu0 0.0
    %7494 = vmatpush2.msra.mxu0 0.0
    %7495 = vmatprep.subr.mxu0 0.0
    %7496 = vmatpush2.msra.mxu0 0.0
    %7497 = vmatprep.mubr.f32.mxu0 0.0
    %7498 = vmatmul.mubr.f32.gmra.mxu0 %v7403
    %v7499 = vpop.f32.mrf.mxu0
    %v7500 = vadd.f32 0.0, %v7499
    %v7501 = vpop.f32.mrf.mxu0
    %7502 = vmatprep.mubr.f32.mxu0 0.0
    %7503 = vmatmul.mubr.f32.gmra.mxu0 %v7404
    %v7504 = vpop.f32.mrf.mxu0
    %v7505 = vadd.f32 0.0, %v7504
    %v7506 = vpop.f32.mrf.mxu0
    %7507 = vmatprep.mubr.f32.mxu0 0.0
    %7508 = vmatmul.mubr.f32.gmra.mxu0 %v7405
    %v7509 = vpop.f32.mrf.mxu0
    %v7510 = vadd.f32 0.0, %v7509
    %v7511 = vpop.f32.mrf.mxu0
    %7512 = vmatprep.mubr.f32.mxu0 0.0
    %7513 = vmatmul.mubr.f32.gmra.mxu0 %v7406
    %v7514 = vpop.f32.mrf.mxu0
    %v7515 = vadd.f32 0.0, %v7514
    %v7516 = vpop.f32.mrf.mxu0
    %7517 = vmatprep.mubr.f32.mxu0 0.0
    %7518 = vmatmul.mubr.f32.gmra.mxu0 %v7407
    %v7519 = vpop.f32.mrf.mxu0
    %v7520 = vadd.f32 0.0, %v7519
    %v7521 = vpop.f32.mrf.mxu0
    %7522 = vmatprep.mubr.f32.mxu0 0.0
    %7523 = vmatmul.mubr.f32.gmra.mxu0 %v7408
    %v7524 = vpop.f32.mrf.mxu0
    %v7525 = vadd.f32 0.0, %v7524
    %v7526 = vpop.f32.mrf.mxu0
    %7527 = vmatprep.mubr.f32.mxu0 0.0
    %7528 = vmatmul.mubr.f32.gmra.mxu0 %v7409
    %v7529 = vpop.f32.mrf.mxu0
    %v7530 = vadd.f32 0.0, %v7529
    %v7531 = vpop.f32.mrf.mxu0
    %7532 = vmatprep.mubr.f32.mxu0 0.0
    %7533 = vmatmul.mubr.f32.gmra.mxu0 %v7410
    %v7534 = vpop.f32.mrf.mxu0
    %v7535 = vadd.f32 0.0, %v7534
    %v7536 = vpop.f32.mrf.mxu0
    %7537 = vmatprep.mubr.f32.mxu0 0.0
    %7538 = vmatmul.mubr.f32.gmra.mxu0 %v7411
    %v7539 = vpop.f32.mrf.mxu0
    %v7540 = vadd.f32 0.0, %v7539
    %v7541 = vpop.f32.mrf.mxu0
    %7542 = vmatprep.mubr.f32.mxu0 0.0
    %7543 = vmatmul.mubr.f32.gmra.mxu0 %v7412
    %v7544 = vpop.f32.mrf.mxu0
    %v7545 = vadd.f32 0.0, %v7544
    %v7546 = vpop.f32.mrf.mxu0
    %7547 = vmatprep.mubr.f32.mxu0 0.0
    %7548 = vmatmul.mubr.f32.gmra.mxu0 %v7413
    %v7549 = vpop.f32.mrf.mxu0
    %v7550 = vadd.f32 0.0, %v7549
    %v7551 = vpop.f32.mrf.mxu0
    %7552 = vmatprep.mubr.f32.mxu0 0.0
    %7553 = vmatmul.mubr.f32.gmra.mxu0 %v7414
    %v7554 = vpop.f32.mrf.mxu0
    %v7555 = vadd.f32 0.0, %v7554
    %v7556 = vpop.f32.mrf.mxu0
    %7557 = vmatprep.mubr.f32.mxu0 0.0
    %7558 = vmatmul.mubr.f32.gmra.mxu0 %v7415
    %v7559 = vpop.f32.mrf.mxu0
    %v7560 = vadd.f32 0.0, %v7559
    %v7561 = vpop.f32.mrf.mxu0
    %7562 = vdwg.mxu0
    %v7563 = vadd.f32 %v7390, %v7500
    %v7564 = vadd.f32 %v7391, %v7505
    %v7565 = vadd.f32 %v7392, %v7510
    %v7566 = vadd.f32 %v7393, %v7515
    %v7567 = vadd.f32 %v7394, %v7520
    %v7568 = vadd.f32 %v7395, %v7525
    %v7569 = vadd.f32 %v7396, %v7530
    %v7570 = vadd.f32 %v7397, %v7535
    %v7571 = vadd.f32 %v7398, %v7540
    %v7572 = vadd.f32 %v7399, %v7545
    %v7573 = vadd.f32 %v7400, %v7550
    %v7574 = vadd.f32 %v7401, %v7555
    %v7575 = vadd.f32 %v7402, %v7560
    %v7576 = vld [vmem:[#allocation3 + $0x15] sm:$0xff]
    %v7577 = vld [vmem:[#allocation3 + $0x1d] sm:$0xff]
    %v7578 = vld [vmem:[#allocation3 + $0x25] sm:$0xff]
    %v7579 = vld [vmem:[#allocation3 + $0x2d] sm:$0xff]
    %v7580 = vld [vmem:[#allocation3 + $0x35] sm:$0xff]
    %v7581 = vld [vmem:[#allocation3 + $0x3d] sm:$0xff]
    %v7582 = vld [vmem:[#allocation3 + $0x45] sm:$0xff]
    %v7583 = vld [vmem:[#allocation3 + $0x4d] sm:$0xff]
    %v7584 = vld [vmem:[#allocation3 + $0x55] sm:$0xff]
    %v7585 = vld [vmem:[#allocation3 + $0x5d] sm:$0xff]
    %v7586 = vld [vmem:[#allocation3 + $0x65] sm:$0xff]
    %v7587 = vld [vmem:[#allocation3 + $0x6d] sm:$0xff]
    %v7588 = vld [vmem:[#allocation3 + $0x75] sm:$0xff]
    %s7589 = scalar_lea.vmem [#allocation13], 512
    %v7590 = vld [vmem:[%s7589] sm:$0xff]
    %v7591 = vld [vmem:[%s7589 + $0x8] sm:$0xff]
    %v7592 = vld [vmem:[%s7589 + $0x10] sm:$0xff]
    %v7593 = vld [vmem:[%s7589 + $0x18] sm:$0xff]
    %v7594 = vld [vmem:[%s7589 + $0x20] sm:$0xff]
    %v7595 = vld [vmem:[%s7589 + $0x28] sm:$0xff]
    %v7596 = vld [vmem:[%s7589 + $0x30] sm:$0xff]
    %v7597 = vld [vmem:[%s7589 + $0x38] sm:$0xff]
    %v7598 = vld [vmem:[%s7589 + $0x40] sm:$0xff]
    %v7599 = vld [vmem:[%s7589 + $0x48] sm:$0xff]
    %v7600 = vld [vmem:[%s7589 + $0x50] sm:$0xff]
    %v7601 = vld [vmem:[%s7589 + $0x58] sm:$0xff]
    %v7602 = vld [vmem:[%s7589 + $0x60] sm:$0xff]
    %v7603 = vld [vmem:[%s7589 + $0x68] sm:$0xff]
    %v7604 = vld [vmem:[%s7589 + $0x70] sm:$0xff]
    %v7605 = vld [vmem:[%s7589 + $0x78] sm:$0xff]
    %7606 = vmatprep.subr.mxu0 0.0
    %7607 = vmatpush1.msra.mxu0 %v7605
    %7608 = vmatprep.subr.mxu0 0.0
    %7609 = vmatpush1.msra.mxu0 %v7604
    %7610 = vmatprep.subr.mxu0 0.0
    %7611 = vmatpush1.msra.mxu0 %v7603
    %7612 = vmatprep.subr.mxu0 0.0
    %7613 = vmatpush1.msra.mxu0 %v7602
    %7614 = vmatprep.subr.mxu0 0.0
    %7615 = vmatpush1.msra.mxu0 %v7601
    %7616 = vmatprep.subr.mxu0 0.0
    %7617 = vmatpush1.msra.mxu0 %v7600
    %7618 = vmatprep.subr.mxu0 0.0
    %7619 = vmatpush1.msra.mxu0 %v7599
    %7620 = vmatprep.subr.mxu0 0.0
    %7621 = vmatpush1.msra.mxu0 %v7598
    %7622 = vmatprep.subr.mxu0 0.0
    %7623 = vmatpush1.msra.mxu0 %v7597
    %7624 = vmatprep.subr.mxu0 0.0
    %7625 = vmatpush1.msra.mxu0 %v7596
    %7626 = vmatprep.subr.mxu0 0.0
    %7627 = vmatpush1.msra.mxu0 %v7595
    %7628 = vmatprep.subr.mxu0 0.0
    %7629 = vmatpush1.msra.mxu0 %v7594
    %7630 = vmatprep.subr.mxu0 0.0
    %7631 = vmatpush1.msra.mxu0 %v7593
    %7632 = vmatprep.subr.mxu0 0.0
    %7633 = vmatpush1.msra.mxu0 %v7592
    %7634 = vmatprep.subr.mxu0 0.0
    %7635 = vmatpush1.msra.mxu0 %v7591
    %7636 = vmatprep.subr.mxu0 0.0
    %7637 = vmatpush1.msra.mxu0 %v7590
    %7638 = vmatprep.subr.mxu0 0.0
    %7639 = vmatpush2.msra.mxu0 0.0
    %7640 = vmatprep.subr.mxu0 0.0
    %7641 = vmatpush2.msra.mxu0 0.0
    %7642 = vmatprep.subr.mxu0 0.0
    %7643 = vmatpush2.msra.mxu0 0.0
    %7644 = vmatprep.subr.mxu0 0.0
    %7645 = vmatpush2.msra.mxu0 0.0
    %7646 = vmatprep.subr.mxu0 0.0
    %7647 = vmatpush2.msra.mxu0 0.0
    %7648 = vmatprep.subr.mxu0 0.0
    %7649 = vmatpush2.msra.mxu0 0.0
    %7650 = vmatprep.subr.mxu0 0.0
    %7651 = vmatpush2.msra.mxu0 0.0
    %7652 = vmatprep.subr.mxu0 0.0
    %7653 = vmatpush2.msra.mxu0 0.0
    %7654 = vmatprep.subr.mxu0 0.0
    %7655 = vmatpush2.msra.mxu0 0.0
    %7656 = vmatprep.subr.mxu0 0.0
    %7657 = vmatpush2.msra.mxu0 0.0
    %7658 = vmatprep.subr.mxu0 0.0
    %7659 = vmatpush2.msra.mxu0 0.0
    %7660 = vmatprep.subr.mxu0 0.0
    %7661 = vmatpush2.msra.mxu0 0.0
    %7662 = vmatprep.subr.mxu0 0.0
    %7663 = vmatpush2.msra.mxu0 0.0
    %7664 = vmatprep.subr.mxu0 0.0
    %7665 = vmatpush2.msra.mxu0 0.0
    %7666 = vmatprep.subr.mxu0 0.0
    %7667 = vmatpush2.msra.mxu0 0.0
    %7668 = vmatprep.subr.mxu0 0.0
    %7669 = vmatpush2.msra.mxu0 0.0
    %7670 = vmatprep.mubr.f32.mxu0 0.0
    %7671 = vmatmul.mubr.f32.gmra.mxu0 %v7576
    %v7672 = vpop.f32.mrf.mxu0
    %v7673 = vadd.f32 0.0, %v7672
    %v7674 = vpop.f32.mrf.mxu0
    %7675 = vmatprep.mubr.f32.mxu0 0.0
    %7676 = vmatmul.mubr.f32.gmra.mxu0 %v7577
    %v7677 = vpop.f32.mrf.mxu0
    %v7678 = vadd.f32 0.0, %v7677
    %v7679 = vpop.f32.mrf.mxu0
    %7680 = vmatprep.mubr.f32.mxu0 0.0
    %7681 = vmatmul.mubr.f32.gmra.mxu0 %v7578
    %v7682 = vpop.f32.mrf.mxu0
    %v7683 = vadd.f32 0.0, %v7682
    %v7684 = vpop.f32.mrf.mxu0
    %7685 = vmatprep.mubr.f32.mxu0 0.0
    %7686 = vmatmul.mubr.f32.gmra.mxu0 %v7579
    %v7687 = vpop.f32.mrf.mxu0
    %v7688 = vadd.f32 0.0, %v7687
    %v7689 = vpop.f32.mrf.mxu0
    %7690 = vmatprep.mubr.f32.mxu0 0.0
    %7691 = vmatmul.mubr.f32.gmra.mxu0 %v7580
    %v7692 = vpop.f32.mrf.mxu0
    %v7693 = vadd.f32 0.0, %v7692
    %v7694 = vpop.f32.mrf.mxu0
    %7695 = vmatprep.mubr.f32.mxu0 0.0
    %7696 = vmatmul.mubr.f32.gmra.mxu0 %v7581
    %v7697 = vpop.f32.mrf.mxu0
    %v7698 = vadd.f32 0.0, %v7697
    %v7699 = vpop.f32.mrf.mxu0
    %7700 = vmatprep.mubr.f32.mxu0 0.0
    %7701 = vmatmul.mubr.f32.gmra.mxu0 %v7582
    %v7702 = vpop.f32.mrf.mxu0
    %v7703 = vadd.f32 0.0, %v7702
    %v7704 = vpop.f32.mrf.mxu0
    %7705 = vmatprep.mubr.f32.mxu0 0.0
    %7706 = vmatmul.mubr.f32.gmra.mxu0 %v7583
    %v7707 = vpop.f32.mrf.mxu0
    %v7708 = vadd.f32 0.0, %v7707
    %v7709 = vpop.f32.mrf.mxu0
    %7710 = vmatprep.mubr.f32.mxu0 0.0
    %7711 = vmatmul.mubr.f32.gmra.mxu0 %v7584
    %v7712 = vpop.f32.mrf.mxu0
    %v7713 = vadd.f32 0.0, %v7712
    %v7714 = vpop.f32.mrf.mxu0
    %7715 = vmatprep.mubr.f32.mxu0 0.0
    %7716 = vmatmul.mubr.f32.gmra.mxu0 %v7585
    %v7717 = vpop.f32.mrf.mxu0
    %v7718 = vadd.f32 0.0, %v7717
    %v7719 = vpop.f32.mrf.mxu0
    %7720 = vmatprep.mubr.f32.mxu0 0.0
    %7721 = vmatmul.mubr.f32.gmra.mxu0 %v7586
    %v7722 = vpop.f32.mrf.mxu0
    %v7723 = vadd.f32 0.0, %v7722
    %v7724 = vpop.f32.mrf.mxu0
    %7725 = vmatprep.mubr.f32.mxu0 0.0
    %7726 = vmatmul.mubr.f32.gmra.mxu0 %v7587
    %v7727 = vpop.f32.mrf.mxu0
    %v7728 = vadd.f32 0.0, %v7727
    %v7729 = vpop.f32.mrf.mxu0
    %7730 = vmatprep.mubr.f32.mxu0 0.0
    %7731 = vmatmul.mubr.f32.gmra.mxu0 %v7588
    %v7732 = vpop.f32.mrf.mxu0
    %v7733 = vadd.f32 0.0, %v7732
    %v7734 = vpop.f32.mrf.mxu0
    %7735 = vdwg.mxu0
    %v7736 = vadd.f32 %v7563, %v7673
    %v7737 = vadd.f32 %v7564, %v7678
    %v7738 = vadd.f32 %v7565, %v7683
    %v7739 = vadd.f32 %v7566, %v7688
    %v7740 = vadd.f32 %v7567, %v7693
    %v7741 = vadd.f32 %v7568, %v7698
    %v7742 = vadd.f32 %v7569, %v7703
    %v7743 = vadd.f32 %v7570, %v7708
    %v7744 = vadd.f32 %v7571, %v7713
    %v7745 = vadd.f32 %v7572, %v7718
    %v7746 = vadd.f32 %v7573, %v7723
    %v7747 = vadd.f32 %v7574, %v7728
    %v7748 = vadd.f32 %v7575, %v7733
    %v7749 = vld [vmem:[#allocation3 + $0x1a] sm:$0xff]
    %v7750 = vld [vmem:[#allocation3 + $0x22] sm:$0xff]
    %v7751 = vld [vmem:[#allocation3 + $0x2a] sm:$0xff]
    %v7752 = vld [vmem:[#allocation3 + $0x32] sm:$0xff]
    %v7753 = vld [vmem:[#allocation3 + $0x3a] sm:$0xff]
    %v7754 = vld [vmem:[#allocation3 + $0x42] sm:$0xff]
    %v7755 = vld [vmem:[#allocation3 + $0x4a] sm:$0xff]
    %v7756 = vld [vmem:[#allocation3 + $0x52] sm:$0xff]
    %v7757 = vld [vmem:[#allocation3 + $0x5a] sm:$0xff]
    %v7758 = vld [vmem:[#allocation3 + $0x62] sm:$0xff]
    %v7759 = vld [vmem:[#allocation3 + $0x6a] sm:$0xff]
    %v7760 = vld [vmem:[#allocation3 + $0x72] sm:$0xff]
    %v7761 = vld [vmem:[#allocation3 + $0x7a] sm:$0xff]
    %s7762 = scalar_lea.vmem [#allocation13], 640
    %v7763 = vld [vmem:[%s7762] sm:$0xff]
    %v7764 = vld [vmem:[%s7762 + $0x8] sm:$0xff]
    %v7765 = vld [vmem:[%s7762 + $0x10] sm:$0xff]
    %v7766 = vld [vmem:[%s7762 + $0x18] sm:$0xff]
    %v7767 = vld [vmem:[%s7762 + $0x20] sm:$0xff]
    %v7768 = vld [vmem:[%s7762 + $0x28] sm:$0xff]
    %v7769 = vld [vmem:[%s7762 + $0x30] sm:$0xff]
    %v7770 = vld [vmem:[%s7762 + $0x38] sm:$0xff]
    %v7771 = vld [vmem:[%s7762 + $0x40] sm:$0xff]
    %v7772 = vld [vmem:[%s7762 + $0x48] sm:$0xff]
    %v7773 = vld [vmem:[%s7762 + $0x50] sm:$0xff]
    %v7774 = vld [vmem:[%s7762 + $0x58] sm:$0xff]
    %v7775 = vld [vmem:[%s7762 + $0x60] sm:$0xff]
    %v7776 = vld [vmem:[%s7762 + $0x68] sm:$0xff]
    %v7777 = vld [vmem:[%s7762 + $0x70] sm:$0xff]
    %v7778 = vld [vmem:[%s7762 + $0x78] sm:$0xff]
    %7779 = vmatprep.subr.mxu0 0.0
    %7780 = vmatpush1.msra.mxu0 %v7778
    %7781 = vmatprep.subr.mxu0 0.0
    %7782 = vmatpush1.msra.mxu0 %v7777
    %7783 = vmatprep.subr.mxu0 0.0
    %7784 = vmatpush1.msra.mxu0 %v7776
    %7785 = vmatprep.subr.mxu0 0.0
    %7786 = vmatpush1.msra.mxu0 %v7775
    %7787 = vmatprep.subr.mxu0 0.0
    %7788 = vmatpush1.msra.mxu0 %v7774
    %7789 = vmatprep.subr.mxu0 0.0
    %7790 = vmatpush1.msra.mxu0 %v7773
    %7791 = vmatprep.subr.mxu0 0.0
    %7792 = vmatpush1.msra.mxu0 %v7772
    %7793 = vmatprep.subr.mxu0 0.0
    %7794 = vmatpush1.msra.mxu0 %v7771
    %7795 = vmatprep.subr.mxu0 0.0
    %7796 = vmatpush1.msra.mxu0 %v7770
    %7797 = vmatprep.subr.mxu0 0.0
    %7798 = vmatpush1.msra.mxu0 %v7769
    %7799 = vmatprep.subr.mxu0 0.0
    %7800 = vmatpush1.msra.mxu0 %v7768
    %7801 = vmatprep.subr.mxu0 0.0
    %7802 = vmatpush1.msra.mxu0 %v7767
    %7803 = vmatprep.subr.mxu0 0.0
    %7804 = vmatpush1.msra.mxu0 %v7766
    %7805 = vmatprep.subr.mxu0 0.0
    %7806 = vmatpush1.msra.mxu0 %v7765
    %7807 = vmatprep.subr.mxu0 0.0
    %7808 = vmatpush1.msra.mxu0 %v7764
    %7809 = vmatprep.subr.mxu0 0.0
    %7810 = vmatpush1.msra.mxu0 %v7763
    %7811 = vmatprep.subr.mxu0 0.0
    %7812 = vmatpush2.msra.mxu0 0.0
    %7813 = vmatprep.subr.mxu0 0.0
    %7814 = vmatpush2.msra.mxu0 0.0
    %7815 = vmatprep.subr.mxu0 0.0
    %7816 = vmatpush2.msra.mxu0 0.0
    %7817 = vmatprep.subr.mxu0 0.0
    %7818 = vmatpush2.msra.mxu0 0.0
    %7819 = vmatprep.subr.mxu0 0.0
    %7820 = vmatpush2.msra.mxu0 0.0
    %7821 = vmatprep.subr.mxu0 0.0
    %7822 = vmatpush2.msra.mxu0 0.0
    %7823 = vmatprep.subr.mxu0 0.0
    %7824 = vmatpush2.msra.mxu0 0.0
    %7825 = vmatprep.subr.mxu0 0.0
    %7826 = vmatpush2.msra.mxu0 0.0
    %7827 = vmatprep.subr.mxu0 0.0
    %7828 = vmatpush2.msra.mxu0 0.0
    %7829 = vmatprep.subr.mxu0 0.0
    %7830 = vmatpush2.msra.mxu0 0.0
    %7831 = vmatprep.subr.mxu0 0.0
    %7832 = vmatpush2.msra.mxu0 0.0
    %7833 = vmatprep.subr.mxu0 0.0
    %7834 = vmatpush2.msra.mxu0 0.0
    %7835 = vmatprep.subr.mxu0 0.0
    %7836 = vmatpush2.msra.mxu0 0.0
    %7837 = vmatprep.subr.mxu0 0.0
    %7838 = vmatpush2.msra.mxu0 0.0
    %7839 = vmatprep.subr.mxu0 0.0
    %7840 = vmatpush2.msra.mxu0 0.0
    %7841 = vmatprep.subr.mxu0 0.0
    %7842 = vmatpush2.msra.mxu0 0.0
    %7843 = vmatprep.mubr.f32.mxu0 0.0
    %7844 = vmatmul.mubr.f32.gmra.mxu0 %v7749
    %v7845 = vpop.f32.mrf.mxu0
    %v7846 = vadd.f32 0.0, %v7845
    %v7847 = vpop.f32.mrf.mxu0
    %7848 = vmatprep.mubr.f32.mxu0 0.0
    %7849 = vmatmul.mubr.f32.gmra.mxu0 %v7750
    %v7850 = vpop.f32.mrf.mxu0
    %v7851 = vadd.f32 0.0, %v7850
    %v7852 = vpop.f32.mrf.mxu0
    %7853 = vmatprep.mubr.f32.mxu0 0.0
    %7854 = vmatmul.mubr.f32.gmra.mxu0 %v7751
    %v7855 = vpop.f32.mrf.mxu0
    %v7856 = vadd.f32 0.0, %v7855
    %v7857 = vpop.f32.mrf.mxu0
    %7858 = vmatprep.mubr.f32.mxu0 0.0
    %7859 = vmatmul.mubr.f32.gmra.mxu0 %v7752
    %v7860 = vpop.f32.mrf.mxu0
    %v7861 = vadd.f32 0.0, %v7860
    %v7862 = vpop.f32.mrf.mxu0
    %7863 = vmatprep.mubr.f32.mxu0 0.0
    %7864 = vmatmul.mubr.f32.gmra.mxu0 %v7753
    %v7865 = vpop.f32.mrf.mxu0
    %v7866 = vadd.f32 0.0, %v7865
    %v7867 = vpop.f32.mrf.mxu0
    %7868 = vmatprep.mubr.f32.mxu0 0.0
    %7869 = vmatmul.mubr.f32.gmra.mxu0 %v7754
    %v7870 = vpop.f32.mrf.mxu0
    %v7871 = vadd.f32 0.0, %v7870
    %v7872 = vpop.f32.mrf.mxu0
    %7873 = vmatprep.mubr.f32.mxu0 0.0
    %7874 = vmatmul.mubr.f32.gmra.mxu0 %v7755
    %v7875 = vpop.f32.mrf.mxu0
    %v7876 = vadd.f32 0.0, %v7875
    %v7877 = vpop.f32.mrf.mxu0
    %7878 = vmatprep.mubr.f32.mxu0 0.0
    %7879 = vmatmul.mubr.f32.gmra.mxu0 %v7756
    %v7880 = vpop.f32.mrf.mxu0
    %v7881 = vadd.f32 0.0, %v7880
    %v7882 = vpop.f32.mrf.mxu0
    %7883 = vmatprep.mubr.f32.mxu0 0.0
    %7884 = vmatmul.mubr.f32.gmra.mxu0 %v7757
    %v7885 = vpop.f32.mrf.mxu0
    %v7886 = vadd.f32 0.0, %v7885
    %v7887 = vpop.f32.mrf.mxu0
    %7888 = vmatprep.mubr.f32.mxu0 0.0
    %7889 = vmatmul.mubr.f32.gmra.mxu0 %v7758
    %v7890 = vpop.f32.mrf.mxu0
    %v7891 = vadd.f32 0.0, %v7890
    %v7892 = vpop.f32.mrf.mxu0
    %7893 = vmatprep.mubr.f32.mxu0 0.0
    %7894 = vmatmul.mubr.f32.gmra.mxu0 %v7759
    %v7895 = vpop.f32.mrf.mxu0
    %v7896 = vadd.f32 0.0, %v7895
    %v7897 = vpop.f32.mrf.mxu0
    %7898 = vmatprep.mubr.f32.mxu0 0.0
    %7899 = vmatmul.mubr.f32.gmra.mxu0 %v7760
    %v7900 = vpop.f32.mrf.mxu0
    %v7901 = vadd.f32 0.0, %v7900
    %v7902 = vpop.f32.mrf.mxu0
    %7903 = vmatprep.mubr.f32.mxu0 0.0
    %7904 = vmatmul.mubr.f32.gmra.mxu0 %v7761
    %v7905 = vpop.f32.mrf.mxu0
    %v7906 = vadd.f32 0.0, %v7905
    %v7907 = vpop.f32.mrf.mxu0
    %7908 = vdwg.mxu0
    %v7909 = vadd.f32 %v7736, %v7846
    %v7910 = vadd.f32 %v7737, %v7851
    %v7911 = vadd.f32 %v7738, %v7856
    %v7912 = vadd.f32 %v7739, %v7861
    %v7913 = vadd.f32 %v7740, %v7866
    %v7914 = vadd.f32 %v7741, %v7871
    %v7915 = vadd.f32 %v7742, %v7876
    %v7916 = vadd.f32 %v7743, %v7881
    %v7917 = vadd.f32 %v7744, %v7886
    %v7918 = vadd.f32 %v7745, %v7891
    %v7919 = vadd.f32 %v7746, %v7896
    %v7920 = vadd.f32 %v7747, %v7901
    %v7921 = vadd.f32 %v7748, %v7906
    %v7922 = vld [vmem:[#allocation3 + $0x1f] sm:$0xff]
    %v7923 = vld [vmem:[#allocation3 + $0x27] sm:$0xff]
    %v7924 = vld [vmem:[#allocation3 + $0x2f] sm:$0xff]
    %v7925 = vld [vmem:[#allocation3 + $0x37] sm:$0xff]
    %v7926 = vld [vmem:[#allocation3 + $0x3f] sm:$0xff]
    %v7927 = vld [vmem:[#allocation3 + $0x47] sm:$0xff]
    %v7928 = vld [vmem:[#allocation3 + $0x4f] sm:$0xff]
    %v7929 = vld [vmem:[#allocation3 + $0x57] sm:$0xff]
    %v7930 = vld [vmem:[#allocation3 + $0x5f] sm:$0xff]
    %v7931 = vld [vmem:[#allocation3 + $0x67] sm:$0xff]
    %v7932 = vld [vmem:[#allocation3 + $0x6f] sm:$0xff]
    %v7933 = vld [vmem:[#allocation3 + $0x77] sm:$0xff]
    %v7934 = vld [vmem:[#allocation3 + $0x7f] sm:$0xff]
    %s7935 = scalar_lea.vmem [#allocation13], 768
    %v7936 = vld [vmem:[%s7935] sm:$0xff]
    %v7937 = vld [vmem:[%s7935 + $0x8] sm:$0xff]
    %v7938 = vld [vmem:[%s7935 + $0x10] sm:$0xff]
    %v7939 = vld [vmem:[%s7935 + $0x18] sm:$0xff]
    %v7940 = vld [vmem:[%s7935 + $0x20] sm:$0xff]
    %v7941 = vld [vmem:[%s7935 + $0x28] sm:$0xff]
    %v7942 = vld [vmem:[%s7935 + $0x30] sm:$0xff]
    %v7943 = vld [vmem:[%s7935 + $0x38] sm:$0xff]
    %v7944 = vld [vmem:[%s7935 + $0x40] sm:$0xff]
    %v7945 = vld [vmem:[%s7935 + $0x48] sm:$0xff]
    %v7946 = vld [vmem:[%s7935 + $0x50] sm:$0xff]
    %v7947 = vld [vmem:[%s7935 + $0x58] sm:$0xff]
    %v7948 = vld [vmem:[%s7935 + $0x60] sm:$0xff]
    %v7949 = vld [vmem:[%s7935 + $0x68] sm:$0xff]
    %v7950 = vld [vmem:[%s7935 + $0x70] sm:$0xff]
    %v7951 = vld [vmem:[%s7935 + $0x78] sm:$0xff]
    %7952 = vmatprep.subr.mxu0 0.0
    %7953 = vmatpush1.msra.mxu0 %v7951
    %7954 = vmatprep.subr.mxu0 0.0
    %7955 = vmatpush1.msra.mxu0 %v7950
    %7956 = vmatprep.subr.mxu0 0.0
    %7957 = vmatpush1.msra.mxu0 %v7949
    %7958 = vmatprep.subr.mxu0 0.0
    %7959 = vmatpush1.msra.mxu0 %v7948
    %7960 = vmatprep.subr.mxu0 0.0
    %7961 = vmatpush1.msra.mxu0 %v7947
    %7962 = vmatprep.subr.mxu0 0.0
    %7963 = vmatpush1.msra.mxu0 %v7946
    %7964 = vmatprep.subr.mxu0 0.0
    %7965 = vmatpush1.msra.mxu0 %v7945
    %7966 = vmatprep.subr.mxu0 0.0
    %7967 = vmatpush1.msra.mxu0 %v7944
    %7968 = vmatprep.subr.mxu0 0.0
    %7969 = vmatpush1.msra.mxu0 %v7943
    %7970 = vmatprep.subr.mxu0 0.0
    %7971 = vmatpush1.msra.mxu0 %v7942
    %7972 = vmatprep.subr.mxu0 0.0
    %7973 = vmatpush1.msra.mxu0 %v7941
    %7974 = vmatprep.subr.mxu0 0.0
    %7975 = vmatpush1.msra.mxu0 %v7940
    %7976 = vmatprep.subr.mxu0 0.0
    %7977 = vmatpush1.msra.mxu0 %v7939
    %7978 = vmatprep.subr.mxu0 0.0
    %7979 = vmatpush1.msra.mxu0 %v7938
    %7980 = vmatprep.subr.mxu0 0.0
    %7981 = vmatpush1.msra.mxu0 %v7937
    %7982 = vmatprep.subr.mxu0 0.0
    %7983 = vmatpush1.msra.mxu0 %v7936
    %7984 = vmatprep.subr.mxu0 0.0
    %7985 = vmatpush2.msra.mxu0 0.0
    %7986 = vmatprep.subr.mxu0 0.0
    %7987 = vmatpush2.msra.mxu0 0.0
    %7988 = vmatprep.subr.mxu0 0.0
    %7989 = vmatpush2.msra.mxu0 0.0
    %7990 = vmatprep.subr.mxu0 0.0
    %7991 = vmatpush2.msra.mxu0 0.0
    %7992 = vmatprep.subr.mxu0 0.0
    %7993 = vmatpush2.msra.mxu0 0.0
    %7994 = vmatprep.subr.mxu0 0.0
    %7995 = vmatpush2.msra.mxu0 0.0
    %7996 = vmatprep.subr.mxu0 0.0
    %7997 = vmatpush2.msra.mxu0 0.0
    %7998 = vmatprep.subr.mxu0 0.0
    %7999 = vmatpush2.msra.mxu0 0.0
    %8000 = vmatprep.subr.mxu0 0.0
    %8001 = vmatpush2.msra.mxu0 0.0
    %8002 = vmatprep.subr.mxu0 0.0
    %8003 = vmatpush2.msra.mxu0 0.0
    %8004 = vmatprep.subr.mxu0 0.0
    %8005 = vmatpush2.msra.mxu0 0.0
    %8006 = vmatprep.subr.mxu0 0.0
    %8007 = vmatpush2.msra.mxu0 0.0
    %8008 = vmatprep.subr.mxu0 0.0
    %8009 = vmatpush2.msra.mxu0 0.0
    %8010 = vmatprep.subr.mxu0 0.0
    %8011 = vmatpush2.msra.mxu0 0.0
    %8012 = vmatprep.subr.mxu0 0.0
    %8013 = vmatpush2.msra.mxu0 0.0
    %8014 = vmatprep.subr.mxu0 0.0
    %8015 = vmatpush2.msra.mxu0 0.0
    %8016 = vmatprep.mubr.f32.mxu0 0.0
    %8017 = vmatmul.mubr.f32.gmra.mxu0 %v7922
    %v8018 = vpop.f32.mrf.mxu0
    %v8019 = vadd.f32 0.0, %v8018
    %v8020 = vpop.f32.mrf.mxu0
    %8021 = vmatprep.mubr.f32.mxu0 0.0
    %8022 = vmatmul.mubr.f32.gmra.mxu0 %v7923
    %v8023 = vpop.f32.mrf.mxu0
    %v8024 = vadd.f32 0.0, %v8023
    %v8025 = vpop.f32.mrf.mxu0
    %8026 = vmatprep.mubr.f32.mxu0 0.0
    %8027 = vmatmul.mubr.f32.gmra.mxu0 %v7924
    %v8028 = vpop.f32.mrf.mxu0
    %v8029 = vadd.f32 0.0, %v8028
    %v8030 = vpop.f32.mrf.mxu0
    %8031 = vmatprep.mubr.f32.mxu0 0.0
    %8032 = vmatmul.mubr.f32.gmra.mxu0 %v7925
    %v8033 = vpop.f32.mrf.mxu0
    %v8034 = vadd.f32 0.0, %v8033
    %v8035 = vpop.f32.mrf.mxu0
    %8036 = vmatprep.mubr.f32.mxu0 0.0
    %8037 = vmatmul.mubr.f32.gmra.mxu0 %v7926
    %v8038 = vpop.f32.mrf.mxu0
    %v8039 = vadd.f32 0.0, %v8038
    %v8040 = vpop.f32.mrf.mxu0
    %8041 = vmatprep.mubr.f32.mxu0 0.0
    %8042 = vmatmul.mubr.f32.gmra.mxu0 %v7927
    %v8043 = vpop.f32.mrf.mxu0
    %v8044 = vadd.f32 0.0, %v8043
    %v8045 = vpop.f32.mrf.mxu0
    %8046 = vmatprep.mubr.f32.mxu0 0.0
    %8047 = vmatmul.mubr.f32.gmra.mxu0 %v7928
    %v8048 = vpop.f32.mrf.mxu0
    %v8049 = vadd.f32 0.0, %v8048
    %v8050 = vpop.f32.mrf.mxu0
    %8051 = vmatprep.mubr.f32.mxu0 0.0
    %8052 = vmatmul.mubr.f32.gmra.mxu0 %v7929
    %v8053 = vpop.f32.mrf.mxu0
    %v8054 = vadd.f32 0.0, %v8053
    %v8055 = vpop.f32.mrf.mxu0
    %8056 = vmatprep.mubr.f32.mxu0 0.0
    %8057 = vmatmul.mubr.f32.gmra.mxu0 %v7930
    %v8058 = vpop.f32.mrf.mxu0
    %v8059 = vadd.f32 0.0, %v8058
    %v8060 = vpop.f32.mrf.mxu0
    %8061 = vmatprep.mubr.f32.mxu0 0.0
    %8062 = vmatmul.mubr.f32.gmra.mxu0 %v7931
    %v8063 = vpop.f32.mrf.mxu0
    %v8064 = vadd.f32 0.0, %v8063
    %v8065 = vpop.f32.mrf.mxu0
    %8066 = vmatprep.mubr.f32.mxu0 0.0
    %8067 = vmatmul.mubr.f32.gmra.mxu0 %v7932
    %v8068 = vpop.f32.mrf.mxu0
    %v8069 = vadd.f32 0.0, %v8068
    %v8070 = vpop.f32.mrf.mxu0
    %8071 = vmatprep.mubr.f32.mxu0 0.0
    %8072 = vmatmul.mubr.f32.gmra.mxu0 %v7933
    %v8073 = vpop.f32.mrf.mxu0
    %v8074 = vadd.f32 0.0, %v8073
    %v8075 = vpop.f32.mrf.mxu0
    %8076 = vmatprep.mubr.f32.mxu0 0.0
    %8077 = vmatmul.mubr.f32.gmra.mxu0 %v7934
    %v8078 = vpop.f32.mrf.mxu0
    %v8079 = vadd.f32 0.0, %v8078
    %v8080 = vpop.f32.mrf.mxu0
    %8081 = vdwg.mxu0
    %v8082 = vadd.f32 %v7909, %v8019
    %v8083 = vadd.f32 %v7910, %v8024
    %v8084 = vadd.f32 %v7911, %v8029
    %v8085 = vadd.f32 %v7912, %v8034
    %v8086 = vadd.f32 %v7913, %v8039
    %v8087 = vadd.f32 %v7914, %v8044
    %v8088 = vadd.f32 %v7915, %v8049
    %v8089 = vadd.f32 %v7916, %v8054
    %v8090 = vadd.f32 %v7917, %v8059
    %v8091 = vadd.f32 %v7918, %v8064
    %v8092 = vadd.f32 %v7919, %v8069
    %v8093 = vadd.f32 %v7920, %v8074
    %v8094 = vadd.f32 %v7921, %v8079
    %v8095 = vld [vmem:[%s14] sm:$0x1]
    %v8097 = vlaneseq
    %v8098 = vshrl.u32 %v8097, 7
    %v8099 = vsub.s32 0, %v8098
    %v8100 = vrot.slane %v8095, %v8099
    %v8102 = vadd.f32 %v8082, %v8100
    %v8103 = vadd.f32 %v8083, %v8100
    %v8104 = vadd.f32 %v8084, %v8100
    %v8105 = vadd.f32 %v8085, %v8100
    %v8106 = vadd.f32 %v8086, %v8100
    %v8107 = vadd.f32 %v8087, %v8100
    %v8108 = vadd.f32 %v8088, %v8100
    %v8109 = vadd.f32 %v8089, %v8100
    %v8110 = vadd.f32 %v8090, %v8100
    %v8111 = vadd.f32 %v8091, %v8100
    %v8112 = vadd.f32 %v8092, %v8100
    %v8113 = vadd.f32 %v8093, %v8100
    %v8114 = vadd.f32 %v8094, %v8100
    %v8115 = vmax.f32 %v8102, 0.0
    %v8116 = vmax.f32 %v8103, 0.0
    %v8117 = vmax.f32 %v8104, 0.0
    %v8118 = vmax.f32 %v8105, 0.0
    %v8119 = vmax.f32 %v8106, 0.0
    %v8120 = vmax.f32 %v8107, 0.0
    %v8121 = vmax.f32 %v8108, 0.0
    %v8122 = vmax.f32 %v8109, 0.0
    %v8123 = vmax.f32 %v8110, 0.0
    %v8124 = vmax.f32 %v8111, 0.0
    %v8125 = vmax.f32 %v8112, 0.0
    %v8126 = vmax.f32 %v8113, 0.0
    %v8127 = vmax.f32 %v8114, 0.0
    %8128 = vst [vmem:[#allocation2 + $0x10] sm:$0xff] %v8115
    %8129 = vst [vmem:[#allocation2 + $0x18] sm:$0xff] %v8116
    %8130 = vst [vmem:[#allocation2 + $0x20] sm:$0xff] %v8117
    %8131 = vst [vmem:[#allocation2 + $0x28] sm:$0xff] %v8118
    %8132 = vst [vmem:[#allocation2 + $0x30] sm:$0xff] %v8119
    %8133 = vst [vmem:[#allocation2 + $0x38] sm:$0xff] %v8120
    %8134 = vst [vmem:[#allocation2 + $0x40] sm:$0xff] %v8121
    %8135 = vst [vmem:[#allocation2 + $0x48] sm:$0xff] %v8122
    %8136 = vst [vmem:[#allocation2 + $0x50] sm:$0xff] %v8123
    %8137 = vst [vmem:[#allocation2 + $0x58] sm:$0xff] %v8124
    %8138 = vst [vmem:[#allocation2 + $0x60] sm:$0xff] %v8125
    %8139 = vst [vmem:[#allocation2 + $0x68] sm:$0xff] %v8126
    %8140 = vst [vmem:[#allocation2 + $0x70] sm:$0xff] %v8127
    %v8141 = vld [vmem:[#allocation2 + $0x10] sm:$0xff]
    %v8142 = vld [vmem:[#allocation2 + $0x18] sm:$0xff]
    %v8143 = vld [vmem:[#allocation2 + $0x20] sm:$0xff]
    %v8144 = vld [vmem:[#allocation2 + $0x28] sm:$0xff]
    %v8145 = vld [vmem:[#allocation2 + $0x30] sm:$0xff]
    %v8146 = vld [vmem:[#allocation2 + $0x38] sm:$0xff]
    %v8147 = vld [vmem:[#allocation2 + $0x40] sm:$0xff]
    %v8148 = vld [vmem:[#allocation2 + $0x48] sm:$0xff]
    %v8149 = vld [vmem:[#allocation2 + $0x50] sm:$0xff]
    %v8150 = vld [vmem:[#allocation2 + $0x58] sm:$0xff]
    %v8151 = vld [vmem:[#allocation2 + $0x60] sm:$0xff]
    %v8152 = vld [vmem:[#allocation2 + $0x68] sm:$0xff]
    %v8153 = vld [vmem:[#allocation2 + $0x70] sm:$0xff]
    %v8154 = vld [vmem:[%s15] sm:$0xff]
    %v8155 = vld [vmem:[%s15 + $0x8] sm:$0xff]
    %v8156 = vld [vmem:[%s15 + $0x10] sm:$0xff]
    %v8157 = vld [vmem:[%s15 + $0x18] sm:$0xff]
    %v8158 = vld [vmem:[%s15 + $0x20] sm:$0xff]
    %v8159 = vld [vmem:[%s15 + $0x28] sm:$0xff]
    %v8160 = vld [vmem:[%s15 + $0x30] sm:$0xff]
    %v8161 = vld [vmem:[%s15 + $0x38] sm:$0xff]
    %v8162 = vld [vmem:[%s15 + $0x40] sm:$0xff]
    %v8163 = vld [vmem:[%s15 + $0x48] sm:$0xff]
    %v8164 = vld [vmem:[%s15 + $0x50] sm:$0xff]
    %v8165 = vld [vmem:[%s15 + $0x58] sm:$0xff]
    %v8166 = vld [vmem:[%s15 + $0x60] sm:$0xff]
    %v8167 = vld [vmem:[%s15 + $0x68] sm:$0xff]
    %v8168 = vld [vmem:[%s15 + $0x70] sm:$0xff]
    %v8169 = vld [vmem:[%s15 + $0x78] sm:$0xff]
    %v8170 = vld [vmem:[#allocation4] sm:$0xff]
    %v8171 = vld [vmem:[#allocation4 + $0x8] sm:$0xff]
    %v8172 = vld [vmem:[#allocation4 + $0x10] sm:$0xff]
    %v8173 = vld [vmem:[#allocation4 + $0x18] sm:$0xff]
    %v8174 = vld [vmem:[#allocation4 + $0x20] sm:$0xff]
    %v8175 = vld [vmem:[#allocation4 + $0x28] sm:$0xff]
    %v8176 = vld [vmem:[#allocation4 + $0x30] sm:$0xff]
    %v8177 = vld [vmem:[#allocation4 + $0x38] sm:$0xff]
    %v8178 = vld [vmem:[#allocation4 + $0x40] sm:$0xff]
    %v8179 = vld [vmem:[#allocation4 + $0x48] sm:$0xff]
    %v8180 = vld [vmem:[#allocation4 + $0x50] sm:$0xff]
    %v8181 = vld [vmem:[#allocation4 + $0x58] sm:$0xff]
    %v8182 = vld [vmem:[#allocation4 + $0x60] sm:$0xff]
    %8183 = vmatprep.subr.mxu0 0.0
    %8184 = vmatpush1.msra.mxu0 %v8169
    %8185 = vmatprep.subr.mxu0 0.0
    %8186 = vmatpush1.msra.mxu0 %v8168
    %8187 = vmatprep.subr.mxu0 0.0
    %8188 = vmatpush1.msra.mxu0 %v8167
    %8189 = vmatprep.subr.mxu0 0.0
    %8190 = vmatpush1.msra.mxu0 %v8166
    %8191 = vmatprep.subr.mxu0 0.0
    %8192 = vmatpush1.msra.mxu0 %v8165
    %8193 = vmatprep.subr.mxu0 0.0
    %8194 = vmatpush1.msra.mxu0 %v8164
    %8195 = vmatprep.subr.mxu0 0.0
    %8196 = vmatpush1.msra.mxu0 %v8163
    %8197 = vmatprep.subr.mxu0 0.0
    %8198 = vmatpush1.msra.mxu0 %v8162
    %8199 = vmatprep.subr.mxu0 0.0
    %8200 = vmatpush1.msra.mxu0 %v8161
    %8201 = vmatprep.subr.mxu0 0.0
    %8202 = vmatpush1.msra.mxu0 %v8160
    %8203 = vmatprep.subr.mxu0 0.0
    %8204 = vmatpush1.msra.mxu0 %v8159
    %8205 = vmatprep.subr.mxu0 0.0
    %8206 = vmatpush1.msra.mxu0 %v8158
    %8207 = vmatprep.subr.mxu0 0.0
    %8208 = vmatpush1.msra.mxu0 %v8157
    %8209 = vmatprep.subr.mxu0 0.0
    %8210 = vmatpush1.msra.mxu0 %v8156
    %8211 = vmatprep.subr.mxu0 0.0
    %8212 = vmatpush1.msra.mxu0 %v8155
    %8213 = vmatprep.subr.mxu0 0.0
    %8214 = vmatpush1.msra.mxu0 %v8154
    %8215 = vmatprep.subr.mxu0 0.0
    %8216 = vmatpush2.msra.mxu0 0.0
    %8217 = vmatprep.subr.mxu0 0.0
    %8218 = vmatpush2.msra.mxu0 0.0
    %8219 = vmatprep.subr.mxu0 0.0
    %8220 = vmatpush2.msra.mxu0 0.0
    %8221 = vmatprep.subr.mxu0 0.0
    %8222 = vmatpush2.msra.mxu0 0.0
    %8223 = vmatprep.subr.mxu0 0.0
    %8224 = vmatpush2.msra.mxu0 0.0
    %8225 = vmatprep.subr.mxu0 0.0
    %8226 = vmatpush2.msra.mxu0 0.0
    %8227 = vmatprep.subr.mxu0 0.0
    %8228 = vmatpush2.msra.mxu0 0.0
    %8229 = vmatprep.subr.mxu0 0.0
    %8230 = vmatpush2.msra.mxu0 0.0
    %8231 = vmatprep.subr.mxu0 0.0
    %8232 = vmatpush2.msra.mxu0 0.0
    %8233 = vmatprep.subr.mxu0 0.0
    %8234 = vmatpush2.msra.mxu0 0.0
    %8235 = vmatprep.subr.mxu0 0.0
    %8236 = vmatpush2.msra.mxu0 0.0
    %8237 = vmatprep.subr.mxu0 0.0
    %8238 = vmatpush2.msra.mxu0 0.0
    %8239 = vmatprep.subr.mxu0 0.0
    %8240 = vmatpush2.msra.mxu0 0.0
    %8241 = vmatprep.subr.mxu0 0.0
    %8242 = vmatpush2.msra.mxu0 0.0
    %8243 = vmatprep.subr.mxu0 0.0
    %8244 = vmatpush2.msra.mxu0 0.0
    %8245 = vmatprep.subr.mxu0 0.0
    %8246 = vmatpush2.msra.mxu0 0.0
    %8247 = vmatprep.mubr.f32.mxu0 0.0
    %8248 = vmatmul.mubr.f32.gmra.mxu0 %v8141
    %v8249 = vpop.f32.mrf.mxu0
    %v8250 = vadd.f32 %v8170, %v8249
    %v8251 = vpop.f32.mrf.mxu0
    %8252 = vmatprep.mubr.f32.mxu0 0.0
    %8253 = vmatmul.mubr.f32.gmra.mxu0 %v8142
    %v8254 = vpop.f32.mrf.mxu0
    %v8255 = vadd.f32 %v8171, %v8254
    %v8256 = vpop.f32.mrf.mxu0
    %8257 = vmatprep.mubr.f32.mxu0 0.0
    %8258 = vmatmul.mubr.f32.gmra.mxu0 %v8143
    %v8259 = vpop.f32.mrf.mxu0
    %v8260 = vadd.f32 %v8172, %v8259
    %v8261 = vpop.f32.mrf.mxu0
    %8262 = vmatprep.mubr.f32.mxu0 0.0
    %8263 = vmatmul.mubr.f32.gmra.mxu0 %v8144
    %v8264 = vpop.f32.mrf.mxu0
    %v8265 = vadd.f32 %v8173, %v8264
    %v8266 = vpop.f32.mrf.mxu0
    %8267 = vmatprep.mubr.f32.mxu0 0.0
    %8268 = vmatmul.mubr.f32.gmra.mxu0 %v8145
    %v8269 = vpop.f32.mrf.mxu0
    %v8270 = vadd.f32 %v8174, %v8269
    %v8271 = vpop.f32.mrf.mxu0
    %8272 = vmatprep.mubr.f32.mxu0 0.0
    %8273 = vmatmul.mubr.f32.gmra.mxu0 %v8146
    %v8274 = vpop.f32.mrf.mxu0
    %v8275 = vadd.f32 %v8175, %v8274
    %v8276 = vpop.f32.mrf.mxu0
    %8277 = vmatprep.mubr.f32.mxu0 0.0
    %8278 = vmatmul.mubr.f32.gmra.mxu0 %v8147
    %v8279 = vpop.f32.mrf.mxu0
    %v8280 = vadd.f32 %v8176, %v8279
    %v8281 = vpop.f32.mrf.mxu0
    %8282 = vmatprep.mubr.f32.mxu0 0.0
    %8283 = vmatmul.mubr.f32.gmra.mxu0 %v8148
    %v8284 = vpop.f32.mrf.mxu0
    %v8285 = vadd.f32 %v8177, %v8284
    %v8286 = vpop.f32.mrf.mxu0
    %8287 = vmatprep.mubr.f32.mxu0 0.0
    %8288 = vmatmul.mubr.f32.gmra.mxu0 %v8149
    %v8289 = vpop.f32.mrf.mxu0
    %v8290 = vadd.f32 %v8178, %v8289
    %v8291 = vpop.f32.mrf.mxu0
    %8292 = vmatprep.mubr.f32.mxu0 0.0
    %8293 = vmatmul.mubr.f32.gmra.mxu0 %v8150
    %v8294 = vpop.f32.mrf.mxu0
    %v8295 = vadd.f32 %v8179, %v8294
    %v8296 = vpop.f32.mrf.mxu0
    %8297 = vmatprep.mubr.f32.mxu0 0.0
    %8298 = vmatmul.mubr.f32.gmra.mxu0 %v8151
    %v8299 = vpop.f32.mrf.mxu0
    %v8300 = vadd.f32 %v8180, %v8299
    %v8301 = vpop.f32.mrf.mxu0
    %8302 = vmatprep.mubr.f32.mxu0 0.0
    %8303 = vmatmul.mubr.f32.gmra.mxu0 %v8152
    %v8304 = vpop.f32.mrf.mxu0
    %v8305 = vadd.f32 %v8181, %v8304
    %v8306 = vpop.f32.mrf.mxu0
    %8307 = vmatprep.mubr.f32.mxu0 0.0
    %8308 = vmatmul.mubr.f32.gmra.mxu0 %v8153
    %v8309 = vpop.f32.mrf.mxu0
    %v8310 = vadd.f32 %v8182, %v8309
    %v8311 = vpop.f32.mrf.mxu0
    %8312 = vdwg.mxu0
    %v8313 = vld [vmem:[%s17] sm:$0x1]
    %v8315 = vlaneseq
    %v8316 = vshrl.u32 %v8315, 7
    %v8317 = vsub.s32 0, %v8316
    %v8318 = vrot.slane %v8313, %v8317
    %v8320 = vadd.f32 %v8250, %v8318
    %v8321 = vadd.f32 %v8255, %v8318
    %v8322 = vadd.f32 %v8260, %v8318
    %v8323 = vadd.f32 %v8265, %v8318
    %v8324 = vadd.f32 %v8270, %v8318
    %v8325 = vadd.f32 %v8275, %v8318
    %v8326 = vadd.f32 %v8280, %v8318
    %v8327 = vadd.f32 %v8285, %v8318
    %v8328 = vadd.f32 %v8290, %v8318
    %v8329 = vadd.f32 %v8295, %v8318
    %v8330 = vadd.f32 %v8300, %v8318
    %v8331 = vadd.f32 %v8305, %v8318
    %v8332 = vadd.f32 %v8310, %v8318
    %v8333 = vmax.f32 %v8320, 0.0
    %v8334 = vmax.f32 %v8321, 0.0
    %v8335 = vmax.f32 %v8322, 0.0
    %v8336 = vmax.f32 %v8323, 0.0
    %v8337 = vmax.f32 %v8324, 0.0
    %v8338 = vmax.f32 %v8325, 0.0
    %v8339 = vmax.f32 %v8326, 0.0
    %v8340 = vmax.f32 %v8327, 0.0
    %v8341 = vmax.f32 %v8328, 0.0
    %v8342 = vmax.f32 %v8329, 0.0
    %v8343 = vmax.f32 %v8330, 0.0
    %v8344 = vmax.f32 %v8331, 0.0
    %v8345 = vmax.f32 %v8332, 0.0
    %8346 = vst [vmem:[#allocation3 + $0x10] sm:$0xff] %v8333
    %8347 = vst [vmem:[#allocation3 + $0x18] sm:$0xff] %v8334
    %8348 = vst [vmem:[#allocation3 + $0x20] sm:$0xff] %v8335
    %8349 = vst [vmem:[#allocation3 + $0x28] sm:$0xff] %v8336
    %8350 = vst [vmem:[#allocation3 + $0x30] sm:$0xff] %v8337
    %8351 = vst [vmem:[#allocation3 + $0x38] sm:$0xff] %v8338
    %8352 = vst [vmem:[#allocation3 + $0x40] sm:$0xff] %v8339
    %8353 = vst [vmem:[#allocation3 + $0x48] sm:$0xff] %v8340
    %8354 = vst [vmem:[#allocation3 + $0x50] sm:$0xff] %v8341
    %8355 = vst [vmem:[#allocation3 + $0x58] sm:$0xff] %v8342
    %8356 = vst [vmem:[#allocation3 + $0x60] sm:$0xff] %v8343
    %8357 = vst [vmem:[#allocation3 + $0x68] sm:$0xff] %v8344
    %8358 = vst [vmem:[#allocation3 + $0x70] sm:$0xff] %v8345
    %v8359 = vld [vmem:[#allocation3 + $0x11] sm:$0xff]
    %v8360 = vld [vmem:[#allocation3 + $0x19] sm:$0xff]
    %8361 = vmatprep.subr.mxu0 0.0
    %8362 = vmatpush1.msra.mxu0 0.0
    %8363 = vmatprep.subr.mxu0 0.0
    %8364 = vmatpush1.msra.mxu0 0.0
    %8365 = vmatprep.subr.mxu0 0.0
    %8366 = vmatpush1.msra.mxu0 0.0
    %8367 = vmatprep.subr.mxu0 0.0
    %8368 = vmatpush1.msra.mxu0 0.0
    %8369 = vmatprep.subr.mxu0 0.0
    %8370 = vmatpush1.msra.mxu0 0.0
    %8371 = vmatprep.subr.mxu0 0.0
    %8372 = vmatpush1.msra.mxu0 0.0
    %8373 = vmatprep.subr.mxu0 0.0
    %8374 = vmatpush1.msra.mxu0 0.0
    %8375 = vmatprep.subr.mxu0 0.0
    %8376 = vmatpush1.msra.mxu0 0.0
    %8377 = vmatprep.subr.mxu0 0.0
    %8378 = vmatpush1.msra.mxu0 0.0
    %8379 = vmatprep.subr.mxu0 0.0
    %8380 = vmatpush1.msra.mxu0 0.0
    %8381 = vmatprep.subr.mxu0 0.0
    %8382 = vmatpush1.msra.mxu0 0.0
    %8383 = vmatprep.subr.mxu0 0.0
    %8384 = vmatpush1.msra.mxu0 0.0
    %8385 = vmatprep.subr.mxu0 0.0
    %8386 = vmatpush1.msra.mxu0 0.0
    %8387 = vmatprep.subr.mxu0 0.0
    %8388 = vmatpush1.msra.mxu0 0.0
    %8389 = vmatprep.subr.mxu0 0.0
    %8390 = vmatpush1.msra.mxu0 %v8360
    %8391 = vmatprep.subr.mxu0 0.0
    %8392 = vmatpush1.msra.mxu0 %v8359
    %8393 = vmatprep.subr.mxu0 0.0
    %8394 = vmatpush2.msra.mxu0 0.0
    %8395 = vmatprep.subr.mxu0 0.0
    %8396 = vmatpush2.msra.mxu0 0.0
    %8397 = vmatprep.subr.mxu0 0.0
    %8398 = vmatpush2.msra.mxu0 0.0
    %8399 = vmatprep.subr.mxu0 0.0
    %8400 = vmatpush2.msra.mxu0 0.0
    %8401 = vmatprep.subr.mxu0 0.0
    %8402 = vmatpush2.msra.mxu0 0.0
    %8403 = vmatprep.subr.mxu0 0.0
    %8404 = vmatpush2.msra.mxu0 0.0
    %8405 = vmatprep.subr.mxu0 0.0
    %8406 = vmatpush2.msra.mxu0 0.0
    %8407 = vmatprep.subr.mxu0 0.0
    %8408 = vmatpush2.msra.mxu0 0.0
    %8409 = vmatprep.subr.mxu0 0.0
    %8410 = vmatpush2.msra.mxu0 0.0
    %8411 = vmatprep.subr.mxu0 0.0
    %8412 = vmatpush2.msra.mxu0 0.0
    %8413 = vmatprep.subr.mxu0 0.0
    %8414 = vmatpush2.msra.mxu0 0.0
    %8415 = vmatprep.subr.mxu0 0.0
    %8416 = vmatpush2.msra.mxu0 0.0
    %8417 = vmatprep.subr.mxu0 0.0
    %8418 = vmatpush2.msra.mxu0 0.0
    %8419 = vmatprep.subr.mxu0 0.0
    %8420 = vmatpush2.msra.mxu0 0.0
    %8421 = vmatprep.subr.mxu0 0.0
    %8422 = vmatpush2.msra.mxu0 0.0
    %8423 = vmatprep.subr.mxu0 0.0
    %8424 = vmatpush2.msra.mxu0 0.0
    %8425 = vmatprep.mubr.f32.mxu0 0.0
    %8426 = vmatmul.mubr.f32.gmra.mxu0 %v426
    %v8427 = vpop.f32.mrf.mxu0
    %v8428 = vadd.f32 0.0, %v8427
    %v8429 = vpop.f32.mrf.mxu0
    %8430 = vmatprep.mubr.f32.mxu0 0.0
    %8431 = vmatmul.mubr.f32.gmra.mxu0 %v429
    %v8432 = vpop.f32.mrf.mxu0
    %v8433 = vadd.f32 0.0, %v8432
    %v8434 = vpop.f32.mrf.mxu0
    %8435 = vdwg.mxu0
    %8436 = vst [vmem:[#allocation3] sm:$0xff] %v8428
    %8437 = vst [vmem:[#allocation3 + $0x8] sm:$0xff] %v8433
    %v8438 = vld [vmem:[#allocation3 + $0x63] sm:$0xff]
    %v8439 = vld [vmem:[#allocation3 + $0x6b] sm:$0xff]
    %8440 = vmatprep.subr.mxu0 0.0
    %8441 = vmatpush1.msra.mxu0 0.0
    %8442 = vmatprep.subr.mxu0 0.0
    %8443 = vmatpush1.msra.mxu0 0.0
    %8444 = vmatprep.subr.mxu0 0.0
    %8445 = vmatpush1.msra.mxu0 0.0
    %8446 = vmatprep.subr.mxu0 0.0
    %8447 = vmatpush1.msra.mxu0 0.0
    %8448 = vmatprep.subr.mxu0 0.0
    %8449 = vmatpush1.msra.mxu0 0.0
    %8450 = vmatprep.subr.mxu0 0.0
    %8451 = vmatpush1.msra.mxu0 0.0
    %8452 = vmatprep.subr.mxu0 0.0
    %8453 = vmatpush1.msra.mxu0 0.0
    %8454 = vmatprep.subr.mxu0 0.0
    %8455 = vmatpush1.msra.mxu0 0.0
    %8456 = vmatprep.subr.mxu0 0.0
    %8457 = vmatpush1.msra.mxu0 0.0
    %8458 = vmatprep.subr.mxu0 0.0
    %8459 = vmatpush1.msra.mxu0 0.0
    %8460 = vmatprep.subr.mxu0 0.0
    %8461 = vmatpush1.msra.mxu0 0.0
    %8462 = vmatprep.subr.mxu0 0.0
    %8463 = vmatpush1.msra.mxu0 0.0
    %8464 = vmatprep.subr.mxu0 0.0
    %8465 = vmatpush1.msra.mxu0 0.0
    %8466 = vmatprep.subr.mxu0 0.0
    %8467 = vmatpush1.msra.mxu0 0.0
    %8468 = vmatprep.subr.mxu0 0.0
    %8469 = vmatpush1.msra.mxu0 %v8439
    %8470 = vmatprep.subr.mxu0 0.0
    %8471 = vmatpush1.msra.mxu0 %v8438
    %8472 = vmatprep.subr.mxu0 0.0
    %8473 = vmatpush2.msra.mxu0 0.0
    %8474 = vmatprep.subr.mxu0 0.0
    %8475 = vmatpush2.msra.mxu0 0.0
    %8476 = vmatprep.subr.mxu0 0.0
    %8477 = vmatpush2.msra.mxu0 0.0
    %8478 = vmatprep.subr.mxu0 0.0
    %8479 = vmatpush2.msra.mxu0 0.0
    %8480 = vmatprep.subr.mxu0 0.0
    %8481 = vmatpush2.msra.mxu0 0.0
    %8482 = vmatprep.subr.mxu0 0.0
    %8483 = vmatpush2.msra.mxu0 0.0
    %8484 = vmatprep.subr.mxu0 0.0
    %8485 = vmatpush2.msra.mxu0 0.0
    %8486 = vmatprep.subr.mxu0 0.0
    %8487 = vmatpush2.msra.mxu0 0.0
    %8488 = vmatprep.subr.mxu0 0.0
    %8489 = vmatpush2.msra.mxu0 0.0
    %8490 = vmatprep.subr.mxu0 0.0
    %8491 = vmatpush2.msra.mxu0 0.0
    %8492 = vmatprep.subr.mxu0 0.0
    %8493 = vmatpush2.msra.mxu0 0.0
    %8494 = vmatprep.subr.mxu0 0.0
    %8495 = vmatpush2.msra.mxu0 0.0
    %8496 = vmatprep.subr.mxu0 0.0
    %8497 = vmatpush2.msra.mxu0 0.0
    %8498 = vmatprep.subr.mxu0 0.0
    %8499 = vmatpush2.msra.mxu0 0.0
    %8500 = vmatprep.subr.mxu0 0.0
    %8501 = vmatpush2.msra.mxu0 0.0
    %8502 = vmatprep.subr.mxu0 0.0
    %8503 = vmatpush2.msra.mxu0 0.0
    %8504 = vmatprep.mubr.f32.mxu0 0.0
    %8505 = vmatmul.mubr.f32.gmra.mxu0 %v426
    %v8506 = vpop.f32.mrf.mxu0
    %v8507 = vadd.f32 0.0, %v8506
    %v8508 = vpop.f32.mrf.mxu0
    %8509 = vmatprep.mubr.f32.mxu0 0.0
    %8510 = vmatmul.mubr.f32.gmra.mxu0 %v429
    %v8511 = vpop.f32.mrf.mxu0
    %v8512 = vadd.f32 0.0, %v8511
    %v8513 = vpop.f32.mrf.mxu0
    %8514 = vdwg.mxu0
    %8515 = vst [vmem:[#allocation3 + $0x74] sm:$0xff] %v8507
    %8516 = vst [vmem:[#allocation3 + $0x7c] sm:$0xff] %v8512
    %v8517 = vld [vmem:[#allocation3 + $0xd] sm:$0xff]
    %v8518 = vld [vmem:[#allocation3 + $0x15] sm:$0xff]
    %v8519 = vld [vmem:[#allocation3 + $0x1d] sm:$0xff]
    %v8520 = vld [vmem:[#allocation3 + $0x25] sm:$0xff]
    %v8521 = vld [vmem:[#allocation3 + $0x2d] sm:$0xff]
    %v8522 = vld [vmem:[#allocation3 + $0x35] sm:$0xff]
    %v8523 = vld [vmem:[#allocation3 + $0x3d] sm:$0xff]
    %v8524 = vld [vmem:[#allocation3 + $0x45] sm:$0xff]
    %v8525 = vld [vmem:[#allocation3 + $0x4d] sm:$0xff]
    %v8526 = vld [vmem:[#allocation3 + $0x55] sm:$0xff]
    %v8527 = vld [vmem:[#allocation3 + $0x5d] sm:$0xff]
    %v8528 = vld [vmem:[#allocation3 + $0x65] sm:$0xff]
    %v8529 = vld [vmem:[#allocation3 + $0x6d] sm:$0xff]
    %v8530 = vld [vmem:[#allocation16] sm:$0xff]
    %v8531 = vld [vmem:[#allocation16 + $0x8] sm:$0xff]
    %v8532 = vld [vmem:[#allocation16 + $0x10] sm:$0xff]
    %v8533 = vld [vmem:[#allocation16 + $0x18] sm:$0xff]
    %v8534 = vld [vmem:[#allocation16 + $0x20] sm:$0xff]
    %v8535 = vld [vmem:[#allocation16 + $0x28] sm:$0xff]
    %v8536 = vld [vmem:[#allocation16 + $0x30] sm:$0xff]
    %v8537 = vld [vmem:[#allocation16 + $0x38] sm:$0xff]
    %v8538 = vld [vmem:[#allocation16 + $0x40] sm:$0xff]
    %v8539 = vld [vmem:[#allocation16 + $0x48] sm:$0xff]
    %v8540 = vld [vmem:[#allocation16 + $0x50] sm:$0xff]
    %v8541 = vld [vmem:[#allocation16 + $0x58] sm:$0xff]
    %v8542 = vld [vmem:[#allocation16 + $0x60] sm:$0xff]
    %v8543 = vld [vmem:[#allocation16 + $0x68] sm:$0xff]
    %v8544 = vld [vmem:[#allocation16 + $0x70] sm:$0xff]
    %v8545 = vld [vmem:[#allocation16 + $0x78] sm:$0xff]
    %v8546 = vld [vmem:[#allocation3 + $0xe] sm:$0xff]
    %v8547 = vld [vmem:[#allocation3 + $0x16] sm:$0xff]
    %v8548 = vld [vmem:[#allocation3 + $0x1e] sm:$0xff]
    %v8549 = vld [vmem:[#allocation3 + $0x26] sm:$0xff]
    %v8550 = vld [vmem:[#allocation3 + $0x2e] sm:$0xff]
    %v8551 = vld [vmem:[#allocation3 + $0x36] sm:$0xff]
    %v8552 = vld [vmem:[#allocation3 + $0x3e] sm:$0xff]
    %v8553 = vld [vmem:[#allocation3 + $0x46] sm:$0xff]
    %v8554 = vld [vmem:[#allocation3 + $0x4e] sm:$0xff]
    %v8555 = vld [vmem:[#allocation3 + $0x56] sm:$0xff]
    %v8556 = vld [vmem:[#allocation3 + $0x5e] sm:$0xff]
    %v8557 = vld [vmem:[#allocation3 + $0x66] sm:$0xff]
    %v8558 = vld [vmem:[#allocation3 + $0x6e] sm:$0xff]
    %s8559 = scalar_lea.vmem [#allocation16], 128
    %v8560 = vld [vmem:[%s8559] sm:$0xff]
    %v8561 = vld [vmem:[%s8559 + $0x8] sm:$0xff]
    %v8562 = vld [vmem:[%s8559 + $0x10] sm:$0xff]
    %v8563 = vld [vmem:[%s8559 + $0x18] sm:$0xff]
    %v8564 = vld [vmem:[%s8559 + $0x20] sm:$0xff]
    %v8565 = vld [vmem:[%s8559 + $0x28] sm:$0xff]
    %v8566 = vld [vmem:[%s8559 + $0x30] sm:$0xff]
    %v8567 = vld [vmem:[%s8559 + $0x38] sm:$0xff]
    %v8568 = vld [vmem:[%s8559 + $0x40] sm:$0xff]
    %v8569 = vld [vmem:[%s8559 + $0x48] sm:$0xff]
    %v8570 = vld [vmem:[%s8559 + $0x50] sm:$0xff]
    %v8571 = vld [vmem:[%s8559 + $0x58] sm:$0xff]
    %v8572 = vld [vmem:[%s8559 + $0x60] sm:$0xff]
    %v8573 = vld [vmem:[%s8559 + $0x68] sm:$0xff]
    %v8574 = vld [vmem:[%s8559 + $0x70] sm:$0xff]
    %v8575 = vld [vmem:[%s8559 + $0x78] sm:$0xff]
    %8576 = vmatprep.subr.mxu0 0.0
    %8577 = vmatpush1.msra.mxu0 %v8575
    %8578 = vmatprep.subr.mxu0 0.0
    %8579 = vmatpush1.msra.mxu0 %v8574
    %8580 = vmatprep.subr.mxu0 0.0
    %8581 = vmatpush1.msra.mxu0 %v8573
    %8582 = vmatprep.subr.mxu0 0.0
    %8583 = vmatpush1.msra.mxu0 %v8572
    %8584 = vmatprep.subr.mxu0 0.0
    %8585 = vmatpush1.msra.mxu0 %v8571
    %8586 = vmatprep.subr.mxu0 0.0
    %8587 = vmatpush1.msra.mxu0 %v8570
    %8588 = vmatprep.subr.mxu0 0.0
    %8589 = vmatpush1.msra.mxu0 %v8569
    %8590 = vmatprep.subr.mxu0 0.0
    %8591 = vmatpush1.msra.mxu0 %v8568
    %8592 = vmatprep.subr.mxu0 0.0
    %8593 = vmatpush1.msra.mxu0 %v8567
    %8594 = vmatprep.subr.mxu0 0.0
    %8595 = vmatpush1.msra.mxu0 %v8566
    %8596 = vmatprep.subr.mxu0 0.0
    %8597 = vmatpush1.msra.mxu0 %v8565
    %8598 = vmatprep.subr.mxu0 0.0
    %8599 = vmatpush1.msra.mxu0 %v8564
    %8600 = vmatprep.subr.mxu0 0.0
    %8601 = vmatpush1.msra.mxu0 %v8563
    %8602 = vmatprep.subr.mxu0 0.0
    %8603 = vmatpush1.msra.mxu0 %v8562
    %8604 = vmatprep.subr.mxu0 0.0
    %8605 = vmatpush1.msra.mxu0 %v8561
    %8606 = vmatprep.subr.mxu0 0.0
    %8607 = vmatpush1.msra.mxu0 %v8560
    %8608 = vmatprep.subr.mxu0 0.0
    %8609 = vmatpush2.msra.mxu0 0.0
    %8610 = vmatprep.subr.mxu0 0.0
    %8611 = vmatpush2.msra.mxu0 0.0
    %8612 = vmatprep.subr.mxu0 0.0
    %8613 = vmatpush2.msra.mxu0 0.0
    %8614 = vmatprep.subr.mxu0 0.0
    %8615 = vmatpush2.msra.mxu0 0.0
    %8616 = vmatprep.subr.mxu0 0.0
    %8617 = vmatpush2.msra.mxu0 0.0
    %8618 = vmatprep.subr.mxu0 0.0
    %8619 = vmatpush2.msra.mxu0 0.0
    %8620 = vmatprep.subr.mxu0 0.0
    %8621 = vmatpush2.msra.mxu0 0.0
    %8622 = vmatprep.subr.mxu0 0.0
    %8623 = vmatpush2.msra.mxu0 0.0
    %8624 = vmatprep.subr.mxu0 0.0
    %8625 = vmatpush2.msra.mxu0 0.0
    %8626 = vmatprep.subr.mxu0 0.0
    %8627 = vmatpush2.msra.mxu0 0.0
    %8628 = vmatprep.subr.mxu0 0.0
    %8629 = vmatpush2.msra.mxu0 0.0
    %8630 = vmatprep.subr.mxu0 0.0
    %8631 = vmatpush2.msra.mxu0 0.0
    %8632 = vmatprep.subr.mxu0 0.0
    %8633 = vmatpush2.msra.mxu0 0.0
    %8634 = vmatprep.subr.mxu0 0.0
    %8635 = vmatpush2.msra.mxu0 0.0
    %8636 = vmatprep.subr.mxu0 0.0
    %8637 = vmatpush2.msra.mxu0 0.0
    %8638 = vmatprep.subr.mxu0 0.0
    %8639 = vmatpush2.msra.mxu0 0.0
    %8640 = vmatprep.mubr.f32.mxu0 0.0
    %8641 = vmatmul.mubr.f32.gmra.mxu0 %v8546
    %v8642 = vpop.f32.mrf.mxu0
    %v8643 = vadd.f32 0.0, %v8642
    %v8644 = vpop.f32.mrf.mxu0
    %8645 = vmatprep.mubr.f32.mxu0 0.0
    %8646 = vmatmul.mubr.f32.gmra.mxu0 %v8547
    %v8647 = vpop.f32.mrf.mxu0
    %v8648 = vadd.f32 0.0, %v8647
    %v8649 = vpop.f32.mrf.mxu0
    %8650 = vmatprep.mubr.f32.mxu0 0.0
    %8651 = vmatmul.mubr.f32.gmra.mxu0 %v8548
    %v8652 = vpop.f32.mrf.mxu0
    %v8653 = vadd.f32 0.0, %v8652
    %v8654 = vpop.f32.mrf.mxu0
    %8655 = vmatprep.mubr.f32.mxu0 0.0
    %8656 = vmatmul.mubr.f32.gmra.mxu0 %v8549
    %v8657 = vpop.f32.mrf.mxu0
    %v8658 = vadd.f32 0.0, %v8657
    %v8659 = vpop.f32.mrf.mxu0
    %8660 = vmatprep.mubr.f32.mxu0 0.0
    %8661 = vmatmul.mubr.f32.gmra.mxu0 %v8550
    %v8662 = vpop.f32.mrf.mxu0
    %v8663 = vadd.f32 0.0, %v8662
    %v8664 = vpop.f32.mrf.mxu0
    %8665 = vmatprep.mubr.f32.mxu0 0.0
    %8666 = vmatmul.mubr.f32.gmra.mxu0 %v8551
    %v8667 = vpop.f32.mrf.mxu0
    %v8668 = vadd.f32 0.0, %v8667
    %v8669 = vpop.f32.mrf.mxu0
    %8670 = vmatprep.mubr.f32.mxu0 0.0
    %8671 = vmatmul.mubr.f32.gmra.mxu0 %v8552
    %v8672 = vpop.f32.mrf.mxu0
    %v8673 = vadd.f32 0.0, %v8672
    %v8674 = vpop.f32.mrf.mxu0
    %8675 = vmatprep.mubr.f32.mxu0 0.0
    %8676 = vmatmul.mubr.f32.gmra.mxu0 %v8553
    %v8677 = vpop.f32.mrf.mxu0
    %v8678 = vadd.f32 0.0, %v8677
    %v8679 = vpop.f32.mrf.mxu0
    %8680 = vmatprep.mubr.f32.mxu0 0.0
    %8681 = vmatmul.mubr.f32.gmra.mxu0 %v8554
    %v8682 = vpop.f32.mrf.mxu0
    %v8683 = vadd.f32 0.0, %v8682
    %v8684 = vpop.f32.mrf.mxu0
    %8685 = vmatprep.mubr.f32.mxu0 0.0
    %8686 = vmatmul.mubr.f32.gmra.mxu0 %v8555
    %v8687 = vpop.f32.mrf.mxu0
    %v8688 = vadd.f32 0.0, %v8687
    %v8689 = vpop.f32.mrf.mxu0
    %8690 = vmatprep.mubr.f32.mxu0 0.0
    %8691 = vmatmul.mubr.f32.gmra.mxu0 %v8556
    %v8692 = vpop.f32.mrf.mxu0
    %v8693 = vadd.f32 0.0, %v8692
    %v8694 = vpop.f32.mrf.mxu0
    %8695 = vmatprep.mubr.f32.mxu0 0.0
    %8696 = vmatmul.mubr.f32.gmra.mxu0 %v8557
    %v8697 = vpop.f32.mrf.mxu0
    %v8698 = vadd.f32 0.0, %v8697
    %v8699 = vpop.f32.mrf.mxu0
    %8700 = vmatprep.mubr.f32.mxu0 0.0
    %8701 = vmatmul.mubr.f32.gmra.mxu0 %v8558
    %v8702 = vpop.f32.mrf.mxu0
    %v8703 = vadd.f32 0.0, %v8702
    %v8704 = vpop.f32.mrf.mxu0
    %8705 = vdwg.mxu0
    %8706 = vmatprep.subr.mxu0 0.0
    %8707 = vmatpush1.msra.mxu0 %v8545
    %8708 = vmatprep.subr.mxu0 0.0
    %8709 = vmatpush1.msra.mxu0 %v8544
    %8710 = vmatprep.subr.mxu0 0.0
    %8711 = vmatpush1.msra.mxu0 %v8543
    %8712 = vmatprep.subr.mxu0 0.0
    %8713 = vmatpush1.msra.mxu0 %v8542
    %8714 = vmatprep.subr.mxu0 0.0
    %8715 = vmatpush1.msra.mxu0 %v8541
    %8716 = vmatprep.subr.mxu0 0.0
    %8717 = vmatpush1.msra.mxu0 %v8540
    %8718 = vmatprep.subr.mxu0 0.0
    %8719 = vmatpush1.msra.mxu0 %v8539
    %8720 = vmatprep.subr.mxu0 0.0
    %8721 = vmatpush1.msra.mxu0 %v8538
    %8722 = vmatprep.subr.mxu0 0.0
    %8723 = vmatpush1.msra.mxu0 %v8537
    %8724 = vmatprep.subr.mxu0 0.0
    %8725 = vmatpush1.msra.mxu0 %v8536
    %8726 = vmatprep.subr.mxu0 0.0
    %8727 = vmatpush1.msra.mxu0 %v8535
    %8728 = vmatprep.subr.mxu0 0.0
    %8729 = vmatpush1.msra.mxu0 %v8534
    %8730 = vmatprep.subr.mxu0 0.0
    %8731 = vmatpush1.msra.mxu0 %v8533
    %8732 = vmatprep.subr.mxu0 0.0
    %8733 = vmatpush1.msra.mxu0 %v8532
    %8734 = vmatprep.subr.mxu0 0.0
    %8735 = vmatpush1.msra.mxu0 %v8531
    %8736 = vmatprep.subr.mxu0 0.0
    %8737 = vmatpush1.msra.mxu0 %v8530
    %8738 = vmatprep.subr.mxu0 0.0
    %8739 = vmatpush2.msra.mxu0 0.0
    %8740 = vmatprep.subr.mxu0 0.0
    %8741 = vmatpush2.msra.mxu0 0.0
    %8742 = vmatprep.subr.mxu0 0.0
    %8743 = vmatpush2.msra.mxu0 0.0
    %8744 = vmatprep.subr.mxu0 0.0
    %8745 = vmatpush2.msra.mxu0 0.0
    %8746 = vmatprep.subr.mxu0 0.0
    %8747 = vmatpush2.msra.mxu0 0.0
    %8748 = vmatprep.subr.mxu0 0.0
    %8749 = vmatpush2.msra.mxu0 0.0
    %8750 = vmatprep.subr.mxu0 0.0
    %8751 = vmatpush2.msra.mxu0 0.0
    %8752 = vmatprep.subr.mxu0 0.0
    %8753 = vmatpush2.msra.mxu0 0.0
    %8754 = vmatprep.subr.mxu0 0.0
    %8755 = vmatpush2.msra.mxu0 0.0
    %8756 = vmatprep.subr.mxu0 0.0
    %8757 = vmatpush2.msra.mxu0 0.0
    %8758 = vmatprep.subr.mxu0 0.0
    %8759 = vmatpush2.msra.mxu0 0.0
    %8760 = vmatprep.subr.mxu0 0.0
    %8761 = vmatpush2.msra.mxu0 0.0
    %8762 = vmatprep.subr.mxu0 0.0
    %8763 = vmatpush2.msra.mxu0 0.0
    %8764 = vmatprep.subr.mxu0 0.0
    %8765 = vmatpush2.msra.mxu0 0.0
    %8766 = vmatprep.subr.mxu0 0.0
    %8767 = vmatpush2.msra.mxu0 0.0
    %8768 = vmatprep.subr.mxu0 0.0
    %8769 = vmatpush2.msra.mxu0 0.0
    %8770 = vmatprep.mubr.f32.mxu0 0.0
    %8771 = vmatmul.mubr.f32.gmra.mxu0 %v8517
    %v8772 = vpop.f32.mrf.mxu0
    %v8773 = vadd.f32 %v8643, %v8772
    %v8774 = vpop.f32.mrf.mxu0
    %8775 = vmatprep.mubr.f32.mxu0 0.0
    %8776 = vmatmul.mubr.f32.gmra.mxu0 %v8518
    %v8777 = vpop.f32.mrf.mxu0
    %v8778 = vadd.f32 %v8648, %v8777
    %v8779 = vpop.f32.mrf.mxu0
    %8780 = vmatprep.mubr.f32.mxu0 0.0
    %8781 = vmatmul.mubr.f32.gmra.mxu0 %v8519
    %v8782 = vpop.f32.mrf.mxu0
    %v8783 = vadd.f32 %v8653, %v8782
    %v8784 = vpop.f32.mrf.mxu0
    %8785 = vmatprep.mubr.f32.mxu0 0.0
    %8786 = vmatmul.mubr.f32.gmra.mxu0 %v8520
    %v8787 = vpop.f32.mrf.mxu0
    %v8788 = vadd.f32 %v8658, %v8787
    %v8789 = vpop.f32.mrf.mxu0
    %8790 = vmatprep.mubr.f32.mxu0 0.0
    %8791 = vmatmul.mubr.f32.gmra.mxu0 %v8521
    %v8792 = vpop.f32.mrf.mxu0
    %v8793 = vadd.f32 %v8663, %v8792
    %v8794 = vpop.f32.mrf.mxu0
    %8795 = vmatprep.mubr.f32.mxu0 0.0
    %8796 = vmatmul.mubr.f32.gmra.mxu0 %v8522
    %v8797 = vpop.f32.mrf.mxu0
    %v8798 = vadd.f32 %v8668, %v8797
    %v8799 = vpop.f32.mrf.mxu0
    %8800 = vmatprep.mubr.f32.mxu0 0.0
    %8801 = vmatmul.mubr.f32.gmra.mxu0 %v8523
    %v8802 = vpop.f32.mrf.mxu0
    %v8803 = vadd.f32 %v8673, %v8802
    %v8804 = vpop.f32.mrf.mxu0
    %8805 = vmatprep.mubr.f32.mxu0 0.0
    %8806 = vmatmul.mubr.f32.gmra.mxu0 %v8524
    %v8807 = vpop.f32.mrf.mxu0
    %v8808 = vadd.f32 %v8678, %v8807
    %v8809 = vpop.f32.mrf.mxu0
    %8810 = vmatprep.mubr.f32.mxu0 0.0
    %8811 = vmatmul.mubr.f32.gmra.mxu0 %v8525
    %v8812 = vpop.f32.mrf.mxu0
    %v8813 = vadd.f32 %v8683, %v8812
    %v8814 = vpop.f32.mrf.mxu0
    %8815 = vmatprep.mubr.f32.mxu0 0.0
    %8816 = vmatmul.mubr.f32.gmra.mxu0 %v8526
    %v8817 = vpop.f32.mrf.mxu0
    %v8818 = vadd.f32 %v8688, %v8817
    %v8819 = vpop.f32.mrf.mxu0
    %8820 = vmatprep.mubr.f32.mxu0 0.0
    %8821 = vmatmul.mubr.f32.gmra.mxu0 %v8527
    %v8822 = vpop.f32.mrf.mxu0
    %v8823 = vadd.f32 %v8693, %v8822
    %v8824 = vpop.f32.mrf.mxu0
    %8825 = vmatprep.mubr.f32.mxu0 0.0
    %8826 = vmatmul.mubr.f32.gmra.mxu0 %v8528
    %v8827 = vpop.f32.mrf.mxu0
    %v8828 = vadd.f32 %v8698, %v8827
    %v8829 = vpop.f32.mrf.mxu0
    %8830 = vmatprep.mubr.f32.mxu0 0.0
    %8831 = vmatmul.mubr.f32.gmra.mxu0 %v8529
    %v8832 = vpop.f32.mrf.mxu0
    %v8833 = vadd.f32 %v8703, %v8832
    %v8834 = vpop.f32.mrf.mxu0
    %8835 = vdwg.mxu0
    %v8836 = vld [vmem:[#allocation3 + $0xf] sm:$0xff]
    %v8837 = vld [vmem:[#allocation3 + $0x17] sm:$0xff]
    %v8838 = vld [vmem:[#allocation3 + $0x1f] sm:$0xff]
    %v8839 = vld [vmem:[#allocation3 + $0x27] sm:$0xff]
    %v8840 = vld [vmem:[#allocation3 + $0x2f] sm:$0xff]
    %v8841 = vld [vmem:[#allocation3 + $0x37] sm:$0xff]
    %v8842 = vld [vmem:[#allocation3 + $0x3f] sm:$0xff]
    %v8843 = vld [vmem:[#allocation3 + $0x47] sm:$0xff]
    %v8844 = vld [vmem:[#allocation3 + $0x4f] sm:$0xff]
    %v8845 = vld [vmem:[#allocation3 + $0x57] sm:$0xff]
    %v8846 = vld [vmem:[#allocation3 + $0x5f] sm:$0xff]
    %v8847 = vld [vmem:[#allocation3 + $0x67] sm:$0xff]
    %v8848 = vld [vmem:[#allocation3 + $0x6f] sm:$0xff]
    %s8849 = scalar_lea.vmem [#allocation16], 256
    %v8850 = vld [vmem:[%s8849] sm:$0xff]
    %v8851 = vld [vmem:[%s8849 + $0x8] sm:$0xff]
    %v8852 = vld [vmem:[%s8849 + $0x10] sm:$0xff]
    %v8853 = vld [vmem:[%s8849 + $0x18] sm:$0xff]
    %v8854 = vld [vmem:[%s8849 + $0x20] sm:$0xff]
    %v8855 = vld [vmem:[%s8849 + $0x28] sm:$0xff]
    %v8856 = vld [vmem:[%s8849 + $0x30] sm:$0xff]
    %v8857 = vld [vmem:[%s8849 + $0x38] sm:$0xff]
    %v8858 = vld [vmem:[%s8849 + $0x40] sm:$0xff]
    %v8859 = vld [vmem:[%s8849 + $0x48] sm:$0xff]
    %v8860 = vld [vmem:[%s8849 + $0x50] sm:$0xff]
    %v8861 = vld [vmem:[%s8849 + $0x58] sm:$0xff]
    %v8862 = vld [vmem:[%s8849 + $0x60] sm:$0xff]
    %v8863 = vld [vmem:[%s8849 + $0x68] sm:$0xff]
    %v8864 = vld [vmem:[%s8849 + $0x70] sm:$0xff]
    %v8865 = vld [vmem:[%s8849 + $0x78] sm:$0xff]
    %8866 = vmatprep.subr.mxu0 0.0
    %8867 = vmatpush1.msra.mxu0 %v8865
    %8868 = vmatprep.subr.mxu0 0.0
    %8869 = vmatpush1.msra.mxu0 %v8864
    %8870 = vmatprep.subr.mxu0 0.0
    %8871 = vmatpush1.msra.mxu0 %v8863
    %8872 = vmatprep.subr.mxu0 0.0
    %8873 = vmatpush1.msra.mxu0 %v8862
    %8874 = vmatprep.subr.mxu0 0.0
    %8875 = vmatpush1.msra.mxu0 %v8861
    %8876 = vmatprep.subr.mxu0 0.0
    %8877 = vmatpush1.msra.mxu0 %v8860
    %8878 = vmatprep.subr.mxu0 0.0
    %8879 = vmatpush1.msra.mxu0 %v8859
    %8880 = vmatprep.subr.mxu0 0.0
    %8881 = vmatpush1.msra.mxu0 %v8858
    %8882 = vmatprep.subr.mxu0 0.0
    %8883 = vmatpush1.msra.mxu0 %v8857
    %8884 = vmatprep.subr.mxu0 0.0
    %8885 = vmatpush1.msra.mxu0 %v8856
    %8886 = vmatprep.subr.mxu0 0.0
    %8887 = vmatpush1.msra.mxu0 %v8855
    %8888 = vmatprep.subr.mxu0 0.0
    %8889 = vmatpush1.msra.mxu0 %v8854
    %8890 = vmatprep.subr.mxu0 0.0
    %8891 = vmatpush1.msra.mxu0 %v8853
    %8892 = vmatprep.subr.mxu0 0.0
    %8893 = vmatpush1.msra.mxu0 %v8852
    %8894 = vmatprep.subr.mxu0 0.0
    %8895 = vmatpush1.msra.mxu0 %v8851
    %8896 = vmatprep.subr.mxu0 0.0
    %8897 = vmatpush1.msra.mxu0 %v8850
    %8898 = vmatprep.subr.mxu0 0.0
    %8899 = vmatpush2.msra.mxu0 0.0
    %8900 = vmatprep.subr.mxu0 0.0
    %8901 = vmatpush2.msra.mxu0 0.0
    %8902 = vmatprep.subr.mxu0 0.0
    %8903 = vmatpush2.msra.mxu0 0.0
    %8904 = vmatprep.subr.mxu0 0.0
    %8905 = vmatpush2.msra.mxu0 0.0
    %8906 = vmatprep.subr.mxu0 0.0
    %8907 = vmatpush2.msra.mxu0 0.0
    %8908 = vmatprep.subr.mxu0 0.0
    %8909 = vmatpush2.msra.mxu0 0.0
    %8910 = vmatprep.subr.mxu0 0.0
    %8911 = vmatpush2.msra.mxu0 0.0
    %8912 = vmatprep.subr.mxu0 0.0
    %8913 = vmatpush2.msra.mxu0 0.0
    %8914 = vmatprep.subr.mxu0 0.0
    %8915 = vmatpush2.msra.mxu0 0.0
    %8916 = vmatprep.subr.mxu0 0.0
    %8917 = vmatpush2.msra.mxu0 0.0
    %8918 = vmatprep.subr.mxu0 0.0
    %8919 = vmatpush2.msra.mxu0 0.0
    %8920 = vmatprep.subr.mxu0 0.0
    %8921 = vmatpush2.msra.mxu0 0.0
    %8922 = vmatprep.subr.mxu0 0.0
    %8923 = vmatpush2.msra.mxu0 0.0
    %8924 = vmatprep.subr.mxu0 0.0
    %8925 = vmatpush2.msra.mxu0 0.0
    %8926 = vmatprep.subr.mxu0 0.0
    %8927 = vmatpush2.msra.mxu0 0.0
    %8928 = vmatprep.subr.mxu0 0.0
    %8929 = vmatpush2.msra.mxu0 0.0
    %8930 = vmatprep.mubr.f32.mxu0 0.0
    %8931 = vmatmul.mubr.f32.gmra.mxu0 %v8836
    %v8932 = vpop.f32.mrf.mxu0
    %v8933 = vadd.f32 0.0, %v8932
    %v8934 = vpop.f32.mrf.mxu0
    %8935 = vmatprep.mubr.f32.mxu0 0.0
    %8936 = vmatmul.mubr.f32.gmra.mxu0 %v8837
    %v8937 = vpop.f32.mrf.mxu0
    %v8938 = vadd.f32 0.0, %v8937
    %v8939 = vpop.f32.mrf.mxu0
    %8940 = vmatprep.mubr.f32.mxu0 0.0
    %8941 = vmatmul.mubr.f32.gmra.mxu0 %v8838
    %v8942 = vpop.f32.mrf.mxu0
    %v8943 = vadd.f32 0.0, %v8942
    %v8944 = vpop.f32.mrf.mxu0
    %8945 = vmatprep.mubr.f32.mxu0 0.0
    %8946 = vmatmul.mubr.f32.gmra.mxu0 %v8839
    %v8947 = vpop.f32.mrf.mxu0
    %v8948 = vadd.f32 0.0, %v8947
    %v8949 = vpop.f32.mrf.mxu0
    %8950 = vmatprep.mubr.f32.mxu0 0.0
    %8951 = vmatmul.mubr.f32.gmra.mxu0 %v8840
    %v8952 = vpop.f32.mrf.mxu0
    %v8953 = vadd.f32 0.0, %v8952
    %v8954 = vpop.f32.mrf.mxu0
    %8955 = vmatprep.mubr.f32.mxu0 0.0
    %8956 = vmatmul.mubr.f32.gmra.mxu0 %v8841
    %v8957 = vpop.f32.mrf.mxu0
    %v8958 = vadd.f32 0.0, %v8957
    %v8959 = vpop.f32.mrf.mxu0
    %8960 = vmatprep.mubr.f32.mxu0 0.0
    %8961 = vmatmul.mubr.f32.gmra.mxu0 %v8842
    %v8962 = vpop.f32.mrf.mxu0
    %v8963 = vadd.f32 0.0, %v8962
    %v8964 = vpop.f32.mrf.mxu0
    %8965 = vmatprep.mubr.f32.mxu0 0.0
    %8966 = vmatmul.mubr.f32.gmra.mxu0 %v8843
    %v8967 = vpop.f32.mrf.mxu0
    %v8968 = vadd.f32 0.0, %v8967
    %v8969 = vpop.f32.mrf.mxu0
    %8970 = vmatprep.mubr.f32.mxu0 0.0
    %8971 = vmatmul.mubr.f32.gmra.mxu0 %v8844
    %v8972 = vpop.f32.mrf.mxu0
    %v8973 = vadd.f32 0.0, %v8972
    %v8974 = vpop.f32.mrf.mxu0
    %8975 = vmatprep.mubr.f32.mxu0 0.0
    %8976 = vmatmul.mubr.f32.gmra.mxu0 %v8845
    %v8977 = vpop.f32.mrf.mxu0
    %v8978 = vadd.f32 0.0, %v8977
    %v8979 = vpop.f32.mrf.mxu0
    %8980 = vmatprep.mubr.f32.mxu0 0.0
    %8981 = vmatmul.mubr.f32.gmra.mxu0 %v8846
    %v8982 = vpop.f32.mrf.mxu0
    %v8983 = vadd.f32 0.0, %v8982
    %v8984 = vpop.f32.mrf.mxu0
    %8985 = vmatprep.mubr.f32.mxu0 0.0
    %8986 = vmatmul.mubr.f32.gmra.mxu0 %v8847
    %v8987 = vpop.f32.mrf.mxu0
    %v8988 = vadd.f32 0.0, %v8987
    %v8989 = vpop.f32.mrf.mxu0
    %8990 = vmatprep.mubr.f32.mxu0 0.0
    %8991 = vmatmul.mubr.f32.gmra.mxu0 %v8848
    %v8992 = vpop.f32.mrf.mxu0
    %v8993 = vadd.f32 0.0, %v8992
    %v8994 = vpop.f32.mrf.mxu0
    %8995 = vdwg.mxu0
    %v8996 = vadd.f32 %v8773, %v8933
    %v8997 = vadd.f32 %v8778, %v8938
    %v8998 = vadd.f32 %v8783, %v8943
    %v8999 = vadd.f32 %v8788, %v8948
    %v9000 = vadd.f32 %v8793, %v8953
    %v9001 = vadd.f32 %v8798, %v8958
    %v9002 = vadd.f32 %v8803, %v8963
    %v9003 = vadd.f32 %v8808, %v8968
    %v9004 = vadd.f32 %v8813, %v8973
    %v9005 = vadd.f32 %v8818, %v8978
    %v9006 = vadd.f32 %v8823, %v8983
    %v9007 = vadd.f32 %v8828, %v8988
    %v9008 = vadd.f32 %v8833, %v8993
    %v9009 = vld [vmem:[#allocation3 + $0x10] sm:$0xff]
    %v9010 = vld [vmem:[#allocation3 + $0x18] sm:$0xff]
    %v9011 = vld [vmem:[#allocation3 + $0x20] sm:$0xff]
    %v9012 = vld [vmem:[#allocation3 + $0x28] sm:$0xff]
    %v9013 = vld [vmem:[#allocation3 + $0x30] sm:$0xff]
    %v9014 = vld [vmem:[#allocation3 + $0x38] sm:$0xff]
    %v9015 = vld [vmem:[#allocation3 + $0x40] sm:$0xff]
    %v9016 = vld [vmem:[#allocation3 + $0x48] sm:$0xff]
    %v9017 = vld [vmem:[#allocation3 + $0x50] sm:$0xff]
    %v9018 = vld [vmem:[#allocation3 + $0x58] sm:$0xff]
    %v9019 = vld [vmem:[#allocation3 + $0x60] sm:$0xff]
    %v9020 = vld [vmem:[#allocation3 + $0x68] sm:$0xff]
    %v9021 = vld [vmem:[#allocation3 + $0x70] sm:$0xff]
    %s9022 = scalar_lea.vmem [#allocation16], 384
    %v9023 = vld [vmem:[%s9022] sm:$0xff]
    %v9024 = vld [vmem:[%s9022 + $0x8] sm:$0xff]
    %v9025 = vld [vmem:[%s9022 + $0x10] sm:$0xff]
    %v9026 = vld [vmem:[%s9022 + $0x18] sm:$0xff]
    %v9027 = vld [vmem:[%s9022 + $0x20] sm:$0xff]
    %v9028 = vld [vmem:[%s9022 + $0x28] sm:$0xff]
    %v9029 = vld [vmem:[%s9022 + $0x30] sm:$0xff]
    %v9030 = vld [vmem:[%s9022 + $0x38] sm:$0xff]
    %v9031 = vld [vmem:[%s9022 + $0x40] sm:$0xff]
    %v9032 = vld [vmem:[%s9022 + $0x48] sm:$0xff]
    %v9033 = vld [vmem:[%s9022 + $0x50] sm:$0xff]
    %v9034 = vld [vmem:[%s9022 + $0x58] sm:$0xff]
    %v9035 = vld [vmem:[%s9022 + $0x60] sm:$0xff]
    %v9036 = vld [vmem:[%s9022 + $0x68] sm:$0xff]
    %v9037 = vld [vmem:[%s9022 + $0x70] sm:$0xff]
    %v9038 = vld [vmem:[%s9022 + $0x78] sm:$0xff]
    %9039 = vmatprep.subr.mxu0 0.0
    %9040 = vmatpush1.msra.mxu0 %v9038
    %9041 = vmatprep.subr.mxu0 0.0
    %9042 = vmatpush1.msra.mxu0 %v9037
    %9043 = vmatprep.subr.mxu0 0.0
    %9044 = vmatpush1.msra.mxu0 %v9036
    %9045 = vmatprep.subr.mxu0 0.0
    %9046 = vmatpush1.msra.mxu0 %v9035
    %9047 = vmatprep.subr.mxu0 0.0
    %9048 = vmatpush1.msra.mxu0 %v9034
    %9049 = vmatprep.subr.mxu0 0.0
    %9050 = vmatpush1.msra.mxu0 %v9033
    %9051 = vmatprep.subr.mxu0 0.0
    %9052 = vmatpush1.msra.mxu0 %v9032
    %9053 = vmatprep.subr.mxu0 0.0
    %9054 = vmatpush1.msra.mxu0 %v9031
    %9055 = vmatprep.subr.mxu0 0.0
    %9056 = vmatpush1.msra.mxu0 %v9030
    %9057 = vmatprep.subr.mxu0 0.0
    %9058 = vmatpush1.msra.mxu0 %v9029
    %9059 = vmatprep.subr.mxu0 0.0
    %9060 = vmatpush1.msra.mxu0 %v9028
    %9061 = vmatprep.subr.mxu0 0.0
    %9062 = vmatpush1.msra.mxu0 %v9027
    %9063 = vmatprep.subr.mxu0 0.0
    %9064 = vmatpush1.msra.mxu0 %v9026
    %9065 = vmatprep.subr.mxu0 0.0
    %9066 = vmatpush1.msra.mxu0 %v9025
    %9067 = vmatprep.subr.mxu0 0.0
    %9068 = vmatpush1.msra.mxu0 %v9024
    %9069 = vmatprep.subr.mxu0 0.0
    %9070 = vmatpush1.msra.mxu0 %v9023
    %9071 = vmatprep.subr.mxu0 0.0
    %9072 = vmatpush2.msra.mxu0 0.0
    %9073 = vmatprep.subr.mxu0 0.0
    %9074 = vmatpush2.msra.mxu0 0.0
    %9075 = vmatprep.subr.mxu0 0.0
    %9076 = vmatpush2.msra.mxu0 0.0
    %9077 = vmatprep.subr.mxu0 0.0
    %9078 = vmatpush2.msra.mxu0 0.0
    %9079 = vmatprep.subr.mxu0 0.0
    %9080 = vmatpush2.msra.mxu0 0.0
    %9081 = vmatprep.subr.mxu0 0.0
    %9082 = vmatpush2.msra.mxu0 0.0
    %9083 = vmatprep.subr.mxu0 0.0
    %9084 = vmatpush2.msra.mxu0 0.0
    %9085 = vmatprep.subr.mxu0 0.0
    %9086 = vmatpush2.msra.mxu0 0.0
    %9087 = vmatprep.subr.mxu0 0.0
    %9088 = vmatpush2.msra.mxu0 0.0
    %9089 = vmatprep.subr.mxu0 0.0
    %9090 = vmatpush2.msra.mxu0 0.0
    %9091 = vmatprep.subr.mxu0 0.0
    %9092 = vmatpush2.msra.mxu0 0.0
    %9093 = vmatprep.subr.mxu0 0.0
    %9094 = vmatpush2.msra.mxu0 0.0
    %9095 = vmatprep.subr.mxu0 0.0
    %9096 = vmatpush2.msra.mxu0 0.0
    %9097 = vmatprep.subr.mxu0 0.0
    %9098 = vmatpush2.msra.mxu0 0.0
    %9099 = vmatprep.subr.mxu0 0.0
    %9100 = vmatpush2.msra.mxu0 0.0
    %9101 = vmatprep.subr.mxu0 0.0
    %9102 = vmatpush2.msra.mxu0 0.0
    %9103 = vmatprep.mubr.f32.mxu0 0.0
    %9104 = vmatmul.mubr.f32.gmra.mxu0 %v9009
    %v9105 = vpop.f32.mrf.mxu0
    %v9106 = vadd.f32 0.0, %v9105
    %v9107 = vpop.f32.mrf.mxu0
    %9108 = vmatprep.mubr.f32.mxu0 0.0
    %9109 = vmatmul.mubr.f32.gmra.mxu0 %v9010
    %v9110 = vpop.f32.mrf.mxu0
    %v9111 = vadd.f32 0.0, %v9110
    %v9112 = vpop.f32.mrf.mxu0
    %9113 = vmatprep.mubr.f32.mxu0 0.0
    %9114 = vmatmul.mubr.f32.gmra.mxu0 %v9011
    %v9115 = vpop.f32.mrf.mxu0
    %v9116 = vadd.f32 0.0, %v9115
    %v9117 = vpop.f32.mrf.mxu0
    %9118 = vmatprep.mubr.f32.mxu0 0.0
    %9119 = vmatmul.mubr.f32.gmra.mxu0 %v9012
    %v9120 = vpop.f32.mrf.mxu0
    %v9121 = vadd.f32 0.0, %v9120
    %v9122 = vpop.f32.mrf.mxu0
    %9123 = vmatprep.mubr.f32.mxu0 0.0
    %9124 = vmatmul.mubr.f32.gmra.mxu0 %v9013
    %v9125 = vpop.f32.mrf.mxu0
    %v9126 = vadd.f32 0.0, %v9125
    %v9127 = vpop.f32.mrf.mxu0
    %9128 = vmatprep.mubr.f32.mxu0 0.0
    %9129 = vmatmul.mubr.f32.gmra.mxu0 %v9014
    %v9130 = vpop.f32.mrf.mxu0
    %v9131 = vadd.f32 0.0, %v9130
    %v9132 = vpop.f32.mrf.mxu0
    %9133 = vmatprep.mubr.f32.mxu0 0.0
    %9134 = vmatmul.mubr.f32.gmra.mxu0 %v9015
    %v9135 = vpop.f32.mrf.mxu0
    %v9136 = vadd.f32 0.0, %v9135
    %v9137 = vpop.f32.mrf.mxu0
    %9138 = vmatprep.mubr.f32.mxu0 0.0
    %9139 = vmatmul.mubr.f32.gmra.mxu0 %v9016
    %v9140 = vpop.f32.mrf.mxu0
    %v9141 = vadd.f32 0.0, %v9140
    %v9142 = vpop.f32.mrf.mxu0
    %9143 = vmatprep.mubr.f32.mxu0 0.0
    %9144 = vmatmul.mubr.f32.gmra.mxu0 %v9017
    %v9145 = vpop.f32.mrf.mxu0
    %v9146 = vadd.f32 0.0, %v9145
    %v9147 = vpop.f32.mrf.mxu0
    %9148 = vmatprep.mubr.f32.mxu0 0.0
    %9149 = vmatmul.mubr.f32.gmra.mxu0 %v9018
    %v9150 = vpop.f32.mrf.mxu0
    %v9151 = vadd.f32 0.0, %v9150
    %v9152 = vpop.f32.mrf.mxu0
    %9153 = vmatprep.mubr.f32.mxu0 0.0
    %9154 = vmatmul.mubr.f32.gmra.mxu0 %v9019
    %v9155 = vpop.f32.mrf.mxu0
    %v9156 = vadd.f32 0.0, %v9155
    %v9157 = vpop.f32.mrf.mxu0
    %9158 = vmatprep.mubr.f32.mxu0 0.0
    %9159 = vmatmul.mubr.f32.gmra.mxu0 %v9020
    %v9160 = vpop.f32.mrf.mxu0
    %v9161 = vadd.f32 0.0, %v9160
    %v9162 = vpop.f32.mrf.mxu0
    %9163 = vmatprep.mubr.f32.mxu0 0.0
    %9164 = vmatmul.mubr.f32.gmra.mxu0 %v9021
    %v9165 = vpop.f32.mrf.mxu0
    %v9166 = vadd.f32 0.0, %v9165
    %v9167 = vpop.f32.mrf.mxu0
    %9168 = vdwg.mxu0
    %v9169 = vadd.f32 %v8996, %v9106
    %v9170 = vadd.f32 %v8997, %v9111
    %v9171 = vadd.f32 %v8998, %v9116
    %v9172 = vadd.f32 %v8999, %v9121
    %v9173 = vadd.f32 %v9000, %v9126
    %v9174 = vadd.f32 %v9001, %v9131
    %v9175 = vadd.f32 %v9002, %v9136
    %v9176 = vadd.f32 %v9003, %v9141
    %v9177 = vadd.f32 %v9004, %v9146
    %v9178 = vadd.f32 %v9005, %v9151
    %v9179 = vadd.f32 %v9006, %v9156
    %v9180 = vadd.f32 %v9007, %v9161
    %v9181 = vadd.f32 %v9008, %v9166
    %v9182 = vld [vmem:[#allocation3 + $0x11] sm:$0xff]
    %v9183 = vld [vmem:[#allocation3 + $0x19] sm:$0xff]
    %v9184 = vld [vmem:[#allocation3 + $0x21] sm:$0xff]
    %v9185 = vld [vmem:[#allocation3 + $0x29] sm:$0xff]
    %v9186 = vld [vmem:[#allocation3 + $0x31] sm:$0xff]
    %v9187 = vld [vmem:[#allocation3 + $0x39] sm:$0xff]
    %v9188 = vld [vmem:[#allocation3 + $0x41] sm:$0xff]
    %v9189 = vld [vmem:[#allocation3 + $0x49] sm:$0xff]
    %v9190 = vld [vmem:[#allocation3 + $0x51] sm:$0xff]
    %v9191 = vld [vmem:[#allocation3 + $0x59] sm:$0xff]
    %v9192 = vld [vmem:[#allocation3 + $0x61] sm:$0xff]
    %v9193 = vld [vmem:[#allocation3 + $0x69] sm:$0xff]
    %v9194 = vld [vmem:[#allocation3 + $0x71] sm:$0xff]
    %s9195 = scalar_lea.vmem [#allocation16], 512
    %v9196 = vld [vmem:[%s9195] sm:$0xff]
    %v9197 = vld [vmem:[%s9195 + $0x8] sm:$0xff]
    %v9198 = vld [vmem:[%s9195 + $0x10] sm:$0xff]
    %v9199 = vld [vmem:[%s9195 + $0x18] sm:$0xff]
    %v9200 = vld [vmem:[%s9195 + $0x20] sm:$0xff]
    %v9201 = vld [vmem:[%s9195 + $0x28] sm:$0xff]
    %v9202 = vld [vmem:[%s9195 + $0x30] sm:$0xff]
    %v9203 = vld [vmem:[%s9195 + $0x38] sm:$0xff]
    %v9204 = vld [vmem:[%s9195 + $0x40] sm:$0xff]
    %v9205 = vld [vmem:[%s9195 + $0x48] sm:$0xff]
    %v9206 = vld [vmem:[%s9195 + $0x50] sm:$0xff]
    %v9207 = vld [vmem:[%s9195 + $0x58] sm:$0xff]
    %v9208 = vld [vmem:[%s9195 + $0x60] sm:$0xff]
    %v9209 = vld [vmem:[%s9195 + $0x68] sm:$0xff]
    %v9210 = vld [vmem:[%s9195 + $0x70] sm:$0xff]
    %v9211 = vld [vmem:[%s9195 + $0x78] sm:$0xff]
    %9212 = vmatprep.subr.mxu0 0.0
    %9213 = vmatpush1.msra.mxu0 %v9211
    %9214 = vmatprep.subr.mxu0 0.0
    %9215 = vmatpush1.msra.mxu0 %v9210
    %9216 = vmatprep.subr.mxu0 0.0
    %9217 = vmatpush1.msra.mxu0 %v9209
    %9218 = vmatprep.subr.mxu0 0.0
    %9219 = vmatpush1.msra.mxu0 %v9208
    %9220 = vmatprep.subr.mxu0 0.0
    %9221 = vmatpush1.msra.mxu0 %v9207
    %9222 = vmatprep.subr.mxu0 0.0
    %9223 = vmatpush1.msra.mxu0 %v9206
    %9224 = vmatprep.subr.mxu0 0.0
    %9225 = vmatpush1.msra.mxu0 %v9205
    %9226 = vmatprep.subr.mxu0 0.0
    %9227 = vmatpush1.msra.mxu0 %v9204
    %9228 = vmatprep.subr.mxu0 0.0
    %9229 = vmatpush1.msra.mxu0 %v9203
    %9230 = vmatprep.subr.mxu0 0.0
    %9231 = vmatpush1.msra.mxu0 %v9202
    %9232 = vmatprep.subr.mxu0 0.0
    %9233 = vmatpush1.msra.mxu0 %v9201
    %9234 = vmatprep.subr.mxu0 0.0
    %9235 = vmatpush1.msra.mxu0 %v9200
    %9236 = vmatprep.subr.mxu0 0.0
    %9237 = vmatpush1.msra.mxu0 %v9199
    %9238 = vmatprep.subr.mxu0 0.0
    %9239 = vmatpush1.msra.mxu0 %v9198
    %9240 = vmatprep.subr.mxu0 0.0
    %9241 = vmatpush1.msra.mxu0 %v9197
    %9242 = vmatprep.subr.mxu0 0.0
    %9243 = vmatpush1.msra.mxu0 %v9196
    %9244 = vmatprep.subr.mxu0 0.0
    %9245 = vmatpush2.msra.mxu0 0.0
    %9246 = vmatprep.subr.mxu0 0.0
    %9247 = vmatpush2.msra.mxu0 0.0
    %9248 = vmatprep.subr.mxu0 0.0
    %9249 = vmatpush2.msra.mxu0 0.0
    %9250 = vmatprep.subr.mxu0 0.0
    %9251 = vmatpush2.msra.mxu0 0.0
    %9252 = vmatprep.subr.mxu0 0.0
    %9253 = vmatpush2.msra.mxu0 0.0
    %9254 = vmatprep.subr.mxu0 0.0
    %9255 = vmatpush2.msra.mxu0 0.0
    %9256 = vmatprep.subr.mxu0 0.0
    %9257 = vmatpush2.msra.mxu0 0.0
    %9258 = vmatprep.subr.mxu0 0.0
    %9259 = vmatpush2.msra.mxu0 0.0
    %9260 = vmatprep.subr.mxu0 0.0
    %9261 = vmatpush2.msra.mxu0 0.0
    %9262 = vmatprep.subr.mxu0 0.0
    %9263 = vmatpush2.msra.mxu0 0.0
    %9264 = vmatprep.subr.mxu0 0.0
    %9265 = vmatpush2.msra.mxu0 0.0
    %9266 = vmatprep.subr.mxu0 0.0
    %9267 = vmatpush2.msra.mxu0 0.0
    %9268 = vmatprep.subr.mxu0 0.0
    %9269 = vmatpush2.msra.mxu0 0.0
    %9270 = vmatprep.subr.mxu0 0.0
    %9271 = vmatpush2.msra.mxu0 0.0
    %9272 = vmatprep.subr.mxu0 0.0
    %9273 = vmatpush2.msra.mxu0 0.0
    %9274 = vmatprep.subr.mxu0 0.0
    %9275 = vmatpush2.msra.mxu0 0.0
    %9276 = vmatprep.mubr.f32.mxu0 0.0
    %9277 = vmatmul.mubr.f32.gmra.mxu0 %v9182
    %v9278 = vpop.f32.mrf.mxu0
    %v9279 = vadd.f32 0.0, %v9278
    %v9280 = vpop.f32.mrf.mxu0
    %9281 = vmatprep.mubr.f32.mxu0 0.0
    %9282 = vmatmul.mubr.f32.gmra.mxu0 %v9183
    %v9283 = vpop.f32.mrf.mxu0
    %v9284 = vadd.f32 0.0, %v9283
    %v9285 = vpop.f32.mrf.mxu0
    %9286 = vmatprep.mubr.f32.mxu0 0.0
    %9287 = vmatmul.mubr.f32.gmra.mxu0 %v9184
    %v9288 = vpop.f32.mrf.mxu0
    %v9289 = vadd.f32 0.0, %v9288
    %v9290 = vpop.f32.mrf.mxu0
    %9291 = vmatprep.mubr.f32.mxu0 0.0
    %9292 = vmatmul.mubr.f32.gmra.mxu0 %v9185
    %v9293 = vpop.f32.mrf.mxu0
    %v9294 = vadd.f32 0.0, %v9293
    %v9295 = vpop.f32.mrf.mxu0
    %9296 = vmatprep.mubr.f32.mxu0 0.0
    %9297 = vmatmul.mubr.f32.gmra.mxu0 %v9186
    %v9298 = vpop.f32.mrf.mxu0
    %v9299 = vadd.f32 0.0, %v9298
    %v9300 = vpop.f32.mrf.mxu0
    %9301 = vmatprep.mubr.f32.mxu0 0.0
    %9302 = vmatmul.mubr.f32.gmra.mxu0 %v9187
    %v9303 = vpop.f32.mrf.mxu0
    %v9304 = vadd.f32 0.0, %v9303
    %v9305 = vpop.f32.mrf.mxu0
    %9306 = vmatprep.mubr.f32.mxu0 0.0
    %9307 = vmatmul.mubr.f32.gmra.mxu0 %v9188
    %v9308 = vpop.f32.mrf.mxu0
    %v9309 = vadd.f32 0.0, %v9308
    %v9310 = vpop.f32.mrf.mxu0
    %9311 = vmatprep.mubr.f32.mxu0 0.0
    %9312 = vmatmul.mubr.f32.gmra.mxu0 %v9189
    %v9313 = vpop.f32.mrf.mxu0
    %v9314 = vadd.f32 0.0, %v9313
    %v9315 = vpop.f32.mrf.mxu0
    %9316 = vmatprep.mubr.f32.mxu0 0.0
    %9317 = vmatmul.mubr.f32.gmra.mxu0 %v9190
    %v9318 = vpop.f32.mrf.mxu0
    %v9319 = vadd.f32 0.0, %v9318
    %v9320 = vpop.f32.mrf.mxu0
    %9321 = vmatprep.mubr.f32.mxu0 0.0
    %9322 = vmatmul.mubr.f32.gmra.mxu0 %v9191
    %v9323 = vpop.f32.mrf.mxu0
    %v9324 = vadd.f32 0.0, %v9323
    %v9325 = vpop.f32.mrf.mxu0
    %9326 = vmatprep.mubr.f32.mxu0 0.0
    %9327 = vmatmul.mubr.f32.gmra.mxu0 %v9192
    %v9328 = vpop.f32.mrf.mxu0
    %v9329 = vadd.f32 0.0, %v9328
    %v9330 = vpop.f32.mrf.mxu0
    %9331 = vmatprep.mubr.f32.mxu0 0.0
    %9332 = vmatmul.mubr.f32.gmra.mxu0 %v9193
    %v9333 = vpop.f32.mrf.mxu0
    %v9334 = vadd.f32 0.0, %v9333
    %v9335 = vpop.f32.mrf.mxu0
    %9336 = vmatprep.mubr.f32.mxu0 0.0
    %9337 = vmatmul.mubr.f32.gmra.mxu0 %v9194
    %v9338 = vpop.f32.mrf.mxu0
    %v9339 = vadd.f32 0.0, %v9338
    %v9340 = vpop.f32.mrf.mxu0
    %9341 = vdwg.mxu0
    %v9342 = vadd.f32 %v9169, %v9279
    %v9343 = vadd.f32 %v9170, %v9284
    %v9344 = vadd.f32 %v9171, %v9289
    %v9345 = vadd.f32 %v9172, %v9294
    %v9346 = vadd.f32 %v9173, %v9299
    %v9347 = vadd.f32 %v9174, %v9304
    %v9348 = vadd.f32 %v9175, %v9309
    %v9349 = vadd.f32 %v9176, %v9314
    %v9350 = vadd.f32 %v9177, %v9319
    %v9351 = vadd.f32 %v9178, %v9324
    %v9352 = vadd.f32 %v9179, %v9329
    %v9353 = vadd.f32 %v9180, %v9334
    %v9354 = vadd.f32 %v9181, %v9339
    %v9355 = vld [vmem:[#allocation3 + $0x12] sm:$0xff]
    %v9356 = vld [vmem:[#allocation3 + $0x1a] sm:$0xff]
    %v9357 = vld [vmem:[#allocation3 + $0x22] sm:$0xff]
    %v9358 = vld [vmem:[#allocation3 + $0x2a] sm:$0xff]
    %v9359 = vld [vmem:[#allocation3 + $0x32] sm:$0xff]
    %v9360 = vld [vmem:[#allocation3 + $0x3a] sm:$0xff]
    %v9361 = vld [vmem:[#allocation3 + $0x42] sm:$0xff]
    %v9362 = vld [vmem:[#allocation3 + $0x4a] sm:$0xff]
    %v9363 = vld [vmem:[#allocation3 + $0x52] sm:$0xff]
    %v9364 = vld [vmem:[#allocation3 + $0x5a] sm:$0xff]
    %v9365 = vld [vmem:[#allocation3 + $0x62] sm:$0xff]
    %v9366 = vld [vmem:[#allocation3 + $0x6a] sm:$0xff]
    %v9367 = vld [vmem:[#allocation3 + $0x72] sm:$0xff]
    %s9368 = scalar_lea.vmem [#allocation16], 640
    %v9369 = vld [vmem:[%s9368] sm:$0xff]
    %v9370 = vld [vmem:[%s9368 + $0x8] sm:$0xff]
    %v9371 = vld [vmem:[%s9368 + $0x10] sm:$0xff]
    %v9372 = vld [vmem:[%s9368 + $0x18] sm:$0xff]
    %v9373 = vld [vmem:[%s9368 + $0x20] sm:$0xff]
    %v9374 = vld [vmem:[%s9368 + $0x28] sm:$0xff]
    %v9375 = vld [vmem:[%s9368 + $0x30] sm:$0xff]
    %v9376 = vld [vmem:[%s9368 + $0x38] sm:$0xff]
    %v9377 = vld [vmem:[%s9368 + $0x40] sm:$0xff]
    %v9378 = vld [vmem:[%s9368 + $0x48] sm:$0xff]
    %v9379 = vld [vmem:[%s9368 + $0x50] sm:$0xff]
    %v9380 = vld [vmem:[%s9368 + $0x58] sm:$0xff]
    %v9381 = vld [vmem:[%s9368 + $0x60] sm:$0xff]
    %v9382 = vld [vmem:[%s9368 + $0x68] sm:$0xff]
    %v9383 = vld [vmem:[%s9368 + $0x70] sm:$0xff]
    %v9384 = vld [vmem:[%s9368 + $0x78] sm:$0xff]
    %9385 = vmatprep.subr.mxu0 0.0
    %9386 = vmatpush1.msra.mxu0 %v9384
    %9387 = vmatprep.subr.mxu0 0.0
    %9388 = vmatpush1.msra.mxu0 %v9383
    %9389 = vmatprep.subr.mxu0 0.0
    %9390 = vmatpush1.msra.mxu0 %v9382
    %9391 = vmatprep.subr.mxu0 0.0
    %9392 = vmatpush1.msra.mxu0 %v9381
    %9393 = vmatprep.subr.mxu0 0.0
    %9394 = vmatpush1.msra.mxu0 %v9380
    %9395 = vmatprep.subr.mxu0 0.0
    %9396 = vmatpush1.msra.mxu0 %v9379
    %9397 = vmatprep.subr.mxu0 0.0
    %9398 = vmatpush1.msra.mxu0 %v9378
    %9399 = vmatprep.subr.mxu0 0.0
    %9400 = vmatpush1.msra.mxu0 %v9377
    %9401 = vmatprep.subr.mxu0 0.0
    %9402 = vmatpush1.msra.mxu0 %v9376
    %9403 = vmatprep.subr.mxu0 0.0
    %9404 = vmatpush1.msra.mxu0 %v9375
    %9405 = vmatprep.subr.mxu0 0.0
    %9406 = vmatpush1.msra.mxu0 %v9374
    %9407 = vmatprep.subr.mxu0 0.0
    %9408 = vmatpush1.msra.mxu0 %v9373
    %9409 = vmatprep.subr.mxu0 0.0
    %9410 = vmatpush1.msra.mxu0 %v9372
    %9411 = vmatprep.subr.mxu0 0.0
    %9412 = vmatpush1.msra.mxu0 %v9371
    %9413 = vmatprep.subr.mxu0 0.0
    %9414 = vmatpush1.msra.mxu0 %v9370
    %9415 = vmatprep.subr.mxu0 0.0
    %9416 = vmatpush1.msra.mxu0 %v9369
    %9417 = vmatprep.subr.mxu0 0.0
    %9418 = vmatpush2.msra.mxu0 0.0
    %9419 = vmatprep.subr.mxu0 0.0
    %9420 = vmatpush2.msra.mxu0 0.0
    %9421 = vmatprep.subr.mxu0 0.0
    %9422 = vmatpush2.msra.mxu0 0.0
    %9423 = vmatprep.subr.mxu0 0.0
    %9424 = vmatpush2.msra.mxu0 0.0
    %9425 = vmatprep.subr.mxu0 0.0
    %9426 = vmatpush2.msra.mxu0 0.0
    %9427 = vmatprep.subr.mxu0 0.0
    %9428 = vmatpush2.msra.mxu0 0.0
    %9429 = vmatprep.subr.mxu0 0.0
    %9430 = vmatpush2.msra.mxu0 0.0
    %9431 = vmatprep.subr.mxu0 0.0
    %9432 = vmatpush2.msra.mxu0 0.0
    %9433 = vmatprep.subr.mxu0 0.0
    %9434 = vmatpush2.msra.mxu0 0.0
    %9435 = vmatprep.subr.mxu0 0.0
    %9436 = vmatpush2.msra.mxu0 0.0
    %9437 = vmatprep.subr.mxu0 0.0
    %9438 = vmatpush2.msra.mxu0 0.0
    %9439 = vmatprep.subr.mxu0 0.0
    %9440 = vmatpush2.msra.mxu0 0.0
    %9441 = vmatprep.subr.mxu0 0.0
    %9442 = vmatpush2.msra.mxu0 0.0
    %9443 = vmatprep.subr.mxu0 0.0
    %9444 = vmatpush2.msra.mxu0 0.0
    %9445 = vmatprep.subr.mxu0 0.0
    %9446 = vmatpush2.msra.mxu0 0.0
    %9447 = vmatprep.subr.mxu0 0.0
    %9448 = vmatpush2.msra.mxu0 0.0
    %9449 = vmatprep.mubr.f32.mxu0 0.0
    %9450 = vmatmul.mubr.f32.gmra.mxu0 %v9355
    %v9451 = vpop.f32.mrf.mxu0
    %v9452 = vadd.f32 0.0, %v9451
    %v9453 = vpop.f32.mrf.mxu0
    %9454 = vmatprep.mubr.f32.mxu0 0.0
    %9455 = vmatmul.mubr.f32.gmra.mxu0 %v9356
    %v9456 = vpop.f32.mrf.mxu0
    %v9457 = vadd.f32 0.0, %v9456
    %v9458 = vpop.f32.mrf.mxu0
    %9459 = vmatprep.mubr.f32.mxu0 0.0
    %9460 = vmatmul.mubr.f32.gmra.mxu0 %v9357
    %v9461 = vpop.f32.mrf.mxu0
    %v9462 = vadd.f32 0.0, %v9461
    %v9463 = vpop.f32.mrf.mxu0
    %9464 = vmatprep.mubr.f32.mxu0 0.0
    %9465 = vmatmul.mubr.f32.gmra.mxu0 %v9358
    %v9466 = vpop.f32.mrf.mxu0
    %v9467 = vadd.f32 0.0, %v9466
    %v9468 = vpop.f32.mrf.mxu0
    %9469 = vmatprep.mubr.f32.mxu0 0.0
    %9470 = vmatmul.mubr.f32.gmra.mxu0 %v9359
    %v9471 = vpop.f32.mrf.mxu0
    %v9472 = vadd.f32 0.0, %v9471
    %v9473 = vpop.f32.mrf.mxu0
    %9474 = vmatprep.mubr.f32.mxu0 0.0
    %9475 = vmatmul.mubr.f32.gmra.mxu0 %v9360
    %v9476 = vpop.f32.mrf.mxu0
    %v9477 = vadd.f32 0.0, %v9476
    %v9478 = vpop.f32.mrf.mxu0
    %9479 = vmatprep.mubr.f32.mxu0 0.0
    %9480 = vmatmul.mubr.f32.gmra.mxu0 %v9361
    %v9481 = vpop.f32.mrf.mxu0
    %v9482 = vadd.f32 0.0, %v9481
    %v9483 = vpop.f32.mrf.mxu0
    %9484 = vmatprep.mubr.f32.mxu0 0.0
    %9485 = vmatmul.mubr.f32.gmra.mxu0 %v9362
    %v9486 = vpop.f32.mrf.mxu0
    %v9487 = vadd.f32 0.0, %v9486
    %v9488 = vpop.f32.mrf.mxu0
    %9489 = vmatprep.mubr.f32.mxu0 0.0
    %9490 = vmatmul.mubr.f32.gmra.mxu0 %v9363
    %v9491 = vpop.f32.mrf.mxu0
    %v9492 = vadd.f32 0.0, %v9491
    %v9493 = vpop.f32.mrf.mxu0
    %9494 = vmatprep.mubr.f32.mxu0 0.0
    %9495 = vmatmul.mubr.f32.gmra.mxu0 %v9364
    %v9496 = vpop.f32.mrf.mxu0
    %v9497 = vadd.f32 0.0, %v9496
    %v9498 = vpop.f32.mrf.mxu0
    %9499 = vmatprep.mubr.f32.mxu0 0.0
    %9500 = vmatmul.mubr.f32.gmra.mxu0 %v9365
    %v9501 = vpop.f32.mrf.mxu0
    %v9502 = vadd.f32 0.0, %v9501
    %v9503 = vpop.f32.mrf.mxu0
    %9504 = vmatprep.mubr.f32.mxu0 0.0
    %9505 = vmatmul.mubr.f32.gmra.mxu0 %v9366
    %v9506 = vpop.f32.mrf.mxu0
    %v9507 = vadd.f32 0.0, %v9506
    %v9508 = vpop.f32.mrf.mxu0
    %9509 = vmatprep.mubr.f32.mxu0 0.0
    %9510 = vmatmul.mubr.f32.gmra.mxu0 %v9367
    %v9511 = vpop.f32.mrf.mxu0
    %v9512 = vadd.f32 0.0, %v9511
    %v9513 = vpop.f32.mrf.mxu0
    %9514 = vdwg.mxu0
    %v9515 = vadd.f32 %v9342, %v9452
    %v9516 = vadd.f32 %v9343, %v9457
    %v9517 = vadd.f32 %v9344, %v9462
    %v9518 = vadd.f32 %v9345, %v9467
    %v9519 = vadd.f32 %v9346, %v9472
    %v9520 = vadd.f32 %v9347, %v9477
    %v9521 = vadd.f32 %v9348, %v9482
    %v9522 = vadd.f32 %v9349, %v9487
    %v9523 = vadd.f32 %v9350, %v9492
    %v9524 = vadd.f32 %v9351, %v9497
    %v9525 = vadd.f32 %v9352, %v9502
    %v9526 = vadd.f32 %v9353, %v9507
    %v9527 = vadd.f32 %v9354, %v9512
    %v9528 = vld [vmem:[#allocation3 + $0x13] sm:$0xff]
    %v9529 = vld [vmem:[#allocation3 + $0x1b] sm:$0xff]
    %v9530 = vld [vmem:[#allocation3 + $0x23] sm:$0xff]
    %v9531 = vld [vmem:[#allocation3 + $0x2b] sm:$0xff]
    %v9532 = vld [vmem:[#allocation3 + $0x33] sm:$0xff]
    %v9533 = vld [vmem:[#allocation3 + $0x3b] sm:$0xff]
    %v9534 = vld [vmem:[#allocation3 + $0x43] sm:$0xff]
    %v9535 = vld [vmem:[#allocation3 + $0x4b] sm:$0xff]
    %v9536 = vld [vmem:[#allocation3 + $0x53] sm:$0xff]
    %v9537 = vld [vmem:[#allocation3 + $0x5b] sm:$0xff]
    %v9538 = vld [vmem:[#allocation3 + $0x63] sm:$0xff]
    %v9539 = vld [vmem:[#allocation3 + $0x6b] sm:$0xff]
    %v9540 = vld [vmem:[#allocation3 + $0x73] sm:$0xff]
    %s9541 = scalar_lea.vmem [#allocation16], 768
    %v9542 = vld [vmem:[%s9541] sm:$0xff]
    %v9543 = vld [vmem:[%s9541 + $0x8] sm:$0xff]
    %v9544 = vld [vmem:[%s9541 + $0x10] sm:$0xff]
    %v9545 = vld [vmem:[%s9541 + $0x18] sm:$0xff]
    %v9546 = vld [vmem:[%s9541 + $0x20] sm:$0xff]
    %v9547 = vld [vmem:[%s9541 + $0x28] sm:$0xff]
    %v9548 = vld [vmem:[%s9541 + $0x30] sm:$0xff]
    %v9549 = vld [vmem:[%s9541 + $0x38] sm:$0xff]
    %v9550 = vld [vmem:[%s9541 + $0x40] sm:$0xff]
    %v9551 = vld [vmem:[%s9541 + $0x48] sm:$0xff]
    %v9552 = vld [vmem:[%s9541 + $0x50] sm:$0xff]
    %v9553 = vld [vmem:[%s9541 + $0x58] sm:$0xff]
    %v9554 = vld [vmem:[%s9541 + $0x60] sm:$0xff]
    %v9555 = vld [vmem:[%s9541 + $0x68] sm:$0xff]
    %v9556 = vld [vmem:[%s9541 + $0x70] sm:$0xff]
    %v9557 = vld [vmem:[%s9541 + $0x78] sm:$0xff]
    %9558 = vmatprep.subr.mxu0 0.0
    %9559 = vmatpush1.msra.mxu0 %v9557
    %9560 = vmatprep.subr.mxu0 0.0
    %9561 = vmatpush1.msra.mxu0 %v9556
    %9562 = vmatprep.subr.mxu0 0.0
    %9563 = vmatpush1.msra.mxu0 %v9555
    %9564 = vmatprep.subr.mxu0 0.0
    %9565 = vmatpush1.msra.mxu0 %v9554
    %9566 = vmatprep.subr.mxu0 0.0
    %9567 = vmatpush1.msra.mxu0 %v9553
    %9568 = vmatprep.subr.mxu0 0.0
    %9569 = vmatpush1.msra.mxu0 %v9552
    %9570 = vmatprep.subr.mxu0 0.0
    %9571 = vmatpush1.msra.mxu0 %v9551
    %9572 = vmatprep.subr.mxu0 0.0
    %9573 = vmatpush1.msra.mxu0 %v9550
    %9574 = vmatprep.subr.mxu0 0.0
    %9575 = vmatpush1.msra.mxu0 %v9549
    %9576 = vmatprep.subr.mxu0 0.0
    %9577 = vmatpush1.msra.mxu0 %v9548
    %9578 = vmatprep.subr.mxu0 0.0
    %9579 = vmatpush1.msra.mxu0 %v9547
    %9580 = vmatprep.subr.mxu0 0.0
    %9581 = vmatpush1.msra.mxu0 %v9546
    %9582 = vmatprep.subr.mxu0 0.0
    %9583 = vmatpush1.msra.mxu0 %v9545
    %9584 = vmatprep.subr.mxu0 0.0
    %9585 = vmatpush1.msra.mxu0 %v9544
    %9586 = vmatprep.subr.mxu0 0.0
    %9587 = vmatpush1.msra.mxu0 %v9543
    %9588 = vmatprep.subr.mxu0 0.0
    %9589 = vmatpush1.msra.mxu0 %v9542
    %9590 = vmatprep.subr.mxu0 0.0
    %9591 = vmatpush2.msra.mxu0 0.0
    %9592 = vmatprep.subr.mxu0 0.0
    %9593 = vmatpush2.msra.mxu0 0.0
    %9594 = vmatprep.subr.mxu0 0.0
    %9595 = vmatpush2.msra.mxu0 0.0
    %9596 = vmatprep.subr.mxu0 0.0
    %9597 = vmatpush2.msra.mxu0 0.0
    %9598 = vmatprep.subr.mxu0 0.0
    %9599 = vmatpush2.msra.mxu0 0.0
    %9600 = vmatprep.subr.mxu0 0.0
    %9601 = vmatpush2.msra.mxu0 0.0
    %9602 = vmatprep.subr.mxu0 0.0
    %9603 = vmatpush2.msra.mxu0 0.0
    %9604 = vmatprep.subr.mxu0 0.0
    %9605 = vmatpush2.msra.mxu0 0.0
    %9606 = vmatprep.subr.mxu0 0.0
    %9607 = vmatpush2.msra.mxu0 0.0
    %9608 = vmatprep.subr.mxu0 0.0
    %9609 = vmatpush2.msra.mxu0 0.0
    %9610 = vmatprep.subr.mxu0 0.0
    %9611 = vmatpush2.msra.mxu0 0.0
    %9612 = vmatprep.subr.mxu0 0.0
    %9613 = vmatpush2.msra.mxu0 0.0
    %9614 = vmatprep.subr.mxu0 0.0
    %9615 = vmatpush2.msra.mxu0 0.0
    %9616 = vmatprep.subr.mxu0 0.0
    %9617 = vmatpush2.msra.mxu0 0.0
    %9618 = vmatprep.subr.mxu0 0.0
    %9619 = vmatpush2.msra.mxu0 0.0
    %9620 = vmatprep.subr.mxu0 0.0
    %9621 = vmatpush2.msra.mxu0 0.0
    %9622 = vmatprep.mubr.f32.mxu0 0.0
    %9623 = vmatmul.mubr.f32.gmra.mxu0 %v9528
    %v9624 = vpop.f32.mrf.mxu0
    %v9625 = vadd.f32 0.0, %v9624
    %v9626 = vpop.f32.mrf.mxu0
    %9627 = vmatprep.mubr.f32.mxu0 0.0
    %9628 = vmatmul.mubr.f32.gmra.mxu0 %v9529
    %v9629 = vpop.f32.mrf.mxu0
    %v9630 = vadd.f32 0.0, %v9629
    %v9631 = vpop.f32.mrf.mxu0
    %9632 = vmatprep.mubr.f32.mxu0 0.0
    %9633 = vmatmul.mubr.f32.gmra.mxu0 %v9530
    %v9634 = vpop.f32.mrf.mxu0
    %v9635 = vadd.f32 0.0, %v9634
    %v9636 = vpop.f32.mrf.mxu0
    %9637 = vmatprep.mubr.f32.mxu0 0.0
    %9638 = vmatmul.mubr.f32.gmra.mxu0 %v9531
    %v9639 = vpop.f32.mrf.mxu0
    %v9640 = vadd.f32 0.0, %v9639
    %v9641 = vpop.f32.mrf.mxu0
    %9642 = vmatprep.mubr.f32.mxu0 0.0
    %9643 = vmatmul.mubr.f32.gmra.mxu0 %v9532
    %v9644 = vpop.f32.mrf.mxu0
    %v9645 = vadd.f32 0.0, %v9644
    %v9646 = vpop.f32.mrf.mxu0
    %9647 = vmatprep.mubr.f32.mxu0 0.0
    %9648 = vmatmul.mubr.f32.gmra.mxu0 %v9533
    %v9649 = vpop.f32.mrf.mxu0
    %v9650 = vadd.f32 0.0, %v9649
    %v9651 = vpop.f32.mrf.mxu0
    %9652 = vmatprep.mubr.f32.mxu0 0.0
    %9653 = vmatmul.mubr.f32.gmra.mxu0 %v9534
    %v9654 = vpop.f32.mrf.mxu0
    %v9655 = vadd.f32 0.0, %v9654
    %v9656 = vpop.f32.mrf.mxu0
    %9657 = vmatprep.mubr.f32.mxu0 0.0
    %9658 = vmatmul.mubr.f32.gmra.mxu0 %v9535
    %v9659 = vpop.f32.mrf.mxu0
    %v9660 = vadd.f32 0.0, %v9659
    %v9661 = vpop.f32.mrf.mxu0
    %9662 = vmatprep.mubr.f32.mxu0 0.0
    %9663 = vmatmul.mubr.f32.gmra.mxu0 %v9536
    %v9664 = vpop.f32.mrf.mxu0
    %v9665 = vadd.f32 0.0, %v9664
    %v9666 = vpop.f32.mrf.mxu0
    %9667 = vmatprep.mubr.f32.mxu0 0.0
    %9668 = vmatmul.mubr.f32.gmra.mxu0 %v9537
    %v9669 = vpop.f32.mrf.mxu0
    %v9670 = vadd.f32 0.0, %v9669
    %v9671 = vpop.f32.mrf.mxu0
    %9672 = vmatprep.mubr.f32.mxu0 0.0
    %9673 = vmatmul.mubr.f32.gmra.mxu0 %v9538
    %v9674 = vpop.f32.mrf.mxu0
    %v9675 = vadd.f32 0.0, %v9674
    %v9676 = vpop.f32.mrf.mxu0
    %9677 = vmatprep.mubr.f32.mxu0 0.0
    %9678 = vmatmul.mubr.f32.gmra.mxu0 %v9539
    %v9679 = vpop.f32.mrf.mxu0
    %v9680 = vadd.f32 0.0, %v9679
    %v9681 = vpop.f32.mrf.mxu0
    %9682 = vmatprep.mubr.f32.mxu0 0.0
    %9683 = vmatmul.mubr.f32.gmra.mxu0 %v9540
    %v9684 = vpop.f32.mrf.mxu0
    %v9685 = vadd.f32 0.0, %v9684
    %v9686 = vpop.f32.mrf.mxu0
    %9687 = vdwg.mxu0
    %v9688 = vadd.f32 %v9515, %v9625
    %v9689 = vadd.f32 %v9516, %v9630
    %v9690 = vadd.f32 %v9517, %v9635
    %v9691 = vadd.f32 %v9518, %v9640
    %v9692 = vadd.f32 %v9519, %v9645
    %v9693 = vadd.f32 %v9520, %v9650
    %v9694 = vadd.f32 %v9521, %v9655
    %v9695 = vadd.f32 %v9522, %v9660
    %v9696 = vadd.f32 %v9523, %v9665
    %v9697 = vadd.f32 %v9524, %v9670
    %v9698 = vadd.f32 %v9525, %v9675
    %v9699 = vadd.f32 %v9526, %v9680
    %v9700 = vadd.f32 %v9527, %v9685
    %v9701 = vld [vmem:[%s19] sm:$0x1]
    %v9703 = vlaneseq
    %v9704 = vshrl.u32 %v9703, 7
    %v9705 = vsub.s32 0, %v9704
    %v9706 = vrot.slane %v9701, %v9705
    %v9708 = vadd.f32 %v9688, %v9706
    %v9709 = vadd.f32 %v9689, %v9706
    %v9710 = vadd.f32 %v9690, %v9706
    %v9711 = vadd.f32 %v9691, %v9706
    %v9712 = vadd.f32 %v9692, %v9706
    %v9713 = vadd.f32 %v9693, %v9706
    %v9714 = vadd.f32 %v9694, %v9706
    %v9715 = vadd.f32 %v9695, %v9706
    %v9716 = vadd.f32 %v9696, %v9706
    %v9717 = vadd.f32 %v9697, %v9706
    %v9718 = vadd.f32 %v9698, %v9706
    %v9719 = vadd.f32 %v9699, %v9706
    %v9720 = vadd.f32 %v9700, %v9706
    %v9721 = vxor.u32 %v9708, 2147483648
    %v9722 = vxor.u32 %v9709, 2147483648
    %v9723 = vxor.u32 %v9710, 2147483648
    %v9724 = vxor.u32 %v9711, 2147483648
    %v9725 = vxor.u32 %v9712, 2147483648
    %v9726 = vxor.u32 %v9713, 2147483648
    %v9727 = vxor.u32 %v9714, 2147483648
    %v9728 = vxor.u32 %v9715, 2147483648
    %v9729 = vxor.u32 %v9716, 2147483648
    %v9730 = vxor.u32 %v9717, 2147483648
    %v9731 = vxor.u32 %v9718, 2147483648
    %v9732 = vxor.u32 %v9719, 2147483648
    %v9733 = vxor.u32 %v9720, 2147483648
    %v9734 = vmul.f32 %v9721, 1.442695
    %v9735 = vpow.pop %v9734
    %v9736 = vmul.f32 %v9722, 1.442695
    %v9737 = vpow.pop %v9736
    %v9738 = vmul.f32 %v9723, 1.442695
    %v9739 = vpow.pop %v9738
    %v9740 = vmul.f32 %v9724, 1.442695
    %v9741 = vpow.pop %v9740
    %v9742 = vmul.f32 %v9725, 1.442695
    %v9743 = vpow.pop %v9742
    %v9744 = vmul.f32 %v9726, 1.442695
    %v9745 = vpow.pop %v9744
    %v9746 = vmul.f32 %v9727, 1.442695
    %v9747 = vpow.pop %v9746
    %v9748 = vmul.f32 %v9728, 1.442695
    %v9749 = vpow.pop %v9748
    %v9750 = vmul.f32 %v9729, 1.442695
    %v9751 = vpow.pop %v9750
    %v9752 = vmul.f32 %v9730, 1.442695
    %v9753 = vpow.pop %v9752
    %v9754 = vmul.f32 %v9731, 1.442695
    %v9755 = vpow.pop %v9754
    %v9756 = vmul.f32 %v9732, 1.442695
    %v9757 = vpow.pop %v9756
    %v9758 = vmul.f32 %v9733, 1.442695
    %v9759 = vpow.pop %v9758
    %v9760 = vadd.f32 %v9735, 1.0
    %v9761 = vadd.f32 %v9737, 1.0
    %v9762 = vadd.f32 %v9739, 1.0
    %v9763 = vadd.f32 %v9741, 1.0
    %v9764 = vadd.f32 %v9743, 1.0
    %v9765 = vadd.f32 %v9745, 1.0
    %v9766 = vadd.f32 %v9747, 1.0
    %v9767 = vadd.f32 %v9749, 1.0
    %v9768 = vadd.f32 %v9751, 1.0
    %v9769 = vadd.f32 %v9753, 1.0
    %v9770 = vadd.f32 %v9755, 1.0
    %v9771 = vadd.f32 %v9757, 1.0
    %v9772 = vadd.f32 %v9759, 1.0
    %v9773 = vrcp.pop %v9760
    %v9774 = vmul.f32 1.0, %v9773
    %v9775 = vrcp.pop %v9761
    %v9776 = vmul.f32 1.0, %v9775
    %v9777 = vrcp.pop %v9762
    %v9778 = vmul.f32 1.0, %v9777
    %v9779 = vrcp.pop %v9763
    %v9780 = vmul.f32 1.0, %v9779
    %v9781 = vrcp.pop %v9764
    %v9782 = vmul.f32 1.0, %v9781
    %v9783 = vrcp.pop %v9765
    %v9784 = vmul.f32 1.0, %v9783
    %v9785 = vrcp.pop %v9766
    %v9786 = vmul.f32 1.0, %v9785
    %v9787 = vrcp.pop %v9767
    %v9788 = vmul.f32 1.0, %v9787
    %v9789 = vrcp.pop %v9768
    %v9790 = vmul.f32 1.0, %v9789
    %v9791 = vrcp.pop %v9769
    %v9792 = vmul.f32 1.0, %v9791
    %v9793 = vrcp.pop %v9770
    %v9794 = vmul.f32 1.0, %v9793
    %v9795 = vrcp.pop %v9771
    %v9796 = vmul.f32 1.0, %v9795
    %v9797 = vrcp.pop %v9772
    %v9798 = vmul.f32 1.0, %v9797
    %9799 = vst [vmem:[%s20] sm:$0xff] %v9774
    %9800 = vst [vmem:[%s20 + $0x8] sm:$0xff] %v9776
    %9801 = vst [vmem:[%s20 + $0x10] sm:$0xff] %v9778
    %9802 = vst [vmem:[%s20 + $0x18] sm:$0xff] %v9780
    %9803 = vst [vmem:[%s20 + $0x20] sm:$0xff] %v9782
    %9804 = vst [vmem:[%s20 + $0x28] sm:$0xff] %v9784
    %9805 = vst [vmem:[%s20 + $0x30] sm:$0xff] %v9786
    %9806 = vst [vmem:[%s20 + $0x38] sm:$0xff] %v9788
    %9807 = vst [vmem:[%s20 + $0x40] sm:$0xff] %v9790
    %9808 = vst [vmem:[%s20 + $0x48] sm:$0xff] %v9792
    %9809 = vst [vmem:[%s20 + $0x50] sm:$0xff] %v9794
    %9810 = vst [vmem:[%s20 + $0x58] sm:$0xff] %v9796
    %9811 = vst [vmem:[%s20 + $0x60] sm:$0xff] %v9798
    // Predicated region
    $region114: #{_forward_batched.1} parent=1 // pred_check
      _
    $region115: #{_forward_batched.1} parent=1 // pred_check_branch
      %9813 = sbr.rel (0) target = $region117
    $region116: #{_forward_batched.1} parent=1 // pred_region
      _
    $region117: #{_forward_batched.1} parent=1 // pred_fallthru
      _
    // Predicated region
    $region118: #{_forward_batched.1} parent=1 // pred_check
      _
    $region119: #{_forward_batched.1} parent=1 // pred_check_branch
      %9815 = sbr.rel (0) target = $region121
    $region120: #{_forward_batched.1} parent=1 // pred_region
      _
    $region121: #{_forward_batched.1} parent=1 // pred_fallthru
      _
    %9816 = vsyncpa [#allocation6], 1
    %9817 = vsyncpa [#allocation8], 1
    %9818 = vsyncpa [#allocation11], 1
    %9819 = vsyncpa [#allocation14], 1
    %9820 = vsyncpa [#allocation17], 1

</llo_original>
